<compile_context>
chip_gen: v6e
topology: v6e:2x2x1
jax: 0.10.0
libtpu: 0.0.40
codegen_flags: <defaults>
</compile_context>

<pallas_src>
from functools import partial

import jax
import jax.numpy as jnp
from jax.experimental import pallas as pl
from jax.experimental.pallas import tpu as pltpu

H, W = 6, 7                 # Connect-4 board
Hp, Wp = H + 2, W + 2       # padded spatial dims
NPB = Hp * Wp               # 72 padded cells per batch element
EPS = 1e-5                  # BatchNorm eps


# --------------------------------------------------------------------------
# Pallas kernel (one grid step processes Bt batch elements)
# --------------------------------------------------------------------------
def make_kernel(Bt, width, depth):
    Npt = Bt * NPB

    def kernel(x_ref, mask_ref,
               w0_ref, b0_ref,
               wres_ref, bres_ref,
               whead_ref, bhead_ref,
               wpol_ref, bpol_ref, wv1_ref, bv1_ref, wv2_ref, bv2_ref,
               out_ref, packed_ref):
        mask = mask_ref[...]                       # (Npt, 1) 1.0 on interior cells

        def conv3x3(feat, w_packed, bias):
            # feat: (Npt, width) f32; w_packed: (9*width, width) bf16, BN scale
            # pre-folded.  Pack the 9 rolled taps side-by-side on the lane axis
            # (cast to bf16 at store time) so the whole conv is a single
            # K=9*width MXU matmul with f32 accumulation.
            # TODO(synk): on v5e A/B test replacing the rolls + lane-offset slab
            # stores with 9 accumulating K=width dots (1 vst slot / XLU bound).
            for dy in range(3):
                for dx in range(3):
                    s = (dy - 1) * Wp + (dx - 1)   # flat offset of this tap
                    shifted = feat if s == 0 else pltpu.roll(feat, (-s) % Npt, 0)
                    k = dy * 3 + dx
                    packed_ref[:, k * width:(k + 1) * width] = (
                        shifted.astype(jnp.bfloat16))
            acc = jnp.dot(packed_ref[...], w_packed,
                          preferred_element_type=jnp.float32)
            return acc + bias                      # conv-bias + BN fully folded

        # ---- conv block ----
        f = conv3x3(x_ref[...], w0_ref[...], b0_ref[...])
        f = jnp.maximum(f, 0.0) * mask

        # ---- residual tower ----
        # TODO(synk): at production width/depth, stream wres/bres over an
        # "arbitrary" grid axis (Buffered(2)) instead of keeping them resident.
        for d in range(depth):
            inp = f
            h = conv3x3(f, wres_ref[2 * d], bres_ref[2 * d])
            h = jnp.maximum(h, 0.0) * mask
            h = conv3x3(h, wres_ref[2 * d + 1], bres_ref[2 * d + 1])
            f = jnp.maximum(h + inp, 0.0) * mask

        # ---- fused policy/value 1x1 conv (+folded BN) + ReLU (f32 epilogue) ----
        # lanes [0:2] = policy channels, lane [2:3] = value channel
        pvf = jnp.dot(f, whead_ref[...], preferred_element_type=jnp.float32)
        pvf = jnp.maximum(pvf + bhead_ref[...], 0.0) * mask       # (Npt, 3)

        # ---- heads: per-batch reductions over the NPB cells (O(B), no selector)
        pvf3 = pvf.reshape(Bt, NPB, 3)                            # layout-free split
        p0 = pvf3[:, :, 0:1]                                      # (Bt, NPB, 1)
        p1 = pvf3[:, :, 1:2]
        pv = pvf3[:, :, 2:3]
        ypol = p0 * wpol_ref[0][None] + p1 * wpol_ref[1][None]    # (Bt, NPB, 128)
        pol = jnp.sum(ypol, axis=1) + bpol_ref[...]               # (Bt, 128)
        yval = pv * wv1_ref[...][None]                            # (Bt, NPB, 256)
        hid = jnp.maximum(jnp.sum(yval, axis=1) + bv1_ref[...], 0.0)   # (Bt, 256)
        val = jnp.tanh(jnp.dot(hid, wv2_ref[...],
                               preferred_element_type=jnp.float32) + bv2_ref[...])

        # Lane-dense (Bt, 128) output: lanes 0..6 = policy logits, lane 7 = value.
        lane = jax.lax.broadcasted_iota(jnp.int32, (1, 128), 1)
        out_ref[0] = pol + val * (lane == 7).astype(jnp.float32)

    return kernel


# --------------------------------------------------------------------------
# Deterministic parameter initialization (PyTorch-shaped)
# --------------------------------------------------------------------------
def init_params(key, width, depth):
    keys = iter(jax.random.split(key, 200))

    def nrm(shape, scale=0.1):
        return jax.random.normal(next(keys), shape, jnp.float32) * scale

    def bn_params(c):
        gamma = jax.random.uniform(next(keys), (c,), jnp.float32, 0.8, 1.2)
        beta = nrm((c,), 0.05)
        mean = nrm((c,), 0.05)
        var = jax.random.uniform(next(keys), (c,), jnp.float32, 0.5, 1.5)
        return gamma, beta, mean, var

    p = {}
    p['conv0_w'] = nrm((width, 2, 3, 3)); p['conv0_b'] = nrm((width,), 0.05)
    p['bn0'] = bn_params(width)
    p['res'] = []
    for _ in range(depth):
        blk = {}
        blk['wA'] = nrm((width, width, 3, 3)); blk['bA'] = nrm((width,), 0.05)
        blk['bnA'] = bn_params(width)
        blk['wB'] = nrm((width, width, 3, 3)); blk['bB'] = nrm((width,), 0.05)
        blk['bnB'] = bn_params(width)
        p['res'].append(blk)
    p['convp_w'] = nrm((2, width, 1, 1)); p['convp_b'] = nrm((2,), 0.05)
    p['bnp'] = bn_params(2)
    p['linp_w'] = nrm((7, 2 * H * W)); p['linp_b'] = nrm((7,), 0.05)
    p['convv_w'] = nrm((1, width, 1, 1)); p['convv_b'] = nrm((1,), 0.05)
    p['bnv'] = bn_params(1)
    p['linv1_w'] = nrm((256, H * W)); p['linv1_b'] = nrm((256,), 0.05)
    p['linv2_w'] = nrm((1, 256)); p['linv2_b'] = nrm((1,), 0.05)
    return p


# --------------------------------------------------------------------------
# Host-side packing: fold BN into weights, build kernel-layout arrays.
# Depends only on (params, width, depth) -> call ONCE per model and reuse.
# --------------------------------------------------------------------------
def fold_bn(conv_b, bn):
    gamma, beta, mean, var = bn
    scale = gamma / jnp.sqrt(var + EPS)
    bias = beta - mean * scale + conv_b * scale
    return scale, bias


def conv3x3_packed(w_pt, scale):
    # (Cout, Cin, 3, 3) -> (9*Cin, Cout) bf16, rows ordered (tap k = dy*3+dx, cin),
    # BN per-output-channel scale folded in.
    cout, cin = w_pt.shape[0], w_pt.shape[1]
    w = jnp.transpose(w_pt, (2, 3, 1, 0)).reshape(9 * cin, cout)
    return (w * scale[None, :]).astype(jnp.bfloat16)


def conv0_packed(w_pt, width, scale):
    # (width, 2, 3, 3) -> (9*width, width) bf16; cin padded 2 -> width with zeros.
    w = jnp.transpose(w_pt, (2, 3, 1, 0))                      # (3, 3, 2, width)
    w = jnp.pad(w, ((0, 0), (0, 0), (0, width - 2), (0, 0)))   # (3, 3, width, width)
    w = w.reshape(9 * width, width) * scale[None, :]
    return w.astype(jnp.bfloat16)


def prepare_args(p, width, depth):
    a = {}
    s0, b0 = fold_bn(p['conv0_b'], p['bn0'])
    a['w0'] = conv0_packed(p['conv0_w'], width, s0)
    a['b0'] = b0.reshape(1, width)

    wres, bres = [], []
    for blk in p['res']:
        sA, bA = fold_bn(blk['bA'], blk['bnA'])
        sB, bB = fold_bn(blk['bB'], blk['bnB'])
        wres += [conv3x3_packed(blk['wA'], sA), conv3x3_packed(blk['wB'], sB)]
        bres += [bA, bB]
    a['wres'] = jnp.stack(wres, axis=0)                        # (2d, 9*w, w) bf16
    a['bres'] = jnp.stack(bres).reshape(depth * 2, 1, width)

    # fused 1x1 head conv (BN scale folded): output lanes [0:2] policy, [2:3] value
    sp, bp = fold_bn(p['convp_b'], p['bnp'])
    sv, bv = fold_bn(p['convv_b'], p['bnv'])
    wp = p['convp_w'][:, :, 0, 0].T * sp[None, :]              # (width, 2)
    wv = p['convv_w'][:, :, 0, 0].T * sv[None, :]              # (width, 1)
    a['whead'] = jnp.concatenate([wp, wv], axis=1)             # (width, 3) f32
    a['bhead'] = jnp.concatenate([bp, bv]).reshape(1, 3)

    # policy linear (7, 2*6*7): per-channel (NPB, 128), border rows zero, UNTILED
    wpol = p['linp_w'].reshape(7, 2, H, W)
    wpol = jnp.transpose(wpol, (1, 2, 3, 0))                   # (2, H, W, 7)
    wpol = jnp.pad(wpol, ((0, 0), (1, 1), (1, 1), (0, 0)))     # (2, Hp, Wp, 7)
    wpol = wpol.reshape(2, NPB, 7)
    a['wpol'] = jnp.pad(wpol, ((0, 0), (0, 0), (0, 128 - 7)))  # (2, NPB, 128)
    a['bpol'] = jnp.pad(p['linp_b'].reshape(1, 7), ((0, 0), (0, 128 - 7)))

    # value linear 1 (256, 42): padded-spatial rows, UNTILED
    wv1 = p['linv1_w'].reshape(256, H, W)
    wv1 = jnp.transpose(wv1, (1, 2, 0))                        # (H, W, 256)
    a['wv1'] = jnp.pad(wv1, ((1, 1), (1, 1), (0, 0))).reshape(NPB, 256)
    a['bv1'] = p['linv1_b'].reshape(1, 256)
    a['wv2'] = p['linv2_w'].reshape(256, 1)
    a['bv2'] = p['linv2_b'].reshape(1, 1)
    return a


def to_kernel_layout(s, width):
    # (B, 2, 6, 7) NCHW -> (B*(H+2)*(W+2), width); spatial border AND channels
    # beyond 2 are zero-padded so every conv layer sees a uniform (Np, width) tile.
    x = jnp.transpose(s, (0, 2, 3, 1))
    x = jnp.pad(x, ((0, 0), (1, 1), (1, 1), (0, width - 2)))
    return x.reshape(-1, width).astype(jnp.float32)


def interior_mask(B):
    m = jnp.zeros((B, Hp, Wp), jnp.float32)
    m = m.at[:, 1:1 + H, 1:1 + W].set(1.0)
    return m.reshape(B * NPB, 1)


def _resident(arr):
    # Weight BlockSpec: full array, constant block index -> stays VMEM-resident
    # across the (parallel) batch grid without re-DMA.
    nd = arr.ndim
    return pl.BlockSpec(arr.shape, lambda i, nd=nd: (0,) * nd)


def _vmem_estimate_bytes(Bt, width, depth):
    Npt = Bt * NPB
    fixed = (2 * Npt * width * 4          # x block (double-buffered)
             + 2 * Npt * 4                # mask block
             + 2 * Bt * 128 * 4           # out block
             + Npt * 9 * width * 2        # packed-tap scratch (bf16)
             + (2 * depth + 1) * 9 * width * width * 2    # conv weights (bf16)
             + (2 * depth + 1) * width * 4                # conv biases
             + (width * 3 + 2 * NPB * 128 + NPB * 256
                + 256 + 128 + 256 + 4) * 4)               # head weights/biases
    live = 4 * Npt * width * 4 + Bt * NPB * (128 + 256) * 4   # activations + head tmp
    return fixed + live


# --------------------------------------------------------------------------
# Forward (jitted; packed weights are prepared once outside)
# --------------------------------------------------------------------------
@partial(jax.jit, static_argnames=("width", "depth", "Bt"))
def alpha_connect4_forward(s, packed, width, depth, Bt=8):
    a = packed
    B = s.shape[0]
    nt = pl.cdiv(B, Bt)
    B_pad = nt * Bt
    if B_pad != B:
        s = jnp.pad(s, ((0, B_pad - B), (0, 0), (0, 0), (0, 0)))

    x_flat = to_kernel_layout(s, width)            # (B_pad*NPB, width)
    mask = interior_mask(B_pad)                    # (B_pad*NPB, 1)
    Npt = Bt * NPB

    in_specs = [
        pl.BlockSpec((Npt, width), lambda i: (i, 0)),     # x
        pl.BlockSpec((Npt, 1), lambda i: (i, 0)),         # mask
        _resident(a['w0']), _resident(a['b0']),
        _resident(a['wres']), _resident(a['bres']),
        _resident(a['whead']), _resident(a['bhead']),
        _resident(a['wpol']), _resident(a['bpol']),
        _resident(a['wv1']), _resident(a['bv1']),
        _resident(a['wv2']), _resident(a['bv2']),
    ]
    out_specs = pl.BlockSpec((1, Bt, 128), lambda i: (i, 0, 0))

    est = _vmem_estimate_bytes(Bt, width, depth)
    cparams = pltpu.CompilerParams(
        dimension_semantics=("parallel",),
        vmem_limit_bytes=int(min(56 * 2**20, max(32 * 2**20, 2 * est))))

    out = pl.pallas_call(
        make_kernel(Bt, width, depth),
        grid=(nt,),
        out_shape=jax.ShapeDtypeStruct((nt, Bt, 128), jnp.float32),
        in_specs=in_specs,
        out_specs=out_specs,
        scratch_shapes=[pltpu.VMEM((Npt, 9 * width), jnp.bfloat16)],
        compiler_params=cparams,
    )(x_flat, mask, a['w0'], a['b0'], a['wres'], a['bres'],
      a['whead'], a['bhead'], a['wpol'], a['bpol'],
      a['wv1'], a['bv1'], a['wv2'], a['bv2'])

    out = out.reshape(B_pad, 128)
    return out[:B, 0:7], out[:B, 7:8]


# --------------------------------------------------------------------------
# Pure-JAX reference (eval-mode BN), used only as a sanity check
# --------------------------------------------------------------------------
def reference_forward(s, p):
    hi = jax.lax.Precision.HIGHEST

    def conv(x, w, b):
        out = jax.lax.conv_general_dilated(
            x, w, (1, 1), 'SAME',
            dimension_numbers=('NCHW', 'OIHW', 'NCHW'), precision=hi)
        return out + b[None, :, None, None]

    def bn(x, bnp):
        g, be, m, v = bnp
        return ((x - m[None, :, None, None]) /
                jnp.sqrt(v[None, :, None, None] + EPS) *
                g[None, :, None, None] + be[None, :, None, None])

    relu = lambda t: jnp.maximum(t, 0.0)
    f = relu(bn(conv(s, p['conv0_w'], p['conv0_b']), p['bn0']))
    for blk in p['res']:
        inp = f
        f = relu(bn(conv(f, blk['wA'], blk['bA']), blk['bnA']))
        f = bn(conv(f, blk['wB'], blk['bB']), blk['bnB'])
        f = relu(f + inp)
    pf = relu(bn(conv(f, p['convp_w'], p['convp_b']), p['bnp']))
    policy = jnp.dot(pf.reshape(pf.shape[0], -1), p['linp_w'].T, precision=hi) + p['linp_b']
    vf = relu(bn(conv(f, p['convv_w'], p['convv_b']), p['bnv']))
    h = relu(jnp.dot(vf.reshape(vf.shape[0], -1), p['linv1_w'].T, precision=hi) + p['linv1_b'])
    value = jnp.tanh(jnp.dot(h, p['linv2_w'].T, precision=hi) + p['linv2_b'])
    return policy, value


if __name__ == "__main__":
    width, depth = 32, 2
    B, Bt = 5, 2                       # B=5 exercises batch padding; grid=(3,)
    key = jax.random.PRNGKey(0)
    kp, kx = jax.random.split(key)
    params = init_params(kp, width, depth)
    s = jax.random.normal(kx, (B, 2, H, W), jnp.float32)

    packed = prepare_args(params, width, depth)     # hoisted: once per model
    policy, value = alpha_connect4_forward(s, packed, width=width, depth=depth, Bt=Bt)
    jax.block_until_ready((policy, value))

    ref_p, ref_v = reference_forward(s, params)
    dp = float(jnp.max(jnp.abs(policy - ref_p)))
    dv = float(jnp.max(jnp.abs(value - ref_v)))
    assert policy.shape == (B, 7) and value.shape == (B, 1)
    assert dp < 5e-2 and dv < 5e-2, (dp, dv)
    print("KERNEL_OK")
</pallas_src>

<mosaic_0001>
module attributes {stable_mosaic.version = 11 : i64} {
  func.func @kernel(%arg0: i32, %arg1: memref<144x32xf32, #tpu.memory_space<vmem>>, %arg2: memref<144x1xf32, #tpu.memory_space<vmem>>, %arg3: memref<288x32xbf16, #tpu.memory_space<vmem>>, %arg4: memref<1x32xf32, #tpu.memory_space<vmem>>, %arg5: memref<4x288x32xbf16, #tpu.memory_space<vmem>>, %arg6: memref<4x1x32xf32, #tpu.memory_space<vmem>>, %arg7: memref<32x3xf32, #tpu.memory_space<vmem>>, %arg8: memref<1x3xf32, #tpu.memory_space<vmem>>, %arg9: memref<2x72x128xf32, #tpu.memory_space<vmem>>, %arg10: memref<1x128xf32, #tpu.memory_space<vmem>>, %arg11: memref<72x256xf32, #tpu.memory_space<vmem>>, %arg12: memref<1x256xf32, #tpu.memory_space<vmem>>, %arg13: memref<256x1xf32, #tpu.memory_space<vmem>>, %arg14: memref<1x1xf32, #tpu.memory_space<vmem>>, %arg15: memref<1x2x128xf32, #tpu.memory_space<vmem>>, %arg16: memref<144x288xbf16, #tpu.memory_space<vmem>>) attributes {dimension_semantics = [#tpu.dimension_semantics<parallel>], iteration_bounds = array<i64: 3>, scalar_prefetch = 0 : i64, scratch_operands = 1 : i64, tpu.core_type = #tpu.core_type<tc>, window_params = [{transform_indices = @transform_0, window_bounds = array<i64: 144, 32>}, {transform_indices = @transform_1, window_bounds = array<i64: 144, 1>}, {pipeline_mode = #tpu.pipeline_mode<synchronous>, transform_indices = @transform_2, window_bounds = array<i64: 288, 32>}, {pipeline_mode = #tpu.pipeline_mode<synchronous>, transform_indices = @transform_3, window_bounds = array<i64: 1, 32>}, {pipeline_mode = #tpu.pipeline_mode<synchronous>, transform_indices = @transform_4, window_bounds = array<i64: 4, 288, 32>}, {pipeline_mode = #tpu.pipeline_mode<synchronous>, transform_indices = @transform_5, window_bounds = array<i64: 4, 1, 32>}, {pipeline_mode = #tpu.pipeline_mode<synchronous>, transform_indices = @transform_6, window_bounds = array<i64: 32, 3>}, {pipeline_mode = #tpu.pipeline_mode<synchronous>, transform_indices = @transform_7, window_bounds = array<i64: 1, 3>}, {pipeline_mode = #tpu.pipeline_mode<synchronous>, transform_indices = @transform_8, window_bounds = array<i64: 2, 72, 128>}, {pipeline_mode = #tpu.pipeline_mode<synchronous>, transform_indices = @transform_9, window_bounds = array<i64: 1, 128>}, {pipeline_mode = #tpu.pipeline_mode<synchronous>, transform_indices = @transform_10, window_bounds = array<i64: 72, 256>}, {pipeline_mode = #tpu.pipeline_mode<synchronous>, transform_indices = @transform_11, window_bounds = array<i64: 1, 256>}, {pipeline_mode = #tpu.pipeline_mode<synchronous>, transform_indices = @transform_12, window_bounds = array<i64: 256, 1>}, {pipeline_mode = #tpu.pipeline_mode<synchronous>, transform_indices = @transform_13, window_bounds = array<i64: 1, 1>}, {transform_indices = @transform_14, window_bounds = array<i64: 1, 2, 128>}]} {
    %c0 = arith.constant 0 : index
    %c0_0 = arith.constant 0 : index
    %0 = vector.load %arg2[%c0, %c0_0] : memref<144x1xf32, #tpu.memory_space<vmem>>, vector<144x1xf32>
    %c0_1 = arith.constant 0 : index
    %c0_2 = arith.constant 0 : index
    %1 = vector.load %arg1[%c0_1, %c0_2] : memref<144x32xf32, #tpu.memory_space<vmem>>, vector<144x32xf32>
    %c0_3 = arith.constant 0 : index
    %c0_4 = arith.constant 0 : index
    %2 = vector.load %arg3[%c0_3, %c0_4] : memref<288x32xbf16, #tpu.memory_space<vmem>>, vector<288x32xbf16>
    %c0_5 = arith.constant 0 : index
    %c0_6 = arith.constant 0 : index
    %3 = vector.load %arg4[%c0_5, %c0_6] : memref<1x32xf32, #tpu.memory_space<vmem>>, vector<1x32xf32>
    %c10_i32 = arith.constant 10 : i32
    %4 = tpu.dynamic_rotate %1 by %c10_i32 dim 0 : vector<144x32xf32>, i32 -> vector<144x32xf32>
    %5 = arith.truncf %4 : vector<144x32xf32> to vector<144x32xbf16>
    %c0_7 = arith.constant 0 : index
    %c0_8 = arith.constant 0 : index
    %6 = vector.load %arg16[%c0_7, %c0_8] : memref<144x288xbf16, #tpu.memory_space<vmem>>, vector<144x32xbf16>
    tpu.vector_store %arg16[%c0_7, %c0_8], %5 {strides = array<i32>} : memref<144x288xbf16, #tpu.memory_space<vmem>>, vector<144x32xbf16>,
    %c9_i32 = arith.constant 9 : i32
    %7 = tpu.dynamic_rotate %1 by %c9_i32 dim 0 : vector<144x32xf32>, i32 -> vector<144x32xf32>
    %8 = arith.truncf %7 : vector<144x32xf32> to vector<144x32xbf16>
    %c0_9 = arith.constant 0 : index
    %c32 = arith.constant 32 : index
    %9 = vector.load %arg16[%c0_9, %c32] : memref<144x288xbf16, #tpu.memory_space<vmem>>, vector<144x32xbf16>
    tpu.vector_store %arg16[%c0_9, %c32], %8 {strides = array<i32>} : memref<144x288xbf16, #tpu.memory_space<vmem>>, vector<144x32xbf16>,
    %c8_i32 = arith.constant 8 : i32
    %10 = tpu.dynamic_rotate %1 by %c8_i32 dim 0 : vector<144x32xf32>, i32 -> vector<144x32xf32>
    %11 = arith.truncf %10 : vector<144x32xf32> to vector<144x32xbf16>
    %c0_10 = arith.constant 0 : index
    %c64 = arith.constant 64 : index
    %12 = vector.load %arg16[%c0_10, %c64] : memref<144x288xbf16, #tpu.memory_space<vmem>>, vector<144x32xbf16>
    tpu.vector_store %arg16[%c0_10, %c64], %11 {strides = array<i32>} : memref<144x288xbf16, #tpu.memory_space<vmem>>, vector<144x32xbf16>,
    %c1_i32 = arith.constant 1 : i32
    %13 = tpu.dynamic_rotate %1 by %c1_i32 dim 0 : vector<144x32xf32>, i32 -> vector<144x32xf32>
    %14 = arith.truncf %13 : vector<144x32xf32> to vector<144x32xbf16>
    %c0_11 = arith.constant 0 : index
    %c96 = arith.constant 96 : index
    %15 = vector.load %arg16[%c0_11, %c96] : memref<144x288xbf16, #tpu.memory_space<vmem>>, vector<144x32xbf16>
    tpu.vector_store %arg16[%c0_11, %c96], %14 {strides = array<i32>} : memref<144x288xbf16, #tpu.memory_space<vmem>>, vector<144x32xbf16>,
    %16 = arith.truncf %1 : vector<144x32xf32> to vector<144x32xbf16>
    %c0_12 = arith.constant 0 : index
    %c128 = arith.constant 128 : index
    %17 = vector.load %arg16[%c0_12, %c128] : memref<144x288xbf16, #tpu.memory_space<vmem>>, vector<144x32xbf16>
    tpu.vector_store %arg16[%c0_12, %c128], %16 {strides = array<i32>} : memref<144x288xbf16, #tpu.memory_space<vmem>>, vector<144x32xbf16>,
    %c143_i32 = arith.constant 143 : i32
    %18 = tpu.dynamic_rotate %1 by %c143_i32 dim 0 : vector<144x32xf32>, i32 -> vector<144x32xf32>
    %19 = arith.truncf %18 : vector<144x32xf32> to vector<144x32xbf16>
    %c0_13 = arith.constant 0 : index
    %c160 = arith.constant 160 : index
    %20 = vector.load %arg16[%c0_13, %c160] : memref<144x288xbf16, #tpu.memory_space<vmem>>, vector<144x32xbf16>
    tpu.vector_store %arg16[%c0_13, %c160], %19 {strides = array<i32>} : memref<144x288xbf16, #tpu.memory_space<vmem>>, vector<144x32xbf16>,
    %c136_i32 = arith.constant 136 : i32
    %21 = tpu.dynamic_rotate %1 by %c136_i32 dim 0 : vector<144x32xf32>, i32 -> vector<144x32xf32>
    %22 = arith.truncf %21 : vector<144x32xf32> to vector<144x32xbf16>
    %c0_14 = arith.constant 0 : index
    %c192 = arith.constant 192 : index
    %23 = vector.load %arg16[%c0_14, %c192] : memref<144x288xbf16, #tpu.memory_space<vmem>>, vector<144x32xbf16>
    tpu.vector_store %arg16[%c0_14, %c192], %22 {strides = array<i32>} : memref<144x288xbf16, #tpu.memory_space<vmem>>, vector<144x32xbf16>,
    %c135_i32 = arith.constant 135 : i32
    %24 = tpu.dynamic_rotate %1 by %c135_i32 dim 0 : vector<144x32xf32>, i32 -> vector<144x32xf32>
    %25 = arith.truncf %24 : vector<144x32xf32> to vector<144x32xbf16>
    %c0_15 = arith.constant 0 : index
    %c224 = arith.constant 224 : index
    %26 = vector.load %arg16[%c0_15, %c224] : memref<144x288xbf16, #tpu.memory_space<vmem>>, vector<144x32xbf16>
    tpu.vector_store %arg16[%c0_15, %c224], %25 {strides = array<i32>} : memref<144x288xbf16, #tpu.memory_space<vmem>>, vector<144x32xbf16>,
    %c134_i32 = arith.constant 134 : i32
    %27 = tpu.dynamic_rotate %1 by %c134_i32 dim 0 : vector<144x32xf32>, i32 -> vector<144x32xf32>
    %28 = arith.truncf %27 : vector<144x32xf32> to vector<144x32xbf16>
    %c0_16 = arith.constant 0 : index
    %c256 = arith.constant 256 : index
    %29 = vector.load %arg16[%c0_16, %c256] : memref<144x288xbf16, #tpu.memory_space<vmem>>, vector<144x32xbf16>
    tpu.vector_store %arg16[%c0_16, %c256], %28 {strides = array<i32>} : memref<144x288xbf16, #tpu.memory_space<vmem>>, vector<144x32xbf16>,
    %c0_17 = arith.constant 0 : index
    %c0_18 = arith.constant 0 : index
    %30 = vector.load %arg16[%c0_17, %c0_18] : memref<144x288xbf16, #tpu.memory_space<vmem>>, vector<144x288xbf16>
    %cst = arith.constant dense<0.000000e+00> : vector<144x32xf32>
    %31 = tpu.matmul %30, %2, %cst {dimension_numbers = #tpu.dot_dimension_numbers<[1], [0], [0], [1], [0, 0, 1, 1], [], []>} : vector<144x288xbf16>, vector<288x32xbf16>, vector<144x32xf32> -> vector<144x32xf32>
    %32 = vector.broadcast %3 : vector<1x32xf32> to vector<144x32xf32>
    %33 = arith.addf %31, %32 : vector<144x32xf32>
    %cst_19 = arith.constant 0.000000e+00 : f32
    %34 = vector.broadcast %cst_19 : f32 to vector<144x32xf32>
    %35 = arith.maximumf %33, %34 : vector<144x32xf32>
    %36 = vector.broadcast %0 : vector<144x1xf32> to vector<144x32xf32>
    %37 = arith.mulf %35, %36 : vector<144x32xf32>
    %c0_20 = arith.constant 0 : index
    %c0_21 = arith.constant 0 : index
    %c0_22 = arith.constant 0 : index
    %38 = vector.load %arg5[%c0_20, %c0_21, %c0_22] : memref<4x288x32xbf16, #tpu.memory_space<vmem>>, vector<1x288x32xbf16>
    %39 = vector.shape_cast %38 : vector<1x288x32xbf16> to vector<288x32xbf16>
    %c0_23 = arith.constant 0 : index
    %c0_24 = arith.constant 0 : index
    %c0_25 = arith.constant 0 : index
    %40 = vector.load %arg6[%c0_23, %c0_24, %c0_25] : memref<4x1x32xf32, #tpu.memory_space<vmem>>, vector<1x1x32xf32>
    %41 = vector.shape_cast %40 : vector<1x1x32xf32> to vector<1x32xf32>
    %c10_i32_26 = arith.constant 10 : i32
    %42 = tpu.dynamic_rotate %37 by %c10_i32_26 dim 0 : vector<144x32xf32>, i32 -> vector<144x32xf32>
    %43 = arith.truncf %42 : vector<144x32xf32> to vector<144x32xbf16>
    %c0_27 = arith.constant 0 : index
    %c0_28 = arith.constant 0 : index
    %44 = vector.load %arg16[%c0_27, %c0_28] : memref<144x288xbf16, #tpu.memory_space<vmem>>, vector<144x32xbf16>
    tpu.vector_store %arg16[%c0_27, %c0_28], %43 {strides = array<i32>} : memref<144x288xbf16, #tpu.memory_space<vmem>>, vector<144x32xbf16>,
    %c9_i32_29 = arith.constant 9 : i32
    %45 = tpu.dynamic_rotate %37 by %c9_i32_29 dim 0 : vector<144x32xf32>, i32 -> vector<144x32xf32>
    %46 = arith.truncf %45 : vector<144x32xf32> to vector<144x32xbf16>
    %c0_30 = arith.constant 0 : index
    %c32_31 = arith.constant 32 : index
    %47 = vector.load %arg16[%c0_30, %c32_31] : memref<144x288xbf16, #tpu.memory_space<vmem>>, vector<144x32xbf16>
    tpu.vector_store %arg16[%c0_30, %c32_31], %46 {strides = array<i32>} : memref<144x288xbf16, #tpu.memory_space<vmem>>, vector<144x32xbf16>,
    %c8_i32_32 = arith.constant 8 : i32
    %48 = tpu.dynamic_rotate %37 by %c8_i32_32 dim 0 : vector<144x32xf32>, i32 -> vector<144x32xf32>
    %49 = arith.truncf %48 : vector<144x32xf32> to vector<144x32xbf16>
    %c0_33 = arith.constant 0 : index
    %c64_34 = arith.constant 64 : index
    %50 = vector.load %arg16[%c0_33, %c64_34] : memref<144x288xbf16, #tpu.memory_space<vmem>>, vector<144x32xbf16>
    tpu.vector_store %arg16[%c0_33, %c64_34], %49 {strides = array<i32>} : memref<144x288xbf16, #tpu.memory_space<vmem>>, vector<144x32xbf16>,
    %c1_i32_35 = arith.constant 1 : i32
    %51 = tpu.dynamic_rotate %37 by %c1_i32_35 dim 0 : vector<144x32xf32>, i32 -> vector<144x32xf32>
    %52 = arith.truncf %51 : vector<144x32xf32> to vector<144x32xbf16>
    %c0_36 = arith.constant 0 : index
    %c96_37 = arith.constant 96 : index
    %53 = vector.load %arg16[%c0_36, %c96_37] : memref<144x288xbf16, #tpu.memory_space<vmem>>, vector<144x32xbf16>
    tpu.vector_store %arg16[%c0_36, %c96_37], %52 {strides = array<i32>} : memref<144x288xbf16, #tpu.memory_space<vmem>>, vector<144x32xbf16>,
    %54 = arith.truncf %37 : vector<144x32xf32> to vector<144x32xbf16>
    %c0_38 = arith.constant 0 : index
    %c128_39 = arith.constant 128 : index
    %55 = vector.load %arg16[%c0_38, %c128_39] : memref<144x288xbf16, #tpu.memory_space<vmem>>, vector<144x32xbf16>
    tpu.vector_store %arg16[%c0_38, %c128_39], %54 {strides = array<i32>} : memref<144x288xbf16, #tpu.memory_space<vmem>>, vector<144x32xbf16>,
    %c143_i32_40 = arith.constant 143 : i32
    %56 = tpu.dynamic_rotate %37 by %c143_i32_40 dim 0 : vector<144x32xf32>, i32 -> vector<144x32xf32>
    %57 = arith.truncf %56 : vector<144x32xf32> to vector<144x32xbf16>
    %c0_41 = arith.constant 0 : index
    %c160_42 = arith.constant 160 : index
    %58 = vector.load %arg16[%c0_41, %c160_42] : memref<144x288xbf16, #tpu.memory_space<vmem>>, vector<144x32xbf16>
    tpu.vector_store %arg16[%c0_41, %c160_42], %57 {strides = array<i32>} : memref<144x288xbf16, #tpu.memory_space<vmem>>, vector<144x32xbf16>,
    %c136_i32_43 = arith.constant 136 : i32
    %59 = tpu.dynamic_rotate %37 by %c136_i32_43 dim 0 : vector<144x32xf32>, i32 -> vector<144x32xf32>
    %60 = arith.truncf %59 : vector<144x32xf32> to vector<144x32xbf16>
    %c0_44 = arith.constant 0 : index
    %c192_45 = arith.constant 192 : index
    %61 = vector.load %arg16[%c0_44, %c192_45] : memref<144x288xbf16, #tpu.memory_space<vmem>>, vector<144x32xbf16>
    tpu.vector_store %arg16[%c0_44, %c192_45], %60 {strides = array<i32>} : memref<144x288xbf16, #tpu.memory_space<vmem>>, vector<144x32xbf16>,
    %c135_i32_46 = arith.constant 135 : i32
    %62 = tpu.dynamic_rotate %37 by %c135_i32_46 dim 0 : vector<144x32xf32>, i32 -> vector<144x32xf32>
    %63 = arith.truncf %62 : vector<144x32xf32> to vector<144x32xbf16>
    %c0_47 = arith.constant 0 : index
    %c224_48 = arith.constant 224 : index
    %64 = vector.load %arg16[%c0_47, %c224_48] : memref<144x288xbf16, #tpu.memory_space<vmem>>, vector<144x32xbf16>
    tpu.vector_store %arg16[%c0_47, %c224_48], %63 {strides = array<i32>} : memref<144x288xbf16, #tpu.memory_space<vmem>>, vector<144x32xbf16>,
    %c134_i32_49 = arith.constant 134 : i32
    %65 = tpu.dynamic_rotate %37 by %c134_i32_49 dim 0 : vector<144x32xf32>, i32 -> vector<144x32xf32>
    %66 = arith.truncf %65 : vector<144x32xf32> to vector<144x32xbf16>
    %c0_50 = arith.constant 0 : index
    %c256_51 = arith.constant 256 : index
    %67 = vector.load %arg16[%c0_50, %c256_51] : memref<144x288xbf16, #tpu.memory_space<vmem>>, vector<144x32xbf16>
    tpu.vector_store %arg16[%c0_50, %c256_51], %66 {strides = array<i32>} : memref<144x288xbf16, #tpu.memory_space<vmem>>, vector<144x32xbf16>,
    %c0_52 = arith.constant 0 : index
    %c0_53 = arith.constant 0 : index
    %68 = vector.load %arg16[%c0_52, %c0_53] : memref<144x288xbf16, #tpu.memory_space<vmem>>, vector<144x288xbf16>
    %cst_54 = arith.constant dense<0.000000e+00> : vector<144x32xf32>
    %69 = tpu.matmul %68, %39, %cst_54 {dimension_numbers = #tpu.dot_dimension_numbers<[1], [0], [0], [1], [0, 0, 1, 1], [], []>} : vector<144x288xbf16>, vector<288x32xbf16>, vector<144x32xf32> -> vector<144x32xf32>
    %70 = vector.broadcast %41 : vector<1x32xf32> to vector<144x32xf32>
    %71 = arith.addf %69, %70 : vector<144x32xf32>
    %cst_55 = arith.constant 0.000000e+00 : f32
    %72 = vector.broadcast %cst_55 : f32 to vector<144x32xf32>
    %73 = arith.maximumf %71, %72 : vector<144x32xf32>
    %74 = vector.broadcast %0 : vector<144x1xf32> to vector<144x32xf32>
    %75 = arith.mulf %73, %74 : vector<144x32xf32>
    %c1 = arith.constant 1 : index
    %c0_56 = arith.constant 0 : index
    %c0_57 = arith.constant 0 : index
    %76 = vector.load %arg5[%c1, %c0_56, %c0_57] : memref<4x288x32xbf16, #tpu.memory_space<vmem>>, vector<1x288x32xbf16>
    %77 = vector.shape_cast %76 : vector<1x288x32xbf16> to vector<288x32xbf16>
    %c1_58 = arith.constant 1 : index
    %c0_59 = arith.constant 0 : index
    %c0_60 = arith.constant 0 : index
    %78 = vector.load %arg6[%c1_58, %c0_59, %c0_60] : memref<4x1x32xf32, #tpu.memory_space<vmem>>, vector<1x1x32xf32>
    %79 = vector.shape_cast %78 : vector<1x1x32xf32> to vector<1x32xf32>
    %c10_i32_61 = arith.constant 10 : i32
    %80 = tpu.dynamic_rotate %75 by %c10_i32_61 dim 0 : vector<144x32xf32>, i32 -> vector<144x32xf32>
    %81 = arith.truncf %80 : vector<144x32xf32> to vector<144x32xbf16>
    %c0_62 = arith.constant 0 : index
    %c0_63 = arith.constant 0 : index
    %82 = vector.load %arg16[%c0_62, %c0_63] : memref<144x288xbf16, #tpu.memory_space<vmem>>, vector<144x32xbf16>
    tpu.vector_store %arg16[%c0_62, %c0_63], %81 {strides = array<i32>} : memref<144x288xbf16, #tpu.memory_space<vmem>>, vector<144x32xbf16>,
    %c9_i32_64 = arith.constant 9 : i32
    %83 = tpu.dynamic_rotate %75 by %c9_i32_64 dim 0 : vector<144x32xf32>, i32 -> vector<144x32xf32>
    %84 = arith.truncf %83 : vector<144x32xf32> to vector<144x32xbf16>
    %c0_65 = arith.constant 0 : index
    %c32_66 = arith.constant 32 : index
    %85 = vector.load %arg16[%c0_65, %c32_66] : memref<144x288xbf16, #tpu.memory_space<vmem>>, vector<144x32xbf16>
    tpu.vector_store %arg16[%c0_65, %c32_66], %84 {strides = array<i32>} : memref<144x288xbf16, #tpu.memory_space<vmem>>, vector<144x32xbf16>,
    %c8_i32_67 = arith.constant 8 : i32
    %86 = tpu.dynamic_rotate %75 by %c8_i32_67 dim 0 : vector<144x32xf32>, i32 -> vector<144x32xf32>
    %87 = arith.truncf %86 : vector<144x32xf32> to vector<144x32xbf16>
    %c0_68 = arith.constant 0 : index
    %c64_69 = arith.constant 64 : index
    %88 = vector.load %arg16[%c0_68, %c64_69] : memref<144x288xbf16, #tpu.memory_space<vmem>>, vector<144x32xbf16>
    tpu.vector_store %arg16[%c0_68, %c64_69], %87 {strides = array<i32>} : memref<144x288xbf16, #tpu.memory_space<vmem>>, vector<144x32xbf16>,
    %c1_i32_70 = arith.constant 1 : i32
    %89 = tpu.dynamic_rotate %75 by %c1_i32_70 dim 0 : vector<144x32xf32>, i32 -> vector<144x32xf32>
    %90 = arith.truncf %89 : vector<144x32xf32> to vector<144x32xbf16>
    %c0_71 = arith.constant 0 : index
    %c96_72 = arith.constant 96 : index
    %91 = vector.load %arg16[%c0_71, %c96_72] : memref<144x288xbf16, #tpu.memory_space<vmem>>, vector<144x32xbf16>
    tpu.vector_store %arg16[%c0_71, %c96_72], %90 {strides = array<i32>} : memref<144x288xbf16, #tpu.memory_space<vmem>>, vector<144x32xbf16>,
    %92 = arith.truncf %75 : vector<144x32xf32> to vector<144x32xbf16>
    %c0_73 = arith.constant 0 : index
    %c128_74 = arith.constant 128 : index
    %93 = vector.load %arg16[%c0_73, %c128_74] : memref<144x288xbf16, #tpu.memory_space<vmem>>, vector<144x32xbf16>
    tpu.vector_store %arg16[%c0_73, %c128_74], %92 {strides = array<i32>} : memref<144x288xbf16, #tpu.memory_space<vmem>>, vector<144x32xbf16>,
    %c143_i32_75 = arith.constant 143 : i32
    %94 = tpu.dynamic_rotate %75 by %c143_i32_75 dim 0 : vector<144x32xf32>, i32 -> vector<144x32xf32>
    %95 = arith.truncf %94 : vector<144x32xf32> to vector<144x32xbf16>
    %c0_76 = arith.constant 0 : index
    %c160_77 = arith.constant 160 : index
    %96 = vector.load %arg16[%c0_76, %c160_77] : memref<144x288xbf16, #tpu.memory_space<vmem>>, vector<144x32xbf16>
    tpu.vector_store %arg16[%c0_76, %c160_77], %95 {strides = array<i32>} : memref<144x288xbf16, #tpu.memory_space<vmem>>, vector<144x32xbf16>,
    %c136_i32_78 = arith.constant 136 : i32
    %97 = tpu.dynamic_rotate %75 by %c136_i32_78 dim 0 : vector<144x32xf32>, i32 -> vector<144x32xf32>
    %98 = arith.truncf %97 : vector<144x32xf32> to vector<144x32xbf16>
    %c0_79 = arith.constant 0 : index
    %c192_80 = arith.constant 192 : index
    %99 = vector.load %arg16[%c0_79, %c192_80] : memref<144x288xbf16, #tpu.memory_space<vmem>>, vector<144x32xbf16>
    tpu.vector_store %arg16[%c0_79, %c192_80], %98 {strides = array<i32>} : memref<144x288xbf16, #tpu.memory_space<vmem>>, vector<144x32xbf16>,
    %c135_i32_81 = arith.constant 135 : i32
    %100 = tpu.dynamic_rotate %75 by %c135_i32_81 dim 0 : vector<144x32xf32>, i32 -> vector<144x32xf32>
    %101 = arith.truncf %100 : vector<144x32xf32> to vector<144x32xbf16>
    %c0_82 = arith.constant 0 : index
    %c224_83 = arith.constant 224 : index
    %102 = vector.load %arg16[%c0_82, %c224_83] : memref<144x288xbf16, #tpu.memory_space<vmem>>, vector<144x32xbf16>
    tpu.vector_store %arg16[%c0_82, %c224_83], %101 {strides = array<i32>} : memref<144x288xbf16, #tpu.memory_space<vmem>>, vector<144x32xbf16>,
    %c134_i32_84 = arith.constant 134 : i32
    %103 = tpu.dynamic_rotate %75 by %c134_i32_84 dim 0 : vector<144x32xf32>, i32 -> vector<144x32xf32>
    %104 = arith.truncf %103 : vector<144x32xf32> to vector<144x32xbf16>
    %c0_85 = arith.constant 0 : index
    %c256_86 = arith.constant 256 : index
    %105 = vector.load %arg16[%c0_85, %c256_86] : memref<144x288xbf16, #tpu.memory_space<vmem>>, vector<144x32xbf16>
    tpu.vector_store %arg16[%c0_85, %c256_86], %104 {strides = array<i32>} : memref<144x288xbf16, #tpu.memory_space<vmem>>, vector<144x32xbf16>,
    %c0_87 = arith.constant 0 : index
    %c0_88 = arith.constant 0 : index
    %106 = vector.load %arg16[%c0_87, %c0_88] : memref<144x288xbf16, #tpu.memory_space<vmem>>, vector<144x288xbf16>
    %cst_89 = arith.constant dense<0.000000e+00> : vector<144x32xf32>
    %107 = tpu.matmul %106, %77, %cst_89 {dimension_numbers = #tpu.dot_dimension_numbers<[1], [0], [0], [1], [0, 0, 1, 1], [], []>} : vector<144x288xbf16>, vector<288x32xbf16>, vector<144x32xf32> -> vector<144x32xf32>
    %108 = vector.broadcast %79 : vector<1x32xf32> to vector<144x32xf32>
    %109 = arith.addf %107, %108 : vector<144x32xf32>
    %110 = arith.addf %109, %37 : vector<144x32xf32>
    %cst_90 = arith.constant 0.000000e+00 : f32
    %111 = vector.broadcast %cst_90 : f32 to vector<144x32xf32>
    %112 = arith.maximumf %110, %111 : vector<144x32xf32>
    %113 = vector.broadcast %0 : vector<144x1xf32> to vector<144x32xf32>
    %114 = arith.mulf %112, %113 : vector<144x32xf32>
    %c2 = arith.constant 2 : index
    %c0_91 = arith.constant 0 : index
    %c0_92 = arith.constant 0 : index
    %115 = vector.load %arg5[%c2, %c0_91, %c0_92] : memref<4x288x32xbf16, #tpu.memory_space<vmem>>, vector<1x288x32xbf16>
    %116 = vector.shape_cast %115 : vector<1x288x32xbf16> to vector<288x32xbf16>
    %c2_93 = arith.constant 2 : index
    %c0_94 = arith.constant 0 : index
    %c0_95 = arith.constant 0 : index
    %117 = vector.load %arg6[%c2_93, %c0_94, %c0_95] : memref<4x1x32xf32, #tpu.memory_space<vmem>>, vector<1x1x32xf32>
    %118 = vector.shape_cast %117 : vector<1x1x32xf32> to vector<1x32xf32>
    %c10_i32_96 = arith.constant 10 : i32
    %119 = tpu.dynamic_rotate %114 by %c10_i32_96 dim 0 : vector<144x32xf32>, i32 -> vector<144x32xf32>
    %120 = arith.truncf %119 : vector<144x32xf32> to vector<144x32xbf16>
    %c0_97 = arith.constant 0 : index
    %c0_98 = arith.constant 0 : index
    %121 = vector.load %arg16[%c0_97, %c0_98] : memref<144x288xbf16, #tpu.memory_space<vmem>>, vector<144x32xbf16>
    tpu.vector_store %arg16[%c0_97, %c0_98], %120 {strides = array<i32>} : memref<144x288xbf16, #tpu.memory_space<vmem>>, vector<144x32xbf16>,
    %c9_i32_99 = arith.constant 9 : i32
    %122 = tpu.dynamic_rotate %114 by %c9_i32_99 dim 0 : vector<144x32xf32>, i32 -> vector<144x32xf32>
    %123 = arith.truncf %122 : vector<144x32xf32> to vector<144x32xbf16>
    %c0_100 = arith.constant 0 : index
    %c32_101 = arith.constant 32 : index
    %124 = vector.load %arg16[%c0_100, %c32_101] : memref<144x288xbf16, #tpu.memory_space<vmem>>, vector<144x32xbf16>
    tpu.vector_store %arg16[%c0_100, %c32_101], %123 {strides = array<i32>} : memref<144x288xbf16, #tpu.memory_space<vmem>>, vector<144x32xbf16>,
    %c8_i32_102 = arith.constant 8 : i32
    %125 = tpu.dynamic_rotate %114 by %c8_i32_102 dim 0 : vector<144x32xf32>, i32 -> vector<144x32xf32>
    %126 = arith.truncf %125 : vector<144x32xf32> to vector<144x32xbf16>
    %c0_103 = arith.constant 0 : index
    %c64_104 = arith.constant 64 : index
    %127 = vector.load %arg16[%c0_103, %c64_104] : memref<144x288xbf16, #tpu.memory_space<vmem>>, vector<144x32xbf16>
    tpu.vector_store %arg16[%c0_103, %c64_104], %126 {strides = array<i32>} : memref<144x288xbf16, #tpu.memory_space<vmem>>, vector<144x32xbf16>,
    %c1_i32_105 = arith.constant 1 : i32
    %128 = tpu.dynamic_rotate %114 by %c1_i32_105 dim 0 : vector<144x32xf32>, i32 -> vector<144x32xf32>
    %129 = arith.truncf %128 : vector<144x32xf32> to vector<144x32xbf16>
    %c0_106 = arith.constant 0 : index
    %c96_107 = arith.constant 96 : index
    %130 = vector.load %arg16[%c0_106, %c96_107] : memref<144x288xbf16, #tpu.memory_space<vmem>>, vector<144x32xbf16>
    tpu.vector_store %arg16[%c0_106, %c96_107], %129 {strides = array<i32>} : memref<144x288xbf16, #tpu.memory_space<vmem>>, vector<144x32xbf16>,
    %131 = arith.truncf %114 : vector<144x32xf32> to vector<144x32xbf16>
    %c0_108 = arith.constant 0 : index
    %c128_109 = arith.constant 128 : index
    %132 = vector.load %arg16[%c0_108, %c128_109] : memref<144x288xbf16, #tpu.memory_space<vmem>>, vector<144x32xbf16>
    tpu.vector_store %arg16[%c0_108, %c128_109], %131 {strides = array<i32>} : memref<144x288xbf16, #tpu.memory_space<vmem>>, vector<144x32xbf16>,
    %c143_i32_110 = arith.constant 143 : i32
    %133 = tpu.dynamic_rotate %114 by %c143_i32_110 dim 0 : vector<144x32xf32>, i32 -> vector<144x32xf32>
    %134 = arith.truncf %133 : vector<144x32xf32> to vector<144x32xbf16>
    %c0_111 = arith.constant 0 : index
    %c160_112 = arith.constant 160 : index
    %135 = vector.load %arg16[%c0_111, %c160_112] : memref<144x288xbf16, #tpu.memory_space<vmem>>, vector<144x32xbf16>
    tpu.vector_store %arg16[%c0_111, %c160_112], %134 {strides = array<i32>} : memref<144x288xbf16, #tpu.memory_space<vmem>>, vector<144x32xbf16>,
    %c136_i32_113 = arith.constant 136 : i32
    %136 = tpu.dynamic_rotate %114 by %c136_i32_113 dim 0 : vector<144x32xf32>, i32 -> vector<144x32xf32>
    %137 = arith.truncf %136 : vector<144x32xf32> to vector<144x32xbf16>
    %c0_114 = arith.constant 0 : index
    %c192_115 = arith.constant 192 : index
    %138 = vector.load %arg16[%c0_114, %c192_115] : memref<144x288xbf16, #tpu.memory_space<vmem>>, vector<144x32xbf16>
    tpu.vector_store %arg16[%c0_114, %c192_115], %137 {strides = array<i32>} : memref<144x288xbf16, #tpu.memory_space<vmem>>, vector<144x32xbf16>,
    %c135_i32_116 = arith.constant 135 : i32
    %139 = tpu.dynamic_rotate %114 by %c135_i32_116 dim 0 : vector<144x32xf32>, i32 -> vector<144x32xf32>
    %140 = arith.truncf %139 : vector<144x32xf32> to vector<144x32xbf16>
    %c0_117 = arith.constant 0 : index
    %c224_118 = arith.constant 224 : index
    %141 = vector.load %arg16[%c0_117, %c224_118] : memref<144x288xbf16, #tpu.memory_space<vmem>>, vector<144x32xbf16>
    tpu.vector_store %arg16[%c0_117, %c224_118], %140 {strides = array<i32>} : memref<144x288xbf16, #tpu.memory_space<vmem>>, vector<144x32xbf16>,
    %c134_i32_119 = arith.constant 134 : i32
    %142 = tpu.dynamic_rotate %114 by %c134_i32_119 dim 0 : vector<144x32xf32>, i32 -> vector<144x32xf32>
    %143 = arith.truncf %142 : vector<144x32xf32> to vector<144x32xbf16>
    %c0_120 = arith.constant 0 : index
    %c256_121 = arith.constant 256 : index
    %144 = vector.load %arg16[%c0_120, %c256_121] : memref<144x288xbf16, #tpu.memory_space<vmem>>, vector<144x32xbf16>
    tpu.vector_store %arg16[%c0_120, %c256_121], %143 {strides = array<i32>} : memref<144x288xbf16, #tpu.memory_space<vmem>>, vector<144x32xbf16>,
    %c0_122 = arith.constant 0 : index
    %c0_123 = arith.constant 0 : index
    %145 = vector.load %arg16[%c0_122, %c0_123] : memref<144x288xbf16, #tpu.memory_space<vmem>>, vector<144x288xbf16>
    %cst_124 = arith.constant dense<0.000000e+00> : vector<144x32xf32>
    %146 = tpu.matmul %145, %116, %cst_124 {dimension_numbers = #tpu.dot_dimension_numbers<[1], [0], [0], [1], [0, 0, 1, 1], [], []>} : vector<144x288xbf16>, vector<288x32xbf16>, vector<144x32xf32> -> vector<144x32xf32>
    %147 = vector.broadcast %118 : vector<1x32xf32> to vector<144x32xf32>
    %148 = arith.addf %146, %147 : vector<144x32xf32>
    %cst_125 = arith.constant 0.000000e+00 : f32
    %149 = vector.broadcast %cst_125 : f32 to vector<144x32xf32>
    %150 = arith.maximumf %148, %149 : vector<144x32xf32>
    %151 = vector.broadcast %0 : vector<144x1xf32> to vector<144x32xf32>
    %152 = arith.mulf %150, %151 : vector<144x32xf32>
    %c3 = arith.constant 3 : index
    %c0_126 = arith.constant 0 : index
    %c0_127 = arith.constant 0 : index
    %153 = vector.load %arg5[%c3, %c0_126, %c0_127] : memref<4x288x32xbf16, #tpu.memory_space<vmem>>, vector<1x288x32xbf16>
    %154 = vector.shape_cast %153 : vector<1x288x32xbf16> to vector<288x32xbf16>
    %c3_128 = arith.constant 3 : index
    %c0_129 = arith.constant 0 : index
    %c0_130 = arith.constant 0 : index
    %155 = vector.load %arg6[%c3_128, %c0_129, %c0_130] : memref<4x1x32xf32, #tpu.memory_space<vmem>>, vector<1x1x32xf32>
    %156 = vector.shape_cast %155 : vector<1x1x32xf32> to vector<1x32xf32>
    %c10_i32_131 = arith.constant 10 : i32
    %157 = tpu.dynamic_rotate %152 by %c10_i32_131 dim 0 : vector<144x32xf32>, i32 -> vector<144x32xf32>
    %158 = arith.truncf %157 : vector<144x32xf32> to vector<144x32xbf16>
    %c0_132 = arith.constant 0 : index
    %c0_133 = arith.constant 0 : index
    %159 = vector.load %arg16[%c0_132, %c0_133] : memref<144x288xbf16, #tpu.memory_space<vmem>>, vector<144x32xbf16>
    tpu.vector_store %arg16[%c0_132, %c0_133], %158 {strides = array<i32>} : memref<144x288xbf16, #tpu.memory_space<vmem>>, vector<144x32xbf16>,
    %c9_i32_134 = arith.constant 9 : i32
    %160 = tpu.dynamic_rotate %152 by %c9_i32_134 dim 0 : vector<144x32xf32>, i32 -> vector<144x32xf32>
    %161 = arith.truncf %160 : vector<144x32xf32> to vector<144x32xbf16>
    %c0_135 = arith.constant 0 : index
    %c32_136 = arith.constant 32 : index
    %162 = vector.load %arg16[%c0_135, %c32_136] : memref<144x288xbf16, #tpu.memory_space<vmem>>, vector<144x32xbf16>
    tpu.vector_store %arg16[%c0_135, %c32_136], %161 {strides = array<i32>} : memref<144x288xbf16, #tpu.memory_space<vmem>>, vector<144x32xbf16>,
    %c8_i32_137 = arith.constant 8 : i32
    %163 = tpu.dynamic_rotate %152 by %c8_i32_137 dim 0 : vector<144x32xf32>, i32 -> vector<144x32xf32>
    %164 = arith.truncf %163 : vector<144x32xf32> to vector<144x32xbf16>
    %c0_138 = arith.constant 0 : index
    %c64_139 = arith.constant 64 : index
    %165 = vector.load %arg16[%c0_138, %c64_139] : memref<144x288xbf16, #tpu.memory_space<vmem>>, vector<144x32xbf16>
    tpu.vector_store %arg16[%c0_138, %c64_139], %164 {strides = array<i32>} : memref<144x288xbf16, #tpu.memory_space<vmem>>, vector<144x32xbf16>,
    %c1_i32_140 = arith.constant 1 : i32
    %166 = tpu.dynamic_rotate %152 by %c1_i32_140 dim 0 : vector<144x32xf32>, i32 -> vector<144x32xf32>
    %167 = arith.truncf %166 : vector<144x32xf32> to vector<144x32xbf16>
    %c0_141 = arith.constant 0 : index
    %c96_142 = arith.constant 96 : index
    %168 = vector.load %arg16[%c0_141, %c96_142] : memref<144x288xbf16, #tpu.memory_space<vmem>>, vector<144x32xbf16>
    tpu.vector_store %arg16[%c0_141, %c96_142], %167 {strides = array<i32>} : memref<144x288xbf16, #tpu.memory_space<vmem>>, vector<144x32xbf16>,
    %169 = arith.truncf %152 : vector<144x32xf32> to vector<144x32xbf16>
    %c0_143 = arith.constant 0 : index
    %c128_144 = arith.constant 128 : index
    %170 = vector.load %arg16[%c0_143, %c128_144] : memref<144x288xbf16, #tpu.memory_space<vmem>>, vector<144x32xbf16>
    tpu.vector_store %arg16[%c0_143, %c128_144], %169 {strides = array<i32>} : memref<144x288xbf16, #tpu.memory_space<vmem>>, vector<144x32xbf16>,
    %c143_i32_145 = arith.constant 143 : i32
    %171 = tpu.dynamic_rotate %152 by %c143_i32_145 dim 0 : vector<144x32xf32>, i32 -> vector<144x32xf32>
    %172 = arith.truncf %171 : vector<144x32xf32> to vector<144x32xbf16>
    %c0_146 = arith.constant 0 : index
    %c160_147 = arith.constant 160 : index
    %173 = vector.load %arg16[%c0_146, %c160_147] : memref<144x288xbf16, #tpu.memory_space<vmem>>, vector<144x32xbf16>
    tpu.vector_store %arg16[%c0_146, %c160_147], %172 {strides = array<i32>} : memref<144x288xbf16, #tpu.memory_space<vmem>>, vector<144x32xbf16>,
    %c136_i32_148 = arith.constant 136 : i32
    %174 = tpu.dynamic_rotate %152 by %c136_i32_148 dim 0 : vector<144x32xf32>, i32 -> vector<144x32xf32>
    %175 = arith.truncf %174 : vector<144x32xf32> to vector<144x32xbf16>
    %c0_149 = arith.constant 0 : index
    %c192_150 = arith.constant 192 : index
    %176 = vector.load %arg16[%c0_149, %c192_150] : memref<144x288xbf16, #tpu.memory_space<vmem>>, vector<144x32xbf16>
    tpu.vector_store %arg16[%c0_149, %c192_150], %175 {strides = array<i32>} : memref<144x288xbf16, #tpu.memory_space<vmem>>, vector<144x32xbf16>,
    %c135_i32_151 = arith.constant 135 : i32
    %177 = tpu.dynamic_rotate %152 by %c135_i32_151 dim 0 : vector<144x32xf32>, i32 -> vector<144x32xf32>
    %178 = arith.truncf %177 : vector<144x32xf32> to vector<144x32xbf16>
    %c0_152 = arith.constant 0 : index
    %c224_153 = arith.constant 224 : index
    %179 = vector.load %arg16[%c0_152, %c224_153] : memref<144x288xbf16, #tpu.memory_space<vmem>>, vector<144x32xbf16>
    tpu.vector_store %arg16[%c0_152, %c224_153], %178 {strides = array<i32>} : memref<144x288xbf16, #tpu.memory_space<vmem>>, vector<144x32xbf16>,
    %c134_i32_154 = arith.constant 134 : i32
    %180 = tpu.dynamic_rotate %152 by %c134_i32_154 dim 0 : vector<144x32xf32>, i32 -> vector<144x32xf32>
    %181 = arith.truncf %180 : vector<144x32xf32> to vector<144x32xbf16>
    %c0_155 = arith.constant 0 : index
    %c256_156 = arith.constant 256 : index
    %182 = vector.load %arg16[%c0_155, %c256_156] : memref<144x288xbf16, #tpu.memory_space<vmem>>, vector<144x32xbf16>
    tpu.vector_store %arg16[%c0_155, %c256_156], %181 {strides = array<i32>} : memref<144x288xbf16, #tpu.memory_space<vmem>>, vector<144x32xbf16>,
    %c0_157 = arith.constant 0 : index
    %c0_158 = arith.constant 0 : index
    %183 = vector.load %arg16[%c0_157, %c0_158] : memref<144x288xbf16, #tpu.memory_space<vmem>>, vector<144x288xbf16>
    %cst_159 = arith.constant dense<0.000000e+00> : vector<144x32xf32>
    %184 = tpu.matmul %183, %154, %cst_159 {dimension_numbers = #tpu.dot_dimension_numbers<[1], [0], [0], [1], [0, 0, 1, 1], [], []>} : vector<144x288xbf16>, vector<288x32xbf16>, vector<144x32xf32> -> vector<144x32xf32>
    %185 = vector.broadcast %156 : vector<1x32xf32> to vector<144x32xf32>
    %186 = arith.addf %184, %185 : vector<144x32xf32>
    %187 = arith.addf %186, %114 : vector<144x32xf32>
    %cst_160 = arith.constant 0.000000e+00 : f32
    %188 = vector.broadcast %cst_160 : f32 to vector<144x32xf32>
    %189 = arith.maximumf %187, %188 : vector<144x32xf32>
    %190 = vector.broadcast %0 : vector<144x1xf32> to vector<144x32xf32>
    %191 = arith.mulf %189, %190 : vector<144x32xf32>
    %c0_161 = arith.constant 0 : index
    %c0_162 = arith.constant 0 : index
    %192 = vector.load %arg7[%c0_161, %c0_162] : memref<32x3xf32, #tpu.memory_space<vmem>>, vector<32x3xf32>
    %cst_163 = arith.constant dense<0.000000e+00> : vector<144x3xf32>
    %193 = tpu.matmul %191, %192, %cst_163 {dimension_numbers = #tpu.dot_dimension_numbers<[1], [0], [0], [1], [0, 0, 1, 1], [], []>} : vector<144x32xf32>, vector<32x3xf32>, vector<144x3xf32> -> vector<144x3xf32>
    %c0_164 = arith.constant 0 : index
    %c0_165 = arith.constant 0 : index
    %194 = vector.load %arg8[%c0_164, %c0_165] : memref<1x3xf32, #tpu.memory_space<vmem>>, vector<1x3xf32>
    %195 = vector.broadcast %194 : vector<1x3xf32> to vector<144x3xf32>
    %196 = arith.addf %193, %195 : vector<144x3xf32>
    %cst_166 = arith.constant 0.000000e+00 : f32
    %197 = vector.broadcast %cst_166 : f32 to vector<144x3xf32>
    %198 = arith.maximumf %196, %197 : vector<144x3xf32>
    %199 = vector.broadcast %0 : vector<144x1xf32> to vector<144x3xf32>
    %200 = arith.mulf %198, %199 : vector<144x3xf32>
    %201 = vector.shape_cast %200 : vector<144x3xf32> to vector<2x72x3xf32>
    %202 = vector.extract_strided_slice %201 {offsets = [0, 0, 0], sizes = [2, 72, 1], strides = [1, 1, 1]} : vector<2x72x3xf32> to vector<2x72x1xf32>
    %203 = vector.extract_strided_slice %201 {offsets = [0, 0, 1], sizes = [2, 72, 1], strides = [1, 1, 1]} : vector<2x72x3xf32> to vector<2x72x1xf32>
    %204 = vector.extract_strided_slice %201 {offsets = [0, 0, 2], sizes = [2, 72, 1], strides = [1, 1, 1]} : vector<2x72x3xf32> to vector<2x72x1xf32>
    %c0_167 = arith.constant 0 : index
    %c0_168 = arith.constant 0 : index
    %c0_169 = arith.constant 0 : index
    %205 = vector.load %arg9[%c0_167, %c0_168, %c0_169] : memref<2x72x128xf32, #tpu.memory_space<vmem>>, vector<1x72x128xf32>
    %206 = vector.shape_cast %205 : vector<1x72x128xf32> to vector<72x128xf32>
    %207 = vector.shape_cast %206 : vector<72x128xf32> to vector<1x72x128xf32>
    %208 = vector.broadcast %202 : vector<2x72x1xf32> to vector<2x72x128xf32>
    %209 = vector.broadcast %207 : vector<1x72x128xf32> to vector<2x72x128xf32>
    %210 = arith.mulf %208, %209 : vector<2x72x128xf32>
    %c1_170 = arith.constant 1 : index
    %c0_171 = arith.constant 0 : index
    %c0_172 = arith.constant 0 : index
    %211 = vector.load %arg9[%c1_170, %c0_171, %c0_172] : memref<2x72x128xf32, #tpu.memory_space<vmem>>, vector<1x72x128xf32>
    %212 = vector.shape_cast %211 : vector<1x72x128xf32> to vector<72x128xf32>
    %213 = vector.shape_cast %212 : vector<72x128xf32> to vector<1x72x128xf32>
    %214 = vector.broadcast %203 : vector<2x72x1xf32> to vector<2x72x128xf32>
    %215 = vector.broadcast %213 : vector<1x72x128xf32> to vector<2x72x128xf32>
    %216 = arith.mulf %214, %215 : vector<2x72x128xf32>
    %217 = arith.addf %210, %216 : vector<2x72x128xf32>
    %cst_173 = arith.constant dense<0.000000e+00> : vector<2x128xf32>
    %218 = vector.multi_reduction <add>, %217, %cst_173 [1] : vector<2x72x128xf32> to vector<2x128xf32>
    %c0_174 = arith.constant 0 : index
    %c0_175 = arith.constant 0 : index
    %219 = vector.load %arg10[%c0_174, %c0_175] : memref<1x128xf32, #tpu.memory_space<vmem>>, vector<1x128xf32>
    %220 = vector.broadcast %219 : vector<1x128xf32> to vector<2x128xf32>
    %221 = arith.addf %218, %220 : vector<2x128xf32>
    %c0_176 = arith.constant 0 : index
    %c0_177 = arith.constant 0 : index
    %222 = vector.load %arg11[%c0_176, %c0_177] : memref<72x256xf32, #tpu.memory_space<vmem>>, vector<72x256xf32>
    %223 = vector.shape_cast %222 : vector<72x256xf32> to vector<1x72x256xf32>
    %224 = vector.broadcast %204 : vector<2x72x1xf32> to vector<2x72x256xf32>
    %225 = vector.broadcast %223 : vector<1x72x256xf32> to vector<2x72x256xf32>
    %226 = arith.mulf %224, %225 : vector<2x72x256xf32>
    %cst_178 = arith.constant dense<0.000000e+00> : vector<2x256xf32>
    %227 = vector.multi_reduction <add>, %226, %cst_178 [1] : vector<2x72x256xf32> to vector<2x256xf32>
    %c0_179 = arith.constant 0 : index
    %c0_180 = arith.constant 0 : index
    %228 = vector.load %arg12[%c0_179, %c0_180] : memref<1x256xf32, #tpu.memory_space<vmem>>, vector<1x256xf32>
    %229 = vector.broadcast %228 : vector<1x256xf32> to vector<2x256xf32>
    %230 = arith.addf %227, %229 : vector<2x256xf32>
    %cst_181 = arith.constant 0.000000e+00 : f32
    %231 = vector.broadcast %cst_181 : f32 to vector<2x256xf32>
    %232 = arith.maximumf %230, %231 : vector<2x256xf32>
    %c0_182 = arith.constant 0 : index
    %c0_183 = arith.constant 0 : index
    %233 = vector.load %arg13[%c0_182, %c0_183] : memref<256x1xf32, #tpu.memory_space<vmem>>, vector<256x1xf32>
    %cst_184 = arith.constant dense<0.000000e+00> : vector<2x1xf32>
    %234 = tpu.matmul %232, %233, %cst_184 {dimension_numbers = #tpu.dot_dimension_numbers<[1], [0], [0], [1], [0, 0, 1, 1], [], []>} : vector<2x256xf32>, vector<256x1xf32>, vector<2x1xf32> -> vector<2x1xf32>
    %c0_185 = arith.constant 0 : index
    %c0_186 = arith.constant 0 : index
    %235 = vector.load %arg14[%c0_185, %c0_186] : memref<1x1xf32, #tpu.memory_space<vmem>>, vector<1x1xf32>
    %236 = vector.broadcast %235 : vector<1x1xf32> to vector<2x1xf32>
    %237 = arith.addf %234, %236 : vector<2x1xf32>
    %238 = math.tanh %237 : vector<2x1xf32>
    %239 = tpu.iota {dimensions = array<i32: 1>} : vector<1x128xi32>
    %c7_i32 = arith.constant 7 : i32
    %240 = vector.broadcast %c7_i32 : i32 to vector<1x128xi32>
    %241 = arith.cmpi eq, %239, %240 : vector<1x128xi32>
    %242 = arith.extui %241 : vector<1x128xi1> to vector<1x128xi32>
    %243 = arith.sitofp %242 : vector<1x128xi32> to vector<1x128xf32>
    %244 = vector.broadcast %238 : vector<2x1xf32> to vector<2x128xf32>
    %245 = vector.broadcast %243 : vector<1x128xf32> to vector<2x128xf32>
    %246 = arith.mulf %244, %245 : vector<2x128xf32>
    %247 = arith.addf %221, %246 : vector<2x128xf32>
    %c0_187 = arith.constant 0 : index
    %c0_188 = arith.constant 0 : index
    %c0_189 = arith.constant 0 : index
    %248 = vector.load %arg15[%c0_187, %c0_188, %c0_189] : memref<1x2x128xf32, #tpu.memory_space<vmem>>, vector<1x2x128xf32>
    %249 = vector.shape_cast %248 : vector<1x2x128xf32> to vector<2x128xf32>
    %250 = vector.shape_cast %247 : vector<2x128xf32> to vector<1x2x128xf32>
    tpu.vector_store %arg15[%c0_187, %c0_188, %c0_189], %250 {strides = array<i32>} : memref<1x2x128xf32, #tpu.memory_space<vmem>>, vector<1x2x128xf32>,
    return
  }
  func.func @transform_0(%arg0: i32) -> (i32, i32) {
    %c0_i32 = arith.constant 0 : i32
    %c0_i32_0 = arith.constant 0 : i32
    return %arg0, %c0_i32 : i32, i32
  }
  func.func @transform_1(%arg0: i32) -> (i32, i32) {
    %c0_i32 = arith.constant 0 : i32
    %c0_i32_0 = arith.constant 0 : i32
    return %arg0, %c0_i32 : i32, i32
  }
  func.func @transform_2(%arg0: i32) -> (i32, i32) {
    %c0_i32 = arith.constant 0 : i32
    %c0_i32_0 = arith.constant 0 : i32
    %c0_i32_1 = arith.constant 0 : i32
    return %c0_i32, %c0_i32_0 : i32, i32
  }
  func.func @transform_3(%arg0: i32) -> (i32, i32) {
    %c0_i32 = arith.constant 0 : i32
    %c0_i32_0 = arith.constant 0 : i32
    %c0_i32_1 = arith.constant 0 : i32
    return %c0_i32, %c0_i32_0 : i32, i32
  }
  func.func @transform_4(%arg0: i32) -> (i32, i32, i32) {
    %c0_i32 = arith.constant 0 : i32
    %c0_i32_0 = arith.constant 0 : i32
    %c0_i32_1 = arith.constant 0 : i32
    %c0_i32_2 = arith.constant 0 : i32
    return %c0_i32, %c0_i32_0, %c0_i32_1 : i32, i32, i32
  }
  func.func @transform_5(%arg0: i32) -> (i32, i32, i32) {
    %c0_i32 = arith.constant 0 : i32
    %c0_i32_0 = arith.constant 0 : i32
    %c0_i32_1 = arith.constant 0 : i32
    %c0_i32_2 = arith.constant 0 : i32
    return %c0_i32, %c0_i32_0, %c0_i32_1 : i32, i32, i32
  }
  func.func @transform_6(%arg0: i32) -> (i32, i32) {
    %c0_i32 = arith.constant 0 : i32
    %c0_i32_0 = arith.constant 0 : i32
    %c0_i32_1 = arith.constant 0 : i32
    return %c0_i32, %c0_i32_0 : i32, i32
  }
  func.func @transform_7(%arg0: i32) -> (i32, i32) {
    %c0_i32 = arith.constant 0 : i32
    %c0_i32_0 = arith.constant 0 : i32
    %c0_i32_1 = arith.constant 0 : i32
    return %c0_i32, %c0_i32_0 : i32, i32
  }
  func.func @transform_8(%arg0: i32) -> (i32, i32, i32) {
    %c0_i32 = arith.constant 0 : i32
    %c0_i32_0 = arith.constant 0 : i32
    %c0_i32_1 = arith.constant 0 : i32
    %c0_i32_2 = arith.constant 0 : i32
    return %c0_i32, %c0_i32_0, %c0_i32_1 : i32, i32, i32
  }
  func.func @transform_9(%arg0: i32) -> (i32, i32) {
    %c0_i32 = arith.constant 0 : i32
    %c0_i32_0 = arith.constant 0 : i32
    %c0_i32_1 = arith.constant 0 : i32
    return %c0_i32, %c0_i32_0 : i32, i32
  }
  func.func @transform_10(%arg0: i32) -> (i32, i32) {
    %c0_i32 = arith.constant 0 : i32
    %c0_i32_0 = arith.constant 0 : i32
    %c0_i32_1 = arith.constant 0 : i32
    return %c0_i32, %c0_i32_0 : i32, i32
  }
  func.func @transform_11(%arg0: i32) -> (i32, i32) {
    %c0_i32 = arith.constant 0 : i32
    %c0_i32_0 = arith.constant 0 : i32
    %c0_i32_1 = arith.constant 0 : i32
    return %c0_i32, %c0_i32_0 : i32, i32
  }
  func.func @transform_12(%arg0: i32) -> (i32, i32) {
    %c0_i32 = arith.constant 0 : i32
    %c0_i32_0 = arith.constant 0 : i32
    %c0_i32_1 = arith.constant 0 : i32
    return %c0_i32, %c0_i32_0 : i32, i32
  }
  func.func @transform_13(%arg0: i32) -> (i32, i32) {
    %c0_i32 = arith.constant 0 : i32
    %c0_i32_0 = arith.constant 0 : i32
    %c0_i32_1 = arith.constant 0 : i32
    return %c0_i32, %c0_i32_0 : i32, i32
  }
  func.func @transform_14(%arg0: i32) -> (i32, i32, i32) {
    %c0_i32 = arith.constant 0 : i32
    %c0_i32_0 = arith.constant 0 : i32
    %c0_i32_1 = arith.constant 0 : i32
    return %arg0, %c0_i32, %c0_i32_0 : i32, i32, i32
  }
}

</mosaic_0001>

<llo_original>
// kernel: alpha_connect4_forward.1
$region0: #{alpha_connect4_forward.1}
  #allocation0 [shape = 'u32[]', space=smem, size = 0x4, offset = 0x4, fixed_abs, tag = 'smem constant byte address 0x4 - core index']
  #allocation1 [shape = 'u32[144,128]{1,0:T(1,128)}', space=vmem, size = 0x12000, scoped, tag = 'internal scratch']
  #allocation2 [shape = 'bf16[144,288]{1,0:T(8,128)(2,1)}', space=vmem, size = 0x1b000, scoped, tag = 'scratch operand']
  #allocation3 [shape = 'f32[1,1]{1,0:T(1,128)S(1)}', space=vmem, size = 0x200, scoped, tag = 'scoped memory for alpha_connect4_forward.1']
  %s0 = inlined_call_operand.vmem [shape: f32[432,32], index: 0, kind: input, shape index: {}]
  %s1 = inlined_call_operand.vmem [shape: f32[432,1], index: 1, kind: input, shape index: {}]
  %s2 = inlined_call_operand.vmem [shape: bf16[288,32], index: 2, kind: input, shape index: {}]
  %s3 = inlined_call_operand.vmem [shape: f32[1,32], index: 3, kind: input, shape index: {}]
  %s4 = inlined_call_operand.vmem [shape: bf16[4,288,32], index: 4, kind: input, shape index: {}]
  %s5 = inlined_call_operand.vmem [shape: f32[4,1,32], index: 5, kind: input, shape index: {}]
  %s6 = inlined_call_operand.vmem [shape: f32[32,3], index: 6, kind: input, shape index: {}]
  %s7 = inlined_call_operand.vmem [shape: f32[1,3], index: 7, kind: input, shape index: {}]
  %s8 = inlined_call_operand.vmem [shape: f32[2,72,128], index: 8, kind: input, shape index: {}]
  %s9 = inlined_call_operand.vmem [shape: f32[1,128], index: 9, kind: input, shape index: {}]
  %s10 = inlined_call_operand.vmem [shape: f32[72,256], index: 10, kind: input, shape index: {}]
  %s11 = inlined_call_operand.vmem [shape: f32[1,256], index: 11, kind: input, shape index: {}]
  %s12 = inlined_call_operand.vmem [shape: f32[256,1], index: 12, kind: input, shape index: {}]
  %s13 = inlined_call_operand.<no memory space> [shape: f32[1,1], index: 13, kind: input, shape index: {}]
  %s14 = inlined_call_operand.vmem [shape: f32[3,2,128], index: 14, kind: output, shape index: {}]
  %s15 = sld [smem:[#allocation0]]
  $region89: #{alpha_connect4_forward.1} parent=0
    _
  %s17 = ssub.s32 1, %s15
  %s18 = scalar_select 0, %s17, %s15
  %v19 = vstv %s13
  %20 = vst [vmem:[#allocation3] sm:$0x1] %v19
  loop: start=0, step=1, limit=5
  $region2: #{alpha_connect4_forward.1} parent=0 // loop_pre_header
    _
  $region3: #{alpha_connect4_forward.1} parent=0 // loop_header
    %s22 = sphi 0, %s26
    %p23 = scmp.ge.s32.totalorder %s22, 5
    %s32 = sphi 0, %s34
    %s35 = sphi 0, %s32
    %s36 = sphi 0, %s35
    %s52 = sphi 0, %s36
    %s58 = sphi 0, %s60
    %s61 = sphi 0, %s58
    %s62 = sphi 0, %s61
    %s78 = sphi 0, %s62
    %s82 = sphi 0, %s82
    %s84 = sphi 0, %s82
    %s85 = sphi 0, %s84
    %s99 = sphi 0, %s85
    %s103 = sphi 0, %s103
    %s105 = sphi 0, %s103
    %s106 = sphi 0, %s105
    %s120 = sphi 0, %s106
    %s124 = sphi 0, %s124
    %s126 = sphi 0, %s124
    %s127 = sphi 0, %s126
    %s141 = sphi 0, %s127
    %s145 = sphi 0, %s145
    %s147 = sphi 0, %s145
    %s148 = sphi 0, %s147
    %s162 = sphi 0, %s148
    %s166 = sphi 0, %s166
    %s168 = sphi 0, %s166
    %s169 = sphi 0, %s168
    %s183 = sphi 0, %s169
    %s187 = sphi 0, %s187
    %s189 = sphi 0, %s187
    %s190 = sphi 0, %s189
    %s204 = sphi 0, %s190
    %s208 = sphi 0, %s208
    %s210 = sphi 0, %s208
    %s211 = sphi 0, %s210
    %s225 = sphi 0, %s211
    %s229 = sphi 0, %s229
    %s231 = sphi 0, %s229
    %s232 = sphi 0, %s231
    %s246 = sphi 0, %s232
    %s250 = sphi 0, %s250
    %s252 = sphi 0, %s250
    %s253 = sphi 0, %s252
    %s267 = sphi 0, %s253
    %s271 = sphi 0, %s271
    %s273 = sphi 0, %s271
    %s274 = sphi 0, %s273
    %s288 = sphi 0, %s274
    %s292 = sphi 0, %s292
    %s294 = sphi 0, %s292
    %s295 = sphi 0, %s294
    %s309 = sphi 0, %s295
    %s313 = sphi 0, %s313
    %s315 = sphi 0, %s313
    %s316 = sphi 0, %s315
    %s330 = sphi 0, %s316
    %s336 = sphi 0, %s338
    %s339 = sphi 0, %s336
    %s340 = sphi 0, %s339
    %s356 = sphi 0, %s340
  $region4: #{alpha_connect4_forward.1} parent=0 // loop_header_branch
    %25 = sbr.rel (%p23) target = $region8
  $region5: #{alpha_connect4_forward.1} parent=0 // loop_body
    %s27 = ssub.s32 %s22, 1
    %s28 = ssub.s32 %s22, 2
    %s29 = sadd.s32 %s22, 1
    %s30 = ssub.s32 %s22, %s29
    %p31 = scmp.eq.s32.totalorder %s30, 0
    %s33 = sadd.s32 %s32, 1
    %s34 = scalar_select %p31, %s32, %s33
    %p37 = pneg %p31
    %p38 = scmp.eq.s32.totalorder %s22, 2
    %p39 = por %p37, %p38
    %p40 = scmp.ne.s32.totalorder %s32, %s35
    %p41 = scmp.eq.s32.totalorder %s22, 0
    %p42 = por %p40, %p41
    %p43 = scmp.ne.s32.totalorder %s32, %s35
    %p44 = scmp.eq.s32.totalorder %s27, 2
    %p45 = por %p43, %p44
    %p46 = scmp.ne.s32.totalorder %s35, %s36
    %p47 = scmp.eq.s32.totalorder %s27, 0
    %p48 = por %p46, %p47
    %p49 = scmp.ne.s32.totalorder %s35, %s36
    %p50 = scmp.eq.s32.totalorder %s28, 2
    %p51 = por %p49, %p50
    %p53 = scmp.ne.s32.totalorder %s36, %s52
    %p54 = scmp.eq.s32.totalorder %s28, 0
    %p55 = por %p53, %p54
    %s56 = ssub.s32 %s22, %s29
    %p57 = scmp.eq.s32.totalorder %s56, 0
    %s59 = sadd.s32 %s58, 1
    %s60 = scalar_select %p57, %s58, %s59
    %p63 = pneg %p57
    %p64 = scmp.eq.s32.totalorder %s22, 2
    %p65 = por %p63, %p64
    %p66 = scmp.ne.s32.totalorder %s58, %s61
    %p67 = scmp.eq.s32.totalorder %s22, 0
    %p68 = por %p66, %p67
    %p69 = scmp.ne.s32.totalorder %s58, %s61
    %p70 = scmp.eq.s32.totalorder %s27, 2
    %p71 = por %p69, %p70
    %p72 = scmp.ne.s32.totalorder %s61, %s62
    %p73 = scmp.eq.s32.totalorder %s27, 0
    %p74 = por %p72, %p73
    %p75 = scmp.ne.s32.totalorder %s61, %s62
    %p76 = scmp.eq.s32.totalorder %s28, 2
    %p77 = por %p75, %p76
    %p79 = scmp.ne.s32.totalorder %s62, %s78
    %p80 = scmp.eq.s32.totalorder %s28, 0
    %p81 = por %p79, %p80
    %s83 = sadd.s32 %s82, 1
    %p86 = scmp.eq.s32.totalorder %s22, 2
    %p87 = scmp.ne.s32.totalorder %s82, %s84
    %p88 = scmp.eq.s32.totalorder %s22, 0
    %p89 = por %p87, %p88
    %p90 = scmp.ne.s32.totalorder %s82, %s84
    %p91 = scmp.eq.s32.totalorder %s27, 2
    %p92 = por %p90, %p91
    %p93 = scmp.ne.s32.totalorder %s84, %s85
    %p94 = scmp.eq.s32.totalorder %s27, 0
    %p95 = por %p93, %p94
    %p96 = scmp.ne.s32.totalorder %s84, %s85
    %p97 = scmp.eq.s32.totalorder %s28, 2
    %p98 = por %p96, %p97
    %p100 = scmp.ne.s32.totalorder %s85, %s99
    %p101 = scmp.eq.s32.totalorder %s28, 0
    %p102 = por %p100, %p101
    %s104 = sadd.s32 %s103, 1
    %p107 = scmp.eq.s32.totalorder %s22, 2
    %p108 = scmp.ne.s32.totalorder %s103, %s105
    %p109 = scmp.eq.s32.totalorder %s22, 0
    %p110 = por %p108, %p109
    %p111 = scmp.ne.s32.totalorder %s103, %s105
    %p112 = scmp.eq.s32.totalorder %s27, 2
    %p113 = por %p111, %p112
    %p114 = scmp.ne.s32.totalorder %s105, %s106
    %p115 = scmp.eq.s32.totalorder %s27, 0
    %p116 = por %p114, %p115
    %p117 = scmp.ne.s32.totalorder %s105, %s106
    %p118 = scmp.eq.s32.totalorder %s28, 2
    %p119 = por %p117, %p118
    %p121 = scmp.ne.s32.totalorder %s106, %s120
    %p122 = scmp.eq.s32.totalorder %s28, 0
    %p123 = por %p121, %p122
    %s125 = sadd.s32 %s124, 1
    %p128 = scmp.eq.s32.totalorder %s22, 2
    %p129 = scmp.ne.s32.totalorder %s124, %s126
    %p130 = scmp.eq.s32.totalorder %s22, 0
    %p131 = por %p129, %p130
    %p132 = scmp.ne.s32.totalorder %s124, %s126
    %p133 = scmp.eq.s32.totalorder %s27, 2
    %p134 = por %p132, %p133
    %p135 = scmp.ne.s32.totalorder %s126, %s127
    %p136 = scmp.eq.s32.totalorder %s27, 0
    %p137 = por %p135, %p136
    %p138 = scmp.ne.s32.totalorder %s126, %s127
    %p139 = scmp.eq.s32.totalorder %s28, 2
    %p140 = por %p138, %p139
    %p142 = scmp.ne.s32.totalorder %s127, %s141
    %p143 = scmp.eq.s32.totalorder %s28, 0
    %p144 = por %p142, %p143
    %s146 = sadd.s32 %s145, 1
    %p149 = scmp.eq.s32.totalorder %s22, 2
    %p150 = scmp.ne.s32.totalorder %s145, %s147
    %p151 = scmp.eq.s32.totalorder %s22, 0
    %p152 = por %p150, %p151
    %p153 = scmp.ne.s32.totalorder %s145, %s147
    %p154 = scmp.eq.s32.totalorder %s27, 2
    %p155 = por %p153, %p154
    %p156 = scmp.ne.s32.totalorder %s147, %s148
    %p157 = scmp.eq.s32.totalorder %s27, 0
    %p158 = por %p156, %p157
    %p159 = scmp.ne.s32.totalorder %s147, %s148
    %p160 = scmp.eq.s32.totalorder %s28, 2
    %p161 = por %p159, %p160
    %p163 = scmp.ne.s32.totalorder %s148, %s162
    %p164 = scmp.eq.s32.totalorder %s28, 0
    %p165 = por %p163, %p164
    %s167 = sadd.s32 %s166, 1
    %p170 = scmp.eq.s32.totalorder %s22, 2
    %p171 = scmp.ne.s32.totalorder %s166, %s168
    %p172 = scmp.eq.s32.totalorder %s22, 0
    %p173 = por %p171, %p172
    %p174 = scmp.ne.s32.totalorder %s166, %s168
    %p175 = scmp.eq.s32.totalorder %s27, 2
    %p176 = por %p174, %p175
    %p177 = scmp.ne.s32.totalorder %s168, %s169
    %p178 = scmp.eq.s32.totalorder %s27, 0
    %p179 = por %p177, %p178
    %p180 = scmp.ne.s32.totalorder %s168, %s169
    %p181 = scmp.eq.s32.totalorder %s28, 2
    %p182 = por %p180, %p181
    %p184 = scmp.ne.s32.totalorder %s169, %s183
    %p185 = scmp.eq.s32.totalorder %s28, 0
    %p186 = por %p184, %p185
    %s188 = sadd.s32 %s187, 1
    %p191 = scmp.eq.s32.totalorder %s22, 2
    %p192 = scmp.ne.s32.totalorder %s187, %s189
    %p193 = scmp.eq.s32.totalorder %s22, 0
    %p194 = por %p192, %p193
    %p195 = scmp.ne.s32.totalorder %s187, %s189
    %p196 = scmp.eq.s32.totalorder %s27, 2
    %p197 = por %p195, %p196
    %p198 = scmp.ne.s32.totalorder %s189, %s190
    %p199 = scmp.eq.s32.totalorder %s27, 0
    %p200 = por %p198, %p199
    %p201 = scmp.ne.s32.totalorder %s189, %s190
    %p202 = scmp.eq.s32.totalorder %s28, 2
    %p203 = por %p201, %p202
    %p205 = scmp.ne.s32.totalorder %s190, %s204
    %p206 = scmp.eq.s32.totalorder %s28, 0
    %p207 = por %p205, %p206
    %s209 = sadd.s32 %s208, 1
    %p212 = scmp.eq.s32.totalorder %s22, 2
    %p213 = scmp.ne.s32.totalorder %s208, %s210
    %p214 = scmp.eq.s32.totalorder %s22, 0
    %p215 = por %p213, %p214
    %p216 = scmp.ne.s32.totalorder %s208, %s210
    %p217 = scmp.eq.s32.totalorder %s27, 2
    %p218 = por %p216, %p217
    %p219 = scmp.ne.s32.totalorder %s210, %s211
    %p220 = scmp.eq.s32.totalorder %s27, 0
    %p221 = por %p219, %p220
    %p222 = scmp.ne.s32.totalorder %s210, %s211
    %p223 = scmp.eq.s32.totalorder %s28, 2
    %p224 = por %p222, %p223
    %p226 = scmp.ne.s32.totalorder %s211, %s225
    %p227 = scmp.eq.s32.totalorder %s28, 0
    %p228 = por %p226, %p227
    %s230 = sadd.s32 %s229, 1
    %p233 = scmp.eq.s32.totalorder %s22, 2
    %p234 = scmp.ne.s32.totalorder %s229, %s231
    %p235 = scmp.eq.s32.totalorder %s22, 0
    %p236 = por %p234, %p235
    %p237 = scmp.ne.s32.totalorder %s229, %s231
    %p238 = scmp.eq.s32.totalorder %s27, 2
    %p239 = por %p237, %p238
    %p240 = scmp.ne.s32.totalorder %s231, %s232
    %p241 = scmp.eq.s32.totalorder %s27, 0
    %p242 = por %p240, %p241
    %p243 = scmp.ne.s32.totalorder %s231, %s232
    %p244 = scmp.eq.s32.totalorder %s28, 2
    %p245 = por %p243, %p244
    %p247 = scmp.ne.s32.totalorder %s232, %s246
    %p248 = scmp.eq.s32.totalorder %s28, 0
    %p249 = por %p247, %p248
    %s251 = sadd.s32 %s250, 1
    %p254 = scmp.eq.s32.totalorder %s22, 2
    %p255 = scmp.ne.s32.totalorder %s250, %s252
    %p256 = scmp.eq.s32.totalorder %s22, 0
    %p257 = por %p255, %p256
    %p258 = scmp.ne.s32.totalorder %s250, %s252
    %p259 = scmp.eq.s32.totalorder %s27, 2
    %p260 = por %p258, %p259
    %p261 = scmp.ne.s32.totalorder %s252, %s253
    %p262 = scmp.eq.s32.totalorder %s27, 0
    %p263 = por %p261, %p262
    %p264 = scmp.ne.s32.totalorder %s252, %s253
    %p265 = scmp.eq.s32.totalorder %s28, 2
    %p266 = por %p264, %p265
    %p268 = scmp.ne.s32.totalorder %s253, %s267
    %p269 = scmp.eq.s32.totalorder %s28, 0
    %p270 = por %p268, %p269
    %s272 = sadd.s32 %s271, 1
    %p275 = scmp.eq.s32.totalorder %s22, 2
    %p276 = scmp.ne.s32.totalorder %s271, %s273
    %p277 = scmp.eq.s32.totalorder %s22, 0
    %p278 = por %p276, %p277
    %p279 = scmp.ne.s32.totalorder %s271, %s273
    %p280 = scmp.eq.s32.totalorder %s27, 2
    %p281 = por %p279, %p280
    %p282 = scmp.ne.s32.totalorder %s273, %s274
    %p283 = scmp.eq.s32.totalorder %s27, 0
    %p284 = por %p282, %p283
    %p285 = scmp.ne.s32.totalorder %s273, %s274
    %p286 = scmp.eq.s32.totalorder %s28, 2
    %p287 = por %p285, %p286
    %p289 = scmp.ne.s32.totalorder %s274, %s288
    %p290 = scmp.eq.s32.totalorder %s28, 0
    %p291 = por %p289, %p290
    %s293 = sadd.s32 %s292, 1
    %p296 = scmp.eq.s32.totalorder %s22, 2
    %p297 = scmp.ne.s32.totalorder %s292, %s294
    %p298 = scmp.eq.s32.totalorder %s22, 0
    %p299 = por %p297, %p298
    %p300 = scmp.ne.s32.totalorder %s292, %s294
    %p301 = scmp.eq.s32.totalorder %s27, 2
    %p302 = por %p300, %p301
    %p303 = scmp.ne.s32.totalorder %s294, %s295
    %p304 = scmp.eq.s32.totalorder %s27, 0
    %p305 = por %p303, %p304
    %p306 = scmp.ne.s32.totalorder %s294, %s295
    %p307 = scmp.eq.s32.totalorder %s28, 2
    %p308 = por %p306, %p307
    %p310 = scmp.ne.s32.totalorder %s295, %s309
    %p311 = scmp.eq.s32.totalorder %s28, 0
    %p312 = por %p310, %p311
    %s314 = sadd.s32 %s313, 1
    %p317 = scmp.eq.s32.totalorder %s22, 2
    %p318 = scmp.ne.s32.totalorder %s313, %s315
    %p319 = scmp.eq.s32.totalorder %s22, 0
    %p320 = por %p318, %p319
    %p321 = scmp.ne.s32.totalorder %s313, %s315
    %p322 = scmp.eq.s32.totalorder %s27, 2
    %p323 = por %p321, %p322
    %p324 = scmp.ne.s32.totalorder %s315, %s316
    %p325 = scmp.eq.s32.totalorder %s27, 0
    %p326 = por %p324, %p325
    %p327 = scmp.ne.s32.totalorder %s315, %s316
    %p328 = scmp.eq.s32.totalorder %s28, 2
    %p329 = por %p327, %p328
    %p331 = scmp.ne.s32.totalorder %s316, %s330
    %p332 = scmp.eq.s32.totalorder %s28, 0
    %p333 = por %p331, %p332
    %s334 = ssub.s32 %s22, %s29
    %p335 = scmp.eq.s32.totalorder %s334, 0
    %s337 = sadd.s32 %s336, 1
    %s338 = scalar_select %p335, %s336, %s337
    %p341 = pneg %p335
    %p342 = scmp.eq.s32.totalorder %s22, 2
    %p343 = por %p341, %p342
    %p344 = scmp.ne.s32.totalorder %s336, %s339
    %p345 = scmp.eq.s32.totalorder %s22, 0
    %p346 = por %p344, %p345
    %p347 = scmp.ne.s32.totalorder %s336, %s339
    %p348 = scmp.eq.s32.totalorder %s27, 2
    %p349 = por %p347, %p348
    %p350 = scmp.ne.s32.totalorder %s339, %s340
    %p351 = scmp.eq.s32.totalorder %s27, 0
    %p352 = por %p350, %p351
    %p353 = scmp.ne.s32.totalorder %s339, %s340
    %p354 = scmp.eq.s32.totalorder %s28, 2
    %p355 = por %p353, %p354
    %p357 = scmp.ne.s32.totalorder %s340, %s356
    %p358 = scmp.eq.s32.totalorder %s28, 0
    %p359 = por %p357, %p358
    %p360 = scmp.le.s32.totalorder 1, %s22
    %p361 = scmp.lt.s32.totalorder %s22, 4
    %p362 = pnand %p360, %p361
    %p363 = pneg %p362
    // Predicated region
    $region9: #{alpha_connect4_forward.1} parent=5 // pred_check
      _
    $region10: #{alpha_connect4_forward.1} parent=5 // pred_check_branch
      %365 = sbr.rel (%p362) target = $region12
    $region11: #{alpha_connect4_forward.1} parent=5 // pred_region
      %s366 = ssub.s32 %s22, 1
      // Predicated region
      $region13: #{alpha_connect4_forward.1} parent=11 // pred_check
        %p367 = pneg %p95
      $region14: #{alpha_connect4_forward.1} parent=11 // pred_check_branch
        %369 = sbr.rel (%p367) target = $region16
      $region15: #{alpha_connect4_forward.1} parent=11 // pred_region
        _
      $region16: #{alpha_connect4_forward.1} parent=11 // pred_fallthru
        _
      // Predicated region
      $region17: #{alpha_connect4_forward.1} parent=11 // pred_check
        %p370 = pneg %p116
      $region18: #{alpha_connect4_forward.1} parent=11 // pred_check_branch
        %372 = sbr.rel (%p370) target = $region20
      $region19: #{alpha_connect4_forward.1} parent=11 // pred_region
        _
      $region20: #{alpha_connect4_forward.1} parent=11 // pred_fallthru
        _
      // Predicated region
      $region21: #{alpha_connect4_forward.1} parent=11 // pred_check
        %p373 = pneg %p137
      $region22: #{alpha_connect4_forward.1} parent=11 // pred_check_branch
        %375 = sbr.rel (%p373) target = $region24
      $region23: #{alpha_connect4_forward.1} parent=11 // pred_region
        _
      $region24: #{alpha_connect4_forward.1} parent=11 // pred_fallthru
        _
      // Predicated region
      $region25: #{alpha_connect4_forward.1} parent=11 // pred_check
        %p376 = pneg %p158
      $region26: #{alpha_connect4_forward.1} parent=11 // pred_check_branch
        %378 = sbr.rel (%p376) target = $region28
      $region27: #{alpha_connect4_forward.1} parent=11 // pred_region
        _
      $region28: #{alpha_connect4_forward.1} parent=11 // pred_fallthru
        _
      // Predicated region
      $region29: #{alpha_connect4_forward.1} parent=11 // pred_check
        %p379 = pneg %p179
      $region30: #{alpha_connect4_forward.1} parent=11 // pred_check_branch
        %381 = sbr.rel (%p379) target = $region32
      $region31: #{alpha_connect4_forward.1} parent=11 // pred_region
        _
      $region32: #{alpha_connect4_forward.1} parent=11 // pred_fallthru
        _
      // Predicated region
      $region33: #{alpha_connect4_forward.1} parent=11 // pred_check
        %p382 = pneg %p200
      $region34: #{alpha_connect4_forward.1} parent=11 // pred_check_branch
        %384 = sbr.rel (%p382) target = $region36
      $region35: #{alpha_connect4_forward.1} parent=11 // pred_region
        _
      $region36: #{alpha_connect4_forward.1} parent=11 // pred_fallthru
        _
      // Predicated region
      $region37: #{alpha_connect4_forward.1} parent=11 // pred_check
        %p385 = pneg %p221
      $region38: #{alpha_connect4_forward.1} parent=11 // pred_check_branch
        %387 = sbr.rel (%p385) target = $region40
      $region39: #{alpha_connect4_forward.1} parent=11 // pred_region
        _
      $region40: #{alpha_connect4_forward.1} parent=11 // pred_fallthru
        _
      // Predicated region
      $region41: #{alpha_connect4_forward.1} parent=11 // pred_check
        %p388 = pneg %p242
      $region42: #{alpha_connect4_forward.1} parent=11 // pred_check_branch
        %390 = sbr.rel (%p388) target = $region44
      $region43: #{alpha_connect4_forward.1} parent=11 // pred_region
        _
      $region44: #{alpha_connect4_forward.1} parent=11 // pred_fallthru
        _
      // Predicated region
      $region45: #{alpha_connect4_forward.1} parent=11 // pred_check
        %p391 = pneg %p263
      $region46: #{alpha_connect4_forward.1} parent=11 // pred_check_branch
        %393 = sbr.rel (%p391) target = $region48
      $region47: #{alpha_connect4_forward.1} parent=11 // pred_region
        _
      $region48: #{alpha_connect4_forward.1} parent=11 // pred_fallthru
        _
      // Predicated region
      $region49: #{alpha_connect4_forward.1} parent=11 // pred_check
        %p394 = pneg %p284
      $region50: #{alpha_connect4_forward.1} parent=11 // pred_check_branch
        %396 = sbr.rel (%p394) target = $region52
      $region51: #{alpha_connect4_forward.1} parent=11 // pred_region
        _
      $region52: #{alpha_connect4_forward.1} parent=11 // pred_fallthru
        _
      // Predicated region
      $region53: #{alpha_connect4_forward.1} parent=11 // pred_check
        %p397 = pneg %p305
      $region54: #{alpha_connect4_forward.1} parent=11 // pred_check_branch
        %399 = sbr.rel (%p397) target = $region56
      $region55: #{alpha_connect4_forward.1} parent=11 // pred_region
        _
      $region56: #{alpha_connect4_forward.1} parent=11 // pred_fallthru
        _
      // Predicated region
      $region57: #{alpha_connect4_forward.1} parent=11 // pred_check
        %p400 = pneg %p326
      $region58: #{alpha_connect4_forward.1} parent=11 // pred_check_branch
        %402 = sbr.rel (%p400) target = $region60
      $region59: #{alpha_connect4_forward.1} parent=11 // pred_region
        _
      $region60: #{alpha_connect4_forward.1} parent=11 // pred_fallthru
        _
    $region12: #{alpha_connect4_forward.1} parent=5 // pred_fallthru
      _
    %p403 = scmp.lt.s32.totalorder %s22, 3
    // Predicated region
    $region61: #{alpha_connect4_forward.1} parent=5 // pred_check
      %p404 = pneg %p403
    $region62: #{alpha_connect4_forward.1} parent=5 // pred_check_branch
      %406 = sbr.rel (%p404) target = $region64
    $region63: #{alpha_connect4_forward.1} parent=5 // pred_region
      // Predicated region
      $region65: #{alpha_connect4_forward.1} parent=63 // pred_check
        %p407 = pneg %p42
      $region66: #{alpha_connect4_forward.1} parent=63 // pred_check_branch
        %409 = sbr.rel (%p407) target = $region68
      $region67: #{alpha_connect4_forward.1} parent=63 // pred_region
        %s410 = smul.u32 18, %s22
        %p411 = scmp.lt.s32.totalorder %s410, 53
        %s412 = scalar_select %p411, %s410, 53
        %s413 = smul.addr %s412, 8
        %s414 = scalar_lea.vmem %s0, %s413
        %s415 = smul.u32 18, %s22
      $region68: #{alpha_connect4_forward.1} parent=63 // pred_fallthru
        _
      // Predicated region
      $region69: #{alpha_connect4_forward.1} parent=63 // pred_check
        %p416 = pneg %p68
      $region70: #{alpha_connect4_forward.1} parent=63 // pred_check_branch
        %418 = sbr.rel (%p416) target = $region72
      $region71: #{alpha_connect4_forward.1} parent=63 // pred_region
        %s419 = smul.u32 18, %s22
        %p420 = scmp.lt.s32.totalorder %s419, 53
        %s421 = scalar_select %p420, %s419, 53
        %s422 = smul.addr %s421, 8
        %s423 = scalar_lea.vmem %s1, %s422
        %s424 = smul.u32 18, %s22
      $region72: #{alpha_connect4_forward.1} parent=63 // pred_fallthru
        _
    $region64: #{alpha_connect4_forward.1} parent=5 // pred_fallthru
      _
    %p425 = scmp.le.s32.totalorder 1, %s22
    %p426 = scmp.lt.s32.totalorder %s22, 4
    %p427 = pnand %p425, %p426
    %p428 = pneg %p427
    // Predicated region
    $region73: #{alpha_connect4_forward.1} parent=5 // pred_check
      _
    $region74: #{alpha_connect4_forward.1} parent=5 // pred_check_branch
      %430 = sbr.rel (%p427) target = $region76
    $region75: #{alpha_connect4_forward.1} parent=5 // pred_region
      %s431 = ssub.s32 %s22, 1
      %s432 = smul.u32 18, %s27
      %p433 = scmp.lt.s32.totalorder %s432, 53
      %s434 = scalar_select %p433, %s432, 53
      %s435 = smul.addr %s434, 8
      %s436 = scalar_lea.vmem %s0, %s435
      %p437 = pneg %p48
      %p438 = pneg %p45
      %s439 = smul.u32 18, %s27
      %p440 = scmp.lt.s32.totalorder %s439, 53
      %s441 = scalar_select %p440, %s439, 53
      %s442 = smul.addr %s441, 8
      %s443 = scalar_lea.vmem %s1, %s442
      %p444 = pneg %p74
      %p445 = pneg %p71
      %p446 = pneg %p95
      %p447 = pneg %p92
      %p448 = pneg %p116
      %p449 = pneg %p113
      %p450 = pneg %p137
      %p451 = pneg %p134
      %p452 = pneg %p158
      %p453 = pneg %p155
      %p454 = pneg %p179
      %p455 = pneg %p176
      %p456 = pneg %p200
      %p457 = pneg %p197
      %p458 = pneg %p221
      %p459 = pneg %p218
      %p460 = pneg %p242
      %p461 = pneg %p239
      %p462 = pneg %p263
      %p463 = pneg %p260
      %p464 = pneg %p284
      %p465 = pneg %p281
      %p466 = pneg %p305
      %p467 = pneg %p302
      %p468 = pneg %p326
      %p469 = pneg %p323
      %p470 = pneg %p352
      %p471 = pneg %p349
      %p472 = scmp.lt.s32.totalorder %s27, 2
      %s473 = scalar_select %p472, %s27, 2
      %s474 = smul.addr %s473, 2
      %s475 = scalar_lea.vmem %s14, %s474
      %s476 = smul.u32 18, %s27
      %p477 = scmp.lt.s32.totalorder %s476, 53
      %s478 = scalar_select %p477, %s476, 53
      %s479 = smul.addr %s478, 8
      %s480 = scalar_lea.vmem %s0, %s479
      %s481 = smul.u32 18, %s27
      %s482 = smul.u32 18, %s27
      %p483 = scmp.lt.s32.totalorder %s482, 53
      %s484 = scalar_select %p483, %s482, 53
      %s485 = smul.addr %s484, 8
      %s486 = scalar_lea.vmem %s1, %s485
      %s487 = smul.u32 18, %s27
      %p488 = scmp.lt.s32.totalorder %s27, 2
      %s489 = scalar_select %p488, %s27, 2
      %s490 = smul.addr %s489, 2
      %s491 = scalar_lea.vmem %s14, %s490
      %v493 = vld [vmem:[%s486] sm:$0xff]
      %v494 = vld [vmem:[%s486 + $0x8] sm:$0xff]
      %v495 = vld [vmem:[%s486 + $0x10] sm:$0xff]
      %v496 = vld [vmem:[%s486 + $0x18] sm:$0xff]
      %v497 = vld [vmem:[%s486 + $0x20] sm:$0xff]
      %v498 = vld [vmem:[%s486 + $0x28] sm:$0xff]
      %v499 = vld [vmem:[%s486 + $0x30] sm:$0xff]
      %v500 = vld [vmem:[%s486 + $0x38] sm:$0xff]
      %v501 = vld [vmem:[%s486 + $0x40] sm:$0xff]
      %v502 = vld [vmem:[%s486 + $0x48] sm:$0xff]
      %v503 = vld [vmem:[%s486 + $0x50] sm:$0xff]
      %v504 = vld [vmem:[%s486 + $0x58] sm:$0xff]
      %v505 = vld [vmem:[%s486 + $0x60] sm:$0xff]
      %v506 = vld [vmem:[%s486 + $0x68] sm:$0xff]
      %v507 = vld [vmem:[%s486 + $0x70] sm:$0xff]
      %v508 = vld [vmem:[%s486 + $0x78] sm:$0xff]
      %v509 = vld [vmem:[%s486 + $0x80] sm:$0xff]
      %v510 = vld [vmem:[%s486 + $0x88] sm:$0xff]
      %v511 = vld [vmem:[%s480] sm:$0xff]
      %v512 = vld [vmem:[%s480 + $0x8] sm:$0xff]
      %v513 = vld [vmem:[%s480 + $0x10] sm:$0xff]
      %v514 = vld [vmem:[%s480 + $0x18] sm:$0xff]
      %v515 = vld [vmem:[%s480 + $0x20] sm:$0xff]
      %v516 = vld [vmem:[%s480 + $0x28] sm:$0xff]
      %v517 = vld [vmem:[%s480 + $0x30] sm:$0xff]
      %v518 = vld [vmem:[%s480 + $0x38] sm:$0xff]
      %v519 = vld [vmem:[%s480 + $0x40] sm:$0xff]
      %v520 = vld [vmem:[%s480 + $0x48] sm:$0xff]
      %v521 = vld [vmem:[%s480 + $0x50] sm:$0xff]
      %v522 = vld [vmem:[%s480 + $0x58] sm:$0xff]
      %v523 = vld [vmem:[%s480 + $0x60] sm:$0xff]
      %v524 = vld [vmem:[%s480 + $0x68] sm:$0xff]
      %v525 = vld [vmem:[%s480 + $0x70] sm:$0xff]
      %v526 = vld [vmem:[%s480 + $0x78] sm:$0xff]
      %v527 = vld [vmem:[%s480 + $0x80] sm:$0xff]
      %v528 = vld [vmem:[%s480 + $0x88] sm:$0xff]
      %v529 = vld [vmem:[%s2] sm:$0xf]
      %v530 = vld [vmem:[%s2 + $0x4] sm:$0xf]
      %v531 = vld [vmem:[%s2 + $0x8] sm:$0xf]
      %v532 = vld [vmem:[%s2 + $0xc] sm:$0xf]
      %v533 = vld [vmem:[%s2 + $0x10] sm:$0xf]
      %v534 = vld [vmem:[%s2 + $0x14] sm:$0xf]
      %v535 = vld [vmem:[%s2 + $0x18] sm:$0xf]
      %v536 = vld [vmem:[%s2 + $0x1c] sm:$0xf]
      %v537 = vld [vmem:[%s2 + $0x20] sm:$0xf]
      %v538 = vld [vmem:[%s2 + $0x24] sm:$0xf]
      %v539 = vld [vmem:[%s2 + $0x28] sm:$0xf]
      %v540 = vld [vmem:[%s2 + $0x2c] sm:$0xf]
      %v541 = vld [vmem:[%s2 + $0x30] sm:$0xf]
      %v542 = vld [vmem:[%s2 + $0x34] sm:$0xf]
      %v543 = vld [vmem:[%s2 + $0x38] sm:$0xf]
      %v544 = vld [vmem:[%s2 + $0x3c] sm:$0xf]
      %v545 = vld [vmem:[%s2 + $0x40] sm:$0xf]
      %v546 = vld [vmem:[%s2 + $0x44] sm:$0xf]
      %v547 = vld [vmem:[%s2 + $0x48] sm:$0xf]
      %v548 = vld [vmem:[%s2 + $0x4c] sm:$0xf]
      %v549 = vld [vmem:[%s2 + $0x50] sm:$0xf]
      %v550 = vld [vmem:[%s2 + $0x54] sm:$0xf]
      %v551 = vld [vmem:[%s2 + $0x58] sm:$0xf]
      %v552 = vld [vmem:[%s2 + $0x5c] sm:$0xf]
      %v553 = vld [vmem:[%s2 + $0x60] sm:$0xf]
      %v554 = vld [vmem:[%s2 + $0x64] sm:$0xf]
      %v555 = vld [vmem:[%s2 + $0x68] sm:$0xf]
      %v556 = vld [vmem:[%s2 + $0x6c] sm:$0xf]
      %v557 = vld [vmem:[%s2 + $0x70] sm:$0xf]
      %v558 = vld [vmem:[%s2 + $0x74] sm:$0xf]
      %v559 = vld [vmem:[%s2 + $0x78] sm:$0xf]
      %v560 = vld [vmem:[%s2 + $0x7c] sm:$0xf]
      %v561 = vld [vmem:[%s2 + $0x80] sm:$0xf]
      %v562 = vld [vmem:[%s2 + $0x84] sm:$0xf]
      %v563 = vld [vmem:[%s2 + $0x88] sm:$0xf]
      %v564 = vld [vmem:[%s2 + $0x8c] sm:$0xf]
      %v565 = vld [vmem:[%s3] sm:$0x1]
      %v566 = vrot.slane %v511, 6
      %v567 = vrot.slane %v512, 6
      %v568 = vrot.slane %v513, 6
      %v569 = vrot.slane %v514, 6
      %v570 = vrot.slane %v515, 6
      %v571 = vrot.slane %v516, 6
      %v572 = vrot.slane %v517, 6
      %v573 = vrot.slane %v518, 6
      %v574 = vrot.slane %v519, 6
      %v575 = vrot.slane %v520, 6
      %v576 = vrot.slane %v521, 6
      %v577 = vrot.slane %v522, 6
      %v578 = vrot.slane %v523, 6
      %v579 = vrot.slane %v524, 6
      %v580 = vrot.slane %v525, 6
      %v581 = vrot.slane %v526, 6
      %v582 = vrot.slane %v527, 6
      %v583 = vrot.slane %v528, 6
      %v584 = vlaneseq
      %v585 = vshrl.u32 %v584, 7
      %vm586 = vcmp.lt.s32.totalorder %v585, 2
      %v587 = vsel %vm586, %v582, %v583
      %v588 = vsel %vm586, %v581, %v582
      %v589 = vsel %vm586, %v580, %v581
      %v590 = vsel %vm586, %v579, %v580
      %v591 = vsel %vm586, %v578, %v579
      %v592 = vsel %vm586, %v577, %v578
      %v593 = vsel %vm586, %v576, %v577
      %v594 = vsel %vm586, %v575, %v576
      %v595 = vsel %vm586, %v574, %v575
      %v596 = vsel %vm586, %v573, %v574
      %v597 = vsel %vm586, %v572, %v573
      %v598 = vsel %vm586, %v571, %v572
      %v599 = vsel %vm586, %v570, %v571
      %v600 = vsel %vm586, %v569, %v570
      %v601 = vsel %vm586, %v568, %v569
      %v602 = vsel %vm586, %v567, %v568
      %v603 = vsel %vm586, %v566, %v567
      %v604 = vsel %vm586, %v583, %v566
      %v605 = vpack.c.bf16 %v604, %v587
      %v606 = vpack.c.bf16 %v602, %v603
      %v607 = vpack.c.bf16 %v600, %v601
      %v608 = vpack.c.bf16 %v598, %v599
      %v609 = vpack.c.bf16 %v596, %v597
      %v610 = vpack.c.bf16 %v594, %v595
      %v611 = vpack.c.bf16 %v592, %v593
      %v612 = vpack.c.bf16 %v590, %v591
      %v613 = vpack.c.bf16 %v588, %v589
      %v623 = vunpack.c.l.b16 %v605
      %v624 = vunpack.c.h.b16 %v605
      %v625 = vunpack.c.l.b16 %v606
      %v626 = vunpack.c.h.b16 %v606
      %v627 = vunpack.c.l.b16 %v607
      %v628 = vunpack.c.h.b16 %v607
      %v629 = vunpack.c.l.b16 %v608
      %v630 = vunpack.c.h.b16 %v608
      %v631 = vunpack.c.l.b16 %v609
      %v632 = vunpack.c.h.b16 %v609
      %v633 = vunpack.c.l.b16 %v610
      %v634 = vunpack.c.h.b16 %v610
      %v635 = vunpack.c.l.b16 %v611
      %v636 = vunpack.c.h.b16 %v611
      %v637 = vunpack.c.l.b16 %v612
      %v638 = vunpack.c.h.b16 %v612
      %v639 = vunpack.c.l.b16 %v613
      %v640 = vunpack.c.h.b16 %v613
      %v641 = vpack.c.b16 %v623, %v623
      %v642 = vpack.c.b16 %v624, %v624
      %v643 = vpack.c.b16 %v625, %v625
      %v644 = vpack.c.b16 %v626, %v626
      %v645 = vpack.c.b16 %v627, %v627
      %v646 = vpack.c.b16 %v628, %v628
      %v647 = vpack.c.b16 %v629, %v629
      %v648 = vpack.c.b16 %v630, %v630
      %v649 = vpack.c.b16 %v631, %v631
      %v650 = vpack.c.b16 %v632, %v632
      %v651 = vpack.c.b16 %v633, %v633
      %v652 = vpack.c.b16 %v634, %v634
      %v653 = vpack.c.b16 %v635, %v635
      %v654 = vpack.c.b16 %v636, %v636
      %v655 = vpack.c.b16 %v637, %v637
      %v656 = vpack.c.b16 %v638, %v638
      %v657 = vpack.c.b16 %v639, %v639
      %v658 = vpack.c.b16 %v640, %v640
      %vm677 = vcmask 257024
      %678 = vst.msk [vmem:[#allocation2] sm:$0xf] %vm677, %v641
      %679 = vst.msk [vmem:[#allocation2 + $0xc] sm:$0xf] %vm677, %v642
      %680 = vst.msk [vmem:[#allocation2 + $0x18] sm:$0xf] %vm677, %v643
      %681 = vst.msk [vmem:[#allocation2 + $0x24] sm:$0xf] %vm677, %v644
      %682 = vst.msk [vmem:[#allocation2 + $0x30] sm:$0xf] %vm677, %v645
      %683 = vst.msk [vmem:[#allocation2 + $0x3c] sm:$0xf] %vm677, %v646
      %684 = vst.msk [vmem:[#allocation2 + $0x48] sm:$0xf] %vm677, %v647
      %685 = vst.msk [vmem:[#allocation2 + $0x54] sm:$0xf] %vm677, %v648
      %686 = vst.msk [vmem:[#allocation2 + $0x60] sm:$0xf] %vm677, %v649
      %687 = vst.msk [vmem:[#allocation2 + $0x6c] sm:$0xf] %vm677, %v650
      %688 = vst.msk [vmem:[#allocation2 + $0x78] sm:$0xf] %vm677, %v651
      %689 = vst.msk [vmem:[#allocation2 + $0x84] sm:$0xf] %vm677, %v652
      %690 = vst.msk [vmem:[#allocation2 + $0x90] sm:$0xf] %vm677, %v653
      %691 = vst.msk [vmem:[#allocation2 + $0x9c] sm:$0xf] %vm677, %v654
      %692 = vst.msk [vmem:[#allocation2 + $0xa8] sm:$0xf] %vm677, %v655
      %693 = vst.msk [vmem:[#allocation2 + $0xb4] sm:$0xf] %vm677, %v656
      %694 = vst.msk [vmem:[#allocation2 + $0xc0] sm:$0xf] %vm677, %v657
      %695 = vst.msk [vmem:[#allocation2 + $0xcc] sm:$0xf] %vm677, %v658
      %v696 = vrot.slane %v511, 7
      %v697 = vrot.slane %v512, 7
      %v698 = vrot.slane %v513, 7
      %v699 = vrot.slane %v514, 7
      %v700 = vrot.slane %v515, 7
      %v701 = vrot.slane %v516, 7
      %v702 = vrot.slane %v517, 7
      %v703 = vrot.slane %v518, 7
      %v704 = vrot.slane %v519, 7
      %v705 = vrot.slane %v520, 7
      %v706 = vrot.slane %v521, 7
      %v707 = vrot.slane %v522, 7
      %v708 = vrot.slane %v523, 7
      %v709 = vrot.slane %v524, 7
      %v710 = vrot.slane %v525, 7
      %v711 = vrot.slane %v526, 7
      %v712 = vrot.slane %v527, 7
      %v713 = vrot.slane %v528, 7
      %vm714 = vcmp.lt.s32.totalorder %v585, 1
      %v715 = vsel %vm714, %v712, %v713
      %v716 = vsel %vm714, %v711, %v712
      %v717 = vsel %vm714, %v710, %v711
      %v718 = vsel %vm714, %v709, %v710
      %v719 = vsel %vm714, %v708, %v709
      %v720 = vsel %vm714, %v707, %v708
      %v721 = vsel %vm714, %v706, %v707
      %v722 = vsel %vm714, %v705, %v706
      %v723 = vsel %vm714, %v704, %v705
      %v724 = vsel %vm714, %v703, %v704
      %v725 = vsel %vm714, %v702, %v703
      %v726 = vsel %vm714, %v701, %v702
      %v727 = vsel %vm714, %v700, %v701
      %v728 = vsel %vm714, %v699, %v700
      %v729 = vsel %vm714, %v698, %v699
      %v730 = vsel %vm714, %v697, %v698
      %v731 = vsel %vm714, %v696, %v697
      %v732 = vsel %vm714, %v713, %v696
      %v733 = vpack.c.bf16 %v732, %v715
      %v734 = vpack.c.bf16 %v730, %v731
      %v735 = vpack.c.bf16 %v728, %v729
      %v736 = vpack.c.bf16 %v726, %v727
      %v737 = vpack.c.bf16 %v724, %v725
      %v738 = vpack.c.bf16 %v722, %v723
      %v739 = vpack.c.bf16 %v720, %v721
      %v740 = vpack.c.bf16 %v718, %v719
      %v741 = vpack.c.bf16 %v716, %v717
      %v751 = vunpack.c.l.b16 %v733
      %v752 = vunpack.c.h.b16 %v733
      %v753 = vunpack.c.l.b16 %v734
      %v754 = vunpack.c.h.b16 %v734
      %v755 = vunpack.c.l.b16 %v735
      %v756 = vunpack.c.h.b16 %v735
      %v757 = vunpack.c.l.b16 %v736
      %v758 = vunpack.c.h.b16 %v736
      %v759 = vunpack.c.l.b16 %v737
      %v760 = vunpack.c.h.b16 %v737
      %v761 = vunpack.c.l.b16 %v738
      %v762 = vunpack.c.h.b16 %v738
      %v763 = vunpack.c.l.b16 %v739
      %v764 = vunpack.c.h.b16 %v739
      %v765 = vunpack.c.l.b16 %v740
      %v766 = vunpack.c.h.b16 %v740
      %v767 = vunpack.c.l.b16 %v741
      %v768 = vunpack.c.h.b16 %v741
      %v769 = vpack.c.b16 %v751, %v751
      %v770 = vpack.c.b16 %v752, %v752
      %v771 = vpack.c.b16 %v753, %v753
      %v772 = vpack.c.b16 %v754, %v754
      %v773 = vpack.c.b16 %v755, %v755
      %v774 = vpack.c.b16 %v756, %v756
      %v775 = vpack.c.b16 %v757, %v757
      %v776 = vpack.c.b16 %v758, %v758
      %v777 = vpack.c.b16 %v759, %v759
      %v778 = vpack.c.b16 %v760, %v760
      %v779 = vpack.c.b16 %v761, %v761
      %v780 = vpack.c.b16 %v762, %v762
      %v781 = vpack.c.b16 %v763, %v763
      %v782 = vpack.c.b16 %v764, %v764
      %v783 = vpack.c.b16 %v765, %v765
      %v784 = vpack.c.b16 %v766, %v766
      %v785 = vpack.c.b16 %v767, %v767
      %v786 = vpack.c.b16 %v768, %v768
      %787 = vrot.lane.b32.xlu0 %v769, 32
      %v788 = vpop.permute.xlu0 %787
      %789 = vrot.lane.b32.xlu0 %v770, 32
      %v790 = vpop.permute.xlu0 %789
      %791 = vrot.lane.b32.xlu0 %v771, 32
      %v792 = vpop.permute.xlu0 %791
      %793 = vrot.lane.b32.xlu0 %v772, 32
      %v794 = vpop.permute.xlu0 %793
      %795 = vrot.lane.b32.xlu0 %v773, 32
      %v796 = vpop.permute.xlu0 %795
      %797 = vrot.lane.b32.xlu0 %v774, 32
      %v798 = vpop.permute.xlu0 %797
      %799 = vrot.lane.b32.xlu0 %v775, 32
      %v800 = vpop.permute.xlu0 %799
      %801 = vrot.lane.b32.xlu0 %v776, 32
      %v802 = vpop.permute.xlu0 %801
      %803 = vrot.lane.b32.xlu0 %v777, 32
      %v804 = vpop.permute.xlu0 %803
      %805 = vrot.lane.b32.xlu0 %v778, 32
      %v806 = vpop.permute.xlu0 %805
      %807 = vrot.lane.b32.xlu0 %v779, 32
      %v808 = vpop.permute.xlu0 %807
      %809 = vrot.lane.b32.xlu0 %v780, 32
      %v810 = vpop.permute.xlu0 %809
      %811 = vrot.lane.b32.xlu0 %v781, 32
      %v812 = vpop.permute.xlu0 %811
      %813 = vrot.lane.b32.xlu0 %v782, 32
      %v814 = vpop.permute.xlu0 %813
      %815 = vrot.lane.b32.xlu0 %v783, 32
      %v816 = vpop.permute.xlu0 %815
      %817 = vrot.lane.b32.xlu0 %v784, 32
      %v818 = vpop.permute.xlu0 %817
      %819 = vrot.lane.b32.xlu0 %v785, 32
      %v820 = vpop.permute.xlu0 %819
      %821 = vrot.lane.b32.xlu0 %v786, 32
      %v822 = vpop.permute.xlu0 %821
      %vm841 = vcmask 519424
      %842 = vst.msk [vmem:[#allocation2] sm:$0xf] %vm841, %v788
      %843 = vst.msk [vmem:[#allocation2 + $0xc] sm:$0xf] %vm841, %v790
      %844 = vst.msk [vmem:[#allocation2 + $0x18] sm:$0xf] %vm841, %v792
      %845 = vst.msk [vmem:[#allocation2 + $0x24] sm:$0xf] %vm841, %v794
      %846 = vst.msk [vmem:[#allocation2 + $0x30] sm:$0xf] %vm841, %v796
      %847 = vst.msk [vmem:[#allocation2 + $0x3c] sm:$0xf] %vm841, %v798
      %848 = vst.msk [vmem:[#allocation2 + $0x48] sm:$0xf] %vm841, %v800
      %849 = vst.msk [vmem:[#allocation2 + $0x54] sm:$0xf] %vm841, %v802
      %850 = vst.msk [vmem:[#allocation2 + $0x60] sm:$0xf] %vm841, %v804
      %851 = vst.msk [vmem:[#allocation2 + $0x6c] sm:$0xf] %vm841, %v806
      %852 = vst.msk [vmem:[#allocation2 + $0x78] sm:$0xf] %vm841, %v808
      %853 = vst.msk [vmem:[#allocation2 + $0x84] sm:$0xf] %vm841, %v810
      %854 = vst.msk [vmem:[#allocation2 + $0x90] sm:$0xf] %vm841, %v812
      %855 = vst.msk [vmem:[#allocation2 + $0x9c] sm:$0xf] %vm841, %v814
      %856 = vst.msk [vmem:[#allocation2 + $0xa8] sm:$0xf] %vm841, %v816
      %857 = vst.msk [vmem:[#allocation2 + $0xb4] sm:$0xf] %vm841, %v818
      %858 = vst.msk [vmem:[#allocation2 + $0xc0] sm:$0xf] %vm841, %v820
      %859 = vst.msk [vmem:[#allocation2 + $0xcc] sm:$0xf] %vm841, %v822
      %v860 = vpack.c.bf16 %v511, %v528
      %v861 = vpack.c.bf16 %v513, %v512
      %v862 = vpack.c.bf16 %v515, %v514
      %v863 = vpack.c.bf16 %v517, %v516
      %v864 = vpack.c.bf16 %v519, %v518
      %v865 = vpack.c.bf16 %v521, %v520
      %v866 = vpack.c.bf16 %v523, %v522
      %v867 = vpack.c.bf16 %v525, %v524
      %v868 = vpack.c.bf16 %v527, %v526
      %v878 = vunpack.c.l.b16 %v860
      %v879 = vunpack.c.h.b16 %v860
      %v880 = vunpack.c.l.b16 %v861
      %v881 = vunpack.c.h.b16 %v861
      %v882 = vunpack.c.l.b16 %v862
      %v883 = vunpack.c.h.b16 %v862
      %v884 = vunpack.c.l.b16 %v863
      %v885 = vunpack.c.h.b16 %v863
      %v886 = vunpack.c.l.b16 %v864
      %v887 = vunpack.c.h.b16 %v864
      %v888 = vunpack.c.l.b16 %v865
      %v889 = vunpack.c.h.b16 %v865
      %v890 = vunpack.c.l.b16 %v866
      %v891 = vunpack.c.h.b16 %v866
      %v892 = vunpack.c.l.b16 %v867
      %v893 = vunpack.c.h.b16 %v867
      %v894 = vunpack.c.l.b16 %v868
      %v895 = vunpack.c.h.b16 %v868
      %v896 = vpack.c.b16 %v878, %v878
      %v897 = vpack.c.b16 %v879, %v879
      %v898 = vpack.c.b16 %v880, %v880
      %v899 = vpack.c.b16 %v881, %v881
      %v900 = vpack.c.b16 %v882, %v882
      %v901 = vpack.c.b16 %v883, %v883
      %v902 = vpack.c.b16 %v884, %v884
      %v903 = vpack.c.b16 %v885, %v885
      %v904 = vpack.c.b16 %v886, %v886
      %v905 = vpack.c.b16 %v887, %v887
      %v906 = vpack.c.b16 %v888, %v888
      %v907 = vpack.c.b16 %v889, %v889
      %v908 = vpack.c.b16 %v890, %v890
      %v909 = vpack.c.b16 %v891, %v891
      %v910 = vpack.c.b16 %v892, %v892
      %v911 = vpack.c.b16 %v893, %v893
      %v912 = vpack.c.b16 %v894, %v894
      %v913 = vpack.c.b16 %v895, %v895
      %914 = vrot.lane.b32.xlu0 %v896, 64
      %v915 = vpop.permute.xlu0 %914
      %916 = vrot.lane.b32.xlu0 %v897, 64
      %v917 = vpop.permute.xlu0 %916
      %918 = vrot.lane.b32.xlu0 %v898, 64
      %v919 = vpop.permute.xlu0 %918
      %920 = vrot.lane.b32.xlu0 %v899, 64
      %v921 = vpop.permute.xlu0 %920
      %922 = vrot.lane.b32.xlu0 %v900, 64
      %v923 = vpop.permute.xlu0 %922
      %924 = vrot.lane.b32.xlu0 %v901, 64
      %v925 = vpop.permute.xlu0 %924
      %926 = vrot.lane.b32.xlu0 %v902, 64
      %v927 = vpop.permute.xlu0 %926
      %928 = vrot.lane.b32.xlu0 %v903, 64
      %v929 = vpop.permute.xlu0 %928
      %930 = vrot.lane.b32.xlu0 %v904, 64
      %v931 = vpop.permute.xlu0 %930
      %932 = vrot.lane.b32.xlu0 %v905, 64
      %v933 = vpop.permute.xlu0 %932
      %934 = vrot.lane.b32.xlu0 %v906, 64
      %v935 = vpop.permute.xlu0 %934
      %936 = vrot.lane.b32.xlu0 %v907, 64
      %v937 = vpop.permute.xlu0 %936
      %938 = vrot.lane.b32.xlu0 %v908, 64
      %v939 = vpop.permute.xlu0 %938
      %940 = vrot.lane.b32.xlu0 %v909, 64
      %v941 = vpop.permute.xlu0 %940
      %942 = vrot.lane.b32.xlu0 %v910, 64
      %v943 = vpop.permute.xlu0 %942
      %944 = vrot.lane.b32.xlu0 %v911, 64
      %v945 = vpop.permute.xlu0 %944
      %946 = vrot.lane.b32.xlu0 %v912, 64
      %v947 = vpop.permute.xlu0 %946
      %948 = vrot.lane.b32.xlu0 %v913, 64
      %v949 = vpop.permute.xlu0 %948
      %vm968 = vcmask 781824
      %969 = vst.msk [vmem:[#allocation2] sm:$0xf] %vm968, %v915
      %970 = vst.msk [vmem:[#allocation2 + $0xc] sm:$0xf] %vm968, %v917
      %971 = vst.msk [vmem:[#allocation2 + $0x18] sm:$0xf] %vm968, %v919
      %972 = vst.msk [vmem:[#allocation2 + $0x24] sm:$0xf] %vm968, %v921
      %973 = vst.msk [vmem:[#allocation2 + $0x30] sm:$0xf] %vm968, %v923
      %974 = vst.msk [vmem:[#allocation2 + $0x3c] sm:$0xf] %vm968, %v925
      %975 = vst.msk [vmem:[#allocation2 + $0x48] sm:$0xf] %vm968, %v927
      %976 = vst.msk [vmem:[#allocation2 + $0x54] sm:$0xf] %vm968, %v929
      %977 = vst.msk [vmem:[#allocation2 + $0x60] sm:$0xf] %vm968, %v931
      %978 = vst.msk [vmem:[#allocation2 + $0x6c] sm:$0xf] %vm968, %v933
      %979 = vst.msk [vmem:[#allocation2 + $0x78] sm:$0xf] %vm968, %v935
      %980 = vst.msk [vmem:[#allocation2 + $0x84] sm:$0xf] %vm968, %v937
      %981 = vst.msk [vmem:[#allocation2 + $0x90] sm:$0xf] %vm968, %v939
      %982 = vst.msk [vmem:[#allocation2 + $0x9c] sm:$0xf] %vm968, %v941
      %983 = vst.msk [vmem:[#allocation2 + $0xa8] sm:$0xf] %vm968, %v943
      %984 = vst.msk [vmem:[#allocation2 + $0xb4] sm:$0xf] %vm968, %v945
      %985 = vst.msk [vmem:[#allocation2 + $0xc0] sm:$0xf] %vm968, %v947
      %986 = vst.msk [vmem:[#allocation2 + $0xcc] sm:$0xf] %vm968, %v949
      %v987 = vpack.c.bf16 %v731, %v732
      %v988 = vpack.c.bf16 %v729, %v730
      %v989 = vpack.c.bf16 %v727, %v728
      %v990 = vpack.c.bf16 %v725, %v726
      %v991 = vpack.c.bf16 %v723, %v724
      %v992 = vpack.c.bf16 %v721, %v722
      %v993 = vpack.c.bf16 %v719, %v720
      %v994 = vpack.c.bf16 %v717, %v718
      %v995 = vpack.c.bf16 %v715, %v716
      %v1005 = vunpack.c.l.b16 %v987
      %v1006 = vunpack.c.h.b16 %v987
      %v1007 = vunpack.c.l.b16 %v988
      %v1008 = vunpack.c.h.b16 %v988
      %v1009 = vunpack.c.l.b16 %v989
      %v1010 = vunpack.c.h.b16 %v989
      %v1011 = vunpack.c.l.b16 %v990
      %v1012 = vunpack.c.h.b16 %v990
      %v1013 = vunpack.c.l.b16 %v991
      %v1014 = vunpack.c.h.b16 %v991
      %v1015 = vunpack.c.l.b16 %v992
      %v1016 = vunpack.c.h.b16 %v992
      %v1017 = vunpack.c.l.b16 %v993
      %v1018 = vunpack.c.h.b16 %v993
      %v1019 = vunpack.c.l.b16 %v994
      %v1020 = vunpack.c.h.b16 %v994
      %v1021 = vunpack.c.l.b16 %v995
      %v1022 = vunpack.c.h.b16 %v995
      %v1023 = vpack.c.b16 %v1005, %v1005
      %v1024 = vpack.c.b16 %v1006, %v1006
      %v1025 = vpack.c.b16 %v1007, %v1007
      %v1026 = vpack.c.b16 %v1008, %v1008
      %v1027 = vpack.c.b16 %v1009, %v1009
      %v1028 = vpack.c.b16 %v1010, %v1010
      %v1029 = vpack.c.b16 %v1011, %v1011
      %v1030 = vpack.c.b16 %v1012, %v1012
      %v1031 = vpack.c.b16 %v1013, %v1013
      %v1032 = vpack.c.b16 %v1014, %v1014
      %v1033 = vpack.c.b16 %v1015, %v1015
      %v1034 = vpack.c.b16 %v1016, %v1016
      %v1035 = vpack.c.b16 %v1017, %v1017
      %v1036 = vpack.c.b16 %v1018, %v1018
      %v1037 = vpack.c.b16 %v1019, %v1019
      %v1038 = vpack.c.b16 %v1020, %v1020
      %v1039 = vpack.c.b16 %v1021, %v1021
      %v1040 = vpack.c.b16 %v1022, %v1022
      %1041 = vrot.lane.b32.xlu0 %v1023, 96
      %v1042 = vpop.permute.xlu0 %1041
      %1043 = vrot.lane.b32.xlu0 %v1024, 96
      %v1044 = vpop.permute.xlu0 %1043
      %1045 = vrot.lane.b32.xlu0 %v1025, 96
      %v1046 = vpop.permute.xlu0 %1045
      %1047 = vrot.lane.b32.xlu0 %v1026, 96
      %v1048 = vpop.permute.xlu0 %1047
      %1049 = vrot.lane.b32.xlu0 %v1027, 96
      %v1050 = vpop.permute.xlu0 %1049
      %1051 = vrot.lane.b32.xlu0 %v1028, 96
      %v1052 = vpop.permute.xlu0 %1051
      %1053 = vrot.lane.b32.xlu0 %v1029, 96
      %v1054 = vpop.permute.xlu0 %1053
      %1055 = vrot.lane.b32.xlu0 %v1030, 96
      %v1056 = vpop.permute.xlu0 %1055
      %1057 = vrot.lane.b32.xlu0 %v1031, 96
      %v1058 = vpop.permute.xlu0 %1057
      %1059 = vrot.lane.b32.xlu0 %v1032, 96
      %v1060 = vpop.permute.xlu0 %1059
      %1061 = vrot.lane.b32.xlu0 %v1033, 96
      %v1062 = vpop.permute.xlu0 %1061
      %1063 = vrot.lane.b32.xlu0 %v1034, 96
      %v1064 = vpop.permute.xlu0 %1063
      %1065 = vrot.lane.b32.xlu0 %v1035, 96
      %v1066 = vpop.permute.xlu0 %1065
      %1067 = vrot.lane.b32.xlu0 %v1036, 96
      %v1068 = vpop.permute.xlu0 %1067
      %1069 = vrot.lane.b32.xlu0 %v1037, 96
      %v1070 = vpop.permute.xlu0 %1069
      %1071 = vrot.lane.b32.xlu0 %v1038, 96
      %v1072 = vpop.permute.xlu0 %1071
      %1073 = vrot.lane.b32.xlu0 %v1039, 96
      %v1074 = vpop.permute.xlu0 %1073
      %1075 = vrot.lane.b32.xlu0 %v1040, 96
      %v1076 = vpop.permute.xlu0 %1075
      %vm1095 = vcmask 1044224
      %1096 = vst.msk [vmem:[#allocation2] sm:$0xf] %vm1095, %v1042
      %1097 = vst.msk [vmem:[#allocation2 + $0xc] sm:$0xf] %vm1095, %v1044
      %1098 = vst.msk [vmem:[#allocation2 + $0x18] sm:$0xf] %vm1095, %v1046
      %1099 = vst.msk [vmem:[#allocation2 + $0x24] sm:$0xf] %vm1095, %v1048
      %1100 = vst.msk [vmem:[#allocation2 + $0x30] sm:$0xf] %vm1095, %v1050
      %1101 = vst.msk [vmem:[#allocation2 + $0x3c] sm:$0xf] %vm1095, %v1052
      %1102 = vst.msk [vmem:[#allocation2 + $0x48] sm:$0xf] %vm1095, %v1054
      %1103 = vst.msk [vmem:[#allocation2 + $0x54] sm:$0xf] %vm1095, %v1056
      %1104 = vst.msk [vmem:[#allocation2 + $0x60] sm:$0xf] %vm1095, %v1058
      %1105 = vst.msk [vmem:[#allocation2 + $0x6c] sm:$0xf] %vm1095, %v1060
      %1106 = vst.msk [vmem:[#allocation2 + $0x78] sm:$0xf] %vm1095, %v1062
      %1107 = vst.msk [vmem:[#allocation2 + $0x84] sm:$0xf] %vm1095, %v1064
      %1108 = vst.msk [vmem:[#allocation2 + $0x90] sm:$0xf] %vm1095, %v1066
      %1109 = vst.msk [vmem:[#allocation2 + $0x9c] sm:$0xf] %vm1095, %v1068
      %1110 = vst.msk [vmem:[#allocation2 + $0xa8] sm:$0xf] %vm1095, %v1070
      %1111 = vst.msk [vmem:[#allocation2 + $0xb4] sm:$0xf] %vm1095, %v1072
      %1112 = vst.msk [vmem:[#allocation2 + $0xc0] sm:$0xf] %vm1095, %v1074
      %1113 = vst.msk [vmem:[#allocation2 + $0xcc] sm:$0xf] %vm1095, %v1076
      %v1114 = vpack.c.bf16 %v512, %v511
      %v1115 = vpack.c.bf16 %v514, %v513
      %v1116 = vpack.c.bf16 %v516, %v515
      %v1117 = vpack.c.bf16 %v518, %v517
      %v1118 = vpack.c.bf16 %v520, %v519
      %v1119 = vpack.c.bf16 %v522, %v521
      %v1120 = vpack.c.bf16 %v524, %v523
      %v1121 = vpack.c.bf16 %v526, %v525
      %v1122 = vpack.c.bf16 %v528, %v527
      %v1132 = vunpack.c.l.b16 %v1114
      %v1133 = vunpack.c.h.b16 %v1114
      %v1134 = vunpack.c.l.b16 %v1115
      %v1135 = vunpack.c.h.b16 %v1115
      %v1136 = vunpack.c.l.b16 %v1116
      %v1137 = vunpack.c.h.b16 %v1116
      %v1138 = vunpack.c.l.b16 %v1117
      %v1139 = vunpack.c.h.b16 %v1117
      %v1140 = vunpack.c.l.b16 %v1118
      %v1141 = vunpack.c.h.b16 %v1118
      %v1142 = vunpack.c.l.b16 %v1119
      %v1143 = vunpack.c.h.b16 %v1119
      %v1144 = vunpack.c.l.b16 %v1120
      %v1145 = vunpack.c.h.b16 %v1120
      %v1146 = vunpack.c.l.b16 %v1121
      %v1147 = vunpack.c.h.b16 %v1121
      %v1148 = vunpack.c.l.b16 %v1122
      %v1149 = vunpack.c.h.b16 %v1122
      %v1150 = vpack.c.b16 %v1132, %v1132
      %v1151 = vpack.c.b16 %v1133, %v1133
      %v1152 = vpack.c.b16 %v1134, %v1134
      %v1153 = vpack.c.b16 %v1135, %v1135
      %v1154 = vpack.c.b16 %v1136, %v1136
      %v1155 = vpack.c.b16 %v1137, %v1137
      %v1156 = vpack.c.b16 %v1138, %v1138
      %v1157 = vpack.c.b16 %v1139, %v1139
      %v1158 = vpack.c.b16 %v1140, %v1140
      %v1159 = vpack.c.b16 %v1141, %v1141
      %v1160 = vpack.c.b16 %v1142, %v1142
      %v1161 = vpack.c.b16 %v1143, %v1143
      %v1162 = vpack.c.b16 %v1144, %v1144
      %v1163 = vpack.c.b16 %v1145, %v1145
      %v1164 = vpack.c.b16 %v1146, %v1146
      %v1165 = vpack.c.b16 %v1147, %v1147
      %v1166 = vpack.c.b16 %v1148, %v1148
      %v1167 = vpack.c.b16 %v1149, %v1149
      %1186 = vst.msk [vmem:[#allocation2 + $0x4] sm:$0xf] %vm677, %v1150
      %1187 = vst.msk [vmem:[#allocation2 + $0x10] sm:$0xf] %vm677, %v1151
      %1188 = vst.msk [vmem:[#allocation2 + $0x1c] sm:$0xf] %vm677, %v1152
      %1189 = vst.msk [vmem:[#allocation2 + $0x28] sm:$0xf] %vm677, %v1153
      %1190 = vst.msk [vmem:[#allocation2 + $0x34] sm:$0xf] %vm677, %v1154
      %1191 = vst.msk [vmem:[#allocation2 + $0x40] sm:$0xf] %vm677, %v1155
      %1192 = vst.msk [vmem:[#allocation2 + $0x4c] sm:$0xf] %vm677, %v1156
      %1193 = vst.msk [vmem:[#allocation2 + $0x58] sm:$0xf] %vm677, %v1157
      %1194 = vst.msk [vmem:[#allocation2 + $0x64] sm:$0xf] %vm677, %v1158
      %1195 = vst.msk [vmem:[#allocation2 + $0x70] sm:$0xf] %vm677, %v1159
      %1196 = vst.msk [vmem:[#allocation2 + $0x7c] sm:$0xf] %vm677, %v1160
      %1197 = vst.msk [vmem:[#allocation2 + $0x88] sm:$0xf] %vm677, %v1161
      %1198 = vst.msk [vmem:[#allocation2 + $0x94] sm:$0xf] %vm677, %v1162
      %1199 = vst.msk [vmem:[#allocation2 + $0xa0] sm:$0xf] %vm677, %v1163
      %1200 = vst.msk [vmem:[#allocation2 + $0xac] sm:$0xf] %vm677, %v1164
      %1201 = vst.msk [vmem:[#allocation2 + $0xb8] sm:$0xf] %vm677, %v1165
      %1202 = vst.msk [vmem:[#allocation2 + $0xc4] sm:$0xf] %vm677, %v1166
      %1203 = vst.msk [vmem:[#allocation2 + $0xd0] sm:$0xf] %vm677, %v1167
      %v1204 = vrot.slane %v511, 1
      %v1205 = vrot.slane %v512, 1
      %v1206 = vrot.slane %v513, 1
      %v1207 = vrot.slane %v514, 1
      %v1208 = vrot.slane %v515, 1
      %v1209 = vrot.slane %v516, 1
      %v1210 = vrot.slane %v517, 1
      %v1211 = vrot.slane %v518, 1
      %v1212 = vrot.slane %v519, 1
      %v1213 = vrot.slane %v520, 1
      %v1214 = vrot.slane %v521, 1
      %v1215 = vrot.slane %v522, 1
      %v1216 = vrot.slane %v523, 1
      %v1217 = vrot.slane %v524, 1
      %v1218 = vrot.slane %v525, 1
      %v1219 = vrot.slane %v526, 1
      %v1220 = vrot.slane %v527, 1
      %v1221 = vrot.slane %v528, 1
      %vm1222 = vcmp.lt.s32.totalorder %v585, 7
      %v1223 = vsel %vm1222, %v1220, %v1221
      %v1224 = vsel %vm1222, %v1219, %v1220
      %v1225 = vsel %vm1222, %v1218, %v1219
      %v1226 = vsel %vm1222, %v1217, %v1218
      %v1227 = vsel %vm1222, %v1216, %v1217
      %v1228 = vsel %vm1222, %v1215, %v1216
      %v1229 = vsel %vm1222, %v1214, %v1215
      %v1230 = vsel %vm1222, %v1213, %v1214
      %v1231 = vsel %vm1222, %v1212, %v1213
      %v1232 = vsel %vm1222, %v1211, %v1212
      %v1233 = vsel %vm1222, %v1210, %v1211
      %v1234 = vsel %vm1222, %v1209, %v1210
      %v1235 = vsel %vm1222, %v1208, %v1209
      %v1236 = vsel %vm1222, %v1207, %v1208
      %v1237 = vsel %vm1222, %v1206, %v1207
      %v1238 = vsel %vm1222, %v1205, %v1206
      %v1239 = vsel %vm1222, %v1204, %v1205
      %v1240 = vsel %vm1222, %v1221, %v1204
      %v1241 = vpack.c.bf16 %v1238, %v1239
      %v1242 = vpack.c.bf16 %v1236, %v1237
      %v1243 = vpack.c.bf16 %v1234, %v1235
      %v1244 = vpack.c.bf16 %v1232, %v1233
      %v1245 = vpack.c.bf16 %v1230, %v1231
      %v1246 = vpack.c.bf16 %v1228, %v1229
      %v1247 = vpack.c.bf16 %v1226, %v1227
      %v1248 = vpack.c.bf16 %v1224, %v1225
      %v1249 = vpack.c.bf16 %v1240, %v1223
      %v1259 = vunpack.c.l.b16 %v1241
      %v1260 = vunpack.c.h.b16 %v1241
      %v1261 = vunpack.c.l.b16 %v1242
      %v1262 = vunpack.c.h.b16 %v1242
      %v1263 = vunpack.c.l.b16 %v1243
      %v1264 = vunpack.c.h.b16 %v1243
      %v1265 = vunpack.c.l.b16 %v1244
      %v1266 = vunpack.c.h.b16 %v1244
      %v1267 = vunpack.c.l.b16 %v1245
      %v1268 = vunpack.c.h.b16 %v1245
      %v1269 = vunpack.c.l.b16 %v1246
      %v1270 = vunpack.c.h.b16 %v1246
      %v1271 = vunpack.c.l.b16 %v1247
      %v1272 = vunpack.c.h.b16 %v1247
      %v1273 = vunpack.c.l.b16 %v1248
      %v1274 = vunpack.c.h.b16 %v1248
      %v1275 = vunpack.c.l.b16 %v1249
      %v1276 = vunpack.c.h.b16 %v1249
      %v1277 = vpack.c.b16 %v1259, %v1259
      %v1278 = vpack.c.b16 %v1260, %v1260
      %v1279 = vpack.c.b16 %v1261, %v1261
      %v1280 = vpack.c.b16 %v1262, %v1262
      %v1281 = vpack.c.b16 %v1263, %v1263
      %v1282 = vpack.c.b16 %v1264, %v1264
      %v1283 = vpack.c.b16 %v1265, %v1265
      %v1284 = vpack.c.b16 %v1266, %v1266
      %v1285 = vpack.c.b16 %v1267, %v1267
      %v1286 = vpack.c.b16 %v1268, %v1268
      %v1287 = vpack.c.b16 %v1269, %v1269
      %v1288 = vpack.c.b16 %v1270, %v1270
      %v1289 = vpack.c.b16 %v1271, %v1271
      %v1290 = vpack.c.b16 %v1272, %v1272
      %v1291 = vpack.c.b16 %v1273, %v1273
      %v1292 = vpack.c.b16 %v1274, %v1274
      %v1293 = vpack.c.b16 %v1275, %v1275
      %v1294 = vpack.c.b16 %v1276, %v1276
      %1295 = vrot.lane.b32.xlu0 %v1277, 32
      %v1296 = vpop.permute.xlu0 %1295
      %1297 = vrot.lane.b32.xlu0 %v1278, 32
      %v1298 = vpop.permute.xlu0 %1297
      %1299 = vrot.lane.b32.xlu0 %v1279, 32
      %v1300 = vpop.permute.xlu0 %1299
      %1301 = vrot.lane.b32.xlu0 %v1280, 32
      %v1302 = vpop.permute.xlu0 %1301
      %1303 = vrot.lane.b32.xlu0 %v1281, 32
      %v1304 = vpop.permute.xlu0 %1303
      %1305 = vrot.lane.b32.xlu0 %v1282, 32
      %v1306 = vpop.permute.xlu0 %1305
      %1307 = vrot.lane.b32.xlu0 %v1283, 32
      %v1308 = vpop.permute.xlu0 %1307
      %1309 = vrot.lane.b32.xlu0 %v1284, 32
      %v1310 = vpop.permute.xlu0 %1309
      %1311 = vrot.lane.b32.xlu0 %v1285, 32
      %v1312 = vpop.permute.xlu0 %1311
      %1313 = vrot.lane.b32.xlu0 %v1286, 32
      %v1314 = vpop.permute.xlu0 %1313
      %1315 = vrot.lane.b32.xlu0 %v1287, 32
      %v1316 = vpop.permute.xlu0 %1315
      %1317 = vrot.lane.b32.xlu0 %v1288, 32
      %v1318 = vpop.permute.xlu0 %1317
      %1319 = vrot.lane.b32.xlu0 %v1289, 32
      %v1320 = vpop.permute.xlu0 %1319
      %1321 = vrot.lane.b32.xlu0 %v1290, 32
      %v1322 = vpop.permute.xlu0 %1321
      %1323 = vrot.lane.b32.xlu0 %v1291, 32
      %v1324 = vpop.permute.xlu0 %1323
      %1325 = vrot.lane.b32.xlu0 %v1292, 32
      %v1326 = vpop.permute.xlu0 %1325
      %1327 = vrot.lane.b32.xlu0 %v1293, 32
      %v1328 = vpop.permute.xlu0 %1327
      %1329 = vrot.lane.b32.xlu0 %v1294, 32
      %v1330 = vpop.permute.xlu0 %1329
      %1349 = vst.msk [vmem:[#allocation2 + $0x4] sm:$0xf] %vm841, %v1296
      %1350 = vst.msk [vmem:[#allocation2 + $0x10] sm:$0xf] %vm841, %v1298
      %1351 = vst.msk [vmem:[#allocation2 + $0x1c] sm:$0xf] %vm841, %v1300
      %1352 = vst.msk [vmem:[#allocation2 + $0x28] sm:$0xf] %vm841, %v1302
      %1353 = vst.msk [vmem:[#allocation2 + $0x34] sm:$0xf] %vm841, %v1304
      %1354 = vst.msk [vmem:[#allocation2 + $0x40] sm:$0xf] %vm841, %v1306
      %1355 = vst.msk [vmem:[#allocation2 + $0x4c] sm:$0xf] %vm841, %v1308
      %1356 = vst.msk [vmem:[#allocation2 + $0x58] sm:$0xf] %vm841, %v1310
      %1357 = vst.msk [vmem:[#allocation2 + $0x64] sm:$0xf] %vm841, %v1312
      %1358 = vst.msk [vmem:[#allocation2 + $0x70] sm:$0xf] %vm841, %v1314
      %1359 = vst.msk [vmem:[#allocation2 + $0x7c] sm:$0xf] %vm841, %v1316
      %1360 = vst.msk [vmem:[#allocation2 + $0x88] sm:$0xf] %vm841, %v1318
      %1361 = vst.msk [vmem:[#allocation2 + $0x94] sm:$0xf] %vm841, %v1320
      %1362 = vst.msk [vmem:[#allocation2 + $0xa0] sm:$0xf] %vm841, %v1322
      %1363 = vst.msk [vmem:[#allocation2 + $0xac] sm:$0xf] %vm841, %v1324
      %1364 = vst.msk [vmem:[#allocation2 + $0xb8] sm:$0xf] %vm841, %v1326
      %1365 = vst.msk [vmem:[#allocation2 + $0xc4] sm:$0xf] %vm841, %v1328
      %1366 = vst.msk [vmem:[#allocation2 + $0xd0] sm:$0xf] %vm841, %v1330
      %1367 = vst.msk [vmem:[#allocation2 + $0x4] sm:$0xf] %vm968, %v919
      %1368 = vst.msk [vmem:[#allocation2 + $0x10] sm:$0xf] %vm968, %v921
      %1369 = vst.msk [vmem:[#allocation2 + $0x1c] sm:$0xf] %vm968, %v923
      %1370 = vst.msk [vmem:[#allocation2 + $0x28] sm:$0xf] %vm968, %v925
      %1371 = vst.msk [vmem:[#allocation2 + $0x34] sm:$0xf] %vm968, %v927
      %1372 = vst.msk [vmem:[#allocation2 + $0x40] sm:$0xf] %vm968, %v929
      %1373 = vst.msk [vmem:[#allocation2 + $0x4c] sm:$0xf] %vm968, %v931
      %1374 = vst.msk [vmem:[#allocation2 + $0x58] sm:$0xf] %vm968, %v933
      %1375 = vst.msk [vmem:[#allocation2 + $0x64] sm:$0xf] %vm968, %v935
      %1376 = vst.msk [vmem:[#allocation2 + $0x70] sm:$0xf] %vm968, %v937
      %1377 = vst.msk [vmem:[#allocation2 + $0x7c] sm:$0xf] %vm968, %v939
      %1378 = vst.msk [vmem:[#allocation2 + $0x88] sm:$0xf] %vm968, %v941
      %1379 = vst.msk [vmem:[#allocation2 + $0x94] sm:$0xf] %vm968, %v943
      %1380 = vst.msk [vmem:[#allocation2 + $0xa0] sm:$0xf] %vm968, %v945
      %1381 = vst.msk [vmem:[#allocation2 + $0xac] sm:$0xf] %vm968, %v947
      %1382 = vst.msk [vmem:[#allocation2 + $0xb8] sm:$0xf] %vm968, %v949
      %1383 = vst.msk [vmem:[#allocation2 + $0xc4] sm:$0xf] %vm968, %v915
      %1384 = vst.msk [vmem:[#allocation2 + $0xd0] sm:$0xf] %vm968, %v917
      %v1385 = vpack.c.bf16 %v1237, %v1238
      %v1386 = vpack.c.bf16 %v1235, %v1236
      %v1387 = vpack.c.bf16 %v1233, %v1234
      %v1388 = vpack.c.bf16 %v1231, %v1232
      %v1389 = vpack.c.bf16 %v1229, %v1230
      %v1390 = vpack.c.bf16 %v1227, %v1228
      %v1391 = vpack.c.bf16 %v1225, %v1226
      %v1392 = vpack.c.bf16 %v1223, %v1224
      %v1393 = vpack.c.bf16 %v1239, %v1240
      %v1403 = vunpack.c.l.b16 %v1385
      %v1404 = vunpack.c.h.b16 %v1385
      %v1405 = vunpack.c.l.b16 %v1386
      %v1406 = vunpack.c.h.b16 %v1386
      %v1407 = vunpack.c.l.b16 %v1387
      %v1408 = vunpack.c.h.b16 %v1387
      %v1409 = vunpack.c.l.b16 %v1388
      %v1410 = vunpack.c.h.b16 %v1388
      %v1411 = vunpack.c.l.b16 %v1389
      %v1412 = vunpack.c.h.b16 %v1389
      %v1413 = vunpack.c.l.b16 %v1390
      %v1414 = vunpack.c.h.b16 %v1390
      %v1415 = vunpack.c.l.b16 %v1391
      %v1416 = vunpack.c.h.b16 %v1391
      %v1417 = vunpack.c.l.b16 %v1392
      %v1418 = vunpack.c.h.b16 %v1392
      %v1419 = vunpack.c.l.b16 %v1393
      %v1420 = vunpack.c.h.b16 %v1393
      %v1421 = vpack.c.b16 %v1403, %v1403
      %v1422 = vpack.c.b16 %v1404, %v1404
      %v1423 = vpack.c.b16 %v1405, %v1405
      %v1424 = vpack.c.b16 %v1406, %v1406
      %v1425 = vpack.c.b16 %v1407, %v1407
      %v1426 = vpack.c.b16 %v1408, %v1408
      %v1427 = vpack.c.b16 %v1409, %v1409
      %v1428 = vpack.c.b16 %v1410, %v1410
      %v1429 = vpack.c.b16 %v1411, %v1411
      %v1430 = vpack.c.b16 %v1412, %v1412
      %v1431 = vpack.c.b16 %v1413, %v1413
      %v1432 = vpack.c.b16 %v1414, %v1414
      %v1433 = vpack.c.b16 %v1415, %v1415
      %v1434 = vpack.c.b16 %v1416, %v1416
      %v1435 = vpack.c.b16 %v1417, %v1417
      %v1436 = vpack.c.b16 %v1418, %v1418
      %v1437 = vpack.c.b16 %v1419, %v1419
      %v1438 = vpack.c.b16 %v1420, %v1420
      %1439 = vrot.lane.b32.xlu0 %v1421, 96
      %v1440 = vpop.permute.xlu0 %1439
      %1441 = vrot.lane.b32.xlu0 %v1422, 96
      %v1442 = vpop.permute.xlu0 %1441
      %1443 = vrot.lane.b32.xlu0 %v1423, 96
      %v1444 = vpop.permute.xlu0 %1443
      %1445 = vrot.lane.b32.xlu0 %v1424, 96
      %v1446 = vpop.permute.xlu0 %1445
      %1447 = vrot.lane.b32.xlu0 %v1425, 96
      %v1448 = vpop.permute.xlu0 %1447
      %1449 = vrot.lane.b32.xlu0 %v1426, 96
      %v1450 = vpop.permute.xlu0 %1449
      %1451 = vrot.lane.b32.xlu0 %v1427, 96
      %v1452 = vpop.permute.xlu0 %1451
      %1453 = vrot.lane.b32.xlu0 %v1428, 96
      %v1454 = vpop.permute.xlu0 %1453
      %1455 = vrot.lane.b32.xlu0 %v1429, 96
      %v1456 = vpop.permute.xlu0 %1455
      %1457 = vrot.lane.b32.xlu0 %v1430, 96
      %v1458 = vpop.permute.xlu0 %1457
      %1459 = vrot.lane.b32.xlu0 %v1431, 96
      %v1460 = vpop.permute.xlu0 %1459
      %1461 = vrot.lane.b32.xlu0 %v1432, 96
      %v1462 = vpop.permute.xlu0 %1461
      %1463 = vrot.lane.b32.xlu0 %v1433, 96
      %v1464 = vpop.permute.xlu0 %1463
      %1465 = vrot.lane.b32.xlu0 %v1434, 96
      %v1466 = vpop.permute.xlu0 %1465
      %1467 = vrot.lane.b32.xlu0 %v1435, 96
      %v1468 = vpop.permute.xlu0 %1467
      %1469 = vrot.lane.b32.xlu0 %v1436, 96
      %v1470 = vpop.permute.xlu0 %1469
      %1471 = vrot.lane.b32.xlu0 %v1437, 96
      %v1472 = vpop.permute.xlu0 %1471
      %1473 = vrot.lane.b32.xlu0 %v1438, 96
      %v1474 = vpop.permute.xlu0 %1473
      %1493 = vst.msk [vmem:[#allocation2 + $0x4] sm:$0xf] %vm1095, %v1440
      %1494 = vst.msk [vmem:[#allocation2 + $0x10] sm:$0xf] %vm1095, %v1442
      %1495 = vst.msk [vmem:[#allocation2 + $0x1c] sm:$0xf] %vm1095, %v1444
      %1496 = vst.msk [vmem:[#allocation2 + $0x28] sm:$0xf] %vm1095, %v1446
      %1497 = vst.msk [vmem:[#allocation2 + $0x34] sm:$0xf] %vm1095, %v1448
      %1498 = vst.msk [vmem:[#allocation2 + $0x40] sm:$0xf] %vm1095, %v1450
      %1499 = vst.msk [vmem:[#allocation2 + $0x4c] sm:$0xf] %vm1095, %v1452
      %1500 = vst.msk [vmem:[#allocation2 + $0x58] sm:$0xf] %vm1095, %v1454
      %1501 = vst.msk [vmem:[#allocation2 + $0x64] sm:$0xf] %vm1095, %v1456
      %1502 = vst.msk [vmem:[#allocation2 + $0x70] sm:$0xf] %vm1095, %v1458
      %1503 = vst.msk [vmem:[#allocation2 + $0x7c] sm:$0xf] %vm1095, %v1460
      %1504 = vst.msk [vmem:[#allocation2 + $0x88] sm:$0xf] %vm1095, %v1462
      %1505 = vst.msk [vmem:[#allocation2 + $0x94] sm:$0xf] %vm1095, %v1464
      %1506 = vst.msk [vmem:[#allocation2 + $0xa0] sm:$0xf] %vm1095, %v1466
      %1507 = vst.msk [vmem:[#allocation2 + $0xac] sm:$0xf] %vm1095, %v1468
      %1508 = vst.msk [vmem:[#allocation2 + $0xb8] sm:$0xf] %vm1095, %v1470
      %1509 = vst.msk [vmem:[#allocation2 + $0xc4] sm:$0xf] %vm1095, %v1472
      %1510 = vst.msk [vmem:[#allocation2 + $0xd0] sm:$0xf] %vm1095, %v1474
      %v1511 = vrot.slane %v511, 2
      %v1512 = vrot.slane %v512, 2
      %v1513 = vrot.slane %v513, 2
      %v1514 = vrot.slane %v514, 2
      %v1515 = vrot.slane %v515, 2
      %v1516 = vrot.slane %v516, 2
      %v1517 = vrot.slane %v517, 2
      %v1518 = vrot.slane %v518, 2
      %v1519 = vrot.slane %v519, 2
      %v1520 = vrot.slane %v520, 2
      %v1521 = vrot.slane %v521, 2
      %v1522 = vrot.slane %v522, 2
      %v1523 = vrot.slane %v523, 2
      %v1524 = vrot.slane %v524, 2
      %v1525 = vrot.slane %v525, 2
      %v1526 = vrot.slane %v526, 2
      %v1527 = vrot.slane %v527, 2
      %v1528 = vrot.slane %v528, 2
      %vm1529 = vcmp.lt.s32.totalorder %v585, 6
      %v1530 = vsel %vm1529, %v1527, %v1528
      %v1531 = vsel %vm1529, %v1526, %v1527
      %v1532 = vsel %vm1529, %v1525, %v1526
      %v1533 = vsel %vm1529, %v1524, %v1525
      %v1534 = vsel %vm1529, %v1523, %v1524
      %v1535 = vsel %vm1529, %v1522, %v1523
      %v1536 = vsel %vm1529, %v1521, %v1522
      %v1537 = vsel %vm1529, %v1520, %v1521
      %v1538 = vsel %vm1529, %v1519, %v1520
      %v1539 = vsel %vm1529, %v1518, %v1519
      %v1540 = vsel %vm1529, %v1517, %v1518
      %v1541 = vsel %vm1529, %v1516, %v1517
      %v1542 = vsel %vm1529, %v1515, %v1516
      %v1543 = vsel %vm1529, %v1514, %v1515
      %v1544 = vsel %vm1529, %v1513, %v1514
      %v1545 = vsel %vm1529, %v1512, %v1513
      %v1546 = vsel %vm1529, %v1511, %v1512
      %v1547 = vsel %vm1529, %v1528, %v1511
      %v1548 = vpack.c.bf16 %v1544, %v1545
      %v1549 = vpack.c.bf16 %v1542, %v1543
      %v1550 = vpack.c.bf16 %v1540, %v1541
      %v1551 = vpack.c.bf16 %v1538, %v1539
      %v1552 = vpack.c.bf16 %v1536, %v1537
      %v1553 = vpack.c.bf16 %v1534, %v1535
      %v1554 = vpack.c.bf16 %v1532, %v1533
      %v1555 = vpack.c.bf16 %v1530, %v1531
      %v1556 = vpack.c.bf16 %v1546, %v1547
      %v1566 = vunpack.c.l.b16 %v1548
      %v1567 = vunpack.c.h.b16 %v1548
      %v1568 = vunpack.c.l.b16 %v1549
      %v1569 = vunpack.c.h.b16 %v1549
      %v1570 = vunpack.c.l.b16 %v1550
      %v1571 = vunpack.c.h.b16 %v1550
      %v1572 = vunpack.c.l.b16 %v1551
      %v1573 = vunpack.c.h.b16 %v1551
      %v1574 = vunpack.c.l.b16 %v1552
      %v1575 = vunpack.c.h.b16 %v1552
      %v1576 = vunpack.c.l.b16 %v1553
      %v1577 = vunpack.c.h.b16 %v1553
      %v1578 = vunpack.c.l.b16 %v1554
      %v1579 = vunpack.c.h.b16 %v1554
      %v1580 = vunpack.c.l.b16 %v1555
      %v1581 = vunpack.c.h.b16 %v1555
      %v1582 = vunpack.c.l.b16 %v1556
      %v1583 = vunpack.c.h.b16 %v1556
      %v1584 = vpack.c.b16 %v1566, %v1566
      %v1585 = vpack.c.b16 %v1567, %v1567
      %v1586 = vpack.c.b16 %v1568, %v1568
      %v1587 = vpack.c.b16 %v1569, %v1569
      %v1588 = vpack.c.b16 %v1570, %v1570
      %v1589 = vpack.c.b16 %v1571, %v1571
      %v1590 = vpack.c.b16 %v1572, %v1572
      %v1591 = vpack.c.b16 %v1573, %v1573
      %v1592 = vpack.c.b16 %v1574, %v1574
      %v1593 = vpack.c.b16 %v1575, %v1575
      %v1594 = vpack.c.b16 %v1576, %v1576
      %v1595 = vpack.c.b16 %v1577, %v1577
      %v1596 = vpack.c.b16 %v1578, %v1578
      %v1597 = vpack.c.b16 %v1579, %v1579
      %v1598 = vpack.c.b16 %v1580, %v1580
      %v1599 = vpack.c.b16 %v1581, %v1581
      %v1600 = vpack.c.b16 %v1582, %v1582
      %v1601 = vpack.c.b16 %v1583, %v1583
      %1620 = vst.msk [vmem:[#allocation2 + $0x8] sm:$0xf] %vm677, %v1584
      %1621 = vst.msk [vmem:[#allocation2 + $0x14] sm:$0xf] %vm677, %v1585
      %1622 = vst.msk [vmem:[#allocation2 + $0x20] sm:$0xf] %vm677, %v1586
      %1623 = vst.msk [vmem:[#allocation2 + $0x2c] sm:$0xf] %vm677, %v1587
      %1624 = vst.msk [vmem:[#allocation2 + $0x38] sm:$0xf] %vm677, %v1588
      %1625 = vst.msk [vmem:[#allocation2 + $0x44] sm:$0xf] %vm677, %v1589
      %1626 = vst.msk [vmem:[#allocation2 + $0x50] sm:$0xf] %vm677, %v1590
      %1627 = vst.msk [vmem:[#allocation2 + $0x5c] sm:$0xf] %vm677, %v1591
      %1628 = vst.msk [vmem:[#allocation2 + $0x68] sm:$0xf] %vm677, %v1592
      %1629 = vst.msk [vmem:[#allocation2 + $0x74] sm:$0xf] %vm677, %v1593
      %1630 = vst.msk [vmem:[#allocation2 + $0x80] sm:$0xf] %vm677, %v1594
      %1631 = vst.msk [vmem:[#allocation2 + $0x8c] sm:$0xf] %vm677, %v1595
      %1632 = vst.msk [vmem:[#allocation2 + $0x98] sm:$0xf] %vm677, %v1596
      %1633 = vst.msk [vmem:[#allocation2 + $0xa4] sm:$0xf] %vm677, %v1597
      %1634 = vst.msk [vmem:[#allocation2 + $0xb0] sm:$0xf] %vm677, %v1598
      %1635 = vst.msk [vmem:[#allocation2 + $0xbc] sm:$0xf] %vm677, %v1599
      %1636 = vst.msk [vmem:[#allocation2 + $0xc8] sm:$0xf] %vm677, %v1600
      %1637 = vst.msk [vmem:[#allocation2 + $0xd4] sm:$0xf] %vm677, %v1601
      %v1638 = vld [vmem:[#allocation2] sm:$0xff]
      %v1639 = vld [vmem:[#allocation2 + $0x8] sm:$0xf]
      %v1640 = vld [vmem:[#allocation2 + $0xc] sm:$0xff]
      %v1641 = vld [vmem:[#allocation2 + $0x14] sm:$0xf]
      %v1642 = vld [vmem:[#allocation2 + $0x18] sm:$0xff]
      %v1643 = vld [vmem:[#allocation2 + $0x20] sm:$0xf]
      %v1644 = vld [vmem:[#allocation2 + $0x24] sm:$0xff]
      %v1645 = vld [vmem:[#allocation2 + $0x2c] sm:$0xf]
      %v1646 = vld [vmem:[#allocation2 + $0x30] sm:$0xff]
      %v1647 = vld [vmem:[#allocation2 + $0x38] sm:$0xf]
      %v1648 = vld [vmem:[#allocation2 + $0x3c] sm:$0xff]
      %v1649 = vld [vmem:[#allocation2 + $0x44] sm:$0xf]
      %v1650 = vld [vmem:[#allocation2 + $0x48] sm:$0xff]
      %v1651 = vld [vmem:[#allocation2 + $0x50] sm:$0xf]
      %v1652 = vld [vmem:[#allocation2 + $0x54] sm:$0xff]
      %v1653 = vld [vmem:[#allocation2 + $0x5c] sm:$0xf]
      %v1654 = vld [vmem:[#allocation2 + $0x60] sm:$0xff]
      %v1655 = vld [vmem:[#allocation2 + $0x68] sm:$0xf]
      %v1656 = vld [vmem:[#allocation2 + $0x6c] sm:$0xff]
      %v1657 = vld [vmem:[#allocation2 + $0x74] sm:$0xf]
      %v1658 = vld [vmem:[#allocation2 + $0x78] sm:$0xff]
      %v1659 = vld [vmem:[#allocation2 + $0x80] sm:$0xf]
      %v1660 = vld [vmem:[#allocation2 + $0x84] sm:$0xff]
      %v1661 = vld [vmem:[#allocation2 + $0x8c] sm:$0xf]
      %v1662 = vld [vmem:[#allocation2 + $0x90] sm:$0xff]
      %v1663 = vld [vmem:[#allocation2 + $0x98] sm:$0xf]
      %v1664 = vld [vmem:[#allocation2 + $0x9c] sm:$0xff]
      %v1665 = vld [vmem:[#allocation2 + $0xa4] sm:$0xf]
      %v1666 = vld [vmem:[#allocation2 + $0xa8] sm:$0xff]
      %v1667 = vld [vmem:[#allocation2 + $0xb0] sm:$0xf]
      %v1668 = vld [vmem:[#allocation2 + $0xb4] sm:$0xff]
      %v1669 = vld [vmem:[#allocation2 + $0xbc] sm:$0xf]
      %v1670 = vld [vmem:[#allocation2 + $0xc0] sm:$0xff]
      %v1671 = vld [vmem:[#allocation2 + $0xc8] sm:$0xf]
      %v1672 = vld [vmem:[#allocation2 + $0xcc] sm:$0xff]
      %v1673 = vld [vmem:[#allocation2 + $0xd4] sm:$0xf]
      %v1675 = vlaneseq
      %v1676 = vshrl.u32 %v1675, 7
      %v1677 = vsub.s32 0, %v1676
      %v1678 = vrot.slane %v565, %v1677
      %v1716 = vunpack.c.l.b16 %v1638
      %v1717 = vunpack.c.h.b16 %v1638
      %v1718 = vunpack.c.l.b16 %v1639
      %v1719 = vunpack.c.l.b16 %v1640
      %v1720 = vunpack.c.h.b16 %v1640
      %v1721 = vunpack.c.l.b16 %v1641
      %v1722 = vunpack.c.l.b16 %v1642
      %v1723 = vunpack.c.h.b16 %v1642
      %v1724 = vunpack.c.l.b16 %v1643
      %v1725 = vunpack.c.l.b16 %v1644
      %v1726 = vunpack.c.h.b16 %v1644
      %v1727 = vunpack.c.l.b16 %v1645
      %v1728 = vunpack.c.l.b16 %v1646
      %v1729 = vunpack.c.h.b16 %v1646
      %v1730 = vunpack.c.l.b16 %v1647
      %v1731 = vunpack.c.l.b16 %v1648
      %v1732 = vunpack.c.h.b16 %v1648
      %v1733 = vunpack.c.l.b16 %v1649
      %v1734 = vunpack.c.l.b16 %v1650
      %v1735 = vunpack.c.h.b16 %v1650
      %v1736 = vunpack.c.l.b16 %v1651
      %v1737 = vunpack.c.l.b16 %v1652
      %v1738 = vunpack.c.h.b16 %v1652
      %v1739 = vunpack.c.l.b16 %v1653
      %v1740 = vunpack.c.l.b16 %v1654
      %v1741 = vunpack.c.h.b16 %v1654
      %v1742 = vunpack.c.l.b16 %v1655
      %v1743 = vunpack.c.l.b16 %v1656
      %v1744 = vunpack.c.h.b16 %v1656
      %v1745 = vunpack.c.l.b16 %v1657
      %v1746 = vunpack.c.l.b16 %v1658
      %v1747 = vunpack.c.h.b16 %v1658
      %v1748 = vunpack.c.l.b16 %v1659
      %v1749 = vunpack.c.l.b16 %v1660
      %v1750 = vunpack.c.h.b16 %v1660
      %v1751 = vunpack.c.l.b16 %v1661
      %v1752 = vunpack.c.l.b16 %v1662
      %v1753 = vunpack.c.h.b16 %v1662
      %v1754 = vunpack.c.l.b16 %v1663
      %v1755 = vunpack.c.l.b16 %v1664
      %v1756 = vunpack.c.h.b16 %v1664
      %v1757 = vunpack.c.l.b16 %v1665
      %v1758 = vunpack.c.l.b16 %v1666
      %v1759 = vunpack.c.h.b16 %v1666
      %v1760 = vunpack.c.l.b16 %v1667
      %v1761 = vunpack.c.l.b16 %v1668
      %v1762 = vunpack.c.h.b16 %v1668
      %v1763 = vunpack.c.l.b16 %v1669
      %v1764 = vunpack.c.l.b16 %v1670
      %v1765 = vunpack.c.h.b16 %v1670
      %v1766 = vunpack.c.l.b16 %v1671
      %v1767 = vunpack.c.l.b16 %v1672
      %v1768 = vunpack.c.h.b16 %v1672
      %v1769 = vunpack.c.l.b16 %v1673
      %v1770 = vpack.c.b16 %v1719, %v1716
      %v1771 = vpack.c.b16 %v1720, %v1717
      %v1772 = vpack.c.b16 %v1721, %v1718
      %v1773 = vpack.c.b16 %v1725, %v1722
      %v1774 = vpack.c.b16 %v1726, %v1723
      %v1775 = vpack.c.b16 %v1727, %v1724
      %v1776 = vpack.c.b16 %v1731, %v1728
      %v1777 = vpack.c.b16 %v1732, %v1729
      %v1778 = vpack.c.b16 %v1733, %v1730
      %v1779 = vpack.c.b16 %v1737, %v1734
      %v1780 = vpack.c.b16 %v1738, %v1735
      %v1781 = vpack.c.b16 %v1739, %v1736
      %v1782 = vpack.c.b16 %v1743, %v1740
      %v1783 = vpack.c.b16 %v1744, %v1741
      %v1784 = vpack.c.b16 %v1745, %v1742
      %v1785 = vpack.c.b16 %v1749, %v1746
      %v1786 = vpack.c.b16 %v1750, %v1747
      %v1787 = vpack.c.b16 %v1751, %v1748
      %v1788 = vpack.c.b16 %v1755, %v1752
      %v1789 = vpack.c.b16 %v1756, %v1753
      %v1790 = vpack.c.b16 %v1757, %v1754
      %v1791 = vpack.c.b16 %v1761, %v1758
      %v1792 = vpack.c.b16 %v1762, %v1759
      %v1793 = vpack.c.b16 %v1763, %v1760
      %v1794 = vpack.c.b16 %v1767, %v1764
      %v1795 = vpack.c.b16 %v1768, %v1765
      %v1796 = vpack.c.b16 %v1769, %v1766
      %v1851 = vunpack.c.l.b16 %v529
      %v1852 = vunpack.c.l.b16 %v530
      %v1853 = vunpack.c.l.b16 %v531
      %v1854 = vunpack.c.l.b16 %v532
      %v1855 = vunpack.c.l.b16 %v533
      %v1856 = vunpack.c.l.b16 %v534
      %v1857 = vunpack.c.l.b16 %v535
      %v1858 = vunpack.c.l.b16 %v536
      %v1859 = vunpack.c.l.b16 %v537
      %v1860 = vunpack.c.l.b16 %v538
      %v1861 = vunpack.c.l.b16 %v539
      %v1862 = vunpack.c.l.b16 %v540
      %v1863 = vunpack.c.l.b16 %v541
      %v1864 = vunpack.c.l.b16 %v542
      %v1865 = vunpack.c.l.b16 %v543
      %v1866 = vunpack.c.l.b16 %v544
      %v1867 = vunpack.c.l.b16 %v545
      %v1868 = vunpack.c.l.b16 %v546
      %v1869 = vunpack.c.l.b16 %v547
      %v1870 = vunpack.c.l.b16 %v548
      %v1871 = vunpack.c.l.b16 %v549
      %v1872 = vunpack.c.l.b16 %v550
      %v1873 = vunpack.c.l.b16 %v551
      %v1874 = vunpack.c.l.b16 %v552
      %v1875 = vunpack.c.l.b16 %v553
      %v1876 = vunpack.c.l.b16 %v554
      %v1877 = vunpack.c.l.b16 %v555
      %v1878 = vunpack.c.l.b16 %v556
      %v1879 = vunpack.c.l.b16 %v557
      %v1880 = vunpack.c.l.b16 %v558
      %v1881 = vunpack.c.l.b16 %v559
      %v1882 = vunpack.c.l.b16 %v560
      %v1883 = vunpack.c.l.b16 %v561
      %v1884 = vunpack.c.l.b16 %v562
      %v1885 = vunpack.c.l.b16 %v563
      %v1886 = vunpack.c.l.b16 %v564
      %v1887 = vpack.c.b16 %v1852, %v1851
      %v1888 = vpack.c.b16 %v1854, %v1853
      %v1889 = vpack.c.b16 %v1856, %v1855
      %v1890 = vpack.c.b16 %v1858, %v1857
      %v1891 = vpack.c.b16 %v1860, %v1859
      %v1892 = vpack.c.b16 %v1862, %v1861
      %v1893 = vpack.c.b16 %v1864, %v1863
      %v1894 = vpack.c.b16 %v1866, %v1865
      %v1895 = vpack.c.b16 %v1868, %v1867
      %v1896 = vpack.c.b16 %v1870, %v1869
      %v1897 = vpack.c.b16 %v1872, %v1871
      %v1898 = vpack.c.b16 %v1874, %v1873
      %v1899 = vpack.c.b16 %v1876, %v1875
      %v1900 = vpack.c.b16 %v1878, %v1877
      %v1901 = vpack.c.b16 %v1880, %v1879
      %v1902 = vpack.c.b16 %v1882, %v1881
      %v1903 = vpack.c.b16 %v1884, %v1883
      %v1904 = vpack.c.b16 %v1886, %v1885
      %vm1923 = vcmask 261120
      %v1925 = vsel %vm1923, %v1772, 0
      %v1928 = vsel %vm1923, %v1775, 0
      %v1931 = vsel %vm1923, %v1778, 0
      %v1934 = vsel %vm1923, %v1781, 0
      %v1937 = vsel %vm1923, %v1784, 0
      %v1940 = vsel %vm1923, %v1787, 0
      %v1943 = vsel %vm1923, %v1790, 0
      %v1946 = vsel %vm1923, %v1793, 0
      %v1949 = vsel %vm1923, %v1796, 0
      %1951 = vmatprep.subr.bf16.mxu0 0
      %1952 = vmatpush1.bf16.msra.mxu0 %v1894
      %1953 = vmatprep.subr.bf16.mxu0 0
      %1954 = vmatpush1.bf16.msra.mxu0 %v1893
      %1955 = vmatprep.subr.bf16.mxu0 0
      %1956 = vmatpush1.bf16.msra.mxu0 %v1892
      %1957 = vmatprep.subr.bf16.mxu0 0
      %1958 = vmatpush1.bf16.msra.mxu0 %v1891
      %1959 = vmatprep.subr.bf16.mxu0 0
      %1960 = vmatpush1.bf16.msra.mxu0 %v1890
      %1961 = vmatprep.subr.bf16.mxu0 0
      %1962 = vmatpush1.bf16.msra.mxu0 %v1889
      %1963 = vmatprep.subr.bf16.mxu0 0
      %1964 = vmatpush1.bf16.msra.mxu0 %v1888
      %1965 = vmatprep.subr.bf16.mxu0 0
      %1966 = vmatpush1.bf16.msra.mxu0 %v1887
      %1967 = vmatprep.subr.bf16.mxu0 0
      %1968 = vmatpush2.bf16.msra.mxu0 %v1902
      %1969 = vmatprep.subr.bf16.mxu0 0
      %1970 = vmatpush2.bf16.msra.mxu0 %v1901
      %1971 = vmatprep.subr.bf16.mxu0 0
      %1972 = vmatpush2.bf16.msra.mxu0 %v1900
      %1973 = vmatprep.subr.bf16.mxu0 0
      %1974 = vmatpush2.bf16.msra.mxu0 %v1899
      %1975 = vmatprep.subr.bf16.mxu0 0
      %1976 = vmatpush2.bf16.msra.mxu0 %v1898
      %1977 = vmatprep.subr.bf16.mxu0 0
      %1978 = vmatpush2.bf16.msra.mxu0 %v1897
      %1979 = vmatprep.subr.bf16.mxu0 0
      %1980 = vmatpush2.bf16.msra.mxu0 %v1896
      %1981 = vmatprep.subr.bf16.mxu0 0
      %1982 = vmatpush2.bf16.msra.mxu0 %v1895
      %1983 = vmatprep.mubr.bf16.mxu0 %v1771
      %1984 = vmatmul.mubr.bf16.gmra.mxu0 %v1770
      %v1985 = vpop.f32.mrf.mxu0
      %v1986 = vadd.f32 %v1678, %v1985
      %v1987 = vpop.f32.mrf.mxu0
      %v1988 = vpop.f32.mrf.mxu0
      %v1989 = vadd.f32 %v1678, %v1988
      %v1990 = vpop.f32.mrf.mxu0
      %1991 = vmatprep.mubr.bf16.mxu0 %v1774
      %1992 = vmatmul.mubr.bf16.gmra.mxu0 %v1773
      %v1993 = vpop.f32.mrf.mxu0
      %v1994 = vadd.f32 %v1678, %v1993
      %v1995 = vpop.f32.mrf.mxu0
      %v1996 = vpop.f32.mrf.mxu0
      %v1997 = vadd.f32 %v1678, %v1996
      %v1998 = vpop.f32.mrf.mxu0
      %1999 = vmatprep.mubr.bf16.mxu0 %v1777
      %2000 = vmatmul.mubr.bf16.gmra.mxu0 %v1776
      %v2001 = vpop.f32.mrf.mxu0
      %v2002 = vadd.f32 %v1678, %v2001
      %v2003 = vpop.f32.mrf.mxu0
      %v2004 = vpop.f32.mrf.mxu0
      %v2005 = vadd.f32 %v1678, %v2004
      %v2006 = vpop.f32.mrf.mxu0
      %2007 = vmatprep.mubr.bf16.mxu0 %v1780
      %2008 = vmatmul.mubr.bf16.gmra.mxu0 %v1779
      %v2009 = vpop.f32.mrf.mxu0
      %v2010 = vadd.f32 %v1678, %v2009
      %v2011 = vpop.f32.mrf.mxu0
      %v2012 = vpop.f32.mrf.mxu0
      %v2013 = vadd.f32 %v1678, %v2012
      %v2014 = vpop.f32.mrf.mxu0
      %2015 = vmatprep.mubr.bf16.mxu0 %v1783
      %2016 = vmatmul.mubr.bf16.gmra.mxu0 %v1782
      %v2017 = vpop.f32.mrf.mxu0
      %v2018 = vadd.f32 %v1678, %v2017
      %v2019 = vpop.f32.mrf.mxu0
      %v2020 = vpop.f32.mrf.mxu0
      %v2021 = vadd.f32 %v1678, %v2020
      %v2022 = vpop.f32.mrf.mxu0
      %2023 = vmatprep.mubr.bf16.mxu0 %v1786
      %2024 = vmatmul.mubr.bf16.gmra.mxu0 %v1785
      %v2025 = vpop.f32.mrf.mxu0
      %v2026 = vadd.f32 %v1678, %v2025
      %v2027 = vpop.f32.mrf.mxu0
      %v2028 = vpop.f32.mrf.mxu0
      %v2029 = vadd.f32 %v1678, %v2028
      %v2030 = vpop.f32.mrf.mxu0
      %2031 = vmatprep.mubr.bf16.mxu0 %v1789
      %2032 = vmatmul.mubr.bf16.gmra.mxu0 %v1788
      %v2033 = vpop.f32.mrf.mxu0
      %v2034 = vadd.f32 %v1678, %v2033
      %v2035 = vpop.f32.mrf.mxu0
      %v2036 = vpop.f32.mrf.mxu0
      %v2037 = vadd.f32 %v1678, %v2036
      %v2038 = vpop.f32.mrf.mxu0
      %2039 = vmatprep.mubr.bf16.mxu0 %v1792
      %2040 = vmatmul.mubr.bf16.gmra.mxu0 %v1791
      %v2041 = vpop.f32.mrf.mxu0
      %v2042 = vadd.f32 %v1678, %v2041
      %v2043 = vpop.f32.mrf.mxu0
      %v2044 = vpop.f32.mrf.mxu0
      %v2045 = vadd.f32 %v1678, %v2044
      %v2046 = vpop.f32.mrf.mxu0
      %2047 = vmatprep.mubr.bf16.mxu0 %v1795
      %2048 = vmatmul.mubr.bf16.gmra.mxu0 %v1794
      %v2049 = vpop.f32.mrf.mxu0
      %v2050 = vadd.f32 %v1678, %v2049
      %v2051 = vpop.f32.mrf.mxu0
      %v2052 = vpop.f32.mrf.mxu0
      %v2053 = vadd.f32 %v1678, %v2052
      %v2054 = vpop.f32.mrf.mxu0
      %2055 = vdwg.mxu0
      %2056 = vmatprep.subr.bf16.mxu0 0
      %2057 = vmatpush1.bf16.msra.mxu0 0
      %2058 = vmatprep.subr.bf16.mxu0 0
      %2059 = vmatpush1.bf16.msra.mxu0 0
      %2060 = vmatprep.subr.bf16.mxu0 0
      %2061 = vmatpush1.bf16.msra.mxu0 0
      %2062 = vmatprep.subr.bf16.mxu0 0
      %2063 = vmatpush1.bf16.msra.mxu0 0
      %2064 = vmatprep.subr.bf16.mxu0 0
      %2065 = vmatpush1.bf16.msra.mxu0 0
      %2066 = vmatprep.subr.bf16.mxu0 0
      %2067 = vmatpush1.bf16.msra.mxu0 0
      %2068 = vmatprep.subr.bf16.mxu0 0
      %2069 = vmatpush1.bf16.msra.mxu0 %v1904
      %2070 = vmatprep.subr.bf16.mxu0 0
      %2071 = vmatpush1.bf16.msra.mxu0 %v1903
      %2072 = vmatprep.subr.bf16.mxu0 0
      %2073 = vmatpush2.bf16.msra.mxu0 0
      %2074 = vmatprep.subr.bf16.mxu0 0
      %2075 = vmatpush2.bf16.msra.mxu0 0
      %2076 = vmatprep.subr.bf16.mxu0 0
      %2077 = vmatpush2.bf16.msra.mxu0 0
      %2078 = vmatprep.subr.bf16.mxu0 0
      %2079 = vmatpush2.bf16.msra.mxu0 0
      %2080 = vmatprep.subr.bf16.mxu0 0
      %2081 = vmatpush2.bf16.msra.mxu0 0
      %2082 = vmatprep.subr.bf16.mxu0 0
      %2083 = vmatpush2.bf16.msra.mxu0 0
      %2084 = vmatprep.subr.bf16.mxu0 0
      %2085 = vmatpush2.bf16.msra.mxu0 0
      %2086 = vmatprep.subr.bf16.mxu0 0
      %2087 = vmatpush2.bf16.msra.mxu0 0
      %2088 = vmatprep.mubr.bf16.mxu0 0
      %2089 = vmatmul.mubr.bf16.gmra.mxu0 %v1925
      %v2090 = vpop.f32.mrf.mxu0
      %v2091 = vadd.f32 %v1986, %v2090
      %v2092 = vpop.f32.mrf.mxu0
      %v2093 = vpop.f32.mrf.mxu0
      %v2094 = vadd.f32 %v1989, %v2093
      %v2095 = vpop.f32.mrf.mxu0
      %2096 = vmatprep.mubr.bf16.mxu0 0
      %2097 = vmatmul.mubr.bf16.gmra.mxu0 %v1928
      %v2098 = vpop.f32.mrf.mxu0
      %v2099 = vadd.f32 %v1994, %v2098
      %v2100 = vpop.f32.mrf.mxu0
      %v2101 = vpop.f32.mrf.mxu0
      %v2102 = vadd.f32 %v1997, %v2101
      %v2103 = vpop.f32.mrf.mxu0
      %2104 = vmatprep.mubr.bf16.mxu0 0
      %2105 = vmatmul.mubr.bf16.gmra.mxu0 %v1931
      %v2106 = vpop.f32.mrf.mxu0
      %v2107 = vadd.f32 %v2002, %v2106
      %v2108 = vpop.f32.mrf.mxu0
      %v2109 = vpop.f32.mrf.mxu0
      %v2110 = vadd.f32 %v2005, %v2109
      %v2111 = vpop.f32.mrf.mxu0
      %2112 = vmatprep.mubr.bf16.mxu0 0
      %2113 = vmatmul.mubr.bf16.gmra.mxu0 %v1934
      %v2114 = vpop.f32.mrf.mxu0
      %v2115 = vadd.f32 %v2010, %v2114
      %v2116 = vpop.f32.mrf.mxu0
      %v2117 = vpop.f32.mrf.mxu0
      %v2118 = vadd.f32 %v2013, %v2117
      %v2119 = vpop.f32.mrf.mxu0
      %2120 = vmatprep.mubr.bf16.mxu0 0
      %2121 = vmatmul.mubr.bf16.gmra.mxu0 %v1937
      %v2122 = vpop.f32.mrf.mxu0
      %v2123 = vadd.f32 %v2018, %v2122
      %v2124 = vpop.f32.mrf.mxu0
      %v2125 = vpop.f32.mrf.mxu0
      %v2126 = vadd.f32 %v2021, %v2125
      %v2127 = vpop.f32.mrf.mxu0
      %2128 = vmatprep.mubr.bf16.mxu0 0
      %2129 = vmatmul.mubr.bf16.gmra.mxu0 %v1940
      %v2130 = vpop.f32.mrf.mxu0
      %v2131 = vadd.f32 %v2026, %v2130
      %v2132 = vpop.f32.mrf.mxu0
      %v2133 = vpop.f32.mrf.mxu0
      %v2134 = vadd.f32 %v2029, %v2133
      %v2135 = vpop.f32.mrf.mxu0
      %2136 = vmatprep.mubr.bf16.mxu0 0
      %2137 = vmatmul.mubr.bf16.gmra.mxu0 %v1943
      %v2138 = vpop.f32.mrf.mxu0
      %v2139 = vadd.f32 %v2034, %v2138
      %v2140 = vpop.f32.mrf.mxu0
      %v2141 = vpop.f32.mrf.mxu0
      %v2142 = vadd.f32 %v2037, %v2141
      %v2143 = vpop.f32.mrf.mxu0
      %2144 = vmatprep.mubr.bf16.mxu0 0
      %2145 = vmatmul.mubr.bf16.gmra.mxu0 %v1946
      %v2146 = vpop.f32.mrf.mxu0
      %v2147 = vadd.f32 %v2042, %v2146
      %v2148 = vpop.f32.mrf.mxu0
      %v2149 = vpop.f32.mrf.mxu0
      %v2150 = vadd.f32 %v2045, %v2149
      %v2151 = vpop.f32.mrf.mxu0
      %2152 = vmatprep.mubr.bf16.mxu0 0
      %2153 = vmatmul.mubr.bf16.gmra.mxu0 %v1949
      %v2154 = vpop.f32.mrf.mxu0
      %v2155 = vadd.f32 %v2050, %v2154
      %v2156 = vpop.f32.mrf.mxu0
      %v2157 = vpop.f32.mrf.mxu0
      %v2158 = vadd.f32 %v2053, %v2157
      %v2159 = vpop.f32.mrf.mxu0
      %2160 = vdwg.mxu0
      %v2161 = vmax.f32 %v2091, 0.0
      %v2162 = vmax.f32 %v2094, 0.0
      %v2163 = vmax.f32 %v2099, 0.0
      %v2164 = vmax.f32 %v2102, 0.0
      %v2165 = vmax.f32 %v2107, 0.0
      %v2166 = vmax.f32 %v2110, 0.0
      %v2167 = vmax.f32 %v2115, 0.0
      %v2168 = vmax.f32 %v2118, 0.0
      %v2169 = vmax.f32 %v2123, 0.0
      %v2170 = vmax.f32 %v2126, 0.0
      %v2171 = vmax.f32 %v2131, 0.0
      %v2172 = vmax.f32 %v2134, 0.0
      %v2173 = vmax.f32 %v2139, 0.0
      %v2174 = vmax.f32 %v2142, 0.0
      %v2175 = vmax.f32 %v2147, 0.0
      %v2176 = vmax.f32 %v2150, 0.0
      %v2177 = vmax.f32 %v2155, 0.0
      %v2178 = vmax.f32 %v2158, 0.0
      %2180 = vset.pattern.permute.xlu0 0
      %2181 = vperm.xlu0 %2180, %v493
      %v2182 = vpop.permute.xlu0 %2181
      %2185 = vset.pattern.permute.xlu0 0
      %2186 = vperm.xlu0 %2185, %v494
      %v2187 = vpop.permute.xlu0 %2186
      %2190 = vset.pattern.permute.xlu0 0
      %2191 = vperm.xlu0 %2190, %v495
      %v2192 = vpop.permute.xlu0 %2191
      %2195 = vset.pattern.permute.xlu0 0
      %2196 = vperm.xlu0 %2195, %v496
      %v2197 = vpop.permute.xlu0 %2196
      %2200 = vset.pattern.permute.xlu0 0
      %2201 = vperm.xlu0 %2200, %v497
      %v2202 = vpop.permute.xlu0 %2201
      %2205 = vset.pattern.permute.xlu0 0
      %2206 = vperm.xlu0 %2205, %v498
      %v2207 = vpop.permute.xlu0 %2206
      %2210 = vset.pattern.permute.xlu0 0
      %2211 = vperm.xlu0 %2210, %v499
      %v2212 = vpop.permute.xlu0 %2211
      %2215 = vset.pattern.permute.xlu0 0
      %2216 = vperm.xlu0 %2215, %v500
      %v2217 = vpop.permute.xlu0 %2216
      %2220 = vset.pattern.permute.xlu0 0
      %2221 = vperm.xlu0 %2220, %v501
      %v2222 = vpop.permute.xlu0 %2221
      %2225 = vset.pattern.permute.xlu0 0
      %2226 = vperm.xlu0 %2225, %v502
      %v2227 = vpop.permute.xlu0 %2226
      %2230 = vset.pattern.permute.xlu0 0
      %2231 = vperm.xlu0 %2230, %v503
      %v2232 = vpop.permute.xlu0 %2231
      %2235 = vset.pattern.permute.xlu0 0
      %2236 = vperm.xlu0 %2235, %v504
      %v2237 = vpop.permute.xlu0 %2236
      %2240 = vset.pattern.permute.xlu0 0
      %2241 = vperm.xlu0 %2240, %v505
      %v2242 = vpop.permute.xlu0 %2241
      %2245 = vset.pattern.permute.xlu0 0
      %2246 = vperm.xlu0 %2245, %v506
      %v2247 = vpop.permute.xlu0 %2246
      %2250 = vset.pattern.permute.xlu0 0
      %2251 = vperm.xlu0 %2250, %v507
      %v2252 = vpop.permute.xlu0 %2251
      %2255 = vset.pattern.permute.xlu0 0
      %2256 = vperm.xlu0 %2255, %v508
      %v2257 = vpop.permute.xlu0 %2256
      %2260 = vset.pattern.permute.xlu0 0
      %2261 = vperm.xlu0 %2260, %v509
      %v2262 = vpop.permute.xlu0 %2261
      %2265 = vset.pattern.permute.xlu0 0
      %2266 = vperm.xlu0 %2265, %v510
      %v2267 = vpop.permute.xlu0 %2266
      %v2269 = vmul.f32 %v2161, %v2182
      %v2270 = vmul.f32 %v2162, %v2187
      %v2271 = vmul.f32 %v2163, %v2192
      %v2272 = vmul.f32 %v2164, %v2197
      %v2273 = vmul.f32 %v2165, %v2202
      %v2274 = vmul.f32 %v2166, %v2207
      %v2275 = vmul.f32 %v2167, %v2212
      %v2276 = vmul.f32 %v2168, %v2217
      %v2277 = vmul.f32 %v2169, %v2222
      %v2278 = vmul.f32 %v2170, %v2227
      %v2279 = vmul.f32 %v2171, %v2232
      %v2280 = vmul.f32 %v2172, %v2237
      %v2281 = vmul.f32 %v2173, %v2242
      %v2282 = vmul.f32 %v2174, %v2247
      %v2283 = vmul.f32 %v2175, %v2252
      %v2284 = vmul.f32 %v2176, %v2257
      %v2285 = vmul.f32 %v2177, %v2262
      %v2286 = vmul.f32 %v2178, %v2267
      %v2287 = vld [vmem:[%s4] sm:$0xf]
      %v2288 = vld [vmem:[%s4 + $0x4] sm:$0xf]
      %v2289 = vld [vmem:[%s4 + $0x8] sm:$0xf]
      %v2290 = vld [vmem:[%s4 + $0xc] sm:$0xf]
      %v2291 = vld [vmem:[%s4 + $0x10] sm:$0xf]
      %v2292 = vld [vmem:[%s4 + $0x14] sm:$0xf]
      %v2293 = vld [vmem:[%s4 + $0x18] sm:$0xf]
      %v2294 = vld [vmem:[%s4 + $0x1c] sm:$0xf]
      %v2295 = vld [vmem:[%s4 + $0x20] sm:$0xf]
      %v2296 = vld [vmem:[%s4 + $0x24] sm:$0xf]
      %v2297 = vld [vmem:[%s4 + $0x28] sm:$0xf]
      %v2298 = vld [vmem:[%s4 + $0x2c] sm:$0xf]
      %v2299 = vld [vmem:[%s4 + $0x30] sm:$0xf]
      %v2300 = vld [vmem:[%s4 + $0x34] sm:$0xf]
      %v2301 = vld [vmem:[%s4 + $0x38] sm:$0xf]
      %v2302 = vld [vmem:[%s4 + $0x3c] sm:$0xf]
      %v2303 = vld [vmem:[%s4 + $0x40] sm:$0xf]
      %v2304 = vld [vmem:[%s4 + $0x44] sm:$0xf]
      %v2305 = vld [vmem:[%s4 + $0x48] sm:$0xf]
      %v2306 = vld [vmem:[%s4 + $0x4c] sm:$0xf]
      %v2307 = vld [vmem:[%s4 + $0x50] sm:$0xf]
      %v2308 = vld [vmem:[%s4 + $0x54] sm:$0xf]
      %v2309 = vld [vmem:[%s4 + $0x58] sm:$0xf]
      %v2310 = vld [vmem:[%s4 + $0x5c] sm:$0xf]
      %v2311 = vld [vmem:[%s4 + $0x60] sm:$0xf]
      %v2312 = vld [vmem:[%s4 + $0x64] sm:$0xf]
      %v2313 = vld [vmem:[%s4 + $0x68] sm:$0xf]
      %v2314 = vld [vmem:[%s4 + $0x6c] sm:$0xf]
      %v2315 = vld [vmem:[%s4 + $0x70] sm:$0xf]
      %v2316 = vld [vmem:[%s4 + $0x74] sm:$0xf]
      %v2317 = vld [vmem:[%s4 + $0x78] sm:$0xf]
      %v2318 = vld [vmem:[%s4 + $0x7c] sm:$0xf]
      %v2319 = vld [vmem:[%s4 + $0x80] sm:$0xf]
      %v2320 = vld [vmem:[%s4 + $0x84] sm:$0xf]
      %v2321 = vld [vmem:[%s4 + $0x88] sm:$0xf]
      %v2322 = vld [vmem:[%s4 + $0x8c] sm:$0xf]
      %v2323 = vld [vmem:[%s5] sm:$0x1]
      %v2324 = vrot.slane %v2269, 6
      %v2325 = vrot.slane %v2270, 6
      %v2326 = vrot.slane %v2271, 6
      %v2327 = vrot.slane %v2272, 6
      %v2328 = vrot.slane %v2273, 6
      %v2329 = vrot.slane %v2274, 6
      %v2330 = vrot.slane %v2275, 6
      %v2331 = vrot.slane %v2276, 6
      %v2332 = vrot.slane %v2277, 6
      %v2333 = vrot.slane %v2278, 6
      %v2334 = vrot.slane %v2279, 6
      %v2335 = vrot.slane %v2280, 6
      %v2336 = vrot.slane %v2281, 6
      %v2337 = vrot.slane %v2282, 6
      %v2338 = vrot.slane %v2283, 6
      %v2339 = vrot.slane %v2284, 6
      %v2340 = vrot.slane %v2285, 6
      %v2341 = vrot.slane %v2286, 6
      %v2342 = vsel %vm586, %v2340, %v2341
      %v2343 = vsel %vm586, %v2339, %v2340
      %v2344 = vsel %vm586, %v2338, %v2339
      %v2345 = vsel %vm586, %v2337, %v2338
      %v2346 = vsel %vm586, %v2336, %v2337
      %v2347 = vsel %vm586, %v2335, %v2336
      %v2348 = vsel %vm586, %v2334, %v2335
      %v2349 = vsel %vm586, %v2333, %v2334
      %v2350 = vsel %vm586, %v2332, %v2333
      %v2351 = vsel %vm586, %v2331, %v2332
      %v2352 = vsel %vm586, %v2330, %v2331
      %v2353 = vsel %vm586, %v2329, %v2330
      %v2354 = vsel %vm586, %v2328, %v2329
      %v2355 = vsel %vm586, %v2327, %v2328
      %v2356 = vsel %vm586, %v2326, %v2327
      %v2357 = vsel %vm586, %v2325, %v2326
      %v2358 = vsel %vm586, %v2324, %v2325
      %v2359 = vsel %vm586, %v2341, %v2324
      %v2360 = vpack.c.bf16 %v2359, %v2342
      %v2361 = vpack.c.bf16 %v2357, %v2358
      %v2362 = vpack.c.bf16 %v2355, %v2356
      %v2363 = vpack.c.bf16 %v2353, %v2354
      %v2364 = vpack.c.bf16 %v2351, %v2352
      %v2365 = vpack.c.bf16 %v2349, %v2350
      %v2366 = vpack.c.bf16 %v2347, %v2348
      %v2367 = vpack.c.bf16 %v2345, %v2346
      %v2368 = vpack.c.bf16 %v2343, %v2344
      %v2378 = vunpack.c.l.b16 %v2360
      %v2379 = vunpack.c.h.b16 %v2360
      %v2380 = vunpack.c.l.b16 %v2361
      %v2381 = vunpack.c.h.b16 %v2361
      %v2382 = vunpack.c.l.b16 %v2362
      %v2383 = vunpack.c.h.b16 %v2362
      %v2384 = vunpack.c.l.b16 %v2363
      %v2385 = vunpack.c.h.b16 %v2363
      %v2386 = vunpack.c.l.b16 %v2364
      %v2387 = vunpack.c.h.b16 %v2364
      %v2388 = vunpack.c.l.b16 %v2365
      %v2389 = vunpack.c.h.b16 %v2365
      %v2390 = vunpack.c.l.b16 %v2366
      %v2391 = vunpack.c.h.b16 %v2366
      %v2392 = vunpack.c.l.b16 %v2367
      %v2393 = vunpack.c.h.b16 %v2367
      %v2394 = vunpack.c.l.b16 %v2368
      %v2395 = vunpack.c.h.b16 %v2368
      %v2396 = vpack.c.b16 %v2378, %v2378
      %v2397 = vpack.c.b16 %v2379, %v2379
      %v2398 = vpack.c.b16 %v2380, %v2380
      %v2399 = vpack.c.b16 %v2381, %v2381
      %v2400 = vpack.c.b16 %v2382, %v2382
      %v2401 = vpack.c.b16 %v2383, %v2383
      %v2402 = vpack.c.b16 %v2384, %v2384
      %v2403 = vpack.c.b16 %v2385, %v2385
      %v2404 = vpack.c.b16 %v2386, %v2386
      %v2405 = vpack.c.b16 %v2387, %v2387
      %v2406 = vpack.c.b16 %v2388, %v2388
      %v2407 = vpack.c.b16 %v2389, %v2389
      %v2408 = vpack.c.b16 %v2390, %v2390
      %v2409 = vpack.c.b16 %v2391, %v2391
      %v2410 = vpack.c.b16 %v2392, %v2392
      %v2411 = vpack.c.b16 %v2393, %v2393
      %v2412 = vpack.c.b16 %v2394, %v2394
      %v2413 = vpack.c.b16 %v2395, %v2395
      %2432 = vst.msk [vmem:[#allocation2] sm:$0xf] %vm677, %v2396
      %2433 = vst.msk [vmem:[#allocation2 + $0xc] sm:$0xf] %vm677, %v2397
      %2434 = vst.msk [vmem:[#allocation2 + $0x18] sm:$0xf] %vm677, %v2398
      %2435 = vst.msk [vmem:[#allocation2 + $0x24] sm:$0xf] %vm677, %v2399
      %2436 = vst.msk [vmem:[#allocation2 + $0x30] sm:$0xf] %vm677, %v2400
      %2437 = vst.msk [vmem:[#allocation2 + $0x3c] sm:$0xf] %vm677, %v2401
      %2438 = vst.msk [vmem:[#allocation2 + $0x48] sm:$0xf] %vm677, %v2402
      %2439 = vst.msk [vmem:[#allocation2 + $0x54] sm:$0xf] %vm677, %v2403
      %2440 = vst.msk [vmem:[#allocation2 + $0x60] sm:$0xf] %vm677, %v2404
      %2441 = vst.msk [vmem:[#allocation2 + $0x6c] sm:$0xf] %vm677, %v2405
      %2442 = vst.msk [vmem:[#allocation2 + $0x78] sm:$0xf] %vm677, %v2406
      %2443 = vst.msk [vmem:[#allocation2 + $0x84] sm:$0xf] %vm677, %v2407
      %2444 = vst.msk [vmem:[#allocation2 + $0x90] sm:$0xf] %vm677, %v2408
      %2445 = vst.msk [vmem:[#allocation2 + $0x9c] sm:$0xf] %vm677, %v2409
      %2446 = vst.msk [vmem:[#allocation2 + $0xa8] sm:$0xf] %vm677, %v2410
      %2447 = vst.msk [vmem:[#allocation2 + $0xb4] sm:$0xf] %vm677, %v2411
      %2448 = vst.msk [vmem:[#allocation2 + $0xc0] sm:$0xf] %vm677, %v2412
      %2449 = vst.msk [vmem:[#allocation2 + $0xcc] sm:$0xf] %vm677, %v2413
      %v2450 = vrot.slane %v2269, 7
      %v2451 = vrot.slane %v2270, 7
      %v2452 = vrot.slane %v2271, 7
      %v2453 = vrot.slane %v2272, 7
      %v2454 = vrot.slane %v2273, 7
      %v2455 = vrot.slane %v2274, 7
      %v2456 = vrot.slane %v2275, 7
      %v2457 = vrot.slane %v2276, 7
      %v2458 = vrot.slane %v2277, 7
      %v2459 = vrot.slane %v2278, 7
      %v2460 = vrot.slane %v2279, 7
      %v2461 = vrot.slane %v2280, 7
      %v2462 = vrot.slane %v2281, 7
      %v2463 = vrot.slane %v2282, 7
      %v2464 = vrot.slane %v2283, 7
      %v2465 = vrot.slane %v2284, 7
      %v2466 = vrot.slane %v2285, 7
      %v2467 = vrot.slane %v2286, 7
      %v2468 = vsel %vm714, %v2466, %v2467
      %v2469 = vsel %vm714, %v2465, %v2466
      %v2470 = vsel %vm714, %v2464, %v2465
      %v2471 = vsel %vm714, %v2463, %v2464
      %v2472 = vsel %vm714, %v2462, %v2463
      %v2473 = vsel %vm714, %v2461, %v2462
      %v2474 = vsel %vm714, %v2460, %v2461
      %v2475 = vsel %vm714, %v2459, %v2460
      %v2476 = vsel %vm714, %v2458, %v2459
      %v2477 = vsel %vm714, %v2457, %v2458
      %v2478 = vsel %vm714, %v2456, %v2457
      %v2479 = vsel %vm714, %v2455, %v2456
      %v2480 = vsel %vm714, %v2454, %v2455
      %v2481 = vsel %vm714, %v2453, %v2454
      %v2482 = vsel %vm714, %v2452, %v2453
      %v2483 = vsel %vm714, %v2451, %v2452
      %v2484 = vsel %vm714, %v2450, %v2451
      %v2485 = vsel %vm714, %v2467, %v2450
      %v2486 = vpack.c.bf16 %v2485, %v2468
      %v2487 = vpack.c.bf16 %v2483, %v2484
      %v2488 = vpack.c.bf16 %v2481, %v2482
      %v2489 = vpack.c.bf16 %v2479, %v2480
      %v2490 = vpack.c.bf16 %v2477, %v2478
      %v2491 = vpack.c.bf16 %v2475, %v2476
      %v2492 = vpack.c.bf16 %v2473, %v2474
      %v2493 = vpack.c.bf16 %v2471, %v2472
      %v2494 = vpack.c.bf16 %v2469, %v2470
      %v2504 = vunpack.c.l.b16 %v2486
      %v2505 = vunpack.c.h.b16 %v2486
      %v2506 = vunpack.c.l.b16 %v2487
      %v2507 = vunpack.c.h.b16 %v2487
      %v2508 = vunpack.c.l.b16 %v2488
      %v2509 = vunpack.c.h.b16 %v2488
      %v2510 = vunpack.c.l.b16 %v2489
      %v2511 = vunpack.c.h.b16 %v2489
      %v2512 = vunpack.c.l.b16 %v2490
      %v2513 = vunpack.c.h.b16 %v2490
      %v2514 = vunpack.c.l.b16 %v2491
      %v2515 = vunpack.c.h.b16 %v2491
      %v2516 = vunpack.c.l.b16 %v2492
      %v2517 = vunpack.c.h.b16 %v2492
      %v2518 = vunpack.c.l.b16 %v2493
      %v2519 = vunpack.c.h.b16 %v2493
      %v2520 = vunpack.c.l.b16 %v2494
      %v2521 = vunpack.c.h.b16 %v2494
      %v2522 = vpack.c.b16 %v2504, %v2504
      %v2523 = vpack.c.b16 %v2505, %v2505
      %v2524 = vpack.c.b16 %v2506, %v2506
      %v2525 = vpack.c.b16 %v2507, %v2507
      %v2526 = vpack.c.b16 %v2508, %v2508
      %v2527 = vpack.c.b16 %v2509, %v2509
      %v2528 = vpack.c.b16 %v2510, %v2510
      %v2529 = vpack.c.b16 %v2511, %v2511
      %v2530 = vpack.c.b16 %v2512, %v2512
      %v2531 = vpack.c.b16 %v2513, %v2513
      %v2532 = vpack.c.b16 %v2514, %v2514
      %v2533 = vpack.c.b16 %v2515, %v2515
      %v2534 = vpack.c.b16 %v2516, %v2516
      %v2535 = vpack.c.b16 %v2517, %v2517
      %v2536 = vpack.c.b16 %v2518, %v2518
      %v2537 = vpack.c.b16 %v2519, %v2519
      %v2538 = vpack.c.b16 %v2520, %v2520
      %v2539 = vpack.c.b16 %v2521, %v2521
      %2540 = vrot.lane.b32.xlu0 %v2522, 32
      %v2541 = vpop.permute.xlu0 %2540
      %2542 = vrot.lane.b32.xlu0 %v2523, 32
      %v2543 = vpop.permute.xlu0 %2542
      %2544 = vrot.lane.b32.xlu0 %v2524, 32
      %v2545 = vpop.permute.xlu0 %2544
      %2546 = vrot.lane.b32.xlu0 %v2525, 32
      %v2547 = vpop.permute.xlu0 %2546
      %2548 = vrot.lane.b32.xlu0 %v2526, 32
      %v2549 = vpop.permute.xlu0 %2548
      %2550 = vrot.lane.b32.xlu0 %v2527, 32
      %v2551 = vpop.permute.xlu0 %2550
      %2552 = vrot.lane.b32.xlu0 %v2528, 32
      %v2553 = vpop.permute.xlu0 %2552
      %2554 = vrot.lane.b32.xlu0 %v2529, 32
      %v2555 = vpop.permute.xlu0 %2554
      %2556 = vrot.lane.b32.xlu0 %v2530, 32
      %v2557 = vpop.permute.xlu0 %2556
      %2558 = vrot.lane.b32.xlu0 %v2531, 32
      %v2559 = vpop.permute.xlu0 %2558
      %2560 = vrot.lane.b32.xlu0 %v2532, 32
      %v2561 = vpop.permute.xlu0 %2560
      %2562 = vrot.lane.b32.xlu0 %v2533, 32
      %v2563 = vpop.permute.xlu0 %2562
      %2564 = vrot.lane.b32.xlu0 %v2534, 32
      %v2565 = vpop.permute.xlu0 %2564
      %2566 = vrot.lane.b32.xlu0 %v2535, 32
      %v2567 = vpop.permute.xlu0 %2566
      %2568 = vrot.lane.b32.xlu0 %v2536, 32
      %v2569 = vpop.permute.xlu0 %2568
      %2570 = vrot.lane.b32.xlu0 %v2537, 32
      %v2571 = vpop.permute.xlu0 %2570
      %2572 = vrot.lane.b32.xlu0 %v2538, 32
      %v2573 = vpop.permute.xlu0 %2572
      %2574 = vrot.lane.b32.xlu0 %v2539, 32
      %v2575 = vpop.permute.xlu0 %2574
      %2594 = vst.msk [vmem:[#allocation2] sm:$0xf] %vm841, %v2541
      %2595 = vst.msk [vmem:[#allocation2 + $0xc] sm:$0xf] %vm841, %v2543
      %2596 = vst.msk [vmem:[#allocation2 + $0x18] sm:$0xf] %vm841, %v2545
      %2597 = vst.msk [vmem:[#allocation2 + $0x24] sm:$0xf] %vm841, %v2547
      %2598 = vst.msk [vmem:[#allocation2 + $0x30] sm:$0xf] %vm841, %v2549
      %2599 = vst.msk [vmem:[#allocation2 + $0x3c] sm:$0xf] %vm841, %v2551
      %2600 = vst.msk [vmem:[#allocation2 + $0x48] sm:$0xf] %vm841, %v2553
      %2601 = vst.msk [vmem:[#allocation2 + $0x54] sm:$0xf] %vm841, %v2555
      %2602 = vst.msk [vmem:[#allocation2 + $0x60] sm:$0xf] %vm841, %v2557
      %2603 = vst.msk [vmem:[#allocation2 + $0x6c] sm:$0xf] %vm841, %v2559
      %2604 = vst.msk [vmem:[#allocation2 + $0x78] sm:$0xf] %vm841, %v2561
      %2605 = vst.msk [vmem:[#allocation2 + $0x84] sm:$0xf] %vm841, %v2563
      %2606 = vst.msk [vmem:[#allocation2 + $0x90] sm:$0xf] %vm841, %v2565
      %2607 = vst.msk [vmem:[#allocation2 + $0x9c] sm:$0xf] %vm841, %v2567
      %2608 = vst.msk [vmem:[#allocation2 + $0xa8] sm:$0xf] %vm841, %v2569
      %2609 = vst.msk [vmem:[#allocation2 + $0xb4] sm:$0xf] %vm841, %v2571
      %2610 = vst.msk [vmem:[#allocation2 + $0xc0] sm:$0xf] %vm841, %v2573
      %2611 = vst.msk [vmem:[#allocation2 + $0xcc] sm:$0xf] %vm841, %v2575
      %v2612 = vpack.c.bf16 %v2269, %v2286
      %v2613 = vpack.c.bf16 %v2271, %v2270
      %v2614 = vpack.c.bf16 %v2273, %v2272
      %v2615 = vpack.c.bf16 %v2275, %v2274
      %v2616 = vpack.c.bf16 %v2277, %v2276
      %v2617 = vpack.c.bf16 %v2279, %v2278
      %v2618 = vpack.c.bf16 %v2281, %v2280
      %v2619 = vpack.c.bf16 %v2283, %v2282
      %v2620 = vpack.c.bf16 %v2285, %v2284
      %v2630 = vunpack.c.l.b16 %v2612
      %v2631 = vunpack.c.h.b16 %v2612
      %v2632 = vunpack.c.l.b16 %v2613
      %v2633 = vunpack.c.h.b16 %v2613
      %v2634 = vunpack.c.l.b16 %v2614
      %v2635 = vunpack.c.h.b16 %v2614
      %v2636 = vunpack.c.l.b16 %v2615
      %v2637 = vunpack.c.h.b16 %v2615
      %v2638 = vunpack.c.l.b16 %v2616
      %v2639 = vunpack.c.h.b16 %v2616
      %v2640 = vunpack.c.l.b16 %v2617
      %v2641 = vunpack.c.h.b16 %v2617
      %v2642 = vunpack.c.l.b16 %v2618
      %v2643 = vunpack.c.h.b16 %v2618
      %v2644 = vunpack.c.l.b16 %v2619
      %v2645 = vunpack.c.h.b16 %v2619
      %v2646 = vunpack.c.l.b16 %v2620
      %v2647 = vunpack.c.h.b16 %v2620
      %v2648 = vpack.c.b16 %v2630, %v2630
      %v2649 = vpack.c.b16 %v2631, %v2631
      %v2650 = vpack.c.b16 %v2632, %v2632
      %v2651 = vpack.c.b16 %v2633, %v2633
      %v2652 = vpack.c.b16 %v2634, %v2634
      %v2653 = vpack.c.b16 %v2635, %v2635
      %v2654 = vpack.c.b16 %v2636, %v2636
      %v2655 = vpack.c.b16 %v2637, %v2637
      %v2656 = vpack.c.b16 %v2638, %v2638
      %v2657 = vpack.c.b16 %v2639, %v2639
      %v2658 = vpack.c.b16 %v2640, %v2640
      %v2659 = vpack.c.b16 %v2641, %v2641
      %v2660 = vpack.c.b16 %v2642, %v2642
      %v2661 = vpack.c.b16 %v2643, %v2643
      %v2662 = vpack.c.b16 %v2644, %v2644
      %v2663 = vpack.c.b16 %v2645, %v2645
      %v2664 = vpack.c.b16 %v2646, %v2646
      %v2665 = vpack.c.b16 %v2647, %v2647
      %2666 = vrot.lane.b32.xlu0 %v2648, 64
      %v2667 = vpop.permute.xlu0 %2666
      %2668 = vrot.lane.b32.xlu0 %v2649, 64
      %v2669 = vpop.permute.xlu0 %2668
      %2670 = vrot.lane.b32.xlu0 %v2650, 64
      %v2671 = vpop.permute.xlu0 %2670
      %2672 = vrot.lane.b32.xlu0 %v2651, 64
      %v2673 = vpop.permute.xlu0 %2672
      %2674 = vrot.lane.b32.xlu0 %v2652, 64
      %v2675 = vpop.permute.xlu0 %2674
      %2676 = vrot.lane.b32.xlu0 %v2653, 64
      %v2677 = vpop.permute.xlu0 %2676
      %2678 = vrot.lane.b32.xlu0 %v2654, 64
      %v2679 = vpop.permute.xlu0 %2678
      %2680 = vrot.lane.b32.xlu0 %v2655, 64
      %v2681 = vpop.permute.xlu0 %2680
      %2682 = vrot.lane.b32.xlu0 %v2656, 64
      %v2683 = vpop.permute.xlu0 %2682
      %2684 = vrot.lane.b32.xlu0 %v2657, 64
      %v2685 = vpop.permute.xlu0 %2684
      %2686 = vrot.lane.b32.xlu0 %v2658, 64
      %v2687 = vpop.permute.xlu0 %2686
      %2688 = vrot.lane.b32.xlu0 %v2659, 64
      %v2689 = vpop.permute.xlu0 %2688
      %2690 = vrot.lane.b32.xlu0 %v2660, 64
      %v2691 = vpop.permute.xlu0 %2690
      %2692 = vrot.lane.b32.xlu0 %v2661, 64
      %v2693 = vpop.permute.xlu0 %2692
      %2694 = vrot.lane.b32.xlu0 %v2662, 64
      %v2695 = vpop.permute.xlu0 %2694
      %2696 = vrot.lane.b32.xlu0 %v2663, 64
      %v2697 = vpop.permute.xlu0 %2696
      %2698 = vrot.lane.b32.xlu0 %v2664, 64
      %v2699 = vpop.permute.xlu0 %2698
      %2700 = vrot.lane.b32.xlu0 %v2665, 64
      %v2701 = vpop.permute.xlu0 %2700
      %2720 = vst.msk [vmem:[#allocation2] sm:$0xf] %vm968, %v2667
      %2721 = vst.msk [vmem:[#allocation2 + $0xc] sm:$0xf] %vm968, %v2669
      %2722 = vst.msk [vmem:[#allocation2 + $0x18] sm:$0xf] %vm968, %v2671
      %2723 = vst.msk [vmem:[#allocation2 + $0x24] sm:$0xf] %vm968, %v2673
      %2724 = vst.msk [vmem:[#allocation2 + $0x30] sm:$0xf] %vm968, %v2675
      %2725 = vst.msk [vmem:[#allocation2 + $0x3c] sm:$0xf] %vm968, %v2677
      %2726 = vst.msk [vmem:[#allocation2 + $0x48] sm:$0xf] %vm968, %v2679
      %2727 = vst.msk [vmem:[#allocation2 + $0x54] sm:$0xf] %vm968, %v2681
      %2728 = vst.msk [vmem:[#allocation2 + $0x60] sm:$0xf] %vm968, %v2683
      %2729 = vst.msk [vmem:[#allocation2 + $0x6c] sm:$0xf] %vm968, %v2685
      %2730 = vst.msk [vmem:[#allocation2 + $0x78] sm:$0xf] %vm968, %v2687
      %2731 = vst.msk [vmem:[#allocation2 + $0x84] sm:$0xf] %vm968, %v2689
      %2732 = vst.msk [vmem:[#allocation2 + $0x90] sm:$0xf] %vm968, %v2691
      %2733 = vst.msk [vmem:[#allocation2 + $0x9c] sm:$0xf] %vm968, %v2693
      %2734 = vst.msk [vmem:[#allocation2 + $0xa8] sm:$0xf] %vm968, %v2695
      %2735 = vst.msk [vmem:[#allocation2 + $0xb4] sm:$0xf] %vm968, %v2697
      %2736 = vst.msk [vmem:[#allocation2 + $0xc0] sm:$0xf] %vm968, %v2699
      %2737 = vst.msk [vmem:[#allocation2 + $0xcc] sm:$0xf] %vm968, %v2701
      %v2738 = vpack.c.bf16 %v2484, %v2485
      %v2739 = vpack.c.bf16 %v2482, %v2483
      %v2740 = vpack.c.bf16 %v2480, %v2481
      %v2741 = vpack.c.bf16 %v2478, %v2479
      %v2742 = vpack.c.bf16 %v2476, %v2477
      %v2743 = vpack.c.bf16 %v2474, %v2475
      %v2744 = vpack.c.bf16 %v2472, %v2473
      %v2745 = vpack.c.bf16 %v2470, %v2471
      %v2746 = vpack.c.bf16 %v2468, %v2469
      %v2756 = vunpack.c.l.b16 %v2738
      %v2757 = vunpack.c.h.b16 %v2738
      %v2758 = vunpack.c.l.b16 %v2739
      %v2759 = vunpack.c.h.b16 %v2739
      %v2760 = vunpack.c.l.b16 %v2740
      %v2761 = vunpack.c.h.b16 %v2740
      %v2762 = vunpack.c.l.b16 %v2741
      %v2763 = vunpack.c.h.b16 %v2741
      %v2764 = vunpack.c.l.b16 %v2742
      %v2765 = vunpack.c.h.b16 %v2742
      %v2766 = vunpack.c.l.b16 %v2743
      %v2767 = vunpack.c.h.b16 %v2743
      %v2768 = vunpack.c.l.b16 %v2744
      %v2769 = vunpack.c.h.b16 %v2744
      %v2770 = vunpack.c.l.b16 %v2745
      %v2771 = vunpack.c.h.b16 %v2745
      %v2772 = vunpack.c.l.b16 %v2746
      %v2773 = vunpack.c.h.b16 %v2746
      %v2774 = vpack.c.b16 %v2756, %v2756
      %v2775 = vpack.c.b16 %v2757, %v2757
      %v2776 = vpack.c.b16 %v2758, %v2758
      %v2777 = vpack.c.b16 %v2759, %v2759
      %v2778 = vpack.c.b16 %v2760, %v2760
      %v2779 = vpack.c.b16 %v2761, %v2761
      %v2780 = vpack.c.b16 %v2762, %v2762
      %v2781 = vpack.c.b16 %v2763, %v2763
      %v2782 = vpack.c.b16 %v2764, %v2764
      %v2783 = vpack.c.b16 %v2765, %v2765
      %v2784 = vpack.c.b16 %v2766, %v2766
      %v2785 = vpack.c.b16 %v2767, %v2767
      %v2786 = vpack.c.b16 %v2768, %v2768
      %v2787 = vpack.c.b16 %v2769, %v2769
      %v2788 = vpack.c.b16 %v2770, %v2770
      %v2789 = vpack.c.b16 %v2771, %v2771
      %v2790 = vpack.c.b16 %v2772, %v2772
      %v2791 = vpack.c.b16 %v2773, %v2773
      %2792 = vrot.lane.b32.xlu0 %v2774, 96
      %v2793 = vpop.permute.xlu0 %2792
      %2794 = vrot.lane.b32.xlu0 %v2775, 96
      %v2795 = vpop.permute.xlu0 %2794
      %2796 = vrot.lane.b32.xlu0 %v2776, 96
      %v2797 = vpop.permute.xlu0 %2796
      %2798 = vrot.lane.b32.xlu0 %v2777, 96
      %v2799 = vpop.permute.xlu0 %2798
      %2800 = vrot.lane.b32.xlu0 %v2778, 96
      %v2801 = vpop.permute.xlu0 %2800
      %2802 = vrot.lane.b32.xlu0 %v2779, 96
      %v2803 = vpop.permute.xlu0 %2802
      %2804 = vrot.lane.b32.xlu0 %v2780, 96
      %v2805 = vpop.permute.xlu0 %2804
      %2806 = vrot.lane.b32.xlu0 %v2781, 96
      %v2807 = vpop.permute.xlu0 %2806
      %2808 = vrot.lane.b32.xlu0 %v2782, 96
      %v2809 = vpop.permute.xlu0 %2808
      %2810 = vrot.lane.b32.xlu0 %v2783, 96
      %v2811 = vpop.permute.xlu0 %2810
      %2812 = vrot.lane.b32.xlu0 %v2784, 96
      %v2813 = vpop.permute.xlu0 %2812
      %2814 = vrot.lane.b32.xlu0 %v2785, 96
      %v2815 = vpop.permute.xlu0 %2814
      %2816 = vrot.lane.b32.xlu0 %v2786, 96
      %v2817 = vpop.permute.xlu0 %2816
      %2818 = vrot.lane.b32.xlu0 %v2787, 96
      %v2819 = vpop.permute.xlu0 %2818
      %2820 = vrot.lane.b32.xlu0 %v2788, 96
      %v2821 = vpop.permute.xlu0 %2820
      %2822 = vrot.lane.b32.xlu0 %v2789, 96
      %v2823 = vpop.permute.xlu0 %2822
      %2824 = vrot.lane.b32.xlu0 %v2790, 96
      %v2825 = vpop.permute.xlu0 %2824
      %2826 = vrot.lane.b32.xlu0 %v2791, 96
      %v2827 = vpop.permute.xlu0 %2826
      %2846 = vst.msk [vmem:[#allocation2] sm:$0xf] %vm1095, %v2793
      %2847 = vst.msk [vmem:[#allocation2 + $0xc] sm:$0xf] %vm1095, %v2795
      %2848 = vst.msk [vmem:[#allocation2 + $0x18] sm:$0xf] %vm1095, %v2797
      %2849 = vst.msk [vmem:[#allocation2 + $0x24] sm:$0xf] %vm1095, %v2799
      %2850 = vst.msk [vmem:[#allocation2 + $0x30] sm:$0xf] %vm1095, %v2801
      %2851 = vst.msk [vmem:[#allocation2 + $0x3c] sm:$0xf] %vm1095, %v2803
      %2852 = vst.msk [vmem:[#allocation2 + $0x48] sm:$0xf] %vm1095, %v2805
      %2853 = vst.msk [vmem:[#allocation2 + $0x54] sm:$0xf] %vm1095, %v2807
      %2854 = vst.msk [vmem:[#allocation2 + $0x60] sm:$0xf] %vm1095, %v2809
      %2855 = vst.msk [vmem:[#allocation2 + $0x6c] sm:$0xf] %vm1095, %v2811
      %2856 = vst.msk [vmem:[#allocation2 + $0x78] sm:$0xf] %vm1095, %v2813
      %2857 = vst.msk [vmem:[#allocation2 + $0x84] sm:$0xf] %vm1095, %v2815
      %2858 = vst.msk [vmem:[#allocation2 + $0x90] sm:$0xf] %vm1095, %v2817
      %2859 = vst.msk [vmem:[#allocation2 + $0x9c] sm:$0xf] %vm1095, %v2819
      %2860 = vst.msk [vmem:[#allocation2 + $0xa8] sm:$0xf] %vm1095, %v2821
      %2861 = vst.msk [vmem:[#allocation2 + $0xb4] sm:$0xf] %vm1095, %v2823
      %2862 = vst.msk [vmem:[#allocation2 + $0xc0] sm:$0xf] %vm1095, %v2825
      %2863 = vst.msk [vmem:[#allocation2 + $0xcc] sm:$0xf] %vm1095, %v2827
      %v2864 = vpack.c.bf16 %v2270, %v2269
      %v2865 = vpack.c.bf16 %v2272, %v2271
      %v2866 = vpack.c.bf16 %v2274, %v2273
      %v2867 = vpack.c.bf16 %v2276, %v2275
      %v2868 = vpack.c.bf16 %v2278, %v2277
      %v2869 = vpack.c.bf16 %v2280, %v2279
      %v2870 = vpack.c.bf16 %v2282, %v2281
      %v2871 = vpack.c.bf16 %v2284, %v2283
      %v2872 = vpack.c.bf16 %v2286, %v2285
      %v2882 = vunpack.c.l.b16 %v2864
      %v2883 = vunpack.c.h.b16 %v2864
      %v2884 = vunpack.c.l.b16 %v2865
      %v2885 = vunpack.c.h.b16 %v2865
      %v2886 = vunpack.c.l.b16 %v2866
      %v2887 = vunpack.c.h.b16 %v2866
      %v2888 = vunpack.c.l.b16 %v2867
      %v2889 = vunpack.c.h.b16 %v2867
      %v2890 = vunpack.c.l.b16 %v2868
      %v2891 = vunpack.c.h.b16 %v2868
      %v2892 = vunpack.c.l.b16 %v2869
      %v2893 = vunpack.c.h.b16 %v2869
      %v2894 = vunpack.c.l.b16 %v2870
      %v2895 = vunpack.c.h.b16 %v2870
      %v2896 = vunpack.c.l.b16 %v2871
      %v2897 = vunpack.c.h.b16 %v2871
      %v2898 = vunpack.c.l.b16 %v2872
      %v2899 = vunpack.c.h.b16 %v2872
      %v2900 = vpack.c.b16 %v2882, %v2882
      %v2901 = vpack.c.b16 %v2883, %v2883
      %v2902 = vpack.c.b16 %v2884, %v2884
      %v2903 = vpack.c.b16 %v2885, %v2885
      %v2904 = vpack.c.b16 %v2886, %v2886
      %v2905 = vpack.c.b16 %v2887, %v2887
      %v2906 = vpack.c.b16 %v2888, %v2888
      %v2907 = vpack.c.b16 %v2889, %v2889
      %v2908 = vpack.c.b16 %v2890, %v2890
      %v2909 = vpack.c.b16 %v2891, %v2891
      %v2910 = vpack.c.b16 %v2892, %v2892
      %v2911 = vpack.c.b16 %v2893, %v2893
      %v2912 = vpack.c.b16 %v2894, %v2894
      %v2913 = vpack.c.b16 %v2895, %v2895
      %v2914 = vpack.c.b16 %v2896, %v2896
      %v2915 = vpack.c.b16 %v2897, %v2897
      %v2916 = vpack.c.b16 %v2898, %v2898
      %v2917 = vpack.c.b16 %v2899, %v2899
      %2936 = vst.msk [vmem:[#allocation2 + $0x4] sm:$0xf] %vm677, %v2900
      %2937 = vst.msk [vmem:[#allocation2 + $0x10] sm:$0xf] %vm677, %v2901
      %2938 = vst.msk [vmem:[#allocation2 + $0x1c] sm:$0xf] %vm677, %v2902
      %2939 = vst.msk [vmem:[#allocation2 + $0x28] sm:$0xf] %vm677, %v2903
      %2940 = vst.msk [vmem:[#allocation2 + $0x34] sm:$0xf] %vm677, %v2904
      %2941 = vst.msk [vmem:[#allocation2 + $0x40] sm:$0xf] %vm677, %v2905
      %2942 = vst.msk [vmem:[#allocation2 + $0x4c] sm:$0xf] %vm677, %v2906
      %2943 = vst.msk [vmem:[#allocation2 + $0x58] sm:$0xf] %vm677, %v2907
      %2944 = vst.msk [vmem:[#allocation2 + $0x64] sm:$0xf] %vm677, %v2908
      %2945 = vst.msk [vmem:[#allocation2 + $0x70] sm:$0xf] %vm677, %v2909
      %2946 = vst.msk [vmem:[#allocation2 + $0x7c] sm:$0xf] %vm677, %v2910
      %2947 = vst.msk [vmem:[#allocation2 + $0x88] sm:$0xf] %vm677, %v2911
      %2948 = vst.msk [vmem:[#allocation2 + $0x94] sm:$0xf] %vm677, %v2912
      %2949 = vst.msk [vmem:[#allocation2 + $0xa0] sm:$0xf] %vm677, %v2913
      %2950 = vst.msk [vmem:[#allocation2 + $0xac] sm:$0xf] %vm677, %v2914
      %2951 = vst.msk [vmem:[#allocation2 + $0xb8] sm:$0xf] %vm677, %v2915
      %2952 = vst.msk [vmem:[#allocation2 + $0xc4] sm:$0xf] %vm677, %v2916
      %2953 = vst.msk [vmem:[#allocation2 + $0xd0] sm:$0xf] %vm677, %v2917
      %v2954 = vrot.slane %v2269, 1
      %v2955 = vrot.slane %v2270, 1
      %v2956 = vrot.slane %v2271, 1
      %v2957 = vrot.slane %v2272, 1
      %v2958 = vrot.slane %v2273, 1
      %v2959 = vrot.slane %v2274, 1
      %v2960 = vrot.slane %v2275, 1
      %v2961 = vrot.slane %v2276, 1
      %v2962 = vrot.slane %v2277, 1
      %v2963 = vrot.slane %v2278, 1
      %v2964 = vrot.slane %v2279, 1
      %v2965 = vrot.slane %v2280, 1
      %v2966 = vrot.slane %v2281, 1
      %v2967 = vrot.slane %v2282, 1
      %v2968 = vrot.slane %v2283, 1
      %v2969 = vrot.slane %v2284, 1
      %v2970 = vrot.slane %v2285, 1
      %v2971 = vrot.slane %v2286, 1
      %v2972 = vsel %vm1222, %v2970, %v2971
      %v2973 = vsel %vm1222, %v2969, %v2970
      %v2974 = vsel %vm1222, %v2968, %v2969
      %v2975 = vsel %vm1222, %v2967, %v2968
      %v2976 = vsel %vm1222, %v2966, %v2967
      %v2977 = vsel %vm1222, %v2965, %v2966
      %v2978 = vsel %vm1222, %v2964, %v2965
      %v2979 = vsel %vm1222, %v2963, %v2964
      %v2980 = vsel %vm1222, %v2962, %v2963
      %v2981 = vsel %vm1222, %v2961, %v2962
      %v2982 = vsel %vm1222, %v2960, %v2961
      %v2983 = vsel %vm1222, %v2959, %v2960
      %v2984 = vsel %vm1222, %v2958, %v2959
      %v2985 = vsel %vm1222, %v2957, %v2958
      %v2986 = vsel %vm1222, %v2956, %v2957
      %v2987 = vsel %vm1222, %v2955, %v2956
      %v2988 = vsel %vm1222, %v2954, %v2955
      %v2989 = vsel %vm1222, %v2971, %v2954
      %v2990 = vpack.c.bf16 %v2987, %v2988
      %v2991 = vpack.c.bf16 %v2985, %v2986
      %v2992 = vpack.c.bf16 %v2983, %v2984
      %v2993 = vpack.c.bf16 %v2981, %v2982
      %v2994 = vpack.c.bf16 %v2979, %v2980
      %v2995 = vpack.c.bf16 %v2977, %v2978
      %v2996 = vpack.c.bf16 %v2975, %v2976
      %v2997 = vpack.c.bf16 %v2973, %v2974
      %v2998 = vpack.c.bf16 %v2989, %v2972
      %v3008 = vunpack.c.l.b16 %v2990
      %v3009 = vunpack.c.h.b16 %v2990
      %v3010 = vunpack.c.l.b16 %v2991
      %v3011 = vunpack.c.h.b16 %v2991
      %v3012 = vunpack.c.l.b16 %v2992
      %v3013 = vunpack.c.h.b16 %v2992
      %v3014 = vunpack.c.l.b16 %v2993
      %v3015 = vunpack.c.h.b16 %v2993
      %v3016 = vunpack.c.l.b16 %v2994
      %v3017 = vunpack.c.h.b16 %v2994
      %v3018 = vunpack.c.l.b16 %v2995
      %v3019 = vunpack.c.h.b16 %v2995
      %v3020 = vunpack.c.l.b16 %v2996
      %v3021 = vunpack.c.h.b16 %v2996
      %v3022 = vunpack.c.l.b16 %v2997
      %v3023 = vunpack.c.h.b16 %v2997
      %v3024 = vunpack.c.l.b16 %v2998
      %v3025 = vunpack.c.h.b16 %v2998
      %v3026 = vpack.c.b16 %v3008, %v3008
      %v3027 = vpack.c.b16 %v3009, %v3009
      %v3028 = vpack.c.b16 %v3010, %v3010
      %v3029 = vpack.c.b16 %v3011, %v3011
      %v3030 = vpack.c.b16 %v3012, %v3012
      %v3031 = vpack.c.b16 %v3013, %v3013
      %v3032 = vpack.c.b16 %v3014, %v3014
      %v3033 = vpack.c.b16 %v3015, %v3015
      %v3034 = vpack.c.b16 %v3016, %v3016
      %v3035 = vpack.c.b16 %v3017, %v3017
      %v3036 = vpack.c.b16 %v3018, %v3018
      %v3037 = vpack.c.b16 %v3019, %v3019
      %v3038 = vpack.c.b16 %v3020, %v3020
      %v3039 = vpack.c.b16 %v3021, %v3021
      %v3040 = vpack.c.b16 %v3022, %v3022
      %v3041 = vpack.c.b16 %v3023, %v3023
      %v3042 = vpack.c.b16 %v3024, %v3024
      %v3043 = vpack.c.b16 %v3025, %v3025
      %3044 = vrot.lane.b32.xlu0 %v3026, 32
      %v3045 = vpop.permute.xlu0 %3044
      %3046 = vrot.lane.b32.xlu0 %v3027, 32
      %v3047 = vpop.permute.xlu0 %3046
      %3048 = vrot.lane.b32.xlu0 %v3028, 32
      %v3049 = vpop.permute.xlu0 %3048
      %3050 = vrot.lane.b32.xlu0 %v3029, 32
      %v3051 = vpop.permute.xlu0 %3050
      %3052 = vrot.lane.b32.xlu0 %v3030, 32
      %v3053 = vpop.permute.xlu0 %3052
      %3054 = vrot.lane.b32.xlu0 %v3031, 32
      %v3055 = vpop.permute.xlu0 %3054
      %3056 = vrot.lane.b32.xlu0 %v3032, 32
      %v3057 = vpop.permute.xlu0 %3056
      %3058 = vrot.lane.b32.xlu0 %v3033, 32
      %v3059 = vpop.permute.xlu0 %3058
      %3060 = vrot.lane.b32.xlu0 %v3034, 32
      %v3061 = vpop.permute.xlu0 %3060
      %3062 = vrot.lane.b32.xlu0 %v3035, 32
      %v3063 = vpop.permute.xlu0 %3062
      %3064 = vrot.lane.b32.xlu0 %v3036, 32
      %v3065 = vpop.permute.xlu0 %3064
      %3066 = vrot.lane.b32.xlu0 %v3037, 32
      %v3067 = vpop.permute.xlu0 %3066
      %3068 = vrot.lane.b32.xlu0 %v3038, 32
      %v3069 = vpop.permute.xlu0 %3068
      %3070 = vrot.lane.b32.xlu0 %v3039, 32
      %v3071 = vpop.permute.xlu0 %3070
      %3072 = vrot.lane.b32.xlu0 %v3040, 32
      %v3073 = vpop.permute.xlu0 %3072
      %3074 = vrot.lane.b32.xlu0 %v3041, 32
      %v3075 = vpop.permute.xlu0 %3074
      %3076 = vrot.lane.b32.xlu0 %v3042, 32
      %v3077 = vpop.permute.xlu0 %3076
      %3078 = vrot.lane.b32.xlu0 %v3043, 32
      %v3079 = vpop.permute.xlu0 %3078
      %3098 = vst.msk [vmem:[#allocation2 + $0x4] sm:$0xf] %vm841, %v3045
      %3099 = vst.msk [vmem:[#allocation2 + $0x10] sm:$0xf] %vm841, %v3047
      %3100 = vst.msk [vmem:[#allocation2 + $0x1c] sm:$0xf] %vm841, %v3049
      %3101 = vst.msk [vmem:[#allocation2 + $0x28] sm:$0xf] %vm841, %v3051
      %3102 = vst.msk [vmem:[#allocation2 + $0x34] sm:$0xf] %vm841, %v3053
      %3103 = vst.msk [vmem:[#allocation2 + $0x40] sm:$0xf] %vm841, %v3055
      %3104 = vst.msk [vmem:[#allocation2 + $0x4c] sm:$0xf] %vm841, %v3057
      %3105 = vst.msk [vmem:[#allocation2 + $0x58] sm:$0xf] %vm841, %v3059
      %3106 = vst.msk [vmem:[#allocation2 + $0x64] sm:$0xf] %vm841, %v3061
      %3107 = vst.msk [vmem:[#allocation2 + $0x70] sm:$0xf] %vm841, %v3063
      %3108 = vst.msk [vmem:[#allocation2 + $0x7c] sm:$0xf] %vm841, %v3065
      %3109 = vst.msk [vmem:[#allocation2 + $0x88] sm:$0xf] %vm841, %v3067
      %3110 = vst.msk [vmem:[#allocation2 + $0x94] sm:$0xf] %vm841, %v3069
      %3111 = vst.msk [vmem:[#allocation2 + $0xa0] sm:$0xf] %vm841, %v3071
      %3112 = vst.msk [vmem:[#allocation2 + $0xac] sm:$0xf] %vm841, %v3073
      %3113 = vst.msk [vmem:[#allocation2 + $0xb8] sm:$0xf] %vm841, %v3075
      %3114 = vst.msk [vmem:[#allocation2 + $0xc4] sm:$0xf] %vm841, %v3077
      %3115 = vst.msk [vmem:[#allocation2 + $0xd0] sm:$0xf] %vm841, %v3079
      %3116 = vst.msk [vmem:[#allocation2 + $0x4] sm:$0xf] %vm968, %v2671
      %3117 = vst.msk [vmem:[#allocation2 + $0x10] sm:$0xf] %vm968, %v2673
      %3118 = vst.msk [vmem:[#allocation2 + $0x1c] sm:$0xf] %vm968, %v2675
      %3119 = vst.msk [vmem:[#allocation2 + $0x28] sm:$0xf] %vm968, %v2677
      %3120 = vst.msk [vmem:[#allocation2 + $0x34] sm:$0xf] %vm968, %v2679
      %3121 = vst.msk [vmem:[#allocation2 + $0x40] sm:$0xf] %vm968, %v2681
      %3122 = vst.msk [vmem:[#allocation2 + $0x4c] sm:$0xf] %vm968, %v2683
      %3123 = vst.msk [vmem:[#allocation2 + $0x58] sm:$0xf] %vm968, %v2685
      %3124 = vst.msk [vmem:[#allocation2 + $0x64] sm:$0xf] %vm968, %v2687
      %3125 = vst.msk [vmem:[#allocation2 + $0x70] sm:$0xf] %vm968, %v2689
      %3126 = vst.msk [vmem:[#allocation2 + $0x7c] sm:$0xf] %vm968, %v2691
      %3127 = vst.msk [vmem:[#allocation2 + $0x88] sm:$0xf] %vm968, %v2693
      %3128 = vst.msk [vmem:[#allocation2 + $0x94] sm:$0xf] %vm968, %v2695
      %3129 = vst.msk [vmem:[#allocation2 + $0xa0] sm:$0xf] %vm968, %v2697
      %3130 = vst.msk [vmem:[#allocation2 + $0xac] sm:$0xf] %vm968, %v2699
      %3131 = vst.msk [vmem:[#allocation2 + $0xb8] sm:$0xf] %vm968, %v2701
      %3132 = vst.msk [vmem:[#allocation2 + $0xc4] sm:$0xf] %vm968, %v2667
      %3133 = vst.msk [vmem:[#allocation2 + $0xd0] sm:$0xf] %vm968, %v2669
      %v3134 = vpack.c.bf16 %v2986, %v2987
      %v3135 = vpack.c.bf16 %v2984, %v2985
      %v3136 = vpack.c.bf16 %v2982, %v2983
      %v3137 = vpack.c.bf16 %v2980, %v2981
      %v3138 = vpack.c.bf16 %v2978, %v2979
      %v3139 = vpack.c.bf16 %v2976, %v2977
      %v3140 = vpack.c.bf16 %v2974, %v2975
      %v3141 = vpack.c.bf16 %v2972, %v2973
      %v3142 = vpack.c.bf16 %v2988, %v2989
      %v3152 = vunpack.c.l.b16 %v3134
      %v3153 = vunpack.c.h.b16 %v3134
      %v3154 = vunpack.c.l.b16 %v3135
      %v3155 = vunpack.c.h.b16 %v3135
      %v3156 = vunpack.c.l.b16 %v3136
      %v3157 = vunpack.c.h.b16 %v3136
      %v3158 = vunpack.c.l.b16 %v3137
      %v3159 = vunpack.c.h.b16 %v3137
      %v3160 = vunpack.c.l.b16 %v3138
      %v3161 = vunpack.c.h.b16 %v3138
      %v3162 = vunpack.c.l.b16 %v3139
      %v3163 = vunpack.c.h.b16 %v3139
      %v3164 = vunpack.c.l.b16 %v3140
      %v3165 = vunpack.c.h.b16 %v3140
      %v3166 = vunpack.c.l.b16 %v3141
      %v3167 = vunpack.c.h.b16 %v3141
      %v3168 = vunpack.c.l.b16 %v3142
      %v3169 = vunpack.c.h.b16 %v3142
      %v3170 = vpack.c.b16 %v3152, %v3152
      %v3171 = vpack.c.b16 %v3153, %v3153
      %v3172 = vpack.c.b16 %v3154, %v3154
      %v3173 = vpack.c.b16 %v3155, %v3155
      %v3174 = vpack.c.b16 %v3156, %v3156
      %v3175 = vpack.c.b16 %v3157, %v3157
      %v3176 = vpack.c.b16 %v3158, %v3158
      %v3177 = vpack.c.b16 %v3159, %v3159
      %v3178 = vpack.c.b16 %v3160, %v3160
      %v3179 = vpack.c.b16 %v3161, %v3161
      %v3180 = vpack.c.b16 %v3162, %v3162
      %v3181 = vpack.c.b16 %v3163, %v3163
      %v3182 = vpack.c.b16 %v3164, %v3164
      %v3183 = vpack.c.b16 %v3165, %v3165
      %v3184 = vpack.c.b16 %v3166, %v3166
      %v3185 = vpack.c.b16 %v3167, %v3167
      %v3186 = vpack.c.b16 %v3168, %v3168
      %v3187 = vpack.c.b16 %v3169, %v3169
      %3188 = vrot.lane.b32.xlu0 %v3170, 96
      %v3189 = vpop.permute.xlu0 %3188
      %3190 = vrot.lane.b32.xlu0 %v3171, 96
      %v3191 = vpop.permute.xlu0 %3190
      %3192 = vrot.lane.b32.xlu0 %v3172, 96
      %v3193 = vpop.permute.xlu0 %3192
      %3194 = vrot.lane.b32.xlu0 %v3173, 96
      %v3195 = vpop.permute.xlu0 %3194
      %3196 = vrot.lane.b32.xlu0 %v3174, 96
      %v3197 = vpop.permute.xlu0 %3196
      %3198 = vrot.lane.b32.xlu0 %v3175, 96
      %v3199 = vpop.permute.xlu0 %3198
      %3200 = vrot.lane.b32.xlu0 %v3176, 96
      %v3201 = vpop.permute.xlu0 %3200
      %3202 = vrot.lane.b32.xlu0 %v3177, 96
      %v3203 = vpop.permute.xlu0 %3202
      %3204 = vrot.lane.b32.xlu0 %v3178, 96
      %v3205 = vpop.permute.xlu0 %3204
      %3206 = vrot.lane.b32.xlu0 %v3179, 96
      %v3207 = vpop.permute.xlu0 %3206
      %3208 = vrot.lane.b32.xlu0 %v3180, 96
      %v3209 = vpop.permute.xlu0 %3208
      %3210 = vrot.lane.b32.xlu0 %v3181, 96
      %v3211 = vpop.permute.xlu0 %3210
      %3212 = vrot.lane.b32.xlu0 %v3182, 96
      %v3213 = vpop.permute.xlu0 %3212
      %3214 = vrot.lane.b32.xlu0 %v3183, 96
      %v3215 = vpop.permute.xlu0 %3214
      %3216 = vrot.lane.b32.xlu0 %v3184, 96
      %v3217 = vpop.permute.xlu0 %3216
      %3218 = vrot.lane.b32.xlu0 %v3185, 96
      %v3219 = vpop.permute.xlu0 %3218
      %3220 = vrot.lane.b32.xlu0 %v3186, 96
      %v3221 = vpop.permute.xlu0 %3220
      %3222 = vrot.lane.b32.xlu0 %v3187, 96
      %v3223 = vpop.permute.xlu0 %3222
      %3242 = vst.msk [vmem:[#allocation2 + $0x4] sm:$0xf] %vm1095, %v3189
      %3243 = vst.msk [vmem:[#allocation2 + $0x10] sm:$0xf] %vm1095, %v3191
      %3244 = vst.msk [vmem:[#allocation2 + $0x1c] sm:$0xf] %vm1095, %v3193
      %3245 = vst.msk [vmem:[#allocation2 + $0x28] sm:$0xf] %vm1095, %v3195
      %3246 = vst.msk [vmem:[#allocation2 + $0x34] sm:$0xf] %vm1095, %v3197
      %3247 = vst.msk [vmem:[#allocation2 + $0x40] sm:$0xf] %vm1095, %v3199
      %3248 = vst.msk [vmem:[#allocation2 + $0x4c] sm:$0xf] %vm1095, %v3201
      %3249 = vst.msk [vmem:[#allocation2 + $0x58] sm:$0xf] %vm1095, %v3203
      %3250 = vst.msk [vmem:[#allocation2 + $0x64] sm:$0xf] %vm1095, %v3205
      %3251 = vst.msk [vmem:[#allocation2 + $0x70] sm:$0xf] %vm1095, %v3207
      %3252 = vst.msk [vmem:[#allocation2 + $0x7c] sm:$0xf] %vm1095, %v3209
      %3253 = vst.msk [vmem:[#allocation2 + $0x88] sm:$0xf] %vm1095, %v3211
      %3254 = vst.msk [vmem:[#allocation2 + $0x94] sm:$0xf] %vm1095, %v3213
      %3255 = vst.msk [vmem:[#allocation2 + $0xa0] sm:$0xf] %vm1095, %v3215
      %3256 = vst.msk [vmem:[#allocation2 + $0xac] sm:$0xf] %vm1095, %v3217
      %3257 = vst.msk [vmem:[#allocation2 + $0xb8] sm:$0xf] %vm1095, %v3219
      %3258 = vst.msk [vmem:[#allocation2 + $0xc4] sm:$0xf] %vm1095, %v3221
      %3259 = vst.msk [vmem:[#allocation2 + $0xd0] sm:$0xf] %vm1095, %v3223
      %v3260 = vrot.slane %v2269, 2
      %v3261 = vrot.slane %v2270, 2
      %v3262 = vrot.slane %v2271, 2
      %v3263 = vrot.slane %v2272, 2
      %v3264 = vrot.slane %v2273, 2
      %v3265 = vrot.slane %v2274, 2
      %v3266 = vrot.slane %v2275, 2
      %v3267 = vrot.slane %v2276, 2
      %v3268 = vrot.slane %v2277, 2
      %v3269 = vrot.slane %v2278, 2
      %v3270 = vrot.slane %v2279, 2
      %v3271 = vrot.slane %v2280, 2
      %v3272 = vrot.slane %v2281, 2
      %v3273 = vrot.slane %v2282, 2
      %v3274 = vrot.slane %v2283, 2
      %v3275 = vrot.slane %v2284, 2
      %v3276 = vrot.slane %v2285, 2
      %v3277 = vrot.slane %v2286, 2
      %v3278 = vsel %vm1529, %v3276, %v3277
      %v3279 = vsel %vm1529, %v3275, %v3276
      %v3280 = vsel %vm1529, %v3274, %v3275
      %v3281 = vsel %vm1529, %v3273, %v3274
      %v3282 = vsel %vm1529, %v3272, %v3273
      %v3283 = vsel %vm1529, %v3271, %v3272
      %v3284 = vsel %vm1529, %v3270, %v3271
      %v3285 = vsel %vm1529, %v3269, %v3270
      %v3286 = vsel %vm1529, %v3268, %v3269
      %v3287 = vsel %vm1529, %v3267, %v3268
      %v3288 = vsel %vm1529, %v3266, %v3267
      %v3289 = vsel %vm1529, %v3265, %v3266
      %v3290 = vsel %vm1529, %v3264, %v3265
      %v3291 = vsel %vm1529, %v3263, %v3264
      %v3292 = vsel %vm1529, %v3262, %v3263
      %v3293 = vsel %vm1529, %v3261, %v3262
      %v3294 = vsel %vm1529, %v3260, %v3261
      %v3295 = vsel %vm1529, %v3277, %v3260
      %v3296 = vpack.c.bf16 %v3292, %v3293
      %v3297 = vpack.c.bf16 %v3290, %v3291
      %v3298 = vpack.c.bf16 %v3288, %v3289
      %v3299 = vpack.c.bf16 %v3286, %v3287
      %v3300 = vpack.c.bf16 %v3284, %v3285
      %v3301 = vpack.c.bf16 %v3282, %v3283
      %v3302 = vpack.c.bf16 %v3280, %v3281
      %v3303 = vpack.c.bf16 %v3278, %v3279
      %v3304 = vpack.c.bf16 %v3294, %v3295
      %v3314 = vunpack.c.l.b16 %v3296
      %v3315 = vunpack.c.h.b16 %v3296
      %v3316 = vunpack.c.l.b16 %v3297
      %v3317 = vunpack.c.h.b16 %v3297
      %v3318 = vunpack.c.l.b16 %v3298
      %v3319 = vunpack.c.h.b16 %v3298
      %v3320 = vunpack.c.l.b16 %v3299
      %v3321 = vunpack.c.h.b16 %v3299
      %v3322 = vunpack.c.l.b16 %v3300
      %v3323 = vunpack.c.h.b16 %v3300
      %v3324 = vunpack.c.l.b16 %v3301
      %v3325 = vunpack.c.h.b16 %v3301
      %v3326 = vunpack.c.l.b16 %v3302
      %v3327 = vunpack.c.h.b16 %v3302
      %v3328 = vunpack.c.l.b16 %v3303
      %v3329 = vunpack.c.h.b16 %v3303
      %v3330 = vunpack.c.l.b16 %v3304
      %v3331 = vunpack.c.h.b16 %v3304
      %v3332 = vpack.c.b16 %v3314, %v3314
      %v3333 = vpack.c.b16 %v3315, %v3315
      %v3334 = vpack.c.b16 %v3316, %v3316
      %v3335 = vpack.c.b16 %v3317, %v3317
      %v3336 = vpack.c.b16 %v3318, %v3318
      %v3337 = vpack.c.b16 %v3319, %v3319
      %v3338 = vpack.c.b16 %v3320, %v3320
      %v3339 = vpack.c.b16 %v3321, %v3321
      %v3340 = vpack.c.b16 %v3322, %v3322
      %v3341 = vpack.c.b16 %v3323, %v3323
      %v3342 = vpack.c.b16 %v3324, %v3324
      %v3343 = vpack.c.b16 %v3325, %v3325
      %v3344 = vpack.c.b16 %v3326, %v3326
      %v3345 = vpack.c.b16 %v3327, %v3327
      %v3346 = vpack.c.b16 %v3328, %v3328
      %v3347 = vpack.c.b16 %v3329, %v3329
      %v3348 = vpack.c.b16 %v3330, %v3330
      %v3349 = vpack.c.b16 %v3331, %v3331
      %3368 = vst.msk [vmem:[#allocation2 + $0x8] sm:$0xf] %vm677, %v3332
      %3369 = vst.msk [vmem:[#allocation2 + $0x14] sm:$0xf] %vm677, %v3333
      %3370 = vst.msk [vmem:[#allocation2 + $0x20] sm:$0xf] %vm677, %v3334
      %3371 = vst.msk [vmem:[#allocation2 + $0x2c] sm:$0xf] %vm677, %v3335
      %3372 = vst.msk [vmem:[#allocation2 + $0x38] sm:$0xf] %vm677, %v3336
      %3373 = vst.msk [vmem:[#allocation2 + $0x44] sm:$0xf] %vm677, %v3337
      %3374 = vst.msk [vmem:[#allocation2 + $0x50] sm:$0xf] %vm677, %v3338
      %3375 = vst.msk [vmem:[#allocation2 + $0x5c] sm:$0xf] %vm677, %v3339
      %3376 = vst.msk [vmem:[#allocation2 + $0x68] sm:$0xf] %vm677, %v3340
      %3377 = vst.msk [vmem:[#allocation2 + $0x74] sm:$0xf] %vm677, %v3341
      %3378 = vst.msk [vmem:[#allocation2 + $0x80] sm:$0xf] %vm677, %v3342
      %3379 = vst.msk [vmem:[#allocation2 + $0x8c] sm:$0xf] %vm677, %v3343
      %3380 = vst.msk [vmem:[#allocation2 + $0x98] sm:$0xf] %vm677, %v3344
      %3381 = vst.msk [vmem:[#allocation2 + $0xa4] sm:$0xf] %vm677, %v3345
      %3382 = vst.msk [vmem:[#allocation2 + $0xb0] sm:$0xf] %vm677, %v3346
      %3383 = vst.msk [vmem:[#allocation2 + $0xbc] sm:$0xf] %vm677, %v3347
      %3384 = vst.msk [vmem:[#allocation2 + $0xc8] sm:$0xf] %vm677, %v3348
      %3385 = vst.msk [vmem:[#allocation2 + $0xd4] sm:$0xf] %vm677, %v3349
      %v3386 = vld [vmem:[#allocation2] sm:$0xff]
      %v3387 = vld [vmem:[#allocation2 + $0x8] sm:$0xf]
      %v3388 = vld [vmem:[#allocation2 + $0xc] sm:$0xff]
      %v3389 = vld [vmem:[#allocation2 + $0x14] sm:$0xf]
      %v3390 = vld [vmem:[#allocation2 + $0x18] sm:$0xff]
      %v3391 = vld [vmem:[#allocation2 + $0x20] sm:$0xf]
      %v3392 = vld [vmem:[#allocation2 + $0x24] sm:$0xff]
      %v3393 = vld [vmem:[#allocation2 + $0x2c] sm:$0xf]
      %v3394 = vld [vmem:[#allocation2 + $0x30] sm:$0xff]
      %v3395 = vld [vmem:[#allocation2 + $0x38] sm:$0xf]
      %v3396 = vld [vmem:[#allocation2 + $0x3c] sm:$0xff]
      %v3397 = vld [vmem:[#allocation2 + $0x44] sm:$0xf]
      %v3398 = vld [vmem:[#allocation2 + $0x48] sm:$0xff]
      %v3399 = vld [vmem:[#allocation2 + $0x50] sm:$0xf]
      %v3400 = vld [vmem:[#allocation2 + $0x54] sm:$0xff]
      %v3401 = vld [vmem:[#allocation2 + $0x5c] sm:$0xf]
      %v3402 = vld [vmem:[#allocation2 + $0x60] sm:$0xff]
      %v3403 = vld [vmem:[#allocation2 + $0x68] sm:$0xf]
      %v3404 = vld [vmem:[#allocation2 + $0x6c] sm:$0xff]
      %v3405 = vld [vmem:[#allocation2 + $0x74] sm:$0xf]
      %v3406 = vld [vmem:[#allocation2 + $0x78] sm:$0xff]
      %v3407 = vld [vmem:[#allocation2 + $0x80] sm:$0xf]
      %v3408 = vld [vmem:[#allocation2 + $0x84] sm:$0xff]
      %v3409 = vld [vmem:[#allocation2 + $0x8c] sm:$0xf]
      %v3410 = vld [vmem:[#allocation2 + $0x90] sm:$0xff]
      %v3411 = vld [vmem:[#allocation2 + $0x98] sm:$0xf]
      %v3412 = vld [vmem:[#allocation2 + $0x9c] sm:$0xff]
      %v3413 = vld [vmem:[#allocation2 + $0xa4] sm:$0xf]
      %v3414 = vld [vmem:[#allocation2 + $0xa8] sm:$0xff]
      %v3415 = vld [vmem:[#allocation2 + $0xb0] sm:$0xf]
      %v3416 = vld [vmem:[#allocation2 + $0xb4] sm:$0xff]
      %v3417 = vld [vmem:[#allocation2 + $0xbc] sm:$0xf]
      %v3418 = vld [vmem:[#allocation2 + $0xc0] sm:$0xff]
      %v3419 = vld [vmem:[#allocation2 + $0xc8] sm:$0xf]
      %v3420 = vld [vmem:[#allocation2 + $0xcc] sm:$0xff]
      %v3421 = vld [vmem:[#allocation2 + $0xd4] sm:$0xf]
      %v3423 = vlaneseq
      %v3424 = vshrl.u32 %v3423, 7
      %v3425 = vsub.s32 0, %v3424
      %v3426 = vrot.slane %v2323, %v3425
      %v3464 = vunpack.c.l.b16 %v3386
      %v3465 = vunpack.c.h.b16 %v3386
      %v3466 = vunpack.c.l.b16 %v3387
      %v3467 = vunpack.c.l.b16 %v3388
      %v3468 = vunpack.c.h.b16 %v3388
      %v3469 = vunpack.c.l.b16 %v3389
      %v3470 = vunpack.c.l.b16 %v3390
      %v3471 = vunpack.c.h.b16 %v3390
      %v3472 = vunpack.c.l.b16 %v3391
      %v3473 = vunpack.c.l.b16 %v3392
      %v3474 = vunpack.c.h.b16 %v3392
      %v3475 = vunpack.c.l.b16 %v3393
      %v3476 = vunpack.c.l.b16 %v3394
      %v3477 = vunpack.c.h.b16 %v3394
      %v3478 = vunpack.c.l.b16 %v3395
      %v3479 = vunpack.c.l.b16 %v3396
      %v3480 = vunpack.c.h.b16 %v3396
      %v3481 = vunpack.c.l.b16 %v3397
      %v3482 = vunpack.c.l.b16 %v3398
      %v3483 = vunpack.c.h.b16 %v3398
      %v3484 = vunpack.c.l.b16 %v3399
      %v3485 = vunpack.c.l.b16 %v3400
      %v3486 = vunpack.c.h.b16 %v3400
      %v3487 = vunpack.c.l.b16 %v3401
      %v3488 = vunpack.c.l.b16 %v3402
      %v3489 = vunpack.c.h.b16 %v3402
      %v3490 = vunpack.c.l.b16 %v3403
      %v3491 = vunpack.c.l.b16 %v3404
      %v3492 = vunpack.c.h.b16 %v3404
      %v3493 = vunpack.c.l.b16 %v3405
      %v3494 = vunpack.c.l.b16 %v3406
      %v3495 = vunpack.c.h.b16 %v3406
      %v3496 = vunpack.c.l.b16 %v3407
      %v3497 = vunpack.c.l.b16 %v3408
      %v3498 = vunpack.c.h.b16 %v3408
      %v3499 = vunpack.c.l.b16 %v3409
      %v3500 = vunpack.c.l.b16 %v3410
      %v3501 = vunpack.c.h.b16 %v3410
      %v3502 = vunpack.c.l.b16 %v3411
      %v3503 = vunpack.c.l.b16 %v3412
      %v3504 = vunpack.c.h.b16 %v3412
      %v3505 = vunpack.c.l.b16 %v3413
      %v3506 = vunpack.c.l.b16 %v3414
      %v3507 = vunpack.c.h.b16 %v3414
      %v3508 = vunpack.c.l.b16 %v3415
      %v3509 = vunpack.c.l.b16 %v3416
      %v3510 = vunpack.c.h.b16 %v3416
      %v3511 = vunpack.c.l.b16 %v3417
      %v3512 = vunpack.c.l.b16 %v3418
      %v3513 = vunpack.c.h.b16 %v3418
      %v3514 = vunpack.c.l.b16 %v3419
      %v3515 = vunpack.c.l.b16 %v3420
      %v3516 = vunpack.c.h.b16 %v3420
      %v3517 = vunpack.c.l.b16 %v3421
      %v3518 = vpack.c.b16 %v3467, %v3464
      %v3519 = vpack.c.b16 %v3468, %v3465
      %v3520 = vpack.c.b16 %v3469, %v3466
      %v3521 = vpack.c.b16 %v3473, %v3470
      %v3522 = vpack.c.b16 %v3474, %v3471
      %v3523 = vpack.c.b16 %v3475, %v3472
      %v3524 = vpack.c.b16 %v3479, %v3476
      %v3525 = vpack.c.b16 %v3480, %v3477
      %v3526 = vpack.c.b16 %v3481, %v3478
      %v3527 = vpack.c.b16 %v3485, %v3482
      %v3528 = vpack.c.b16 %v3486, %v3483
      %v3529 = vpack.c.b16 %v3487, %v3484
      %v3530 = vpack.c.b16 %v3491, %v3488
      %v3531 = vpack.c.b16 %v3492, %v3489
      %v3532 = vpack.c.b16 %v3493, %v3490
      %v3533 = vpack.c.b16 %v3497, %v3494
      %v3534 = vpack.c.b16 %v3498, %v3495
      %v3535 = vpack.c.b16 %v3499, %v3496
      %v3536 = vpack.c.b16 %v3503, %v3500
      %v3537 = vpack.c.b16 %v3504, %v3501
      %v3538 = vpack.c.b16 %v3505, %v3502
      %v3539 = vpack.c.b16 %v3509, %v3506
      %v3540 = vpack.c.b16 %v3510, %v3507
      %v3541 = vpack.c.b16 %v3511, %v3508
      %v3542 = vpack.c.b16 %v3515, %v3512
      %v3543 = vpack.c.b16 %v3516, %v3513
      %v3544 = vpack.c.b16 %v3517, %v3514
      %v3599 = vunpack.c.l.b16 %v2287
      %v3600 = vunpack.c.l.b16 %v2288
      %v3601 = vunpack.c.l.b16 %v2289
      %v3602 = vunpack.c.l.b16 %v2290
      %v3603 = vunpack.c.l.b16 %v2291
      %v3604 = vunpack.c.l.b16 %v2292
      %v3605 = vunpack.c.l.b16 %v2293
      %v3606 = vunpack.c.l.b16 %v2294
      %v3607 = vunpack.c.l.b16 %v2295
      %v3608 = vunpack.c.l.b16 %v2296
      %v3609 = vunpack.c.l.b16 %v2297
      %v3610 = vunpack.c.l.b16 %v2298
      %v3611 = vunpack.c.l.b16 %v2299
      %v3612 = vunpack.c.l.b16 %v2300
      %v3613 = vunpack.c.l.b16 %v2301
      %v3614 = vunpack.c.l.b16 %v2302
      %v3615 = vunpack.c.l.b16 %v2303
      %v3616 = vunpack.c.l.b16 %v2304
      %v3617 = vunpack.c.l.b16 %v2305
      %v3618 = vunpack.c.l.b16 %v2306
      %v3619 = vunpack.c.l.b16 %v2307
      %v3620 = vunpack.c.l.b16 %v2308
      %v3621 = vunpack.c.l.b16 %v2309
      %v3622 = vunpack.c.l.b16 %v2310
      %v3623 = vunpack.c.l.b16 %v2311
      %v3624 = vunpack.c.l.b16 %v2312
      %v3625 = vunpack.c.l.b16 %v2313
      %v3626 = vunpack.c.l.b16 %v2314
      %v3627 = vunpack.c.l.b16 %v2315
      %v3628 = vunpack.c.l.b16 %v2316
      %v3629 = vunpack.c.l.b16 %v2317
      %v3630 = vunpack.c.l.b16 %v2318
      %v3631 = vunpack.c.l.b16 %v2319
      %v3632 = vunpack.c.l.b16 %v2320
      %v3633 = vunpack.c.l.b16 %v2321
      %v3634 = vunpack.c.l.b16 %v2322
      %v3635 = vpack.c.b16 %v3600, %v3599
      %v3636 = vpack.c.b16 %v3602, %v3601
      %v3637 = vpack.c.b16 %v3604, %v3603
      %v3638 = vpack.c.b16 %v3606, %v3605
      %v3639 = vpack.c.b16 %v3608, %v3607
      %v3640 = vpack.c.b16 %v3610, %v3609
      %v3641 = vpack.c.b16 %v3612, %v3611
      %v3642 = vpack.c.b16 %v3614, %v3613
      %v3643 = vpack.c.b16 %v3616, %v3615
      %v3644 = vpack.c.b16 %v3618, %v3617
      %v3645 = vpack.c.b16 %v3620, %v3619
      %v3646 = vpack.c.b16 %v3622, %v3621
      %v3647 = vpack.c.b16 %v3624, %v3623
      %v3648 = vpack.c.b16 %v3626, %v3625
      %v3649 = vpack.c.b16 %v3628, %v3627
      %v3650 = vpack.c.b16 %v3630, %v3629
      %v3651 = vpack.c.b16 %v3632, %v3631
      %v3652 = vpack.c.b16 %v3634, %v3633
      %v3672 = vsel %vm1923, %v3520, 0
      %v3675 = vsel %vm1923, %v3523, 0
      %v3678 = vsel %vm1923, %v3526, 0
      %v3681 = vsel %vm1923, %v3529, 0
      %v3684 = vsel %vm1923, %v3532, 0
      %v3687 = vsel %vm1923, %v3535, 0
      %v3690 = vsel %vm1923, %v3538, 0
      %v3693 = vsel %vm1923, %v3541, 0
      %v3696 = vsel %vm1923, %v3544, 0
      %3698 = vmatprep.subr.bf16.mxu0 0
      %3699 = vmatpush1.bf16.msra.mxu0 %v3642
      %3700 = vmatprep.subr.bf16.mxu0 0
      %3701 = vmatpush1.bf16.msra.mxu0 %v3641
      %3702 = vmatprep.subr.bf16.mxu0 0
      %3703 = vmatpush1.bf16.msra.mxu0 %v3640
      %3704 = vmatprep.subr.bf16.mxu0 0
      %3705 = vmatpush1.bf16.msra.mxu0 %v3639
      %3706 = vmatprep.subr.bf16.mxu0 0
      %3707 = vmatpush1.bf16.msra.mxu0 %v3638
      %3708 = vmatprep.subr.bf16.mxu0 0
      %3709 = vmatpush1.bf16.msra.mxu0 %v3637
      %3710 = vmatprep.subr.bf16.mxu0 0
      %3711 = vmatpush1.bf16.msra.mxu0 %v3636
      %3712 = vmatprep.subr.bf16.mxu0 0
      %3713 = vmatpush1.bf16.msra.mxu0 %v3635
      %3714 = vmatprep.subr.bf16.mxu0 0
      %3715 = vmatpush2.bf16.msra.mxu0 %v3650
      %3716 = vmatprep.subr.bf16.mxu0 0
      %3717 = vmatpush2.bf16.msra.mxu0 %v3649
      %3718 = vmatprep.subr.bf16.mxu0 0
      %3719 = vmatpush2.bf16.msra.mxu0 %v3648
      %3720 = vmatprep.subr.bf16.mxu0 0
      %3721 = vmatpush2.bf16.msra.mxu0 %v3647
      %3722 = vmatprep.subr.bf16.mxu0 0
      %3723 = vmatpush2.bf16.msra.mxu0 %v3646
      %3724 = vmatprep.subr.bf16.mxu0 0
      %3725 = vmatpush2.bf16.msra.mxu0 %v3645
      %3726 = vmatprep.subr.bf16.mxu0 0
      %3727 = vmatpush2.bf16.msra.mxu0 %v3644
      %3728 = vmatprep.subr.bf16.mxu0 0
      %3729 = vmatpush2.bf16.msra.mxu0 %v3643
      %3730 = vmatprep.mubr.bf16.mxu0 %v3519
      %3731 = vmatmul.mubr.bf16.gmra.mxu0 %v3518
      %v3732 = vpop.f32.mrf.mxu0
      %v3733 = vadd.f32 %v3426, %v3732
      %v3734 = vpop.f32.mrf.mxu0
      %v3735 = vpop.f32.mrf.mxu0
      %v3736 = vadd.f32 %v3426, %v3735
      %v3737 = vpop.f32.mrf.mxu0
      %3738 = vmatprep.mubr.bf16.mxu0 %v3522
      %3739 = vmatmul.mubr.bf16.gmra.mxu0 %v3521
      %v3740 = vpop.f32.mrf.mxu0
      %v3741 = vadd.f32 %v3426, %v3740
      %v3742 = vpop.f32.mrf.mxu0
      %v3743 = vpop.f32.mrf.mxu0
      %v3744 = vadd.f32 %v3426, %v3743
      %v3745 = vpop.f32.mrf.mxu0
      %3746 = vmatprep.mubr.bf16.mxu0 %v3525
      %3747 = vmatmul.mubr.bf16.gmra.mxu0 %v3524
      %v3748 = vpop.f32.mrf.mxu0
      %v3749 = vadd.f32 %v3426, %v3748
      %v3750 = vpop.f32.mrf.mxu0
      %v3751 = vpop.f32.mrf.mxu0
      %v3752 = vadd.f32 %v3426, %v3751
      %v3753 = vpop.f32.mrf.mxu0
      %3754 = vmatprep.mubr.bf16.mxu0 %v3528
      %3755 = vmatmul.mubr.bf16.gmra.mxu0 %v3527
      %v3756 = vpop.f32.mrf.mxu0
      %v3757 = vadd.f32 %v3426, %v3756
      %v3758 = vpop.f32.mrf.mxu0
      %v3759 = vpop.f32.mrf.mxu0
      %v3760 = vadd.f32 %v3426, %v3759
      %v3761 = vpop.f32.mrf.mxu0
      %3762 = vmatprep.mubr.bf16.mxu0 %v3531
      %3763 = vmatmul.mubr.bf16.gmra.mxu0 %v3530
      %v3764 = vpop.f32.mrf.mxu0
      %v3765 = vadd.f32 %v3426, %v3764
      %v3766 = vpop.f32.mrf.mxu0
      %v3767 = vpop.f32.mrf.mxu0
      %v3768 = vadd.f32 %v3426, %v3767
      %v3769 = vpop.f32.mrf.mxu0
      %3770 = vmatprep.mubr.bf16.mxu0 %v3534
      %3771 = vmatmul.mubr.bf16.gmra.mxu0 %v3533
      %v3772 = vpop.f32.mrf.mxu0
      %v3773 = vadd.f32 %v3426, %v3772
      %v3774 = vpop.f32.mrf.mxu0
      %v3775 = vpop.f32.mrf.mxu0
      %v3776 = vadd.f32 %v3426, %v3775
      %v3777 = vpop.f32.mrf.mxu0
      %3778 = vmatprep.mubr.bf16.mxu0 %v3537
      %3779 = vmatmul.mubr.bf16.gmra.mxu0 %v3536
      %v3780 = vpop.f32.mrf.mxu0
      %v3781 = vadd.f32 %v3426, %v3780
      %v3782 = vpop.f32.mrf.mxu0
      %v3783 = vpop.f32.mrf.mxu0
      %v3784 = vadd.f32 %v3426, %v3783
      %v3785 = vpop.f32.mrf.mxu0
      %3786 = vmatprep.mubr.bf16.mxu0 %v3540
      %3787 = vmatmul.mubr.bf16.gmra.mxu0 %v3539
      %v3788 = vpop.f32.mrf.mxu0
      %v3789 = vadd.f32 %v3426, %v3788
      %v3790 = vpop.f32.mrf.mxu0
      %v3791 = vpop.f32.mrf.mxu0
      %v3792 = vadd.f32 %v3426, %v3791
      %v3793 = vpop.f32.mrf.mxu0
      %3794 = vmatprep.mubr.bf16.mxu0 %v3543
      %3795 = vmatmul.mubr.bf16.gmra.mxu0 %v3542
      %v3796 = vpop.f32.mrf.mxu0
      %v3797 = vadd.f32 %v3426, %v3796
      %v3798 = vpop.f32.mrf.mxu0
      %v3799 = vpop.f32.mrf.mxu0
      %v3800 = vadd.f32 %v3426, %v3799
      %v3801 = vpop.f32.mrf.mxu0
      %3802 = vdwg.mxu0
      %3803 = vmatprep.subr.bf16.mxu0 0
      %3804 = vmatpush1.bf16.msra.mxu0 0
      %3805 = vmatprep.subr.bf16.mxu0 0
      %3806 = vmatpush1.bf16.msra.mxu0 0
      %3807 = vmatprep.subr.bf16.mxu0 0
      %3808 = vmatpush1.bf16.msra.mxu0 0
      %3809 = vmatprep.subr.bf16.mxu0 0
      %3810 = vmatpush1.bf16.msra.mxu0 0
      %3811 = vmatprep.subr.bf16.mxu0 0
      %3812 = vmatpush1.bf16.msra.mxu0 0
      %3813 = vmatprep.subr.bf16.mxu0 0
      %3814 = vmatpush1.bf16.msra.mxu0 0
      %3815 = vmatprep.subr.bf16.mxu0 0
      %3816 = vmatpush1.bf16.msra.mxu0 %v3652
      %3817 = vmatprep.subr.bf16.mxu0 0
      %3818 = vmatpush1.bf16.msra.mxu0 %v3651
      %3819 = vmatprep.subr.bf16.mxu0 0
      %3820 = vmatpush2.bf16.msra.mxu0 0
      %3821 = vmatprep.subr.bf16.mxu0 0
      %3822 = vmatpush2.bf16.msra.mxu0 0
      %3823 = vmatprep.subr.bf16.mxu0 0
      %3824 = vmatpush2.bf16.msra.mxu0 0
      %3825 = vmatprep.subr.bf16.mxu0 0
      %3826 = vmatpush2.bf16.msra.mxu0 0
      %3827 = vmatprep.subr.bf16.mxu0 0
      %3828 = vmatpush2.bf16.msra.mxu0 0
      %3829 = vmatprep.subr.bf16.mxu0 0
      %3830 = vmatpush2.bf16.msra.mxu0 0
      %3831 = vmatprep.subr.bf16.mxu0 0
      %3832 = vmatpush2.bf16.msra.mxu0 0
      %3833 = vmatprep.subr.bf16.mxu0 0
      %3834 = vmatpush2.bf16.msra.mxu0 0
      %3835 = vmatprep.mubr.bf16.mxu0 0
      %3836 = vmatmul.mubr.bf16.gmra.mxu0 %v3672
      %v3837 = vpop.f32.mrf.mxu0
      %v3838 = vadd.f32 %v3733, %v3837
      %v3839 = vpop.f32.mrf.mxu0
      %v3840 = vpop.f32.mrf.mxu0
      %v3841 = vadd.f32 %v3736, %v3840
      %v3842 = vpop.f32.mrf.mxu0
      %3843 = vmatprep.mubr.bf16.mxu0 0
      %3844 = vmatmul.mubr.bf16.gmra.mxu0 %v3675
      %v3845 = vpop.f32.mrf.mxu0
      %v3846 = vadd.f32 %v3741, %v3845
      %v3847 = vpop.f32.mrf.mxu0
      %v3848 = vpop.f32.mrf.mxu0
      %v3849 = vadd.f32 %v3744, %v3848
      %v3850 = vpop.f32.mrf.mxu0
      %3851 = vmatprep.mubr.bf16.mxu0 0
      %3852 = vmatmul.mubr.bf16.gmra.mxu0 %v3678
      %v3853 = vpop.f32.mrf.mxu0
      %v3854 = vadd.f32 %v3749, %v3853
      %v3855 = vpop.f32.mrf.mxu0
      %v3856 = vpop.f32.mrf.mxu0
      %v3857 = vadd.f32 %v3752, %v3856
      %v3858 = vpop.f32.mrf.mxu0
      %3859 = vmatprep.mubr.bf16.mxu0 0
      %3860 = vmatmul.mubr.bf16.gmra.mxu0 %v3681
      %v3861 = vpop.f32.mrf.mxu0
      %v3862 = vadd.f32 %v3757, %v3861
      %v3863 = vpop.f32.mrf.mxu0
      %v3864 = vpop.f32.mrf.mxu0
      %v3865 = vadd.f32 %v3760, %v3864
      %v3866 = vpop.f32.mrf.mxu0
      %3867 = vmatprep.mubr.bf16.mxu0 0
      %3868 = vmatmul.mubr.bf16.gmra.mxu0 %v3684
      %v3869 = vpop.f32.mrf.mxu0
      %v3870 = vadd.f32 %v3765, %v3869
      %v3871 = vpop.f32.mrf.mxu0
      %v3872 = vpop.f32.mrf.mxu0
      %v3873 = vadd.f32 %v3768, %v3872
      %v3874 = vpop.f32.mrf.mxu0
      %3875 = vmatprep.mubr.bf16.mxu0 0
      %3876 = vmatmul.mubr.bf16.gmra.mxu0 %v3687
      %v3877 = vpop.f32.mrf.mxu0
      %v3878 = vadd.f32 %v3773, %v3877
      %v3879 = vpop.f32.mrf.mxu0
      %v3880 = vpop.f32.mrf.mxu0
      %v3881 = vadd.f32 %v3776, %v3880
      %v3882 = vpop.f32.mrf.mxu0
      %3883 = vmatprep.mubr.bf16.mxu0 0
      %3884 = vmatmul.mubr.bf16.gmra.mxu0 %v3690
      %v3885 = vpop.f32.mrf.mxu0
      %v3886 = vadd.f32 %v3781, %v3885
      %v3887 = vpop.f32.mrf.mxu0
      %v3888 = vpop.f32.mrf.mxu0
      %v3889 = vadd.f32 %v3784, %v3888
      %v3890 = vpop.f32.mrf.mxu0
      %3891 = vmatprep.mubr.bf16.mxu0 0
      %3892 = vmatmul.mubr.bf16.gmra.mxu0 %v3693
      %v3893 = vpop.f32.mrf.mxu0
      %v3894 = vadd.f32 %v3789, %v3893
      %v3895 = vpop.f32.mrf.mxu0
      %v3896 = vpop.f32.mrf.mxu0
      %v3897 = vadd.f32 %v3792, %v3896
      %v3898 = vpop.f32.mrf.mxu0
      %3899 = vmatprep.mubr.bf16.mxu0 0
      %3900 = vmatmul.mubr.bf16.gmra.mxu0 %v3696
      %v3901 = vpop.f32.mrf.mxu0
      %v3902 = vadd.f32 %v3797, %v3901
      %v3903 = vpop.f32.mrf.mxu0
      %v3904 = vpop.f32.mrf.mxu0
      %v3905 = vadd.f32 %v3800, %v3904
      %v3906 = vpop.f32.mrf.mxu0
      %3907 = vdwg.mxu0
      %v3908 = vmax.f32 %v3838, 0.0
      %v3909 = vmax.f32 %v3841, 0.0
      %v3910 = vmax.f32 %v3846, 0.0
      %v3911 = vmax.f32 %v3849, 0.0
      %v3912 = vmax.f32 %v3854, 0.0
      %v3913 = vmax.f32 %v3857, 0.0
      %v3914 = vmax.f32 %v3862, 0.0
      %v3915 = vmax.f32 %v3865, 0.0
      %v3916 = vmax.f32 %v3870, 0.0
      %v3917 = vmax.f32 %v3873, 0.0
      %v3918 = vmax.f32 %v3878, 0.0
      %v3919 = vmax.f32 %v3881, 0.0
      %v3920 = vmax.f32 %v3886, 0.0
      %v3921 = vmax.f32 %v3889, 0.0
      %v3922 = vmax.f32 %v3894, 0.0
      %v3923 = vmax.f32 %v3897, 0.0
      %v3924 = vmax.f32 %v3902, 0.0
      %v3925 = vmax.f32 %v3905, 0.0
      %v3926 = vmul.f32 %v3908, %v2182
      %v3927 = vmul.f32 %v3909, %v2187
      %v3928 = vmul.f32 %v3910, %v2192
      %v3929 = vmul.f32 %v3911, %v2197
      %v3930 = vmul.f32 %v3912, %v2202
      %v3931 = vmul.f32 %v3913, %v2207
      %v3932 = vmul.f32 %v3914, %v2212
      %v3933 = vmul.f32 %v3915, %v2217
      %v3934 = vmul.f32 %v3916, %v2222
      %v3935 = vmul.f32 %v3917, %v2227
      %v3936 = vmul.f32 %v3918, %v2232
      %v3937 = vmul.f32 %v3919, %v2237
      %v3938 = vmul.f32 %v3920, %v2242
      %v3939 = vmul.f32 %v3921, %v2247
      %v3940 = vmul.f32 %v3922, %v2252
      %v3941 = vmul.f32 %v3923, %v2257
      %v3942 = vmul.f32 %v3924, %v2262
      %v3943 = vmul.f32 %v3925, %v2267
      %s3944 = scalar_lea.vmem %s4, 144
      %v3945 = vld [vmem:[%s3944] sm:$0xf]
      %v3946 = vld [vmem:[%s3944 + $0x4] sm:$0xf]
      %v3947 = vld [vmem:[%s3944 + $0x8] sm:$0xf]
      %v3948 = vld [vmem:[%s3944 + $0xc] sm:$0xf]
      %v3949 = vld [vmem:[%s3944 + $0x10] sm:$0xf]
      %v3950 = vld [vmem:[%s3944 + $0x14] sm:$0xf]
      %v3951 = vld [vmem:[%s3944 + $0x18] sm:$0xf]
      %v3952 = vld [vmem:[%s3944 + $0x1c] sm:$0xf]
      %v3953 = vld [vmem:[%s3944 + $0x20] sm:$0xf]
      %v3954 = vld [vmem:[%s3944 + $0x24] sm:$0xf]
      %v3955 = vld [vmem:[%s3944 + $0x28] sm:$0xf]
      %v3956 = vld [vmem:[%s3944 + $0x2c] sm:$0xf]
      %v3957 = vld [vmem:[%s3944 + $0x30] sm:$0xf]
      %v3958 = vld [vmem:[%s3944 + $0x34] sm:$0xf]
      %v3959 = vld [vmem:[%s3944 + $0x38] sm:$0xf]
      %v3960 = vld [vmem:[%s3944 + $0x3c] sm:$0xf]
      %v3961 = vld [vmem:[%s3944 + $0x40] sm:$0xf]
      %v3962 = vld [vmem:[%s3944 + $0x44] sm:$0xf]
      %v3963 = vld [vmem:[%s3944 + $0x48] sm:$0xf]
      %v3964 = vld [vmem:[%s3944 + $0x4c] sm:$0xf]
      %v3965 = vld [vmem:[%s3944 + $0x50] sm:$0xf]
      %v3966 = vld [vmem:[%s3944 + $0x54] sm:$0xf]
      %v3967 = vld [vmem:[%s3944 + $0x58] sm:$0xf]
      %v3968 = vld [vmem:[%s3944 + $0x5c] sm:$0xf]
      %v3969 = vld [vmem:[%s3944 + $0x60] sm:$0xf]
      %v3970 = vld [vmem:[%s3944 + $0x64] sm:$0xf]
      %v3971 = vld [vmem:[%s3944 + $0x68] sm:$0xf]
      %v3972 = vld [vmem:[%s3944 + $0x6c] sm:$0xf]
      %v3973 = vld [vmem:[%s3944 + $0x70] sm:$0xf]
      %v3974 = vld [vmem:[%s3944 + $0x74] sm:$0xf]
      %v3975 = vld [vmem:[%s3944 + $0x78] sm:$0xf]
      %v3976 = vld [vmem:[%s3944 + $0x7c] sm:$0xf]
      %v3977 = vld [vmem:[%s3944 + $0x80] sm:$0xf]
      %v3978 = vld [vmem:[%s3944 + $0x84] sm:$0xf]
      %v3979 = vld [vmem:[%s3944 + $0x88] sm:$0xf]
      %v3980 = vld [vmem:[%s3944 + $0x8c] sm:$0xf]
      %s3981 = scalar_lea.vmem %s5, 1
      %v3982 = vld [vmem:[%s3981] sm:$0x1]
      %v3983 = vrot.slane %v3926, 6
      %v3984 = vrot.slane %v3927, 6
      %v3985 = vrot.slane %v3928, 6
      %v3986 = vrot.slane %v3929, 6
      %v3987 = vrot.slane %v3930, 6
      %v3988 = vrot.slane %v3931, 6
      %v3989 = vrot.slane %v3932, 6
      %v3990 = vrot.slane %v3933, 6
      %v3991 = vrot.slane %v3934, 6
      %v3992 = vrot.slane %v3935, 6
      %v3993 = vrot.slane %v3936, 6
      %v3994 = vrot.slane %v3937, 6
      %v3995 = vrot.slane %v3938, 6
      %v3996 = vrot.slane %v3939, 6
      %v3997 = vrot.slane %v3940, 6
      %v3998 = vrot.slane %v3941, 6
      %v3999 = vrot.slane %v3942, 6
      %v4000 = vrot.slane %v3943, 6
      %v4001 = vsel %vm586, %v3999, %v4000
      %v4002 = vsel %vm586, %v3998, %v3999
      %v4003 = vsel %vm586, %v3997, %v3998
      %v4004 = vsel %vm586, %v3996, %v3997
      %v4005 = vsel %vm586, %v3995, %v3996
      %v4006 = vsel %vm586, %v3994, %v3995
      %v4007 = vsel %vm586, %v3993, %v3994
      %v4008 = vsel %vm586, %v3992, %v3993
      %v4009 = vsel %vm586, %v3991, %v3992
      %v4010 = vsel %vm586, %v3990, %v3991
      %v4011 = vsel %vm586, %v3989, %v3990
      %v4012 = vsel %vm586, %v3988, %v3989
      %v4013 = vsel %vm586, %v3987, %v3988
      %v4014 = vsel %vm586, %v3986, %v3987
      %v4015 = vsel %vm586, %v3985, %v3986
      %v4016 = vsel %vm586, %v3984, %v3985
      %v4017 = vsel %vm586, %v3983, %v3984
      %v4018 = vsel %vm586, %v4000, %v3983
      %v4019 = vpack.c.bf16 %v4018, %v4001
      %v4020 = vpack.c.bf16 %v4016, %v4017
      %v4021 = vpack.c.bf16 %v4014, %v4015
      %v4022 = vpack.c.bf16 %v4012, %v4013
      %v4023 = vpack.c.bf16 %v4010, %v4011
      %v4024 = vpack.c.bf16 %v4008, %v4009
      %v4025 = vpack.c.bf16 %v4006, %v4007
      %v4026 = vpack.c.bf16 %v4004, %v4005
      %v4027 = vpack.c.bf16 %v4002, %v4003
      %v4037 = vunpack.c.l.b16 %v4019
      %v4038 = vunpack.c.h.b16 %v4019
      %v4039 = vunpack.c.l.b16 %v4020
      %v4040 = vunpack.c.h.b16 %v4020
      %v4041 = vunpack.c.l.b16 %v4021
      %v4042 = vunpack.c.h.b16 %v4021
      %v4043 = vunpack.c.l.b16 %v4022
      %v4044 = vunpack.c.h.b16 %v4022
      %v4045 = vunpack.c.l.b16 %v4023
      %v4046 = vunpack.c.h.b16 %v4023
      %v4047 = vunpack.c.l.b16 %v4024
      %v4048 = vunpack.c.h.b16 %v4024
      %v4049 = vunpack.c.l.b16 %v4025
      %v4050 = vunpack.c.h.b16 %v4025
      %v4051 = vunpack.c.l.b16 %v4026
      %v4052 = vunpack.c.h.b16 %v4026
      %v4053 = vunpack.c.l.b16 %v4027
      %v4054 = vunpack.c.h.b16 %v4027
      %v4055 = vpack.c.b16 %v4037, %v4037
      %v4056 = vpack.c.b16 %v4038, %v4038
      %v4057 = vpack.c.b16 %v4039, %v4039
      %v4058 = vpack.c.b16 %v4040, %v4040
      %v4059 = vpack.c.b16 %v4041, %v4041
      %v4060 = vpack.c.b16 %v4042, %v4042
      %v4061 = vpack.c.b16 %v4043, %v4043
      %v4062 = vpack.c.b16 %v4044, %v4044
      %v4063 = vpack.c.b16 %v4045, %v4045
      %v4064 = vpack.c.b16 %v4046, %v4046
      %v4065 = vpack.c.b16 %v4047, %v4047
      %v4066 = vpack.c.b16 %v4048, %v4048
      %v4067 = vpack.c.b16 %v4049, %v4049
      %v4068 = vpack.c.b16 %v4050, %v4050
      %v4069 = vpack.c.b16 %v4051, %v4051
      %v4070 = vpack.c.b16 %v4052, %v4052
      %v4071 = vpack.c.b16 %v4053, %v4053
      %v4072 = vpack.c.b16 %v4054, %v4054
      %4091 = vst.msk [vmem:[#allocation2] sm:$0xf] %vm677, %v4055
      %4092 = vst.msk [vmem:[#allocation2 + $0xc] sm:$0xf] %vm677, %v4056
      %4093 = vst.msk [vmem:[#allocation2 + $0x18] sm:$0xf] %vm677, %v4057
      %4094 = vst.msk [vmem:[#allocation2 + $0x24] sm:$0xf] %vm677, %v4058
      %4095 = vst.msk [vmem:[#allocation2 + $0x30] sm:$0xf] %vm677, %v4059
      %4096 = vst.msk [vmem:[#allocation2 + $0x3c] sm:$0xf] %vm677, %v4060
      %4097 = vst.msk [vmem:[#allocation2 + $0x48] sm:$0xf] %vm677, %v4061
      %4098 = vst.msk [vmem:[#allocation2 + $0x54] sm:$0xf] %vm677, %v4062
      %4099 = vst.msk [vmem:[#allocation2 + $0x60] sm:$0xf] %vm677, %v4063
      %4100 = vst.msk [vmem:[#allocation2 + $0x6c] sm:$0xf] %vm677, %v4064
      %4101 = vst.msk [vmem:[#allocation2 + $0x78] sm:$0xf] %vm677, %v4065
      %4102 = vst.msk [vmem:[#allocation2 + $0x84] sm:$0xf] %vm677, %v4066
      %4103 = vst.msk [vmem:[#allocation2 + $0x90] sm:$0xf] %vm677, %v4067
      %4104 = vst.msk [vmem:[#allocation2 + $0x9c] sm:$0xf] %vm677, %v4068
      %4105 = vst.msk [vmem:[#allocation2 + $0xa8] sm:$0xf] %vm677, %v4069
      %4106 = vst.msk [vmem:[#allocation2 + $0xb4] sm:$0xf] %vm677, %v4070
      %4107 = vst.msk [vmem:[#allocation2 + $0xc0] sm:$0xf] %vm677, %v4071
      %4108 = vst.msk [vmem:[#allocation2 + $0xcc] sm:$0xf] %vm677, %v4072
      %v4109 = vrot.slane %v3926, 7
      %v4110 = vrot.slane %v3927, 7
      %v4111 = vrot.slane %v3928, 7
      %v4112 = vrot.slane %v3929, 7
      %v4113 = vrot.slane %v3930, 7
      %v4114 = vrot.slane %v3931, 7
      %v4115 = vrot.slane %v3932, 7
      %v4116 = vrot.slane %v3933, 7
      %v4117 = vrot.slane %v3934, 7
      %v4118 = vrot.slane %v3935, 7
      %v4119 = vrot.slane %v3936, 7
      %v4120 = vrot.slane %v3937, 7
      %v4121 = vrot.slane %v3938, 7
      %v4122 = vrot.slane %v3939, 7
      %v4123 = vrot.slane %v3940, 7
      %v4124 = vrot.slane %v3941, 7
      %v4125 = vrot.slane %v3942, 7
      %v4126 = vrot.slane %v3943, 7
      %v4127 = vsel %vm714, %v4125, %v4126
      %v4128 = vsel %vm714, %v4124, %v4125
      %v4129 = vsel %vm714, %v4123, %v4124
      %v4130 = vsel %vm714, %v4122, %v4123
      %v4131 = vsel %vm714, %v4121, %v4122
      %v4132 = vsel %vm714, %v4120, %v4121
      %v4133 = vsel %vm714, %v4119, %v4120
      %v4134 = vsel %vm714, %v4118, %v4119
      %v4135 = vsel %vm714, %v4117, %v4118
      %v4136 = vsel %vm714, %v4116, %v4117
      %v4137 = vsel %vm714, %v4115, %v4116
      %v4138 = vsel %vm714, %v4114, %v4115
      %v4139 = vsel %vm714, %v4113, %v4114
      %v4140 = vsel %vm714, %v4112, %v4113
      %v4141 = vsel %vm714, %v4111, %v4112
      %v4142 = vsel %vm714, %v4110, %v4111
      %v4143 = vsel %vm714, %v4109, %v4110
      %v4144 = vsel %vm714, %v4126, %v4109
      %v4145 = vpack.c.bf16 %v4144, %v4127
      %v4146 = vpack.c.bf16 %v4142, %v4143
      %v4147 = vpack.c.bf16 %v4140, %v4141
      %v4148 = vpack.c.bf16 %v4138, %v4139
      %v4149 = vpack.c.bf16 %v4136, %v4137
      %v4150 = vpack.c.bf16 %v4134, %v4135
      %v4151 = vpack.c.bf16 %v4132, %v4133
      %v4152 = vpack.c.bf16 %v4130, %v4131
      %v4153 = vpack.c.bf16 %v4128, %v4129
      %v4163 = vunpack.c.l.b16 %v4145
      %v4164 = vunpack.c.h.b16 %v4145
      %v4165 = vunpack.c.l.b16 %v4146
      %v4166 = vunpack.c.h.b16 %v4146
      %v4167 = vunpack.c.l.b16 %v4147
      %v4168 = vunpack.c.h.b16 %v4147
      %v4169 = vunpack.c.l.b16 %v4148
      %v4170 = vunpack.c.h.b16 %v4148
      %v4171 = vunpack.c.l.b16 %v4149
      %v4172 = vunpack.c.h.b16 %v4149
      %v4173 = vunpack.c.l.b16 %v4150
      %v4174 = vunpack.c.h.b16 %v4150
      %v4175 = vunpack.c.l.b16 %v4151
      %v4176 = vunpack.c.h.b16 %v4151
      %v4177 = vunpack.c.l.b16 %v4152
      %v4178 = vunpack.c.h.b16 %v4152
      %v4179 = vunpack.c.l.b16 %v4153
      %v4180 = vunpack.c.h.b16 %v4153
      %v4181 = vpack.c.b16 %v4163, %v4163
      %v4182 = vpack.c.b16 %v4164, %v4164
      %v4183 = vpack.c.b16 %v4165, %v4165
      %v4184 = vpack.c.b16 %v4166, %v4166
      %v4185 = vpack.c.b16 %v4167, %v4167
      %v4186 = vpack.c.b16 %v4168, %v4168
      %v4187 = vpack.c.b16 %v4169, %v4169
      %v4188 = vpack.c.b16 %v4170, %v4170
      %v4189 = vpack.c.b16 %v4171, %v4171
      %v4190 = vpack.c.b16 %v4172, %v4172
      %v4191 = vpack.c.b16 %v4173, %v4173
      %v4192 = vpack.c.b16 %v4174, %v4174
      %v4193 = vpack.c.b16 %v4175, %v4175
      %v4194 = vpack.c.b16 %v4176, %v4176
      %v4195 = vpack.c.b16 %v4177, %v4177
      %v4196 = vpack.c.b16 %v4178, %v4178
      %v4197 = vpack.c.b16 %v4179, %v4179
      %v4198 = vpack.c.b16 %v4180, %v4180
      %4199 = vrot.lane.b32.xlu0 %v4181, 32
      %v4200 = vpop.permute.xlu0 %4199
      %4201 = vrot.lane.b32.xlu0 %v4182, 32
      %v4202 = vpop.permute.xlu0 %4201
      %4203 = vrot.lane.b32.xlu0 %v4183, 32
      %v4204 = vpop.permute.xlu0 %4203
      %4205 = vrot.lane.b32.xlu0 %v4184, 32
      %v4206 = vpop.permute.xlu0 %4205
      %4207 = vrot.lane.b32.xlu0 %v4185, 32
      %v4208 = vpop.permute.xlu0 %4207
      %4209 = vrot.lane.b32.xlu0 %v4186, 32
      %v4210 = vpop.permute.xlu0 %4209
      %4211 = vrot.lane.b32.xlu0 %v4187, 32
      %v4212 = vpop.permute.xlu0 %4211
      %4213 = vrot.lane.b32.xlu0 %v4188, 32
      %v4214 = vpop.permute.xlu0 %4213
      %4215 = vrot.lane.b32.xlu0 %v4189, 32
      %v4216 = vpop.permute.xlu0 %4215
      %4217 = vrot.lane.b32.xlu0 %v4190, 32
      %v4218 = vpop.permute.xlu0 %4217
      %4219 = vrot.lane.b32.xlu0 %v4191, 32
      %v4220 = vpop.permute.xlu0 %4219
      %4221 = vrot.lane.b32.xlu0 %v4192, 32
      %v4222 = vpop.permute.xlu0 %4221
      %4223 = vrot.lane.b32.xlu0 %v4193, 32
      %v4224 = vpop.permute.xlu0 %4223
      %4225 = vrot.lane.b32.xlu0 %v4194, 32
      %v4226 = vpop.permute.xlu0 %4225
      %4227 = vrot.lane.b32.xlu0 %v4195, 32
      %v4228 = vpop.permute.xlu0 %4227
      %4229 = vrot.lane.b32.xlu0 %v4196, 32
      %v4230 = vpop.permute.xlu0 %4229
      %4231 = vrot.lane.b32.xlu0 %v4197, 32
      %v4232 = vpop.permute.xlu0 %4231
      %4233 = vrot.lane.b32.xlu0 %v4198, 32
      %v4234 = vpop.permute.xlu0 %4233
      %4253 = vst.msk [vmem:[#allocation2] sm:$0xf] %vm841, %v4200
      %4254 = vst.msk [vmem:[#allocation2 + $0xc] sm:$0xf] %vm841, %v4202
      %4255 = vst.msk [vmem:[#allocation2 + $0x18] sm:$0xf] %vm841, %v4204
      %4256 = vst.msk [vmem:[#allocation2 + $0x24] sm:$0xf] %vm841, %v4206
      %4257 = vst.msk [vmem:[#allocation2 + $0x30] sm:$0xf] %vm841, %v4208
      %4258 = vst.msk [vmem:[#allocation2 + $0x3c] sm:$0xf] %vm841, %v4210
      %4259 = vst.msk [vmem:[#allocation2 + $0x48] sm:$0xf] %vm841, %v4212
      %4260 = vst.msk [vmem:[#allocation2 + $0x54] sm:$0xf] %vm841, %v4214
      %4261 = vst.msk [vmem:[#allocation2 + $0x60] sm:$0xf] %vm841, %v4216
      %4262 = vst.msk [vmem:[#allocation2 + $0x6c] sm:$0xf] %vm841, %v4218
      %4263 = vst.msk [vmem:[#allocation2 + $0x78] sm:$0xf] %vm841, %v4220
      %4264 = vst.msk [vmem:[#allocation2 + $0x84] sm:$0xf] %vm841, %v4222
      %4265 = vst.msk [vmem:[#allocation2 + $0x90] sm:$0xf] %vm841, %v4224
      %4266 = vst.msk [vmem:[#allocation2 + $0x9c] sm:$0xf] %vm841, %v4226
      %4267 = vst.msk [vmem:[#allocation2 + $0xa8] sm:$0xf] %vm841, %v4228
      %4268 = vst.msk [vmem:[#allocation2 + $0xb4] sm:$0xf] %vm841, %v4230
      %4269 = vst.msk [vmem:[#allocation2 + $0xc0] sm:$0xf] %vm841, %v4232
      %4270 = vst.msk [vmem:[#allocation2 + $0xcc] sm:$0xf] %vm841, %v4234
      %v4271 = vpack.c.bf16 %v3926, %v3943
      %v4272 = vpack.c.bf16 %v3928, %v3927
      %v4273 = vpack.c.bf16 %v3930, %v3929
      %v4274 = vpack.c.bf16 %v3932, %v3931
      %v4275 = vpack.c.bf16 %v3934, %v3933
      %v4276 = vpack.c.bf16 %v3936, %v3935
      %v4277 = vpack.c.bf16 %v3938, %v3937
      %v4278 = vpack.c.bf16 %v3940, %v3939
      %v4279 = vpack.c.bf16 %v3942, %v3941
      %v4289 = vunpack.c.l.b16 %v4271
      %v4290 = vunpack.c.h.b16 %v4271
      %v4291 = vunpack.c.l.b16 %v4272
      %v4292 = vunpack.c.h.b16 %v4272
      %v4293 = vunpack.c.l.b16 %v4273
      %v4294 = vunpack.c.h.b16 %v4273
      %v4295 = vunpack.c.l.b16 %v4274
      %v4296 = vunpack.c.h.b16 %v4274
      %v4297 = vunpack.c.l.b16 %v4275
      %v4298 = vunpack.c.h.b16 %v4275
      %v4299 = vunpack.c.l.b16 %v4276
      %v4300 = vunpack.c.h.b16 %v4276
      %v4301 = vunpack.c.l.b16 %v4277
      %v4302 = vunpack.c.h.b16 %v4277
      %v4303 = vunpack.c.l.b16 %v4278
      %v4304 = vunpack.c.h.b16 %v4278
      %v4305 = vunpack.c.l.b16 %v4279
      %v4306 = vunpack.c.h.b16 %v4279
      %v4307 = vpack.c.b16 %v4289, %v4289
      %v4308 = vpack.c.b16 %v4290, %v4290
      %v4309 = vpack.c.b16 %v4291, %v4291
      %v4310 = vpack.c.b16 %v4292, %v4292
      %v4311 = vpack.c.b16 %v4293, %v4293
      %v4312 = vpack.c.b16 %v4294, %v4294
      %v4313 = vpack.c.b16 %v4295, %v4295
      %v4314 = vpack.c.b16 %v4296, %v4296
      %v4315 = vpack.c.b16 %v4297, %v4297
      %v4316 = vpack.c.b16 %v4298, %v4298
      %v4317 = vpack.c.b16 %v4299, %v4299
      %v4318 = vpack.c.b16 %v4300, %v4300
      %v4319 = vpack.c.b16 %v4301, %v4301
      %v4320 = vpack.c.b16 %v4302, %v4302
      %v4321 = vpack.c.b16 %v4303, %v4303
      %v4322 = vpack.c.b16 %v4304, %v4304
      %v4323 = vpack.c.b16 %v4305, %v4305
      %v4324 = vpack.c.b16 %v4306, %v4306
      %4325 = vrot.lane.b32.xlu0 %v4307, 64
      %v4326 = vpop.permute.xlu0 %4325
      %4327 = vrot.lane.b32.xlu0 %v4308, 64
      %v4328 = vpop.permute.xlu0 %4327
      %4329 = vrot.lane.b32.xlu0 %v4309, 64
      %v4330 = vpop.permute.xlu0 %4329
      %4331 = vrot.lane.b32.xlu0 %v4310, 64
      %v4332 = vpop.permute.xlu0 %4331
      %4333 = vrot.lane.b32.xlu0 %v4311, 64
      %v4334 = vpop.permute.xlu0 %4333
      %4335 = vrot.lane.b32.xlu0 %v4312, 64
      %v4336 = vpop.permute.xlu0 %4335
      %4337 = vrot.lane.b32.xlu0 %v4313, 64
      %v4338 = vpop.permute.xlu0 %4337
      %4339 = vrot.lane.b32.xlu0 %v4314, 64
      %v4340 = vpop.permute.xlu0 %4339
      %4341 = vrot.lane.b32.xlu0 %v4315, 64
      %v4342 = vpop.permute.xlu0 %4341
      %4343 = vrot.lane.b32.xlu0 %v4316, 64
      %v4344 = vpop.permute.xlu0 %4343
      %4345 = vrot.lane.b32.xlu0 %v4317, 64
      %v4346 = vpop.permute.xlu0 %4345
      %4347 = vrot.lane.b32.xlu0 %v4318, 64
      %v4348 = vpop.permute.xlu0 %4347
      %4349 = vrot.lane.b32.xlu0 %v4319, 64
      %v4350 = vpop.permute.xlu0 %4349
      %4351 = vrot.lane.b32.xlu0 %v4320, 64
      %v4352 = vpop.permute.xlu0 %4351
      %4353 = vrot.lane.b32.xlu0 %v4321, 64
      %v4354 = vpop.permute.xlu0 %4353
      %4355 = vrot.lane.b32.xlu0 %v4322, 64
      %v4356 = vpop.permute.xlu0 %4355
      %4357 = vrot.lane.b32.xlu0 %v4323, 64
      %v4358 = vpop.permute.xlu0 %4357
      %4359 = vrot.lane.b32.xlu0 %v4324, 64
      %v4360 = vpop.permute.xlu0 %4359
      %4379 = vst.msk [vmem:[#allocation2] sm:$0xf] %vm968, %v4326
      %4380 = vst.msk [vmem:[#allocation2 + $0xc] sm:$0xf] %vm968, %v4328
      %4381 = vst.msk [vmem:[#allocation2 + $0x18] sm:$0xf] %vm968, %v4330
      %4382 = vst.msk [vmem:[#allocation2 + $0x24] sm:$0xf] %vm968, %v4332
      %4383 = vst.msk [vmem:[#allocation2 + $0x30] sm:$0xf] %vm968, %v4334
      %4384 = vst.msk [vmem:[#allocation2 + $0x3c] sm:$0xf] %vm968, %v4336
      %4385 = vst.msk [vmem:[#allocation2 + $0x48] sm:$0xf] %vm968, %v4338
      %4386 = vst.msk [vmem:[#allocation2 + $0x54] sm:$0xf] %vm968, %v4340
      %4387 = vst.msk [vmem:[#allocation2 + $0x60] sm:$0xf] %vm968, %v4342
      %4388 = vst.msk [vmem:[#allocation2 + $0x6c] sm:$0xf] %vm968, %v4344
      %4389 = vst.msk [vmem:[#allocation2 + $0x78] sm:$0xf] %vm968, %v4346
      %4390 = vst.msk [vmem:[#allocation2 + $0x84] sm:$0xf] %vm968, %v4348
      %4391 = vst.msk [vmem:[#allocation2 + $0x90] sm:$0xf] %vm968, %v4350
      %4392 = vst.msk [vmem:[#allocation2 + $0x9c] sm:$0xf] %vm968, %v4352
      %4393 = vst.msk [vmem:[#allocation2 + $0xa8] sm:$0xf] %vm968, %v4354
      %4394 = vst.msk [vmem:[#allocation2 + $0xb4] sm:$0xf] %vm968, %v4356
      %4395 = vst.msk [vmem:[#allocation2 + $0xc0] sm:$0xf] %vm968, %v4358
      %4396 = vst.msk [vmem:[#allocation2 + $0xcc] sm:$0xf] %vm968, %v4360
      %v4397 = vpack.c.bf16 %v4143, %v4144
      %v4398 = vpack.c.bf16 %v4141, %v4142
      %v4399 = vpack.c.bf16 %v4139, %v4140
      %v4400 = vpack.c.bf16 %v4137, %v4138
      %v4401 = vpack.c.bf16 %v4135, %v4136
      %v4402 = vpack.c.bf16 %v4133, %v4134
      %v4403 = vpack.c.bf16 %v4131, %v4132
      %v4404 = vpack.c.bf16 %v4129, %v4130
      %v4405 = vpack.c.bf16 %v4127, %v4128
      %v4415 = vunpack.c.l.b16 %v4397
      %v4416 = vunpack.c.h.b16 %v4397
      %v4417 = vunpack.c.l.b16 %v4398
      %v4418 = vunpack.c.h.b16 %v4398
      %v4419 = vunpack.c.l.b16 %v4399
      %v4420 = vunpack.c.h.b16 %v4399
      %v4421 = vunpack.c.l.b16 %v4400
      %v4422 = vunpack.c.h.b16 %v4400
      %v4423 = vunpack.c.l.b16 %v4401
      %v4424 = vunpack.c.h.b16 %v4401
      %v4425 = vunpack.c.l.b16 %v4402
      %v4426 = vunpack.c.h.b16 %v4402
      %v4427 = vunpack.c.l.b16 %v4403
      %v4428 = vunpack.c.h.b16 %v4403
      %v4429 = vunpack.c.l.b16 %v4404
      %v4430 = vunpack.c.h.b16 %v4404
      %v4431 = vunpack.c.l.b16 %v4405
      %v4432 = vunpack.c.h.b16 %v4405
      %v4433 = vpack.c.b16 %v4415, %v4415
      %v4434 = vpack.c.b16 %v4416, %v4416
      %v4435 = vpack.c.b16 %v4417, %v4417
      %v4436 = vpack.c.b16 %v4418, %v4418
      %v4437 = vpack.c.b16 %v4419, %v4419
      %v4438 = vpack.c.b16 %v4420, %v4420
      %v4439 = vpack.c.b16 %v4421, %v4421
      %v4440 = vpack.c.b16 %v4422, %v4422
      %v4441 = vpack.c.b16 %v4423, %v4423
      %v4442 = vpack.c.b16 %v4424, %v4424
      %v4443 = vpack.c.b16 %v4425, %v4425
      %v4444 = vpack.c.b16 %v4426, %v4426
      %v4445 = vpack.c.b16 %v4427, %v4427
      %v4446 = vpack.c.b16 %v4428, %v4428
      %v4447 = vpack.c.b16 %v4429, %v4429
      %v4448 = vpack.c.b16 %v4430, %v4430
      %v4449 = vpack.c.b16 %v4431, %v4431
      %v4450 = vpack.c.b16 %v4432, %v4432
      %4451 = vrot.lane.b32.xlu0 %v4433, 96
      %v4452 = vpop.permute.xlu0 %4451
      %4453 = vrot.lane.b32.xlu0 %v4434, 96
      %v4454 = vpop.permute.xlu0 %4453
      %4455 = vrot.lane.b32.xlu0 %v4435, 96
      %v4456 = vpop.permute.xlu0 %4455
      %4457 = vrot.lane.b32.xlu0 %v4436, 96
      %v4458 = vpop.permute.xlu0 %4457
      %4459 = vrot.lane.b32.xlu0 %v4437, 96
      %v4460 = vpop.permute.xlu0 %4459
      %4461 = vrot.lane.b32.xlu0 %v4438, 96
      %v4462 = vpop.permute.xlu0 %4461
      %4463 = vrot.lane.b32.xlu0 %v4439, 96
      %v4464 = vpop.permute.xlu0 %4463
      %4465 = vrot.lane.b32.xlu0 %v4440, 96
      %v4466 = vpop.permute.xlu0 %4465
      %4467 = vrot.lane.b32.xlu0 %v4441, 96
      %v4468 = vpop.permute.xlu0 %4467
      %4469 = vrot.lane.b32.xlu0 %v4442, 96
      %v4470 = vpop.permute.xlu0 %4469
      %4471 = vrot.lane.b32.xlu0 %v4443, 96
      %v4472 = vpop.permute.xlu0 %4471
      %4473 = vrot.lane.b32.xlu0 %v4444, 96
      %v4474 = vpop.permute.xlu0 %4473
      %4475 = vrot.lane.b32.xlu0 %v4445, 96
      %v4476 = vpop.permute.xlu0 %4475
      %4477 = vrot.lane.b32.xlu0 %v4446, 96
      %v4478 = vpop.permute.xlu0 %4477
      %4479 = vrot.lane.b32.xlu0 %v4447, 96
      %v4480 = vpop.permute.xlu0 %4479
      %4481 = vrot.lane.b32.xlu0 %v4448, 96
      %v4482 = vpop.permute.xlu0 %4481
      %4483 = vrot.lane.b32.xlu0 %v4449, 96
      %v4484 = vpop.permute.xlu0 %4483
      %4485 = vrot.lane.b32.xlu0 %v4450, 96
      %v4486 = vpop.permute.xlu0 %4485
      %4505 = vst.msk [vmem:[#allocation2] sm:$0xf] %vm1095, %v4452
      %4506 = vst.msk [vmem:[#allocation2 + $0xc] sm:$0xf] %vm1095, %v4454
      %4507 = vst.msk [vmem:[#allocation2 + $0x18] sm:$0xf] %vm1095, %v4456
      %4508 = vst.msk [vmem:[#allocation2 + $0x24] sm:$0xf] %vm1095, %v4458
      %4509 = vst.msk [vmem:[#allocation2 + $0x30] sm:$0xf] %vm1095, %v4460
      %4510 = vst.msk [vmem:[#allocation2 + $0x3c] sm:$0xf] %vm1095, %v4462
      %4511 = vst.msk [vmem:[#allocation2 + $0x48] sm:$0xf] %vm1095, %v4464
      %4512 = vst.msk [vmem:[#allocation2 + $0x54] sm:$0xf] %vm1095, %v4466
      %4513 = vst.msk [vmem:[#allocation2 + $0x60] sm:$0xf] %vm1095, %v4468
      %4514 = vst.msk [vmem:[#allocation2 + $0x6c] sm:$0xf] %vm1095, %v4470
      %4515 = vst.msk [vmem:[#allocation2 + $0x78] sm:$0xf] %vm1095, %v4472
      %4516 = vst.msk [vmem:[#allocation2 + $0x84] sm:$0xf] %vm1095, %v4474
      %4517 = vst.msk [vmem:[#allocation2 + $0x90] sm:$0xf] %vm1095, %v4476
      %4518 = vst.msk [vmem:[#allocation2 + $0x9c] sm:$0xf] %vm1095, %v4478
      %4519 = vst.msk [vmem:[#allocation2 + $0xa8] sm:$0xf] %vm1095, %v4480
      %4520 = vst.msk [vmem:[#allocation2 + $0xb4] sm:$0xf] %vm1095, %v4482
      %4521 = vst.msk [vmem:[#allocation2 + $0xc0] sm:$0xf] %vm1095, %v4484
      %4522 = vst.msk [vmem:[#allocation2 + $0xcc] sm:$0xf] %vm1095, %v4486
      %v4523 = vpack.c.bf16 %v3927, %v3926
      %v4524 = vpack.c.bf16 %v3929, %v3928
      %v4525 = vpack.c.bf16 %v3931, %v3930
      %v4526 = vpack.c.bf16 %v3933, %v3932
      %v4527 = vpack.c.bf16 %v3935, %v3934
      %v4528 = vpack.c.bf16 %v3937, %v3936
      %v4529 = vpack.c.bf16 %v3939, %v3938
      %v4530 = vpack.c.bf16 %v3941, %v3940
      %v4531 = vpack.c.bf16 %v3943, %v3942
      %v4541 = vunpack.c.l.b16 %v4523
      %v4542 = vunpack.c.h.b16 %v4523
      %v4543 = vunpack.c.l.b16 %v4524
      %v4544 = vunpack.c.h.b16 %v4524
      %v4545 = vunpack.c.l.b16 %v4525
      %v4546 = vunpack.c.h.b16 %v4525
      %v4547 = vunpack.c.l.b16 %v4526
      %v4548 = vunpack.c.h.b16 %v4526
      %v4549 = vunpack.c.l.b16 %v4527
      %v4550 = vunpack.c.h.b16 %v4527
      %v4551 = vunpack.c.l.b16 %v4528
      %v4552 = vunpack.c.h.b16 %v4528
      %v4553 = vunpack.c.l.b16 %v4529
      %v4554 = vunpack.c.h.b16 %v4529
      %v4555 = vunpack.c.l.b16 %v4530
      %v4556 = vunpack.c.h.b16 %v4530
      %v4557 = vunpack.c.l.b16 %v4531
      %v4558 = vunpack.c.h.b16 %v4531
      %v4559 = vpack.c.b16 %v4541, %v4541
      %v4560 = vpack.c.b16 %v4542, %v4542
      %v4561 = vpack.c.b16 %v4543, %v4543
      %v4562 = vpack.c.b16 %v4544, %v4544
      %v4563 = vpack.c.b16 %v4545, %v4545
      %v4564 = vpack.c.b16 %v4546, %v4546
      %v4565 = vpack.c.b16 %v4547, %v4547
      %v4566 = vpack.c.b16 %v4548, %v4548
      %v4567 = vpack.c.b16 %v4549, %v4549
      %v4568 = vpack.c.b16 %v4550, %v4550
      %v4569 = vpack.c.b16 %v4551, %v4551
      %v4570 = vpack.c.b16 %v4552, %v4552
      %v4571 = vpack.c.b16 %v4553, %v4553
      %v4572 = vpack.c.b16 %v4554, %v4554
      %v4573 = vpack.c.b16 %v4555, %v4555
      %v4574 = vpack.c.b16 %v4556, %v4556
      %v4575 = vpack.c.b16 %v4557, %v4557
      %v4576 = vpack.c.b16 %v4558, %v4558
      %4595 = vst.msk [vmem:[#allocation2 + $0x4] sm:$0xf] %vm677, %v4559
      %4596 = vst.msk [vmem:[#allocation2 + $0x10] sm:$0xf] %vm677, %v4560
      %4597 = vst.msk [vmem:[#allocation2 + $0x1c] sm:$0xf] %vm677, %v4561
      %4598 = vst.msk [vmem:[#allocation2 + $0x28] sm:$0xf] %vm677, %v4562
      %4599 = vst.msk [vmem:[#allocation2 + $0x34] sm:$0xf] %vm677, %v4563
      %4600 = vst.msk [vmem:[#allocation2 + $0x40] sm:$0xf] %vm677, %v4564
      %4601 = vst.msk [vmem:[#allocation2 + $0x4c] sm:$0xf] %vm677, %v4565
      %4602 = vst.msk [vmem:[#allocation2 + $0x58] sm:$0xf] %vm677, %v4566
      %4603 = vst.msk [vmem:[#allocation2 + $0x64] sm:$0xf] %vm677, %v4567
      %4604 = vst.msk [vmem:[#allocation2 + $0x70] sm:$0xf] %vm677, %v4568
      %4605 = vst.msk [vmem:[#allocation2 + $0x7c] sm:$0xf] %vm677, %v4569
      %4606 = vst.msk [vmem:[#allocation2 + $0x88] sm:$0xf] %vm677, %v4570
      %4607 = vst.msk [vmem:[#allocation2 + $0x94] sm:$0xf] %vm677, %v4571
      %4608 = vst.msk [vmem:[#allocation2 + $0xa0] sm:$0xf] %vm677, %v4572
      %4609 = vst.msk [vmem:[#allocation2 + $0xac] sm:$0xf] %vm677, %v4573
      %4610 = vst.msk [vmem:[#allocation2 + $0xb8] sm:$0xf] %vm677, %v4574
      %4611 = vst.msk [vmem:[#allocation2 + $0xc4] sm:$0xf] %vm677, %v4575
      %4612 = vst.msk [vmem:[#allocation2 + $0xd0] sm:$0xf] %vm677, %v4576
      %v4613 = vrot.slane %v3926, 1
      %v4614 = vrot.slane %v3927, 1
      %v4615 = vrot.slane %v3928, 1
      %v4616 = vrot.slane %v3929, 1
      %v4617 = vrot.slane %v3930, 1
      %v4618 = vrot.slane %v3931, 1
      %v4619 = vrot.slane %v3932, 1
      %v4620 = vrot.slane %v3933, 1
      %v4621 = vrot.slane %v3934, 1
      %v4622 = vrot.slane %v3935, 1
      %v4623 = vrot.slane %v3936, 1
      %v4624 = vrot.slane %v3937, 1
      %v4625 = vrot.slane %v3938, 1
      %v4626 = vrot.slane %v3939, 1
      %v4627 = vrot.slane %v3940, 1
      %v4628 = vrot.slane %v3941, 1
      %v4629 = vrot.slane %v3942, 1
      %v4630 = vrot.slane %v3943, 1
      %v4631 = vsel %vm1222, %v4629, %v4630
      %v4632 = vsel %vm1222, %v4628, %v4629
      %v4633 = vsel %vm1222, %v4627, %v4628
      %v4634 = vsel %vm1222, %v4626, %v4627
      %v4635 = vsel %vm1222, %v4625, %v4626
      %v4636 = vsel %vm1222, %v4624, %v4625
      %v4637 = vsel %vm1222, %v4623, %v4624
      %v4638 = vsel %vm1222, %v4622, %v4623
      %v4639 = vsel %vm1222, %v4621, %v4622
      %v4640 = vsel %vm1222, %v4620, %v4621
      %v4641 = vsel %vm1222, %v4619, %v4620
      %v4642 = vsel %vm1222, %v4618, %v4619
      %v4643 = vsel %vm1222, %v4617, %v4618
      %v4644 = vsel %vm1222, %v4616, %v4617
      %v4645 = vsel %vm1222, %v4615, %v4616
      %v4646 = vsel %vm1222, %v4614, %v4615
      %v4647 = vsel %vm1222, %v4613, %v4614
      %v4648 = vsel %vm1222, %v4630, %v4613
      %v4649 = vpack.c.bf16 %v4646, %v4647
      %v4650 = vpack.c.bf16 %v4644, %v4645
      %v4651 = vpack.c.bf16 %v4642, %v4643
      %v4652 = vpack.c.bf16 %v4640, %v4641
      %v4653 = vpack.c.bf16 %v4638, %v4639
      %v4654 = vpack.c.bf16 %v4636, %v4637
      %v4655 = vpack.c.bf16 %v4634, %v4635
      %v4656 = vpack.c.bf16 %v4632, %v4633
      %v4657 = vpack.c.bf16 %v4648, %v4631
      %v4667 = vunpack.c.l.b16 %v4649
      %v4668 = vunpack.c.h.b16 %v4649
      %v4669 = vunpack.c.l.b16 %v4650
      %v4670 = vunpack.c.h.b16 %v4650
      %v4671 = vunpack.c.l.b16 %v4651
      %v4672 = vunpack.c.h.b16 %v4651
      %v4673 = vunpack.c.l.b16 %v4652
      %v4674 = vunpack.c.h.b16 %v4652
      %v4675 = vunpack.c.l.b16 %v4653
      %v4676 = vunpack.c.h.b16 %v4653
      %v4677 = vunpack.c.l.b16 %v4654
      %v4678 = vunpack.c.h.b16 %v4654
      %v4679 = vunpack.c.l.b16 %v4655
      %v4680 = vunpack.c.h.b16 %v4655
      %v4681 = vunpack.c.l.b16 %v4656
      %v4682 = vunpack.c.h.b16 %v4656
      %v4683 = vunpack.c.l.b16 %v4657
      %v4684 = vunpack.c.h.b16 %v4657
      %v4685 = vpack.c.b16 %v4667, %v4667
      %v4686 = vpack.c.b16 %v4668, %v4668
      %v4687 = vpack.c.b16 %v4669, %v4669
      %v4688 = vpack.c.b16 %v4670, %v4670
      %v4689 = vpack.c.b16 %v4671, %v4671
      %v4690 = vpack.c.b16 %v4672, %v4672
      %v4691 = vpack.c.b16 %v4673, %v4673
      %v4692 = vpack.c.b16 %v4674, %v4674
      %v4693 = vpack.c.b16 %v4675, %v4675
      %v4694 = vpack.c.b16 %v4676, %v4676
      %v4695 = vpack.c.b16 %v4677, %v4677
      %v4696 = vpack.c.b16 %v4678, %v4678
      %v4697 = vpack.c.b16 %v4679, %v4679
      %v4698 = vpack.c.b16 %v4680, %v4680
      %v4699 = vpack.c.b16 %v4681, %v4681
      %v4700 = vpack.c.b16 %v4682, %v4682
      %v4701 = vpack.c.b16 %v4683, %v4683
      %v4702 = vpack.c.b16 %v4684, %v4684
      %4703 = vrot.lane.b32.xlu0 %v4685, 32
      %v4704 = vpop.permute.xlu0 %4703
      %4705 = vrot.lane.b32.xlu0 %v4686, 32
      %v4706 = vpop.permute.xlu0 %4705
      %4707 = vrot.lane.b32.xlu0 %v4687, 32
      %v4708 = vpop.permute.xlu0 %4707
      %4709 = vrot.lane.b32.xlu0 %v4688, 32
      %v4710 = vpop.permute.xlu0 %4709
      %4711 = vrot.lane.b32.xlu0 %v4689, 32
      %v4712 = vpop.permute.xlu0 %4711
      %4713 = vrot.lane.b32.xlu0 %v4690, 32
      %v4714 = vpop.permute.xlu0 %4713
      %4715 = vrot.lane.b32.xlu0 %v4691, 32
      %v4716 = vpop.permute.xlu0 %4715
      %4717 = vrot.lane.b32.xlu0 %v4692, 32
      %v4718 = vpop.permute.xlu0 %4717
      %4719 = vrot.lane.b32.xlu0 %v4693, 32
      %v4720 = vpop.permute.xlu0 %4719
      %4721 = vrot.lane.b32.xlu0 %v4694, 32
      %v4722 = vpop.permute.xlu0 %4721
      %4723 = vrot.lane.b32.xlu0 %v4695, 32
      %v4724 = vpop.permute.xlu0 %4723
      %4725 = vrot.lane.b32.xlu0 %v4696, 32
      %v4726 = vpop.permute.xlu0 %4725
      %4727 = vrot.lane.b32.xlu0 %v4697, 32
      %v4728 = vpop.permute.xlu0 %4727
      %4729 = vrot.lane.b32.xlu0 %v4698, 32
      %v4730 = vpop.permute.xlu0 %4729
      %4731 = vrot.lane.b32.xlu0 %v4699, 32
      %v4732 = vpop.permute.xlu0 %4731
      %4733 = vrot.lane.b32.xlu0 %v4700, 32
      %v4734 = vpop.permute.xlu0 %4733
      %4735 = vrot.lane.b32.xlu0 %v4701, 32
      %v4736 = vpop.permute.xlu0 %4735
      %4737 = vrot.lane.b32.xlu0 %v4702, 32
      %v4738 = vpop.permute.xlu0 %4737
      %4757 = vst.msk [vmem:[#allocation2 + $0x4] sm:$0xf] %vm841, %v4704
      %4758 = vst.msk [vmem:[#allocation2 + $0x10] sm:$0xf] %vm841, %v4706
      %4759 = vst.msk [vmem:[#allocation2 + $0x1c] sm:$0xf] %vm841, %v4708
      %4760 = vst.msk [vmem:[#allocation2 + $0x28] sm:$0xf] %vm841, %v4710
      %4761 = vst.msk [vmem:[#allocation2 + $0x34] sm:$0xf] %vm841, %v4712
      %4762 = vst.msk [vmem:[#allocation2 + $0x40] sm:$0xf] %vm841, %v4714
      %4763 = vst.msk [vmem:[#allocation2 + $0x4c] sm:$0xf] %vm841, %v4716
      %4764 = vst.msk [vmem:[#allocation2 + $0x58] sm:$0xf] %vm841, %v4718
      %4765 = vst.msk [vmem:[#allocation2 + $0x64] sm:$0xf] %vm841, %v4720
      %4766 = vst.msk [vmem:[#allocation2 + $0x70] sm:$0xf] %vm841, %v4722
      %4767 = vst.msk [vmem:[#allocation2 + $0x7c] sm:$0xf] %vm841, %v4724
      %4768 = vst.msk [vmem:[#allocation2 + $0x88] sm:$0xf] %vm841, %v4726
      %4769 = vst.msk [vmem:[#allocation2 + $0x94] sm:$0xf] %vm841, %v4728
      %4770 = vst.msk [vmem:[#allocation2 + $0xa0] sm:$0xf] %vm841, %v4730
      %4771 = vst.msk [vmem:[#allocation2 + $0xac] sm:$0xf] %vm841, %v4732
      %4772 = vst.msk [vmem:[#allocation2 + $0xb8] sm:$0xf] %vm841, %v4734
      %4773 = vst.msk [vmem:[#allocation2 + $0xc4] sm:$0xf] %vm841, %v4736
      %4774 = vst.msk [vmem:[#allocation2 + $0xd0] sm:$0xf] %vm841, %v4738
      %4775 = vst.msk [vmem:[#allocation2 + $0x4] sm:$0xf] %vm968, %v4330
      %4776 = vst.msk [vmem:[#allocation2 + $0x10] sm:$0xf] %vm968, %v4332
      %4777 = vst.msk [vmem:[#allocation2 + $0x1c] sm:$0xf] %vm968, %v4334
      %4778 = vst.msk [vmem:[#allocation2 + $0x28] sm:$0xf] %vm968, %v4336
      %4779 = vst.msk [vmem:[#allocation2 + $0x34] sm:$0xf] %vm968, %v4338
      %4780 = vst.msk [vmem:[#allocation2 + $0x40] sm:$0xf] %vm968, %v4340
      %4781 = vst.msk [vmem:[#allocation2 + $0x4c] sm:$0xf] %vm968, %v4342
      %4782 = vst.msk [vmem:[#allocation2 + $0x58] sm:$0xf] %vm968, %v4344
      %4783 = vst.msk [vmem:[#allocation2 + $0x64] sm:$0xf] %vm968, %v4346
      %4784 = vst.msk [vmem:[#allocation2 + $0x70] sm:$0xf] %vm968, %v4348
      %4785 = vst.msk [vmem:[#allocation2 + $0x7c] sm:$0xf] %vm968, %v4350
      %4786 = vst.msk [vmem:[#allocation2 + $0x88] sm:$0xf] %vm968, %v4352
      %4787 = vst.msk [vmem:[#allocation2 + $0x94] sm:$0xf] %vm968, %v4354
      %4788 = vst.msk [vmem:[#allocation2 + $0xa0] sm:$0xf] %vm968, %v4356
      %4789 = vst.msk [vmem:[#allocation2 + $0xac] sm:$0xf] %vm968, %v4358
      %4790 = vst.msk [vmem:[#allocation2 + $0xb8] sm:$0xf] %vm968, %v4360
      %4791 = vst.msk [vmem:[#allocation2 + $0xc4] sm:$0xf] %vm968, %v4326
      %4792 = vst.msk [vmem:[#allocation2 + $0xd0] sm:$0xf] %vm968, %v4328
      %v4793 = vpack.c.bf16 %v4645, %v4646
      %v4794 = vpack.c.bf16 %v4643, %v4644
      %v4795 = vpack.c.bf16 %v4641, %v4642
      %v4796 = vpack.c.bf16 %v4639, %v4640
      %v4797 = vpack.c.bf16 %v4637, %v4638
      %v4798 = vpack.c.bf16 %v4635, %v4636
      %v4799 = vpack.c.bf16 %v4633, %v4634
      %v4800 = vpack.c.bf16 %v4631, %v4632
      %v4801 = vpack.c.bf16 %v4647, %v4648
      %v4811 = vunpack.c.l.b16 %v4793
      %v4812 = vunpack.c.h.b16 %v4793
      %v4813 = vunpack.c.l.b16 %v4794
      %v4814 = vunpack.c.h.b16 %v4794
      %v4815 = vunpack.c.l.b16 %v4795
      %v4816 = vunpack.c.h.b16 %v4795
      %v4817 = vunpack.c.l.b16 %v4796
      %v4818 = vunpack.c.h.b16 %v4796
      %v4819 = vunpack.c.l.b16 %v4797
      %v4820 = vunpack.c.h.b16 %v4797
      %v4821 = vunpack.c.l.b16 %v4798
      %v4822 = vunpack.c.h.b16 %v4798
      %v4823 = vunpack.c.l.b16 %v4799
      %v4824 = vunpack.c.h.b16 %v4799
      %v4825 = vunpack.c.l.b16 %v4800
      %v4826 = vunpack.c.h.b16 %v4800
      %v4827 = vunpack.c.l.b16 %v4801
      %v4828 = vunpack.c.h.b16 %v4801
      %v4829 = vpack.c.b16 %v4811, %v4811
      %v4830 = vpack.c.b16 %v4812, %v4812
      %v4831 = vpack.c.b16 %v4813, %v4813
      %v4832 = vpack.c.b16 %v4814, %v4814
      %v4833 = vpack.c.b16 %v4815, %v4815
      %v4834 = vpack.c.b16 %v4816, %v4816
      %v4835 = vpack.c.b16 %v4817, %v4817
      %v4836 = vpack.c.b16 %v4818, %v4818
      %v4837 = vpack.c.b16 %v4819, %v4819
      %v4838 = vpack.c.b16 %v4820, %v4820
      %v4839 = vpack.c.b16 %v4821, %v4821
      %v4840 = vpack.c.b16 %v4822, %v4822
      %v4841 = vpack.c.b16 %v4823, %v4823
      %v4842 = vpack.c.b16 %v4824, %v4824
      %v4843 = vpack.c.b16 %v4825, %v4825
      %v4844 = vpack.c.b16 %v4826, %v4826
      %v4845 = vpack.c.b16 %v4827, %v4827
      %v4846 = vpack.c.b16 %v4828, %v4828
      %4847 = vrot.lane.b32.xlu0 %v4829, 96
      %v4848 = vpop.permute.xlu0 %4847
      %4849 = vrot.lane.b32.xlu0 %v4830, 96
      %v4850 = vpop.permute.xlu0 %4849
      %4851 = vrot.lane.b32.xlu0 %v4831, 96
      %v4852 = vpop.permute.xlu0 %4851
      %4853 = vrot.lane.b32.xlu0 %v4832, 96
      %v4854 = vpop.permute.xlu0 %4853
      %4855 = vrot.lane.b32.xlu0 %v4833, 96
      %v4856 = vpop.permute.xlu0 %4855
      %4857 = vrot.lane.b32.xlu0 %v4834, 96
      %v4858 = vpop.permute.xlu0 %4857
      %4859 = vrot.lane.b32.xlu0 %v4835, 96
      %v4860 = vpop.permute.xlu0 %4859
      %4861 = vrot.lane.b32.xlu0 %v4836, 96
      %v4862 = vpop.permute.xlu0 %4861
      %4863 = vrot.lane.b32.xlu0 %v4837, 96
      %v4864 = vpop.permute.xlu0 %4863
      %4865 = vrot.lane.b32.xlu0 %v4838, 96
      %v4866 = vpop.permute.xlu0 %4865
      %4867 = vrot.lane.b32.xlu0 %v4839, 96
      %v4868 = vpop.permute.xlu0 %4867
      %4869 = vrot.lane.b32.xlu0 %v4840, 96
      %v4870 = vpop.permute.xlu0 %4869
      %4871 = vrot.lane.b32.xlu0 %v4841, 96
      %v4872 = vpop.permute.xlu0 %4871
      %4873 = vrot.lane.b32.xlu0 %v4842, 96
      %v4874 = vpop.permute.xlu0 %4873
      %4875 = vrot.lane.b32.xlu0 %v4843, 96
      %v4876 = vpop.permute.xlu0 %4875
      %4877 = vrot.lane.b32.xlu0 %v4844, 96
      %v4878 = vpop.permute.xlu0 %4877
      %4879 = vrot.lane.b32.xlu0 %v4845, 96
      %v4880 = vpop.permute.xlu0 %4879
      %4881 = vrot.lane.b32.xlu0 %v4846, 96
      %v4882 = vpop.permute.xlu0 %4881
      %4901 = vst.msk [vmem:[#allocation2 + $0x4] sm:$0xf] %vm1095, %v4848
      %4902 = vst.msk [vmem:[#allocation2 + $0x10] sm:$0xf] %vm1095, %v4850
      %4903 = vst.msk [vmem:[#allocation2 + $0x1c] sm:$0xf] %vm1095, %v4852
      %4904 = vst.msk [vmem:[#allocation2 + $0x28] sm:$0xf] %vm1095, %v4854
      %4905 = vst.msk [vmem:[#allocation2 + $0x34] sm:$0xf] %vm1095, %v4856
      %4906 = vst.msk [vmem:[#allocation2 + $0x40] sm:$0xf] %vm1095, %v4858
      %4907 = vst.msk [vmem:[#allocation2 + $0x4c] sm:$0xf] %vm1095, %v4860
      %4908 = vst.msk [vmem:[#allocation2 + $0x58] sm:$0xf] %vm1095, %v4862
      %4909 = vst.msk [vmem:[#allocation2 + $0x64] sm:$0xf] %vm1095, %v4864
      %4910 = vst.msk [vmem:[#allocation2 + $0x70] sm:$0xf] %vm1095, %v4866
      %4911 = vst.msk [vmem:[#allocation2 + $0x7c] sm:$0xf] %vm1095, %v4868
      %4912 = vst.msk [vmem:[#allocation2 + $0x88] sm:$0xf] %vm1095, %v4870
      %4913 = vst.msk [vmem:[#allocation2 + $0x94] sm:$0xf] %vm1095, %v4872
      %4914 = vst.msk [vmem:[#allocation2 + $0xa0] sm:$0xf] %vm1095, %v4874
      %4915 = vst.msk [vmem:[#allocation2 + $0xac] sm:$0xf] %vm1095, %v4876
      %4916 = vst.msk [vmem:[#allocation2 + $0xb8] sm:$0xf] %vm1095, %v4878
      %4917 = vst.msk [vmem:[#allocation2 + $0xc4] sm:$0xf] %vm1095, %v4880
      %4918 = vst.msk [vmem:[#allocation2 + $0xd0] sm:$0xf] %vm1095, %v4882
      %v4919 = vrot.slane %v3926, 2
      %v4920 = vrot.slane %v3927, 2
      %v4921 = vrot.slane %v3928, 2
      %v4922 = vrot.slane %v3929, 2
      %v4923 = vrot.slane %v3930, 2
      %v4924 = vrot.slane %v3931, 2
      %v4925 = vrot.slane %v3932, 2
      %v4926 = vrot.slane %v3933, 2
      %v4927 = vrot.slane %v3934, 2
      %v4928 = vrot.slane %v3935, 2
      %v4929 = vrot.slane %v3936, 2
      %v4930 = vrot.slane %v3937, 2
      %v4931 = vrot.slane %v3938, 2
      %v4932 = vrot.slane %v3939, 2
      %v4933 = vrot.slane %v3940, 2
      %v4934 = vrot.slane %v3941, 2
      %v4935 = vrot.slane %v3942, 2
      %v4936 = vrot.slane %v3943, 2
      %v4937 = vsel %vm1529, %v4935, %v4936
      %v4938 = vsel %vm1529, %v4934, %v4935
      %v4939 = vsel %vm1529, %v4933, %v4934
      %v4940 = vsel %vm1529, %v4932, %v4933
      %v4941 = vsel %vm1529, %v4931, %v4932
      %v4942 = vsel %vm1529, %v4930, %v4931
      %v4943 = vsel %vm1529, %v4929, %v4930
      %v4944 = vsel %vm1529, %v4928, %v4929
      %v4945 = vsel %vm1529, %v4927, %v4928
      %v4946 = vsel %vm1529, %v4926, %v4927
      %v4947 = vsel %vm1529, %v4925, %v4926
      %v4948 = vsel %vm1529, %v4924, %v4925
      %v4949 = vsel %vm1529, %v4923, %v4924
      %v4950 = vsel %vm1529, %v4922, %v4923
      %v4951 = vsel %vm1529, %v4921, %v4922
      %v4952 = vsel %vm1529, %v4920, %v4921
      %v4953 = vsel %vm1529, %v4919, %v4920
      %v4954 = vsel %vm1529, %v4936, %v4919
      %v4955 = vpack.c.bf16 %v4951, %v4952
      %v4956 = vpack.c.bf16 %v4949, %v4950
      %v4957 = vpack.c.bf16 %v4947, %v4948
      %v4958 = vpack.c.bf16 %v4945, %v4946
      %v4959 = vpack.c.bf16 %v4943, %v4944
      %v4960 = vpack.c.bf16 %v4941, %v4942
      %v4961 = vpack.c.bf16 %v4939, %v4940
      %v4962 = vpack.c.bf16 %v4937, %v4938
      %v4963 = vpack.c.bf16 %v4953, %v4954
      %v4973 = vunpack.c.l.b16 %v4955
      %v4974 = vunpack.c.h.b16 %v4955
      %v4975 = vunpack.c.l.b16 %v4956
      %v4976 = vunpack.c.h.b16 %v4956
      %v4977 = vunpack.c.l.b16 %v4957
      %v4978 = vunpack.c.h.b16 %v4957
      %v4979 = vunpack.c.l.b16 %v4958
      %v4980 = vunpack.c.h.b16 %v4958
      %v4981 = vunpack.c.l.b16 %v4959
      %v4982 = vunpack.c.h.b16 %v4959
      %v4983 = vunpack.c.l.b16 %v4960
      %v4984 = vunpack.c.h.b16 %v4960
      %v4985 = vunpack.c.l.b16 %v4961
      %v4986 = vunpack.c.h.b16 %v4961
      %v4987 = vunpack.c.l.b16 %v4962
      %v4988 = vunpack.c.h.b16 %v4962
      %v4989 = vunpack.c.l.b16 %v4963
      %v4990 = vunpack.c.h.b16 %v4963
      %v4991 = vpack.c.b16 %v4973, %v4973
      %v4992 = vpack.c.b16 %v4974, %v4974
      %v4993 = vpack.c.b16 %v4975, %v4975
      %v4994 = vpack.c.b16 %v4976, %v4976
      %v4995 = vpack.c.b16 %v4977, %v4977
      %v4996 = vpack.c.b16 %v4978, %v4978
      %v4997 = vpack.c.b16 %v4979, %v4979
      %v4998 = vpack.c.b16 %v4980, %v4980
      %v4999 = vpack.c.b16 %v4981, %v4981
      %v5000 = vpack.c.b16 %v4982, %v4982
      %v5001 = vpack.c.b16 %v4983, %v4983
      %v5002 = vpack.c.b16 %v4984, %v4984
      %v5003 = vpack.c.b16 %v4985, %v4985
      %v5004 = vpack.c.b16 %v4986, %v4986
      %v5005 = vpack.c.b16 %v4987, %v4987
      %v5006 = vpack.c.b16 %v4988, %v4988
      %v5007 = vpack.c.b16 %v4989, %v4989
      %v5008 = vpack.c.b16 %v4990, %v4990
      %5027 = vst.msk [vmem:[#allocation2 + $0x8] sm:$0xf] %vm677, %v4991
      %5028 = vst.msk [vmem:[#allocation2 + $0x14] sm:$0xf] %vm677, %v4992
      %5029 = vst.msk [vmem:[#allocation2 + $0x20] sm:$0xf] %vm677, %v4993
      %5030 = vst.msk [vmem:[#allocation2 + $0x2c] sm:$0xf] %vm677, %v4994
      %5031 = vst.msk [vmem:[#allocation2 + $0x38] sm:$0xf] %vm677, %v4995
      %5032 = vst.msk [vmem:[#allocation2 + $0x44] sm:$0xf] %vm677, %v4996
      %5033 = vst.msk [vmem:[#allocation2 + $0x50] sm:$0xf] %vm677, %v4997
      %5034 = vst.msk [vmem:[#allocation2 + $0x5c] sm:$0xf] %vm677, %v4998
      %5035 = vst.msk [vmem:[#allocation2 + $0x68] sm:$0xf] %vm677, %v4999
      %5036 = vst.msk [vmem:[#allocation2 + $0x74] sm:$0xf] %vm677, %v5000
      %5037 = vst.msk [vmem:[#allocation2 + $0x80] sm:$0xf] %vm677, %v5001
      %5038 = vst.msk [vmem:[#allocation2 + $0x8c] sm:$0xf] %vm677, %v5002
      %5039 = vst.msk [vmem:[#allocation2 + $0x98] sm:$0xf] %vm677, %v5003
      %5040 = vst.msk [vmem:[#allocation2 + $0xa4] sm:$0xf] %vm677, %v5004
      %5041 = vst.msk [vmem:[#allocation2 + $0xb0] sm:$0xf] %vm677, %v5005
      %5042 = vst.msk [vmem:[#allocation2 + $0xbc] sm:$0xf] %vm677, %v5006
      %5043 = vst.msk [vmem:[#allocation2 + $0xc8] sm:$0xf] %vm677, %v5007
      %5044 = vst.msk [vmem:[#allocation2 + $0xd4] sm:$0xf] %vm677, %v5008
      %v5045 = vld [vmem:[#allocation2] sm:$0xff]
      %v5046 = vld [vmem:[#allocation2 + $0x8] sm:$0xf]
      %v5047 = vld [vmem:[#allocation2 + $0xc] sm:$0xff]
      %v5048 = vld [vmem:[#allocation2 + $0x14] sm:$0xf]
      %v5049 = vld [vmem:[#allocation2 + $0x18] sm:$0xff]
      %v5050 = vld [vmem:[#allocation2 + $0x20] sm:$0xf]
      %v5051 = vld [vmem:[#allocation2 + $0x24] sm:$0xff]
      %v5052 = vld [vmem:[#allocation2 + $0x2c] sm:$0xf]
      %v5053 = vld [vmem:[#allocation2 + $0x30] sm:$0xff]
      %v5054 = vld [vmem:[#allocation2 + $0x38] sm:$0xf]
      %v5055 = vld [vmem:[#allocation2 + $0x3c] sm:$0xff]
      %v5056 = vld [vmem:[#allocation2 + $0x44] sm:$0xf]
      %v5057 = vld [vmem:[#allocation2 + $0x48] sm:$0xff]
      %v5058 = vld [vmem:[#allocation2 + $0x50] sm:$0xf]
      %v5059 = vld [vmem:[#allocation2 + $0x54] sm:$0xff]
      %v5060 = vld [vmem:[#allocation2 + $0x5c] sm:$0xf]
      %v5061 = vld [vmem:[#allocation2 + $0x60] sm:$0xff]
      %v5062 = vld [vmem:[#allocation2 + $0x68] sm:$0xf]
      %v5063 = vld [vmem:[#allocation2 + $0x6c] sm:$0xff]
      %v5064 = vld [vmem:[#allocation2 + $0x74] sm:$0xf]
      %v5065 = vld [vmem:[#allocation2 + $0x78] sm:$0xff]
      %v5066 = vld [vmem:[#allocation2 + $0x80] sm:$0xf]
      %v5067 = vld [vmem:[#allocation2 + $0x84] sm:$0xff]
      %v5068 = vld [vmem:[#allocation2 + $0x8c] sm:$0xf]
      %v5069 = vld [vmem:[#allocation2 + $0x90] sm:$0xff]
      %v5070 = vld [vmem:[#allocation2 + $0x98] sm:$0xf]
      %v5071 = vld [vmem:[#allocation2 + $0x9c] sm:$0xff]
      %v5072 = vld [vmem:[#allocation2 + $0xa4] sm:$0xf]
      %v5073 = vld [vmem:[#allocation2 + $0xa8] sm:$0xff]
      %v5074 = vld [vmem:[#allocation2 + $0xb0] sm:$0xf]
      %v5075 = vld [vmem:[#allocation2 + $0xb4] sm:$0xff]
      %v5076 = vld [vmem:[#allocation2 + $0xbc] sm:$0xf]
      %v5077 = vld [vmem:[#allocation2 + $0xc0] sm:$0xff]
      %v5078 = vld [vmem:[#allocation2 + $0xc8] sm:$0xf]
      %v5079 = vld [vmem:[#allocation2 + $0xcc] sm:$0xff]
      %v5080 = vld [vmem:[#allocation2 + $0xd4] sm:$0xf]
      %v5082 = vlaneseq
      %v5083 = vshrl.u32 %v5082, 7
      %v5084 = vsub.s32 0, %v5083
      %v5085 = vrot.slane %v3982, %v5084
      %v5123 = vunpack.c.l.b16 %v5045
      %v5124 = vunpack.c.h.b16 %v5045
      %v5125 = vunpack.c.l.b16 %v5046
      %v5126 = vunpack.c.l.b16 %v5047
      %v5127 = vunpack.c.h.b16 %v5047
      %v5128 = vunpack.c.l.b16 %v5048
      %v5129 = vunpack.c.l.b16 %v5049
      %v5130 = vunpack.c.h.b16 %v5049
      %v5131 = vunpack.c.l.b16 %v5050
      %v5132 = vunpack.c.l.b16 %v5051
      %v5133 = vunpack.c.h.b16 %v5051
      %v5134 = vunpack.c.l.b16 %v5052
      %v5135 = vunpack.c.l.b16 %v5053
      %v5136 = vunpack.c.h.b16 %v5053
      %v5137 = vunpack.c.l.b16 %v5054
      %v5138 = vunpack.c.l.b16 %v5055
      %v5139 = vunpack.c.h.b16 %v5055
      %v5140 = vunpack.c.l.b16 %v5056
      %v5141 = vunpack.c.l.b16 %v5057
      %v5142 = vunpack.c.h.b16 %v5057
      %v5143 = vunpack.c.l.b16 %v5058
      %v5144 = vunpack.c.l.b16 %v5059
      %v5145 = vunpack.c.h.b16 %v5059
      %v5146 = vunpack.c.l.b16 %v5060
      %v5147 = vunpack.c.l.b16 %v5061
      %v5148 = vunpack.c.h.b16 %v5061
      %v5149 = vunpack.c.l.b16 %v5062
      %v5150 = vunpack.c.l.b16 %v5063
      %v5151 = vunpack.c.h.b16 %v5063
      %v5152 = vunpack.c.l.b16 %v5064
      %v5153 = vunpack.c.l.b16 %v5065
      %v5154 = vunpack.c.h.b16 %v5065
      %v5155 = vunpack.c.l.b16 %v5066
      %v5156 = vunpack.c.l.b16 %v5067
      %v5157 = vunpack.c.h.b16 %v5067
      %v5158 = vunpack.c.l.b16 %v5068
      %v5159 = vunpack.c.l.b16 %v5069
      %v5160 = vunpack.c.h.b16 %v5069
      %v5161 = vunpack.c.l.b16 %v5070
      %v5162 = vunpack.c.l.b16 %v5071
      %v5163 = vunpack.c.h.b16 %v5071
      %v5164 = vunpack.c.l.b16 %v5072
      %v5165 = vunpack.c.l.b16 %v5073
      %v5166 = vunpack.c.h.b16 %v5073
      %v5167 = vunpack.c.l.b16 %v5074
      %v5168 = vunpack.c.l.b16 %v5075
      %v5169 = vunpack.c.h.b16 %v5075
      %v5170 = vunpack.c.l.b16 %v5076
      %v5171 = vunpack.c.l.b16 %v5077
      %v5172 = vunpack.c.h.b16 %v5077
      %v5173 = vunpack.c.l.b16 %v5078
      %v5174 = vunpack.c.l.b16 %v5079
      %v5175 = vunpack.c.h.b16 %v5079
      %v5176 = vunpack.c.l.b16 %v5080
      %v5177 = vpack.c.b16 %v5126, %v5123
      %v5178 = vpack.c.b16 %v5127, %v5124
      %v5179 = vpack.c.b16 %v5128, %v5125
      %v5180 = vpack.c.b16 %v5132, %v5129
      %v5181 = vpack.c.b16 %v5133, %v5130
      %v5182 = vpack.c.b16 %v5134, %v5131
      %v5183 = vpack.c.b16 %v5138, %v5135
      %v5184 = vpack.c.b16 %v5139, %v5136
      %v5185 = vpack.c.b16 %v5140, %v5137
      %v5186 = vpack.c.b16 %v5144, %v5141
      %v5187 = vpack.c.b16 %v5145, %v5142
      %v5188 = vpack.c.b16 %v5146, %v5143
      %v5189 = vpack.c.b16 %v5150, %v5147
      %v5190 = vpack.c.b16 %v5151, %v5148
      %v5191 = vpack.c.b16 %v5152, %v5149
      %v5192 = vpack.c.b16 %v5156, %v5153
      %v5193 = vpack.c.b16 %v5157, %v5154
      %v5194 = vpack.c.b16 %v5158, %v5155
      %v5195 = vpack.c.b16 %v5162, %v5159
      %v5196 = vpack.c.b16 %v5163, %v5160
      %v5197 = vpack.c.b16 %v5164, %v5161
      %v5198 = vpack.c.b16 %v5168, %v5165
      %v5199 = vpack.c.b16 %v5169, %v5166
      %v5200 = vpack.c.b16 %v5170, %v5167
      %v5201 = vpack.c.b16 %v5174, %v5171
      %v5202 = vpack.c.b16 %v5175, %v5172
      %v5203 = vpack.c.b16 %v5176, %v5173
      %v5258 = vunpack.c.l.b16 %v3945
      %v5259 = vunpack.c.l.b16 %v3946
      %v5260 = vunpack.c.l.b16 %v3947
      %v5261 = vunpack.c.l.b16 %v3948
      %v5262 = vunpack.c.l.b16 %v3949
      %v5263 = vunpack.c.l.b16 %v3950
      %v5264 = vunpack.c.l.b16 %v3951
      %v5265 = vunpack.c.l.b16 %v3952
      %v5266 = vunpack.c.l.b16 %v3953
      %v5267 = vunpack.c.l.b16 %v3954
      %v5268 = vunpack.c.l.b16 %v3955
      %v5269 = vunpack.c.l.b16 %v3956
      %v5270 = vunpack.c.l.b16 %v3957
      %v5271 = vunpack.c.l.b16 %v3958
      %v5272 = vunpack.c.l.b16 %v3959
      %v5273 = vunpack.c.l.b16 %v3960
      %v5274 = vunpack.c.l.b16 %v3961
      %v5275 = vunpack.c.l.b16 %v3962
      %v5276 = vunpack.c.l.b16 %v3963
      %v5277 = vunpack.c.l.b16 %v3964
      %v5278 = vunpack.c.l.b16 %v3965
      %v5279 = vunpack.c.l.b16 %v3966
      %v5280 = vunpack.c.l.b16 %v3967
      %v5281 = vunpack.c.l.b16 %v3968
      %v5282 = vunpack.c.l.b16 %v3969
      %v5283 = vunpack.c.l.b16 %v3970
      %v5284 = vunpack.c.l.b16 %v3971
      %v5285 = vunpack.c.l.b16 %v3972
      %v5286 = vunpack.c.l.b16 %v3973
      %v5287 = vunpack.c.l.b16 %v3974
      %v5288 = vunpack.c.l.b16 %v3975
      %v5289 = vunpack.c.l.b16 %v3976
      %v5290 = vunpack.c.l.b16 %v3977
      %v5291 = vunpack.c.l.b16 %v3978
      %v5292 = vunpack.c.l.b16 %v3979
      %v5293 = vunpack.c.l.b16 %v3980
      %v5294 = vpack.c.b16 %v5259, %v5258
      %v5295 = vpack.c.b16 %v5261, %v5260
      %v5296 = vpack.c.b16 %v5263, %v5262
      %v5297 = vpack.c.b16 %v5265, %v5264
      %v5298 = vpack.c.b16 %v5267, %v5266
      %v5299 = vpack.c.b16 %v5269, %v5268
      %v5300 = vpack.c.b16 %v5271, %v5270
      %v5301 = vpack.c.b16 %v5273, %v5272
      %v5302 = vpack.c.b16 %v5275, %v5274
      %v5303 = vpack.c.b16 %v5277, %v5276
      %v5304 = vpack.c.b16 %v5279, %v5278
      %v5305 = vpack.c.b16 %v5281, %v5280
      %v5306 = vpack.c.b16 %v5283, %v5282
      %v5307 = vpack.c.b16 %v5285, %v5284
      %v5308 = vpack.c.b16 %v5287, %v5286
      %v5309 = vpack.c.b16 %v5289, %v5288
      %v5310 = vpack.c.b16 %v5291, %v5290
      %v5311 = vpack.c.b16 %v5293, %v5292
      %v5331 = vsel %vm1923, %v5179, 0
      %v5334 = vsel %vm1923, %v5182, 0
      %v5337 = vsel %vm1923, %v5185, 0
      %v5340 = vsel %vm1923, %v5188, 0
      %v5343 = vsel %vm1923, %v5191, 0
      %v5346 = vsel %vm1923, %v5194, 0
      %v5349 = vsel %vm1923, %v5197, 0
      %v5352 = vsel %vm1923, %v5200, 0
      %v5355 = vsel %vm1923, %v5203, 0
      %5357 = vmatprep.subr.bf16.mxu0 0
      %5358 = vmatpush1.bf16.msra.mxu0 %v5301
      %5359 = vmatprep.subr.bf16.mxu0 0
      %5360 = vmatpush1.bf16.msra.mxu0 %v5300
      %5361 = vmatprep.subr.bf16.mxu0 0
      %5362 = vmatpush1.bf16.msra.mxu0 %v5299
      %5363 = vmatprep.subr.bf16.mxu0 0
      %5364 = vmatpush1.bf16.msra.mxu0 %v5298
      %5365 = vmatprep.subr.bf16.mxu0 0
      %5366 = vmatpush1.bf16.msra.mxu0 %v5297
      %5367 = vmatprep.subr.bf16.mxu0 0
      %5368 = vmatpush1.bf16.msra.mxu0 %v5296
      %5369 = vmatprep.subr.bf16.mxu0 0
      %5370 = vmatpush1.bf16.msra.mxu0 %v5295
      %5371 = vmatprep.subr.bf16.mxu0 0
      %5372 = vmatpush1.bf16.msra.mxu0 %v5294
      %5373 = vmatprep.subr.bf16.mxu0 0
      %5374 = vmatpush2.bf16.msra.mxu0 %v5309
      %5375 = vmatprep.subr.bf16.mxu0 0
      %5376 = vmatpush2.bf16.msra.mxu0 %v5308
      %5377 = vmatprep.subr.bf16.mxu0 0
      %5378 = vmatpush2.bf16.msra.mxu0 %v5307
      %5379 = vmatprep.subr.bf16.mxu0 0
      %5380 = vmatpush2.bf16.msra.mxu0 %v5306
      %5381 = vmatprep.subr.bf16.mxu0 0
      %5382 = vmatpush2.bf16.msra.mxu0 %v5305
      %5383 = vmatprep.subr.bf16.mxu0 0
      %5384 = vmatpush2.bf16.msra.mxu0 %v5304
      %5385 = vmatprep.subr.bf16.mxu0 0
      %5386 = vmatpush2.bf16.msra.mxu0 %v5303
      %5387 = vmatprep.subr.bf16.mxu0 0
      %5388 = vmatpush2.bf16.msra.mxu0 %v5302
      %5389 = vmatprep.mubr.bf16.mxu0 %v5178
      %5390 = vmatmul.mubr.bf16.gmra.mxu0 %v5177
      %v5391 = vpop.f32.mrf.mxu0
      %v5392 = vadd.f32 %v5085, %v5391
      %v5393 = vpop.f32.mrf.mxu0
      %v5394 = vpop.f32.mrf.mxu0
      %v5395 = vadd.f32 %v5085, %v5394
      %v5396 = vpop.f32.mrf.mxu0
      %5397 = vmatprep.mubr.bf16.mxu0 %v5181
      %5398 = vmatmul.mubr.bf16.gmra.mxu0 %v5180
      %v5399 = vpop.f32.mrf.mxu0
      %v5400 = vadd.f32 %v5085, %v5399
      %v5401 = vpop.f32.mrf.mxu0
      %v5402 = vpop.f32.mrf.mxu0
      %v5403 = vadd.f32 %v5085, %v5402
      %v5404 = vpop.f32.mrf.mxu0
      %5405 = vmatprep.mubr.bf16.mxu0 %v5184
      %5406 = vmatmul.mubr.bf16.gmra.mxu0 %v5183
      %v5407 = vpop.f32.mrf.mxu0
      %v5408 = vadd.f32 %v5085, %v5407
      %v5409 = vpop.f32.mrf.mxu0
      %v5410 = vpop.f32.mrf.mxu0
      %v5411 = vadd.f32 %v5085, %v5410
      %v5412 = vpop.f32.mrf.mxu0
      %5413 = vmatprep.mubr.bf16.mxu0 %v5187
      %5414 = vmatmul.mubr.bf16.gmra.mxu0 %v5186
      %v5415 = vpop.f32.mrf.mxu0
      %v5416 = vadd.f32 %v5085, %v5415
      %v5417 = vpop.f32.mrf.mxu0
      %v5418 = vpop.f32.mrf.mxu0
      %v5419 = vadd.f32 %v5085, %v5418
      %v5420 = vpop.f32.mrf.mxu0
      %5421 = vmatprep.mubr.bf16.mxu0 %v5190
      %5422 = vmatmul.mubr.bf16.gmra.mxu0 %v5189
      %v5423 = vpop.f32.mrf.mxu0
      %v5424 = vadd.f32 %v5085, %v5423
      %v5425 = vpop.f32.mrf.mxu0
      %v5426 = vpop.f32.mrf.mxu0
      %v5427 = vadd.f32 %v5085, %v5426
      %v5428 = vpop.f32.mrf.mxu0
      %5429 = vmatprep.mubr.bf16.mxu0 %v5193
      %5430 = vmatmul.mubr.bf16.gmra.mxu0 %v5192
      %v5431 = vpop.f32.mrf.mxu0
      %v5432 = vadd.f32 %v5085, %v5431
      %v5433 = vpop.f32.mrf.mxu0
      %v5434 = vpop.f32.mrf.mxu0
      %v5435 = vadd.f32 %v5085, %v5434
      %v5436 = vpop.f32.mrf.mxu0
      %5437 = vmatprep.mubr.bf16.mxu0 %v5196
      %5438 = vmatmul.mubr.bf16.gmra.mxu0 %v5195
      %v5439 = vpop.f32.mrf.mxu0
      %v5440 = vadd.f32 %v5085, %v5439
      %v5441 = vpop.f32.mrf.mxu0
      %v5442 = vpop.f32.mrf.mxu0
      %v5443 = vadd.f32 %v5085, %v5442
      %v5444 = vpop.f32.mrf.mxu0
      %5445 = vmatprep.mubr.bf16.mxu0 %v5199
      %5446 = vmatmul.mubr.bf16.gmra.mxu0 %v5198
      %v5447 = vpop.f32.mrf.mxu0
      %v5448 = vadd.f32 %v5085, %v5447
      %v5449 = vpop.f32.mrf.mxu0
      %v5450 = vpop.f32.mrf.mxu0
      %v5451 = vadd.f32 %v5085, %v5450
      %v5452 = vpop.f32.mrf.mxu0
      %5453 = vmatprep.mubr.bf16.mxu0 %v5202
      %5454 = vmatmul.mubr.bf16.gmra.mxu0 %v5201
      %v5455 = vpop.f32.mrf.mxu0
      %v5456 = vadd.f32 %v5085, %v5455
      %v5457 = vpop.f32.mrf.mxu0
      %v5458 = vpop.f32.mrf.mxu0
      %v5459 = vadd.f32 %v5085, %v5458
      %v5460 = vpop.f32.mrf.mxu0
      %5461 = vdwg.mxu0
      %5462 = vmatprep.subr.bf16.mxu0 0
      %5463 = vmatpush1.bf16.msra.mxu0 0
      %5464 = vmatprep.subr.bf16.mxu0 0
      %5465 = vmatpush1.bf16.msra.mxu0 0
      %5466 = vmatprep.subr.bf16.mxu0 0
      %5467 = vmatpush1.bf16.msra.mxu0 0
      %5468 = vmatprep.subr.bf16.mxu0 0
      %5469 = vmatpush1.bf16.msra.mxu0 0
      %5470 = vmatprep.subr.bf16.mxu0 0
      %5471 = vmatpush1.bf16.msra.mxu0 0
      %5472 = vmatprep.subr.bf16.mxu0 0
      %5473 = vmatpush1.bf16.msra.mxu0 0
      %5474 = vmatprep.subr.bf16.mxu0 0
      %5475 = vmatpush1.bf16.msra.mxu0 %v5311
      %5476 = vmatprep.subr.bf16.mxu0 0
      %5477 = vmatpush1.bf16.msra.mxu0 %v5310
      %5478 = vmatprep.subr.bf16.mxu0 0
      %5479 = vmatpush2.bf16.msra.mxu0 0
      %5480 = vmatprep.subr.bf16.mxu0 0
      %5481 = vmatpush2.bf16.msra.mxu0 0
      %5482 = vmatprep.subr.bf16.mxu0 0
      %5483 = vmatpush2.bf16.msra.mxu0 0
      %5484 = vmatprep.subr.bf16.mxu0 0
      %5485 = vmatpush2.bf16.msra.mxu0 0
      %5486 = vmatprep.subr.bf16.mxu0 0
      %5487 = vmatpush2.bf16.msra.mxu0 0
      %5488 = vmatprep.subr.bf16.mxu0 0
      %5489 = vmatpush2.bf16.msra.mxu0 0
      %5490 = vmatprep.subr.bf16.mxu0 0
      %5491 = vmatpush2.bf16.msra.mxu0 0
      %5492 = vmatprep.subr.bf16.mxu0 0
      %5493 = vmatpush2.bf16.msra.mxu0 0
      %5494 = vmatprep.mubr.bf16.mxu0 0
      %5495 = vmatmul.mubr.bf16.gmra.mxu0 %v5331
      %v5496 = vpop.f32.mrf.mxu0
      %v5497 = vadd.f32 %v5392, %v5496
      %v5498 = vpop.f32.mrf.mxu0
      %v5499 = vpop.f32.mrf.mxu0
      %v5500 = vadd.f32 %v5395, %v5499
      %v5501 = vpop.f32.mrf.mxu0
      %5502 = vmatprep.mubr.bf16.mxu0 0
      %5503 = vmatmul.mubr.bf16.gmra.mxu0 %v5334
      %v5504 = vpop.f32.mrf.mxu0
      %v5505 = vadd.f32 %v5400, %v5504
      %v5506 = vpop.f32.mrf.mxu0
      %v5507 = vpop.f32.mrf.mxu0
      %v5508 = vadd.f32 %v5403, %v5507
      %v5509 = vpop.f32.mrf.mxu0
      %5510 = vmatprep.mubr.bf16.mxu0 0
      %5511 = vmatmul.mubr.bf16.gmra.mxu0 %v5337
      %v5512 = vpop.f32.mrf.mxu0
      %v5513 = vadd.f32 %v5408, %v5512
      %v5514 = vpop.f32.mrf.mxu0
      %v5515 = vpop.f32.mrf.mxu0
      %v5516 = vadd.f32 %v5411, %v5515
      %v5517 = vpop.f32.mrf.mxu0
      %5518 = vmatprep.mubr.bf16.mxu0 0
      %5519 = vmatmul.mubr.bf16.gmra.mxu0 %v5340
      %v5520 = vpop.f32.mrf.mxu0
      %v5521 = vadd.f32 %v5416, %v5520
      %v5522 = vpop.f32.mrf.mxu0
      %v5523 = vpop.f32.mrf.mxu0
      %v5524 = vadd.f32 %v5419, %v5523
      %v5525 = vpop.f32.mrf.mxu0
      %5526 = vmatprep.mubr.bf16.mxu0 0
      %5527 = vmatmul.mubr.bf16.gmra.mxu0 %v5343
      %v5528 = vpop.f32.mrf.mxu0
      %v5529 = vadd.f32 %v5424, %v5528
      %v5530 = vpop.f32.mrf.mxu0
      %v5531 = vpop.f32.mrf.mxu0
      %v5532 = vadd.f32 %v5427, %v5531
      %v5533 = vpop.f32.mrf.mxu0
      %5534 = vmatprep.mubr.bf16.mxu0 0
      %5535 = vmatmul.mubr.bf16.gmra.mxu0 %v5346
      %v5536 = vpop.f32.mrf.mxu0
      %v5537 = vadd.f32 %v5432, %v5536
      %v5538 = vpop.f32.mrf.mxu0
      %v5539 = vpop.f32.mrf.mxu0
      %v5540 = vadd.f32 %v5435, %v5539
      %v5541 = vpop.f32.mrf.mxu0
      %5542 = vmatprep.mubr.bf16.mxu0 0
      %5543 = vmatmul.mubr.bf16.gmra.mxu0 %v5349
      %v5544 = vpop.f32.mrf.mxu0
      %v5545 = vadd.f32 %v5440, %v5544
      %v5546 = vpop.f32.mrf.mxu0
      %v5547 = vpop.f32.mrf.mxu0
      %v5548 = vadd.f32 %v5443, %v5547
      %v5549 = vpop.f32.mrf.mxu0
      %5550 = vmatprep.mubr.bf16.mxu0 0
      %5551 = vmatmul.mubr.bf16.gmra.mxu0 %v5352
      %v5552 = vpop.f32.mrf.mxu0
      %v5553 = vadd.f32 %v5448, %v5552
      %v5554 = vpop.f32.mrf.mxu0
      %v5555 = vpop.f32.mrf.mxu0
      %v5556 = vadd.f32 %v5451, %v5555
      %v5557 = vpop.f32.mrf.mxu0
      %5558 = vmatprep.mubr.bf16.mxu0 0
      %5559 = vmatmul.mubr.bf16.gmra.mxu0 %v5355
      %v5560 = vpop.f32.mrf.mxu0
      %v5561 = vadd.f32 %v5456, %v5560
      %v5562 = vpop.f32.mrf.mxu0
      %v5563 = vpop.f32.mrf.mxu0
      %v5564 = vadd.f32 %v5459, %v5563
      %v5565 = vpop.f32.mrf.mxu0
      %5566 = vdwg.mxu0
      %v5567 = vadd.f32 %v5497, %v2269
      %v5568 = vadd.f32 %v5500, %v2270
      %v5569 = vadd.f32 %v5505, %v2271
      %v5570 = vadd.f32 %v5508, %v2272
      %v5571 = vadd.f32 %v5513, %v2273
      %v5572 = vadd.f32 %v5516, %v2274
      %v5573 = vadd.f32 %v5521, %v2275
      %v5574 = vadd.f32 %v5524, %v2276
      %v5575 = vadd.f32 %v5529, %v2277
      %v5576 = vadd.f32 %v5532, %v2278
      %v5577 = vadd.f32 %v5537, %v2279
      %v5578 = vadd.f32 %v5540, %v2280
      %v5579 = vadd.f32 %v5545, %v2281
      %v5580 = vadd.f32 %v5548, %v2282
      %v5581 = vadd.f32 %v5553, %v2283
      %v5582 = vadd.f32 %v5556, %v2284
      %v5583 = vadd.f32 %v5561, %v2285
      %v5584 = vadd.f32 %v5564, %v2286
      %v5585 = vmax.f32 %v5567, 0.0
      %v5586 = vmax.f32 %v5568, 0.0
      %v5587 = vmax.f32 %v5569, 0.0
      %v5588 = vmax.f32 %v5570, 0.0
      %v5589 = vmax.f32 %v5571, 0.0
      %v5590 = vmax.f32 %v5572, 0.0
      %v5591 = vmax.f32 %v5573, 0.0
      %v5592 = vmax.f32 %v5574, 0.0
      %v5593 = vmax.f32 %v5575, 0.0
      %v5594 = vmax.f32 %v5576, 0.0
      %v5595 = vmax.f32 %v5577, 0.0
      %v5596 = vmax.f32 %v5578, 0.0
      %v5597 = vmax.f32 %v5579, 0.0
      %v5598 = vmax.f32 %v5580, 0.0
      %v5599 = vmax.f32 %v5581, 0.0
      %v5600 = vmax.f32 %v5582, 0.0
      %v5601 = vmax.f32 %v5583, 0.0
      %v5602 = vmax.f32 %v5584, 0.0
      %v5603 = vmul.f32 %v5585, %v2182
      %v5604 = vmul.f32 %v5586, %v2187
      %v5605 = vmul.f32 %v5587, %v2192
      %v5606 = vmul.f32 %v5588, %v2197
      %v5607 = vmul.f32 %v5589, %v2202
      %v5608 = vmul.f32 %v5590, %v2207
      %v5609 = vmul.f32 %v5591, %v2212
      %v5610 = vmul.f32 %v5592, %v2217
      %v5611 = vmul.f32 %v5593, %v2222
      %v5612 = vmul.f32 %v5594, %v2227
      %v5613 = vmul.f32 %v5595, %v2232
      %v5614 = vmul.f32 %v5596, %v2237
      %v5615 = vmul.f32 %v5597, %v2242
      %v5616 = vmul.f32 %v5598, %v2247
      %v5617 = vmul.f32 %v5599, %v2252
      %v5618 = vmul.f32 %v5600, %v2257
      %v5619 = vmul.f32 %v5601, %v2262
      %v5620 = vmul.f32 %v5602, %v2267
      %s5621 = scalar_lea.vmem %s4, 288
      %v5622 = vld [vmem:[%s5621] sm:$0xf]
      %v5623 = vld [vmem:[%s5621 + $0x4] sm:$0xf]
      %v5624 = vld [vmem:[%s5621 + $0x8] sm:$0xf]
      %v5625 = vld [vmem:[%s5621 + $0xc] sm:$0xf]
      %v5626 = vld [vmem:[%s5621 + $0x10] sm:$0xf]
      %v5627 = vld [vmem:[%s5621 + $0x14] sm:$0xf]
      %v5628 = vld [vmem:[%s5621 + $0x18] sm:$0xf]
      %v5629 = vld [vmem:[%s5621 + $0x1c] sm:$0xf]
      %v5630 = vld [vmem:[%s5621 + $0x20] sm:$0xf]
      %v5631 = vld [vmem:[%s5621 + $0x24] sm:$0xf]
      %v5632 = vld [vmem:[%s5621 + $0x28] sm:$0xf]
      %v5633 = vld [vmem:[%s5621 + $0x2c] sm:$0xf]
      %v5634 = vld [vmem:[%s5621 + $0x30] sm:$0xf]
      %v5635 = vld [vmem:[%s5621 + $0x34] sm:$0xf]
      %v5636 = vld [vmem:[%s5621 + $0x38] sm:$0xf]
      %v5637 = vld [vmem:[%s5621 + $0x3c] sm:$0xf]
      %v5638 = vld [vmem:[%s5621 + $0x40] sm:$0xf]
      %v5639 = vld [vmem:[%s5621 + $0x44] sm:$0xf]
      %v5640 = vld [vmem:[%s5621 + $0x48] sm:$0xf]
      %v5641 = vld [vmem:[%s5621 + $0x4c] sm:$0xf]
      %v5642 = vld [vmem:[%s5621 + $0x50] sm:$0xf]
      %v5643 = vld [vmem:[%s5621 + $0x54] sm:$0xf]
      %v5644 = vld [vmem:[%s5621 + $0x58] sm:$0xf]
      %v5645 = vld [vmem:[%s5621 + $0x5c] sm:$0xf]
      %v5646 = vld [vmem:[%s5621 + $0x60] sm:$0xf]
      %v5647 = vld [vmem:[%s5621 + $0x64] sm:$0xf]
      %v5648 = vld [vmem:[%s5621 + $0x68] sm:$0xf]
      %v5649 = vld [vmem:[%s5621 + $0x6c] sm:$0xf]
      %v5650 = vld [vmem:[%s5621 + $0x70] sm:$0xf]
      %v5651 = vld [vmem:[%s5621 + $0x74] sm:$0xf]
      %v5652 = vld [vmem:[%s5621 + $0x78] sm:$0xf]
      %v5653 = vld [vmem:[%s5621 + $0x7c] sm:$0xf]
      %v5654 = vld [vmem:[%s5621 + $0x80] sm:$0xf]
      %v5655 = vld [vmem:[%s5621 + $0x84] sm:$0xf]
      %v5656 = vld [vmem:[%s5621 + $0x88] sm:$0xf]
      %v5657 = vld [vmem:[%s5621 + $0x8c] sm:$0xf]
      %s5658 = scalar_lea.vmem %s5, 2
      %v5659 = vld [vmem:[%s5658] sm:$0x1]
      %v5660 = vrot.slane %v5603, 6
      %v5661 = vrot.slane %v5604, 6
      %v5662 = vrot.slane %v5605, 6
      %v5663 = vrot.slane %v5606, 6
      %v5664 = vrot.slane %v5607, 6
      %v5665 = vrot.slane %v5608, 6
      %v5666 = vrot.slane %v5609, 6
      %v5667 = vrot.slane %v5610, 6
      %v5668 = vrot.slane %v5611, 6
      %v5669 = vrot.slane %v5612, 6
      %v5670 = vrot.slane %v5613, 6
      %v5671 = vrot.slane %v5614, 6
      %v5672 = vrot.slane %v5615, 6
      %v5673 = vrot.slane %v5616, 6
      %v5674 = vrot.slane %v5617, 6
      %v5675 = vrot.slane %v5618, 6
      %v5676 = vrot.slane %v5619, 6
      %v5677 = vrot.slane %v5620, 6
      %v5678 = vsel %vm586, %v5676, %v5677
      %v5679 = vsel %vm586, %v5675, %v5676
      %v5680 = vsel %vm586, %v5674, %v5675
      %v5681 = vsel %vm586, %v5673, %v5674
      %v5682 = vsel %vm586, %v5672, %v5673
      %v5683 = vsel %vm586, %v5671, %v5672
      %v5684 = vsel %vm586, %v5670, %v5671
      %v5685 = vsel %vm586, %v5669, %v5670
      %v5686 = vsel %vm586, %v5668, %v5669
      %v5687 = vsel %vm586, %v5667, %v5668
      %v5688 = vsel %vm586, %v5666, %v5667
      %v5689 = vsel %vm586, %v5665, %v5666
      %v5690 = vsel %vm586, %v5664, %v5665
      %v5691 = vsel %vm586, %v5663, %v5664
      %v5692 = vsel %vm586, %v5662, %v5663
      %v5693 = vsel %vm586, %v5661, %v5662
      %v5694 = vsel %vm586, %v5660, %v5661
      %v5695 = vsel %vm586, %v5677, %v5660
      %v5696 = vpack.c.bf16 %v5695, %v5678
      %v5697 = vpack.c.bf16 %v5693, %v5694
      %v5698 = vpack.c.bf16 %v5691, %v5692
      %v5699 = vpack.c.bf16 %v5689, %v5690
      %v5700 = vpack.c.bf16 %v5687, %v5688
      %v5701 = vpack.c.bf16 %v5685, %v5686
      %v5702 = vpack.c.bf16 %v5683, %v5684
      %v5703 = vpack.c.bf16 %v5681, %v5682
      %v5704 = vpack.c.bf16 %v5679, %v5680
      %v5714 = vunpack.c.l.b16 %v5696
      %v5715 = vunpack.c.h.b16 %v5696
      %v5716 = vunpack.c.l.b16 %v5697
      %v5717 = vunpack.c.h.b16 %v5697
      %v5718 = vunpack.c.l.b16 %v5698
      %v5719 = vunpack.c.h.b16 %v5698
      %v5720 = vunpack.c.l.b16 %v5699
      %v5721 = vunpack.c.h.b16 %v5699
      %v5722 = vunpack.c.l.b16 %v5700
      %v5723 = vunpack.c.h.b16 %v5700
      %v5724 = vunpack.c.l.b16 %v5701
      %v5725 = vunpack.c.h.b16 %v5701
      %v5726 = vunpack.c.l.b16 %v5702
      %v5727 = vunpack.c.h.b16 %v5702
      %v5728 = vunpack.c.l.b16 %v5703
      %v5729 = vunpack.c.h.b16 %v5703
      %v5730 = vunpack.c.l.b16 %v5704
      %v5731 = vunpack.c.h.b16 %v5704
      %v5732 = vpack.c.b16 %v5714, %v5714
      %v5733 = vpack.c.b16 %v5715, %v5715
      %v5734 = vpack.c.b16 %v5716, %v5716
      %v5735 = vpack.c.b16 %v5717, %v5717
      %v5736 = vpack.c.b16 %v5718, %v5718
      %v5737 = vpack.c.b16 %v5719, %v5719
      %v5738 = vpack.c.b16 %v5720, %v5720
      %v5739 = vpack.c.b16 %v5721, %v5721
      %v5740 = vpack.c.b16 %v5722, %v5722
      %v5741 = vpack.c.b16 %v5723, %v5723
      %v5742 = vpack.c.b16 %v5724, %v5724
      %v5743 = vpack.c.b16 %v5725, %v5725
      %v5744 = vpack.c.b16 %v5726, %v5726
      %v5745 = vpack.c.b16 %v5727, %v5727
      %v5746 = vpack.c.b16 %v5728, %v5728
      %v5747 = vpack.c.b16 %v5729, %v5729
      %v5748 = vpack.c.b16 %v5730, %v5730
      %v5749 = vpack.c.b16 %v5731, %v5731
      %5768 = vst.msk [vmem:[#allocation2] sm:$0xf] %vm677, %v5732
      %5769 = vst.msk [vmem:[#allocation2 + $0xc] sm:$0xf] %vm677, %v5733
      %5770 = vst.msk [vmem:[#allocation2 + $0x18] sm:$0xf] %vm677, %v5734
      %5771 = vst.msk [vmem:[#allocation2 + $0x24] sm:$0xf] %vm677, %v5735
      %5772 = vst.msk [vmem:[#allocation2 + $0x30] sm:$0xf] %vm677, %v5736
      %5773 = vst.msk [vmem:[#allocation2 + $0x3c] sm:$0xf] %vm677, %v5737
      %5774 = vst.msk [vmem:[#allocation2 + $0x48] sm:$0xf] %vm677, %v5738
      %5775 = vst.msk [vmem:[#allocation2 + $0x54] sm:$0xf] %vm677, %v5739
      %5776 = vst.msk [vmem:[#allocation2 + $0x60] sm:$0xf] %vm677, %v5740
      %5777 = vst.msk [vmem:[#allocation2 + $0x6c] sm:$0xf] %vm677, %v5741
      %5778 = vst.msk [vmem:[#allocation2 + $0x78] sm:$0xf] %vm677, %v5742
      %5779 = vst.msk [vmem:[#allocation2 + $0x84] sm:$0xf] %vm677, %v5743
      %5780 = vst.msk [vmem:[#allocation2 + $0x90] sm:$0xf] %vm677, %v5744
      %5781 = vst.msk [vmem:[#allocation2 + $0x9c] sm:$0xf] %vm677, %v5745
      %5782 = vst.msk [vmem:[#allocation2 + $0xa8] sm:$0xf] %vm677, %v5746
      %5783 = vst.msk [vmem:[#allocation2 + $0xb4] sm:$0xf] %vm677, %v5747
      %5784 = vst.msk [vmem:[#allocation2 + $0xc0] sm:$0xf] %vm677, %v5748
      %5785 = vst.msk [vmem:[#allocation2 + $0xcc] sm:$0xf] %vm677, %v5749
      %v5786 = vrot.slane %v5603, 7
      %v5787 = vrot.slane %v5604, 7
      %v5788 = vrot.slane %v5605, 7
      %v5789 = vrot.slane %v5606, 7
      %v5790 = vrot.slane %v5607, 7
      %v5791 = vrot.slane %v5608, 7
      %v5792 = vrot.slane %v5609, 7
      %v5793 = vrot.slane %v5610, 7
      %v5794 = vrot.slane %v5611, 7
      %v5795 = vrot.slane %v5612, 7
      %v5796 = vrot.slane %v5613, 7
      %v5797 = vrot.slane %v5614, 7
      %v5798 = vrot.slane %v5615, 7
      %v5799 = vrot.slane %v5616, 7
      %v5800 = vrot.slane %v5617, 7
      %v5801 = vrot.slane %v5618, 7
      %v5802 = vrot.slane %v5619, 7
      %v5803 = vrot.slane %v5620, 7
      %v5804 = vsel %vm714, %v5802, %v5803
      %v5805 = vsel %vm714, %v5801, %v5802
      %v5806 = vsel %vm714, %v5800, %v5801
      %v5807 = vsel %vm714, %v5799, %v5800
      %v5808 = vsel %vm714, %v5798, %v5799
      %v5809 = vsel %vm714, %v5797, %v5798
      %v5810 = vsel %vm714, %v5796, %v5797
      %v5811 = vsel %vm714, %v5795, %v5796
      %v5812 = vsel %vm714, %v5794, %v5795
      %v5813 = vsel %vm714, %v5793, %v5794
      %v5814 = vsel %vm714, %v5792, %v5793
      %v5815 = vsel %vm714, %v5791, %v5792
      %v5816 = vsel %vm714, %v5790, %v5791
      %v5817 = vsel %vm714, %v5789, %v5790
      %v5818 = vsel %vm714, %v5788, %v5789
      %v5819 = vsel %vm714, %v5787, %v5788
      %v5820 = vsel %vm714, %v5786, %v5787
      %v5821 = vsel %vm714, %v5803, %v5786
      %v5822 = vpack.c.bf16 %v5821, %v5804
      %v5823 = vpack.c.bf16 %v5819, %v5820
      %v5824 = vpack.c.bf16 %v5817, %v5818
      %v5825 = vpack.c.bf16 %v5815, %v5816
      %v5826 = vpack.c.bf16 %v5813, %v5814
      %v5827 = vpack.c.bf16 %v5811, %v5812
      %v5828 = vpack.c.bf16 %v5809, %v5810
      %v5829 = vpack.c.bf16 %v5807, %v5808
      %v5830 = vpack.c.bf16 %v5805, %v5806
      %v5840 = vunpack.c.l.b16 %v5822
      %v5841 = vunpack.c.h.b16 %v5822
      %v5842 = vunpack.c.l.b16 %v5823
      %v5843 = vunpack.c.h.b16 %v5823
      %v5844 = vunpack.c.l.b16 %v5824
      %v5845 = vunpack.c.h.b16 %v5824
      %v5846 = vunpack.c.l.b16 %v5825
      %v5847 = vunpack.c.h.b16 %v5825
      %v5848 = vunpack.c.l.b16 %v5826
      %v5849 = vunpack.c.h.b16 %v5826
      %v5850 = vunpack.c.l.b16 %v5827
      %v5851 = vunpack.c.h.b16 %v5827
      %v5852 = vunpack.c.l.b16 %v5828
      %v5853 = vunpack.c.h.b16 %v5828
      %v5854 = vunpack.c.l.b16 %v5829
      %v5855 = vunpack.c.h.b16 %v5829
      %v5856 = vunpack.c.l.b16 %v5830
      %v5857 = vunpack.c.h.b16 %v5830
      %v5858 = vpack.c.b16 %v5840, %v5840
      %v5859 = vpack.c.b16 %v5841, %v5841
      %v5860 = vpack.c.b16 %v5842, %v5842
      %v5861 = vpack.c.b16 %v5843, %v5843
      %v5862 = vpack.c.b16 %v5844, %v5844
      %v5863 = vpack.c.b16 %v5845, %v5845
      %v5864 = vpack.c.b16 %v5846, %v5846
      %v5865 = vpack.c.b16 %v5847, %v5847
      %v5866 = vpack.c.b16 %v5848, %v5848
      %v5867 = vpack.c.b16 %v5849, %v5849
      %v5868 = vpack.c.b16 %v5850, %v5850
      %v5869 = vpack.c.b16 %v5851, %v5851
      %v5870 = vpack.c.b16 %v5852, %v5852
      %v5871 = vpack.c.b16 %v5853, %v5853
      %v5872 = vpack.c.b16 %v5854, %v5854
      %v5873 = vpack.c.b16 %v5855, %v5855
      %v5874 = vpack.c.b16 %v5856, %v5856
      %v5875 = vpack.c.b16 %v5857, %v5857
      %5876 = vrot.lane.b32.xlu0 %v5858, 32
      %v5877 = vpop.permute.xlu0 %5876
      %5878 = vrot.lane.b32.xlu0 %v5859, 32
      %v5879 = vpop.permute.xlu0 %5878
      %5880 = vrot.lane.b32.xlu0 %v5860, 32
      %v5881 = vpop.permute.xlu0 %5880
      %5882 = vrot.lane.b32.xlu0 %v5861, 32
      %v5883 = vpop.permute.xlu0 %5882
      %5884 = vrot.lane.b32.xlu0 %v5862, 32
      %v5885 = vpop.permute.xlu0 %5884
      %5886 = vrot.lane.b32.xlu0 %v5863, 32
      %v5887 = vpop.permute.xlu0 %5886
      %5888 = vrot.lane.b32.xlu0 %v5864, 32
      %v5889 = vpop.permute.xlu0 %5888
      %5890 = vrot.lane.b32.xlu0 %v5865, 32
      %v5891 = vpop.permute.xlu0 %5890
      %5892 = vrot.lane.b32.xlu0 %v5866, 32
      %v5893 = vpop.permute.xlu0 %5892
      %5894 = vrot.lane.b32.xlu0 %v5867, 32
      %v5895 = vpop.permute.xlu0 %5894
      %5896 = vrot.lane.b32.xlu0 %v5868, 32
      %v5897 = vpop.permute.xlu0 %5896
      %5898 = vrot.lane.b32.xlu0 %v5869, 32
      %v5899 = vpop.permute.xlu0 %5898
      %5900 = vrot.lane.b32.xlu0 %v5870, 32
      %v5901 = vpop.permute.xlu0 %5900
      %5902 = vrot.lane.b32.xlu0 %v5871, 32
      %v5903 = vpop.permute.xlu0 %5902
      %5904 = vrot.lane.b32.xlu0 %v5872, 32
      %v5905 = vpop.permute.xlu0 %5904
      %5906 = vrot.lane.b32.xlu0 %v5873, 32
      %v5907 = vpop.permute.xlu0 %5906
      %5908 = vrot.lane.b32.xlu0 %v5874, 32
      %v5909 = vpop.permute.xlu0 %5908
      %5910 = vrot.lane.b32.xlu0 %v5875, 32
      %v5911 = vpop.permute.xlu0 %5910
      %5930 = vst.msk [vmem:[#allocation2] sm:$0xf] %vm841, %v5877
      %5931 = vst.msk [vmem:[#allocation2 + $0xc] sm:$0xf] %vm841, %v5879
      %5932 = vst.msk [vmem:[#allocation2 + $0x18] sm:$0xf] %vm841, %v5881
      %5933 = vst.msk [vmem:[#allocation2 + $0x24] sm:$0xf] %vm841, %v5883
      %5934 = vst.msk [vmem:[#allocation2 + $0x30] sm:$0xf] %vm841, %v5885
      %5935 = vst.msk [vmem:[#allocation2 + $0x3c] sm:$0xf] %vm841, %v5887
      %5936 = vst.msk [vmem:[#allocation2 + $0x48] sm:$0xf] %vm841, %v5889
      %5937 = vst.msk [vmem:[#allocation2 + $0x54] sm:$0xf] %vm841, %v5891
      %5938 = vst.msk [vmem:[#allocation2 + $0x60] sm:$0xf] %vm841, %v5893
      %5939 = vst.msk [vmem:[#allocation2 + $0x6c] sm:$0xf] %vm841, %v5895
      %5940 = vst.msk [vmem:[#allocation2 + $0x78] sm:$0xf] %vm841, %v5897
      %5941 = vst.msk [vmem:[#allocation2 + $0x84] sm:$0xf] %vm841, %v5899
      %5942 = vst.msk [vmem:[#allocation2 + $0x90] sm:$0xf] %vm841, %v5901
      %5943 = vst.msk [vmem:[#allocation2 + $0x9c] sm:$0xf] %vm841, %v5903
      %5944 = vst.msk [vmem:[#allocation2 + $0xa8] sm:$0xf] %vm841, %v5905
      %5945 = vst.msk [vmem:[#allocation2 + $0xb4] sm:$0xf] %vm841, %v5907
      %5946 = vst.msk [vmem:[#allocation2 + $0xc0] sm:$0xf] %vm841, %v5909
      %5947 = vst.msk [vmem:[#allocation2 + $0xcc] sm:$0xf] %vm841, %v5911
      %v5948 = vpack.c.bf16 %v5603, %v5620
      %v5949 = vpack.c.bf16 %v5605, %v5604
      %v5950 = vpack.c.bf16 %v5607, %v5606
      %v5951 = vpack.c.bf16 %v5609, %v5608
      %v5952 = vpack.c.bf16 %v5611, %v5610
      %v5953 = vpack.c.bf16 %v5613, %v5612
      %v5954 = vpack.c.bf16 %v5615, %v5614
      %v5955 = vpack.c.bf16 %v5617, %v5616
      %v5956 = vpack.c.bf16 %v5619, %v5618
      %v5966 = vunpack.c.l.b16 %v5948
      %v5967 = vunpack.c.h.b16 %v5948
      %v5968 = vunpack.c.l.b16 %v5949
      %v5969 = vunpack.c.h.b16 %v5949
      %v5970 = vunpack.c.l.b16 %v5950
      %v5971 = vunpack.c.h.b16 %v5950
      %v5972 = vunpack.c.l.b16 %v5951
      %v5973 = vunpack.c.h.b16 %v5951
      %v5974 = vunpack.c.l.b16 %v5952
      %v5975 = vunpack.c.h.b16 %v5952
      %v5976 = vunpack.c.l.b16 %v5953
      %v5977 = vunpack.c.h.b16 %v5953
      %v5978 = vunpack.c.l.b16 %v5954
      %v5979 = vunpack.c.h.b16 %v5954
      %v5980 = vunpack.c.l.b16 %v5955
      %v5981 = vunpack.c.h.b16 %v5955
      %v5982 = vunpack.c.l.b16 %v5956
      %v5983 = vunpack.c.h.b16 %v5956
      %v5984 = vpack.c.b16 %v5966, %v5966
      %v5985 = vpack.c.b16 %v5967, %v5967
      %v5986 = vpack.c.b16 %v5968, %v5968
      %v5987 = vpack.c.b16 %v5969, %v5969
      %v5988 = vpack.c.b16 %v5970, %v5970
      %v5989 = vpack.c.b16 %v5971, %v5971
      %v5990 = vpack.c.b16 %v5972, %v5972
      %v5991 = vpack.c.b16 %v5973, %v5973
      %v5992 = vpack.c.b16 %v5974, %v5974
      %v5993 = vpack.c.b16 %v5975, %v5975
      %v5994 = vpack.c.b16 %v5976, %v5976
      %v5995 = vpack.c.b16 %v5977, %v5977
      %v5996 = vpack.c.b16 %v5978, %v5978
      %v5997 = vpack.c.b16 %v5979, %v5979
      %v5998 = vpack.c.b16 %v5980, %v5980
      %v5999 = vpack.c.b16 %v5981, %v5981
      %v6000 = vpack.c.b16 %v5982, %v5982
      %v6001 = vpack.c.b16 %v5983, %v5983
      %6002 = vrot.lane.b32.xlu0 %v5984, 64
      %v6003 = vpop.permute.xlu0 %6002
      %6004 = vrot.lane.b32.xlu0 %v5985, 64
      %v6005 = vpop.permute.xlu0 %6004
      %6006 = vrot.lane.b32.xlu0 %v5986, 64
      %v6007 = vpop.permute.xlu0 %6006
      %6008 = vrot.lane.b32.xlu0 %v5987, 64
      %v6009 = vpop.permute.xlu0 %6008
      %6010 = vrot.lane.b32.xlu0 %v5988, 64
      %v6011 = vpop.permute.xlu0 %6010
      %6012 = vrot.lane.b32.xlu0 %v5989, 64
      %v6013 = vpop.permute.xlu0 %6012
      %6014 = vrot.lane.b32.xlu0 %v5990, 64
      %v6015 = vpop.permute.xlu0 %6014
      %6016 = vrot.lane.b32.xlu0 %v5991, 64
      %v6017 = vpop.permute.xlu0 %6016
      %6018 = vrot.lane.b32.xlu0 %v5992, 64
      %v6019 = vpop.permute.xlu0 %6018
      %6020 = vrot.lane.b32.xlu0 %v5993, 64
      %v6021 = vpop.permute.xlu0 %6020
      %6022 = vrot.lane.b32.xlu0 %v5994, 64
      %v6023 = vpop.permute.xlu0 %6022
      %6024 = vrot.lane.b32.xlu0 %v5995, 64
      %v6025 = vpop.permute.xlu0 %6024
      %6026 = vrot.lane.b32.xlu0 %v5996, 64
      %v6027 = vpop.permute.xlu0 %6026
      %6028 = vrot.lane.b32.xlu0 %v5997, 64
      %v6029 = vpop.permute.xlu0 %6028
      %6030 = vrot.lane.b32.xlu0 %v5998, 64
      %v6031 = vpop.permute.xlu0 %6030
      %6032 = vrot.lane.b32.xlu0 %v5999, 64
      %v6033 = vpop.permute.xlu0 %6032
      %6034 = vrot.lane.b32.xlu0 %v6000, 64
      %v6035 = vpop.permute.xlu0 %6034
      %6036 = vrot.lane.b32.xlu0 %v6001, 64
      %v6037 = vpop.permute.xlu0 %6036
      %6056 = vst.msk [vmem:[#allocation2] sm:$0xf] %vm968, %v6003
      %6057 = vst.msk [vmem:[#allocation2 + $0xc] sm:$0xf] %vm968, %v6005
      %6058 = vst.msk [vmem:[#allocation2 + $0x18] sm:$0xf] %vm968, %v6007
      %6059 = vst.msk [vmem:[#allocation2 + $0x24] sm:$0xf] %vm968, %v6009
      %6060 = vst.msk [vmem:[#allocation2 + $0x30] sm:$0xf] %vm968, %v6011
      %6061 = vst.msk [vmem:[#allocation2 + $0x3c] sm:$0xf] %vm968, %v6013
      %6062 = vst.msk [vmem:[#allocation2 + $0x48] sm:$0xf] %vm968, %v6015
      %6063 = vst.msk [vmem:[#allocation2 + $0x54] sm:$0xf] %vm968, %v6017
      %6064 = vst.msk [vmem:[#allocation2 + $0x60] sm:$0xf] %vm968, %v6019
      %6065 = vst.msk [vmem:[#allocation2 + $0x6c] sm:$0xf] %vm968, %v6021
      %6066 = vst.msk [vmem:[#allocation2 + $0x78] sm:$0xf] %vm968, %v6023
      %6067 = vst.msk [vmem:[#allocation2 + $0x84] sm:$0xf] %vm968, %v6025
      %6068 = vst.msk [vmem:[#allocation2 + $0x90] sm:$0xf] %vm968, %v6027
      %6069 = vst.msk [vmem:[#allocation2 + $0x9c] sm:$0xf] %vm968, %v6029
      %6070 = vst.msk [vmem:[#allocation2 + $0xa8] sm:$0xf] %vm968, %v6031
      %6071 = vst.msk [vmem:[#allocation2 + $0xb4] sm:$0xf] %vm968, %v6033
      %6072 = vst.msk [vmem:[#allocation2 + $0xc0] sm:$0xf] %vm968, %v6035
      %6073 = vst.msk [vmem:[#allocation2 + $0xcc] sm:$0xf] %vm968, %v6037
      %v6074 = vpack.c.bf16 %v5820, %v5821
      %v6075 = vpack.c.bf16 %v5818, %v5819
      %v6076 = vpack.c.bf16 %v5816, %v5817
      %v6077 = vpack.c.bf16 %v5814, %v5815
      %v6078 = vpack.c.bf16 %v5812, %v5813
      %v6079 = vpack.c.bf16 %v5810, %v5811
      %v6080 = vpack.c.bf16 %v5808, %v5809
      %v6081 = vpack.c.bf16 %v5806, %v5807
      %v6082 = vpack.c.bf16 %v5804, %v5805
      %v6092 = vunpack.c.l.b16 %v6074
      %v6093 = vunpack.c.h.b16 %v6074
      %v6094 = vunpack.c.l.b16 %v6075
      %v6095 = vunpack.c.h.b16 %v6075
      %v6096 = vunpack.c.l.b16 %v6076
      %v6097 = vunpack.c.h.b16 %v6076
      %v6098 = vunpack.c.l.b16 %v6077
      %v6099 = vunpack.c.h.b16 %v6077
      %v6100 = vunpack.c.l.b16 %v6078
      %v6101 = vunpack.c.h.b16 %v6078
      %v6102 = vunpack.c.l.b16 %v6079
      %v6103 = vunpack.c.h.b16 %v6079
      %v6104 = vunpack.c.l.b16 %v6080
      %v6105 = vunpack.c.h.b16 %v6080
      %v6106 = vunpack.c.l.b16 %v6081
      %v6107 = vunpack.c.h.b16 %v6081
      %v6108 = vunpack.c.l.b16 %v6082
      %v6109 = vunpack.c.h.b16 %v6082
      %v6110 = vpack.c.b16 %v6092, %v6092
      %v6111 = vpack.c.b16 %v6093, %v6093
      %v6112 = vpack.c.b16 %v6094, %v6094
      %v6113 = vpack.c.b16 %v6095, %v6095
      %v6114 = vpack.c.b16 %v6096, %v6096
      %v6115 = vpack.c.b16 %v6097, %v6097
      %v6116 = vpack.c.b16 %v6098, %v6098
      %v6117 = vpack.c.b16 %v6099, %v6099
      %v6118 = vpack.c.b16 %v6100, %v6100
      %v6119 = vpack.c.b16 %v6101, %v6101
      %v6120 = vpack.c.b16 %v6102, %v6102
      %v6121 = vpack.c.b16 %v6103, %v6103
      %v6122 = vpack.c.b16 %v6104, %v6104
      %v6123 = vpack.c.b16 %v6105, %v6105
      %v6124 = vpack.c.b16 %v6106, %v6106
      %v6125 = vpack.c.b16 %v6107, %v6107
      %v6126 = vpack.c.b16 %v6108, %v6108
      %v6127 = vpack.c.b16 %v6109, %v6109
      %6128 = vrot.lane.b32.xlu0 %v6110, 96
      %v6129 = vpop.permute.xlu0 %6128
      %6130 = vrot.lane.b32.xlu0 %v6111, 96
      %v6131 = vpop.permute.xlu0 %6130
      %6132 = vrot.lane.b32.xlu0 %v6112, 96
      %v6133 = vpop.permute.xlu0 %6132
      %6134 = vrot.lane.b32.xlu0 %v6113, 96
      %v6135 = vpop.permute.xlu0 %6134
      %6136 = vrot.lane.b32.xlu0 %v6114, 96
      %v6137 = vpop.permute.xlu0 %6136
      %6138 = vrot.lane.b32.xlu0 %v6115, 96
      %v6139 = vpop.permute.xlu0 %6138
      %6140 = vrot.lane.b32.xlu0 %v6116, 96
      %v6141 = vpop.permute.xlu0 %6140
      %6142 = vrot.lane.b32.xlu0 %v6117, 96
      %v6143 = vpop.permute.xlu0 %6142
      %6144 = vrot.lane.b32.xlu0 %v6118, 96
      %v6145 = vpop.permute.xlu0 %6144
      %6146 = vrot.lane.b32.xlu0 %v6119, 96
      %v6147 = vpop.permute.xlu0 %6146
      %6148 = vrot.lane.b32.xlu0 %v6120, 96
      %v6149 = vpop.permute.xlu0 %6148
      %6150 = vrot.lane.b32.xlu0 %v6121, 96
      %v6151 = vpop.permute.xlu0 %6150
      %6152 = vrot.lane.b32.xlu0 %v6122, 96
      %v6153 = vpop.permute.xlu0 %6152
      %6154 = vrot.lane.b32.xlu0 %v6123, 96
      %v6155 = vpop.permute.xlu0 %6154
      %6156 = vrot.lane.b32.xlu0 %v6124, 96
      %v6157 = vpop.permute.xlu0 %6156
      %6158 = vrot.lane.b32.xlu0 %v6125, 96
      %v6159 = vpop.permute.xlu0 %6158
      %6160 = vrot.lane.b32.xlu0 %v6126, 96
      %v6161 = vpop.permute.xlu0 %6160
      %6162 = vrot.lane.b32.xlu0 %v6127, 96
      %v6163 = vpop.permute.xlu0 %6162
      %6182 = vst.msk [vmem:[#allocation2] sm:$0xf] %vm1095, %v6129
      %6183 = vst.msk [vmem:[#allocation2 + $0xc] sm:$0xf] %vm1095, %v6131
      %6184 = vst.msk [vmem:[#allocation2 + $0x18] sm:$0xf] %vm1095, %v6133
      %6185 = vst.msk [vmem:[#allocation2 + $0x24] sm:$0xf] %vm1095, %v6135
      %6186 = vst.msk [vmem:[#allocation2 + $0x30] sm:$0xf] %vm1095, %v6137
      %6187 = vst.msk [vmem:[#allocation2 + $0x3c] sm:$0xf] %vm1095, %v6139
      %6188 = vst.msk [vmem:[#allocation2 + $0x48] sm:$0xf] %vm1095, %v6141
      %6189 = vst.msk [vmem:[#allocation2 + $0x54] sm:$0xf] %vm1095, %v6143
      %6190 = vst.msk [vmem:[#allocation2 + $0x60] sm:$0xf] %vm1095, %v6145
      %6191 = vst.msk [vmem:[#allocation2 + $0x6c] sm:$0xf] %vm1095, %v6147
      %6192 = vst.msk [vmem:[#allocation2 + $0x78] sm:$0xf] %vm1095, %v6149
      %6193 = vst.msk [vmem:[#allocation2 + $0x84] sm:$0xf] %vm1095, %v6151
      %6194 = vst.msk [vmem:[#allocation2 + $0x90] sm:$0xf] %vm1095, %v6153
      %6195 = vst.msk [vmem:[#allocation2 + $0x9c] sm:$0xf] %vm1095, %v6155
      %6196 = vst.msk [vmem:[#allocation2 + $0xa8] sm:$0xf] %vm1095, %v6157
      %6197 = vst.msk [vmem:[#allocation2 + $0xb4] sm:$0xf] %vm1095, %v6159
      %6198 = vst.msk [vmem:[#allocation2 + $0xc0] sm:$0xf] %vm1095, %v6161
      %6199 = vst.msk [vmem:[#allocation2 + $0xcc] sm:$0xf] %vm1095, %v6163
      %v6200 = vpack.c.bf16 %v5604, %v5603
      %v6201 = vpack.c.bf16 %v5606, %v5605
      %v6202 = vpack.c.bf16 %v5608, %v5607
      %v6203 = vpack.c.bf16 %v5610, %v5609
      %v6204 = vpack.c.bf16 %v5612, %v5611
      %v6205 = vpack.c.bf16 %v5614, %v5613
      %v6206 = vpack.c.bf16 %v5616, %v5615
      %v6207 = vpack.c.bf16 %v5618, %v5617
      %v6208 = vpack.c.bf16 %v5620, %v5619
      %v6218 = vunpack.c.l.b16 %v6200
      %v6219 = vunpack.c.h.b16 %v6200
      %v6220 = vunpack.c.l.b16 %v6201
      %v6221 = vunpack.c.h.b16 %v6201
      %v6222 = vunpack.c.l.b16 %v6202
      %v6223 = vunpack.c.h.b16 %v6202
      %v6224 = vunpack.c.l.b16 %v6203
      %v6225 = vunpack.c.h.b16 %v6203
      %v6226 = vunpack.c.l.b16 %v6204
      %v6227 = vunpack.c.h.b16 %v6204
      %v6228 = vunpack.c.l.b16 %v6205
      %v6229 = vunpack.c.h.b16 %v6205
      %v6230 = vunpack.c.l.b16 %v6206
      %v6231 = vunpack.c.h.b16 %v6206
      %v6232 = vunpack.c.l.b16 %v6207
      %v6233 = vunpack.c.h.b16 %v6207
      %v6234 = vunpack.c.l.b16 %v6208
      %v6235 = vunpack.c.h.b16 %v6208
      %v6236 = vpack.c.b16 %v6218, %v6218
      %v6237 = vpack.c.b16 %v6219, %v6219
      %v6238 = vpack.c.b16 %v6220, %v6220
      %v6239 = vpack.c.b16 %v6221, %v6221
      %v6240 = vpack.c.b16 %v6222, %v6222
      %v6241 = vpack.c.b16 %v6223, %v6223
      %v6242 = vpack.c.b16 %v6224, %v6224
      %v6243 = vpack.c.b16 %v6225, %v6225
      %v6244 = vpack.c.b16 %v6226, %v6226
      %v6245 = vpack.c.b16 %v6227, %v6227
      %v6246 = vpack.c.b16 %v6228, %v6228
      %v6247 = vpack.c.b16 %v6229, %v6229
      %v6248 = vpack.c.b16 %v6230, %v6230
      %v6249 = vpack.c.b16 %v6231, %v6231
      %v6250 = vpack.c.b16 %v6232, %v6232
      %v6251 = vpack.c.b16 %v6233, %v6233
      %v6252 = vpack.c.b16 %v6234, %v6234
      %v6253 = vpack.c.b16 %v6235, %v6235
      %6272 = vst.msk [vmem:[#allocation2 + $0x4] sm:$0xf] %vm677, %v6236
      %6273 = vst.msk [vmem:[#allocation2 + $0x10] sm:$0xf] %vm677, %v6237
      %6274 = vst.msk [vmem:[#allocation2 + $0x1c] sm:$0xf] %vm677, %v6238
      %6275 = vst.msk [vmem:[#allocation2 + $0x28] sm:$0xf] %vm677, %v6239
      %6276 = vst.msk [vmem:[#allocation2 + $0x34] sm:$0xf] %vm677, %v6240
      %6277 = vst.msk [vmem:[#allocation2 + $0x40] sm:$0xf] %vm677, %v6241
      %6278 = vst.msk [vmem:[#allocation2 + $0x4c] sm:$0xf] %vm677, %v6242
      %6279 = vst.msk [vmem:[#allocation2 + $0x58] sm:$0xf] %vm677, %v6243
      %6280 = vst.msk [vmem:[#allocation2 + $0x64] sm:$0xf] %vm677, %v6244
      %6281 = vst.msk [vmem:[#allocation2 + $0x70] sm:$0xf] %vm677, %v6245
      %6282 = vst.msk [vmem:[#allocation2 + $0x7c] sm:$0xf] %vm677, %v6246
      %6283 = vst.msk [vmem:[#allocation2 + $0x88] sm:$0xf] %vm677, %v6247
      %6284 = vst.msk [vmem:[#allocation2 + $0x94] sm:$0xf] %vm677, %v6248
      %6285 = vst.msk [vmem:[#allocation2 + $0xa0] sm:$0xf] %vm677, %v6249
      %6286 = vst.msk [vmem:[#allocation2 + $0xac] sm:$0xf] %vm677, %v6250
      %6287 = vst.msk [vmem:[#allocation2 + $0xb8] sm:$0xf] %vm677, %v6251
      %6288 = vst.msk [vmem:[#allocation2 + $0xc4] sm:$0xf] %vm677, %v6252
      %6289 = vst.msk [vmem:[#allocation2 + $0xd0] sm:$0xf] %vm677, %v6253
      %v6290 = vrot.slane %v5603, 1
      %v6291 = vrot.slane %v5604, 1
      %v6292 = vrot.slane %v5605, 1
      %v6293 = vrot.slane %v5606, 1
      %v6294 = vrot.slane %v5607, 1
      %v6295 = vrot.slane %v5608, 1
      %v6296 = vrot.slane %v5609, 1
      %v6297 = vrot.slane %v5610, 1
      %v6298 = vrot.slane %v5611, 1
      %v6299 = vrot.slane %v5612, 1
      %v6300 = vrot.slane %v5613, 1
      %v6301 = vrot.slane %v5614, 1
      %v6302 = vrot.slane %v5615, 1
      %v6303 = vrot.slane %v5616, 1
      %v6304 = vrot.slane %v5617, 1
      %v6305 = vrot.slane %v5618, 1
      %v6306 = vrot.slane %v5619, 1
      %v6307 = vrot.slane %v5620, 1
      %v6308 = vsel %vm1222, %v6306, %v6307
      %v6309 = vsel %vm1222, %v6305, %v6306
      %v6310 = vsel %vm1222, %v6304, %v6305
      %v6311 = vsel %vm1222, %v6303, %v6304
      %v6312 = vsel %vm1222, %v6302, %v6303
      %v6313 = vsel %vm1222, %v6301, %v6302
      %v6314 = vsel %vm1222, %v6300, %v6301
      %v6315 = vsel %vm1222, %v6299, %v6300
      %v6316 = vsel %vm1222, %v6298, %v6299
      %v6317 = vsel %vm1222, %v6297, %v6298
      %v6318 = vsel %vm1222, %v6296, %v6297
      %v6319 = vsel %vm1222, %v6295, %v6296
      %v6320 = vsel %vm1222, %v6294, %v6295
      %v6321 = vsel %vm1222, %v6293, %v6294
      %v6322 = vsel %vm1222, %v6292, %v6293
      %v6323 = vsel %vm1222, %v6291, %v6292
      %v6324 = vsel %vm1222, %v6290, %v6291
      %v6325 = vsel %vm1222, %v6307, %v6290
      %v6326 = vpack.c.bf16 %v6323, %v6324
      %v6327 = vpack.c.bf16 %v6321, %v6322
      %v6328 = vpack.c.bf16 %v6319, %v6320
      %v6329 = vpack.c.bf16 %v6317, %v6318
      %v6330 = vpack.c.bf16 %v6315, %v6316
      %v6331 = vpack.c.bf16 %v6313, %v6314
      %v6332 = vpack.c.bf16 %v6311, %v6312
      %v6333 = vpack.c.bf16 %v6309, %v6310
      %v6334 = vpack.c.bf16 %v6325, %v6308
      %v6344 = vunpack.c.l.b16 %v6326
      %v6345 = vunpack.c.h.b16 %v6326
      %v6346 = vunpack.c.l.b16 %v6327
      %v6347 = vunpack.c.h.b16 %v6327
      %v6348 = vunpack.c.l.b16 %v6328
      %v6349 = vunpack.c.h.b16 %v6328
      %v6350 = vunpack.c.l.b16 %v6329
      %v6351 = vunpack.c.h.b16 %v6329
      %v6352 = vunpack.c.l.b16 %v6330
      %v6353 = vunpack.c.h.b16 %v6330
      %v6354 = vunpack.c.l.b16 %v6331
      %v6355 = vunpack.c.h.b16 %v6331
      %v6356 = vunpack.c.l.b16 %v6332
      %v6357 = vunpack.c.h.b16 %v6332
      %v6358 = vunpack.c.l.b16 %v6333
      %v6359 = vunpack.c.h.b16 %v6333
      %v6360 = vunpack.c.l.b16 %v6334
      %v6361 = vunpack.c.h.b16 %v6334
      %v6362 = vpack.c.b16 %v6344, %v6344
      %v6363 = vpack.c.b16 %v6345, %v6345
      %v6364 = vpack.c.b16 %v6346, %v6346
      %v6365 = vpack.c.b16 %v6347, %v6347
      %v6366 = vpack.c.b16 %v6348, %v6348
      %v6367 = vpack.c.b16 %v6349, %v6349
      %v6368 = vpack.c.b16 %v6350, %v6350
      %v6369 = vpack.c.b16 %v6351, %v6351
      %v6370 = vpack.c.b16 %v6352, %v6352
      %v6371 = vpack.c.b16 %v6353, %v6353
      %v6372 = vpack.c.b16 %v6354, %v6354
      %v6373 = vpack.c.b16 %v6355, %v6355
      %v6374 = vpack.c.b16 %v6356, %v6356
      %v6375 = vpack.c.b16 %v6357, %v6357
      %v6376 = vpack.c.b16 %v6358, %v6358
      %v6377 = vpack.c.b16 %v6359, %v6359
      %v6378 = vpack.c.b16 %v6360, %v6360
      %v6379 = vpack.c.b16 %v6361, %v6361
      %6380 = vrot.lane.b32.xlu0 %v6362, 32
      %v6381 = vpop.permute.xlu0 %6380
      %6382 = vrot.lane.b32.xlu0 %v6363, 32
      %v6383 = vpop.permute.xlu0 %6382
      %6384 = vrot.lane.b32.xlu0 %v6364, 32
      %v6385 = vpop.permute.xlu0 %6384
      %6386 = vrot.lane.b32.xlu0 %v6365, 32
      %v6387 = vpop.permute.xlu0 %6386
      %6388 = vrot.lane.b32.xlu0 %v6366, 32
      %v6389 = vpop.permute.xlu0 %6388
      %6390 = vrot.lane.b32.xlu0 %v6367, 32
      %v6391 = vpop.permute.xlu0 %6390
      %6392 = vrot.lane.b32.xlu0 %v6368, 32
      %v6393 = vpop.permute.xlu0 %6392
      %6394 = vrot.lane.b32.xlu0 %v6369, 32
      %v6395 = vpop.permute.xlu0 %6394
      %6396 = vrot.lane.b32.xlu0 %v6370, 32
      %v6397 = vpop.permute.xlu0 %6396
      %6398 = vrot.lane.b32.xlu0 %v6371, 32
      %v6399 = vpop.permute.xlu0 %6398
      %6400 = vrot.lane.b32.xlu0 %v6372, 32
      %v6401 = vpop.permute.xlu0 %6400
      %6402 = vrot.lane.b32.xlu0 %v6373, 32
      %v6403 = vpop.permute.xlu0 %6402
      %6404 = vrot.lane.b32.xlu0 %v6374, 32
      %v6405 = vpop.permute.xlu0 %6404
      %6406 = vrot.lane.b32.xlu0 %v6375, 32
      %v6407 = vpop.permute.xlu0 %6406
      %6408 = vrot.lane.b32.xlu0 %v6376, 32
      %v6409 = vpop.permute.xlu0 %6408
      %6410 = vrot.lane.b32.xlu0 %v6377, 32
      %v6411 = vpop.permute.xlu0 %6410
      %6412 = vrot.lane.b32.xlu0 %v6378, 32
      %v6413 = vpop.permute.xlu0 %6412
      %6414 = vrot.lane.b32.xlu0 %v6379, 32
      %v6415 = vpop.permute.xlu0 %6414
      %6434 = vst.msk [vmem:[#allocation2 + $0x4] sm:$0xf] %vm841, %v6381
      %6435 = vst.msk [vmem:[#allocation2 + $0x10] sm:$0xf] %vm841, %v6383
      %6436 = vst.msk [vmem:[#allocation2 + $0x1c] sm:$0xf] %vm841, %v6385
      %6437 = vst.msk [vmem:[#allocation2 + $0x28] sm:$0xf] %vm841, %v6387
      %6438 = vst.msk [vmem:[#allocation2 + $0x34] sm:$0xf] %vm841, %v6389
      %6439 = vst.msk [vmem:[#allocation2 + $0x40] sm:$0xf] %vm841, %v6391
      %6440 = vst.msk [vmem:[#allocation2 + $0x4c] sm:$0xf] %vm841, %v6393
      %6441 = vst.msk [vmem:[#allocation2 + $0x58] sm:$0xf] %vm841, %v6395
      %6442 = vst.msk [vmem:[#allocation2 + $0x64] sm:$0xf] %vm841, %v6397
      %6443 = vst.msk [vmem:[#allocation2 + $0x70] sm:$0xf] %vm841, %v6399
      %6444 = vst.msk [vmem:[#allocation2 + $0x7c] sm:$0xf] %vm841, %v6401
      %6445 = vst.msk [vmem:[#allocation2 + $0x88] sm:$0xf] %vm841, %v6403
      %6446 = vst.msk [vmem:[#allocation2 + $0x94] sm:$0xf] %vm841, %v6405
      %6447 = vst.msk [vmem:[#allocation2 + $0xa0] sm:$0xf] %vm841, %v6407
      %6448 = vst.msk [vmem:[#allocation2 + $0xac] sm:$0xf] %vm841, %v6409
      %6449 = vst.msk [vmem:[#allocation2 + $0xb8] sm:$0xf] %vm841, %v6411
      %6450 = vst.msk [vmem:[#allocation2 + $0xc4] sm:$0xf] %vm841, %v6413
      %6451 = vst.msk [vmem:[#allocation2 + $0xd0] sm:$0xf] %vm841, %v6415
      %6452 = vst.msk [vmem:[#allocation2 + $0x4] sm:$0xf] %vm968, %v6007
      %6453 = vst.msk [vmem:[#allocation2 + $0x10] sm:$0xf] %vm968, %v6009
      %6454 = vst.msk [vmem:[#allocation2 + $0x1c] sm:$0xf] %vm968, %v6011
      %6455 = vst.msk [vmem:[#allocation2 + $0x28] sm:$0xf] %vm968, %v6013
      %6456 = vst.msk [vmem:[#allocation2 + $0x34] sm:$0xf] %vm968, %v6015
      %6457 = vst.msk [vmem:[#allocation2 + $0x40] sm:$0xf] %vm968, %v6017
      %6458 = vst.msk [vmem:[#allocation2 + $0x4c] sm:$0xf] %vm968, %v6019
      %6459 = vst.msk [vmem:[#allocation2 + $0x58] sm:$0xf] %vm968, %v6021
      %6460 = vst.msk [vmem:[#allocation2 + $0x64] sm:$0xf] %vm968, %v6023
      %6461 = vst.msk [vmem:[#allocation2 + $0x70] sm:$0xf] %vm968, %v6025
      %6462 = vst.msk [vmem:[#allocation2 + $0x7c] sm:$0xf] %vm968, %v6027
      %6463 = vst.msk [vmem:[#allocation2 + $0x88] sm:$0xf] %vm968, %v6029
      %6464 = vst.msk [vmem:[#allocation2 + $0x94] sm:$0xf] %vm968, %v6031
      %6465 = vst.msk [vmem:[#allocation2 + $0xa0] sm:$0xf] %vm968, %v6033
      %6466 = vst.msk [vmem:[#allocation2 + $0xac] sm:$0xf] %vm968, %v6035
      %6467 = vst.msk [vmem:[#allocation2 + $0xb8] sm:$0xf] %vm968, %v6037
      %6468 = vst.msk [vmem:[#allocation2 + $0xc4] sm:$0xf] %vm968, %v6003
      %6469 = vst.msk [vmem:[#allocation2 + $0xd0] sm:$0xf] %vm968, %v6005
      %v6470 = vpack.c.bf16 %v6322, %v6323
      %v6471 = vpack.c.bf16 %v6320, %v6321
      %v6472 = vpack.c.bf16 %v6318, %v6319
      %v6473 = vpack.c.bf16 %v6316, %v6317
      %v6474 = vpack.c.bf16 %v6314, %v6315
      %v6475 = vpack.c.bf16 %v6312, %v6313
      %v6476 = vpack.c.bf16 %v6310, %v6311
      %v6477 = vpack.c.bf16 %v6308, %v6309
      %v6478 = vpack.c.bf16 %v6324, %v6325
      %v6488 = vunpack.c.l.b16 %v6470
      %v6489 = vunpack.c.h.b16 %v6470
      %v6490 = vunpack.c.l.b16 %v6471
      %v6491 = vunpack.c.h.b16 %v6471
      %v6492 = vunpack.c.l.b16 %v6472
      %v6493 = vunpack.c.h.b16 %v6472
      %v6494 = vunpack.c.l.b16 %v6473
      %v6495 = vunpack.c.h.b16 %v6473
      %v6496 = vunpack.c.l.b16 %v6474
      %v6497 = vunpack.c.h.b16 %v6474
      %v6498 = vunpack.c.l.b16 %v6475
      %v6499 = vunpack.c.h.b16 %v6475
      %v6500 = vunpack.c.l.b16 %v6476
      %v6501 = vunpack.c.h.b16 %v6476
      %v6502 = vunpack.c.l.b16 %v6477
      %v6503 = vunpack.c.h.b16 %v6477
      %v6504 = vunpack.c.l.b16 %v6478
      %v6505 = vunpack.c.h.b16 %v6478
      %v6506 = vpack.c.b16 %v6488, %v6488
      %v6507 = vpack.c.b16 %v6489, %v6489
      %v6508 = vpack.c.b16 %v6490, %v6490
      %v6509 = vpack.c.b16 %v6491, %v6491
      %v6510 = vpack.c.b16 %v6492, %v6492
      %v6511 = vpack.c.b16 %v6493, %v6493
      %v6512 = vpack.c.b16 %v6494, %v6494
      %v6513 = vpack.c.b16 %v6495, %v6495
      %v6514 = vpack.c.b16 %v6496, %v6496
      %v6515 = vpack.c.b16 %v6497, %v6497
      %v6516 = vpack.c.b16 %v6498, %v6498
      %v6517 = vpack.c.b16 %v6499, %v6499
      %v6518 = vpack.c.b16 %v6500, %v6500
      %v6519 = vpack.c.b16 %v6501, %v6501
      %v6520 = vpack.c.b16 %v6502, %v6502
      %v6521 = vpack.c.b16 %v6503, %v6503
      %v6522 = vpack.c.b16 %v6504, %v6504
      %v6523 = vpack.c.b16 %v6505, %v6505
      %6524 = vrot.lane.b32.xlu0 %v6506, 96
      %v6525 = vpop.permute.xlu0 %6524
      %6526 = vrot.lane.b32.xlu0 %v6507, 96
      %v6527 = vpop.permute.xlu0 %6526
      %6528 = vrot.lane.b32.xlu0 %v6508, 96
      %v6529 = vpop.permute.xlu0 %6528
      %6530 = vrot.lane.b32.xlu0 %v6509, 96
      %v6531 = vpop.permute.xlu0 %6530
      %6532 = vrot.lane.b32.xlu0 %v6510, 96
      %v6533 = vpop.permute.xlu0 %6532
      %6534 = vrot.lane.b32.xlu0 %v6511, 96
      %v6535 = vpop.permute.xlu0 %6534
      %6536 = vrot.lane.b32.xlu0 %v6512, 96
      %v6537 = vpop.permute.xlu0 %6536
      %6538 = vrot.lane.b32.xlu0 %v6513, 96
      %v6539 = vpop.permute.xlu0 %6538
      %6540 = vrot.lane.b32.xlu0 %v6514, 96
      %v6541 = vpop.permute.xlu0 %6540
      %6542 = vrot.lane.b32.xlu0 %v6515, 96
      %v6543 = vpop.permute.xlu0 %6542
      %6544 = vrot.lane.b32.xlu0 %v6516, 96
      %v6545 = vpop.permute.xlu0 %6544
      %6546 = vrot.lane.b32.xlu0 %v6517, 96
      %v6547 = vpop.permute.xlu0 %6546
      %6548 = vrot.lane.b32.xlu0 %v6518, 96
      %v6549 = vpop.permute.xlu0 %6548
      %6550 = vrot.lane.b32.xlu0 %v6519, 96
      %v6551 = vpop.permute.xlu0 %6550
      %6552 = vrot.lane.b32.xlu0 %v6520, 96
      %v6553 = vpop.permute.xlu0 %6552
      %6554 = vrot.lane.b32.xlu0 %v6521, 96
      %v6555 = vpop.permute.xlu0 %6554
      %6556 = vrot.lane.b32.xlu0 %v6522, 96
      %v6557 = vpop.permute.xlu0 %6556
      %6558 = vrot.lane.b32.xlu0 %v6523, 96
      %v6559 = vpop.permute.xlu0 %6558
      %6578 = vst.msk [vmem:[#allocation2 + $0x4] sm:$0xf] %vm1095, %v6525
      %6579 = vst.msk [vmem:[#allocation2 + $0x10] sm:$0xf] %vm1095, %v6527
      %6580 = vst.msk [vmem:[#allocation2 + $0x1c] sm:$0xf] %vm1095, %v6529
      %6581 = vst.msk [vmem:[#allocation2 + $0x28] sm:$0xf] %vm1095, %v6531
      %6582 = vst.msk [vmem:[#allocation2 + $0x34] sm:$0xf] %vm1095, %v6533
      %6583 = vst.msk [vmem:[#allocation2 + $0x40] sm:$0xf] %vm1095, %v6535
      %6584 = vst.msk [vmem:[#allocation2 + $0x4c] sm:$0xf] %vm1095, %v6537
      %6585 = vst.msk [vmem:[#allocation2 + $0x58] sm:$0xf] %vm1095, %v6539
      %6586 = vst.msk [vmem:[#allocation2 + $0x64] sm:$0xf] %vm1095, %v6541
      %6587 = vst.msk [vmem:[#allocation2 + $0x70] sm:$0xf] %vm1095, %v6543
      %6588 = vst.msk [vmem:[#allocation2 + $0x7c] sm:$0xf] %vm1095, %v6545
      %6589 = vst.msk [vmem:[#allocation2 + $0x88] sm:$0xf] %vm1095, %v6547
      %6590 = vst.msk [vmem:[#allocation2 + $0x94] sm:$0xf] %vm1095, %v6549
      %6591 = vst.msk [vmem:[#allocation2 + $0xa0] sm:$0xf] %vm1095, %v6551
      %6592 = vst.msk [vmem:[#allocation2 + $0xac] sm:$0xf] %vm1095, %v6553
      %6593 = vst.msk [vmem:[#allocation2 + $0xb8] sm:$0xf] %vm1095, %v6555
      %6594 = vst.msk [vmem:[#allocation2 + $0xc4] sm:$0xf] %vm1095, %v6557
      %6595 = vst.msk [vmem:[#allocation2 + $0xd0] sm:$0xf] %vm1095, %v6559
      %v6596 = vrot.slane %v5603, 2
      %v6597 = vrot.slane %v5604, 2
      %v6598 = vrot.slane %v5605, 2
      %v6599 = vrot.slane %v5606, 2
      %v6600 = vrot.slane %v5607, 2
      %v6601 = vrot.slane %v5608, 2
      %v6602 = vrot.slane %v5609, 2
      %v6603 = vrot.slane %v5610, 2
      %v6604 = vrot.slane %v5611, 2
      %v6605 = vrot.slane %v5612, 2
      %v6606 = vrot.slane %v5613, 2
      %v6607 = vrot.slane %v5614, 2
      %v6608 = vrot.slane %v5615, 2
      %v6609 = vrot.slane %v5616, 2
      %v6610 = vrot.slane %v5617, 2
      %v6611 = vrot.slane %v5618, 2
      %v6612 = vrot.slane %v5619, 2
      %v6613 = vrot.slane %v5620, 2
      %v6614 = vsel %vm1529, %v6612, %v6613
      %v6615 = vsel %vm1529, %v6611, %v6612
      %v6616 = vsel %vm1529, %v6610, %v6611
      %v6617 = vsel %vm1529, %v6609, %v6610
      %v6618 = vsel %vm1529, %v6608, %v6609
      %v6619 = vsel %vm1529, %v6607, %v6608
      %v6620 = vsel %vm1529, %v6606, %v6607
      %v6621 = vsel %vm1529, %v6605, %v6606
      %v6622 = vsel %vm1529, %v6604, %v6605
      %v6623 = vsel %vm1529, %v6603, %v6604
      %v6624 = vsel %vm1529, %v6602, %v6603
      %v6625 = vsel %vm1529, %v6601, %v6602
      %v6626 = vsel %vm1529, %v6600, %v6601
      %v6627 = vsel %vm1529, %v6599, %v6600
      %v6628 = vsel %vm1529, %v6598, %v6599
      %v6629 = vsel %vm1529, %v6597, %v6598
      %v6630 = vsel %vm1529, %v6596, %v6597
      %v6631 = vsel %vm1529, %v6613, %v6596
      %v6632 = vpack.c.bf16 %v6628, %v6629
      %v6633 = vpack.c.bf16 %v6626, %v6627
      %v6634 = vpack.c.bf16 %v6624, %v6625
      %v6635 = vpack.c.bf16 %v6622, %v6623
      %v6636 = vpack.c.bf16 %v6620, %v6621
      %v6637 = vpack.c.bf16 %v6618, %v6619
      %v6638 = vpack.c.bf16 %v6616, %v6617
      %v6639 = vpack.c.bf16 %v6614, %v6615
      %v6640 = vpack.c.bf16 %v6630, %v6631
      %v6650 = vunpack.c.l.b16 %v6632
      %v6651 = vunpack.c.h.b16 %v6632
      %v6652 = vunpack.c.l.b16 %v6633
      %v6653 = vunpack.c.h.b16 %v6633
      %v6654 = vunpack.c.l.b16 %v6634
      %v6655 = vunpack.c.h.b16 %v6634
      %v6656 = vunpack.c.l.b16 %v6635
      %v6657 = vunpack.c.h.b16 %v6635
      %v6658 = vunpack.c.l.b16 %v6636
      %v6659 = vunpack.c.h.b16 %v6636
      %v6660 = vunpack.c.l.b16 %v6637
      %v6661 = vunpack.c.h.b16 %v6637
      %v6662 = vunpack.c.l.b16 %v6638
      %v6663 = vunpack.c.h.b16 %v6638
      %v6664 = vunpack.c.l.b16 %v6639
      %v6665 = vunpack.c.h.b16 %v6639
      %v6666 = vunpack.c.l.b16 %v6640
      %v6667 = vunpack.c.h.b16 %v6640
      %v6668 = vpack.c.b16 %v6650, %v6650
      %v6669 = vpack.c.b16 %v6651, %v6651
      %v6670 = vpack.c.b16 %v6652, %v6652
      %v6671 = vpack.c.b16 %v6653, %v6653
      %v6672 = vpack.c.b16 %v6654, %v6654
      %v6673 = vpack.c.b16 %v6655, %v6655
      %v6674 = vpack.c.b16 %v6656, %v6656
      %v6675 = vpack.c.b16 %v6657, %v6657
      %v6676 = vpack.c.b16 %v6658, %v6658
      %v6677 = vpack.c.b16 %v6659, %v6659
      %v6678 = vpack.c.b16 %v6660, %v6660
      %v6679 = vpack.c.b16 %v6661, %v6661
      %v6680 = vpack.c.b16 %v6662, %v6662
      %v6681 = vpack.c.b16 %v6663, %v6663
      %v6682 = vpack.c.b16 %v6664, %v6664
      %v6683 = vpack.c.b16 %v6665, %v6665
      %v6684 = vpack.c.b16 %v6666, %v6666
      %v6685 = vpack.c.b16 %v6667, %v6667
      %6704 = vst.msk [vmem:[#allocation2 + $0x8] sm:$0xf] %vm677, %v6668
      %6705 = vst.msk [vmem:[#allocation2 + $0x14] sm:$0xf] %vm677, %v6669
      %6706 = vst.msk [vmem:[#allocation2 + $0x20] sm:$0xf] %vm677, %v6670
      %6707 = vst.msk [vmem:[#allocation2 + $0x2c] sm:$0xf] %vm677, %v6671
      %6708 = vst.msk [vmem:[#allocation2 + $0x38] sm:$0xf] %vm677, %v6672
      %6709 = vst.msk [vmem:[#allocation2 + $0x44] sm:$0xf] %vm677, %v6673
      %6710 = vst.msk [vmem:[#allocation2 + $0x50] sm:$0xf] %vm677, %v6674
      %6711 = vst.msk [vmem:[#allocation2 + $0x5c] sm:$0xf] %vm677, %v6675
      %6712 = vst.msk [vmem:[#allocation2 + $0x68] sm:$0xf] %vm677, %v6676
      %6713 = vst.msk [vmem:[#allocation2 + $0x74] sm:$0xf] %vm677, %v6677
      %6714 = vst.msk [vmem:[#allocation2 + $0x80] sm:$0xf] %vm677, %v6678
      %6715 = vst.msk [vmem:[#allocation2 + $0x8c] sm:$0xf] %vm677, %v6679
      %6716 = vst.msk [vmem:[#allocation2 + $0x98] sm:$0xf] %vm677, %v6680
      %6717 = vst.msk [vmem:[#allocation2 + $0xa4] sm:$0xf] %vm677, %v6681
      %6718 = vst.msk [vmem:[#allocation2 + $0xb0] sm:$0xf] %vm677, %v6682
      %6719 = vst.msk [vmem:[#allocation2 + $0xbc] sm:$0xf] %vm677, %v6683
      %6720 = vst.msk [vmem:[#allocation2 + $0xc8] sm:$0xf] %vm677, %v6684
      %6721 = vst.msk [vmem:[#allocation2 + $0xd4] sm:$0xf] %vm677, %v6685
      %v6722 = vld [vmem:[#allocation2] sm:$0xff]
      %v6723 = vld [vmem:[#allocation2 + $0x8] sm:$0xf]
      %v6724 = vld [vmem:[#allocation2 + $0xc] sm:$0xff]
      %v6725 = vld [vmem:[#allocation2 + $0x14] sm:$0xf]
      %v6726 = vld [vmem:[#allocation2 + $0x18] sm:$0xff]
      %v6727 = vld [vmem:[#allocation2 + $0x20] sm:$0xf]
      %v6728 = vld [vmem:[#allocation2 + $0x24] sm:$0xff]
      %v6729 = vld [vmem:[#allocation2 + $0x2c] sm:$0xf]
      %v6730 = vld [vmem:[#allocation2 + $0x30] sm:$0xff]
      %v6731 = vld [vmem:[#allocation2 + $0x38] sm:$0xf]
      %v6732 = vld [vmem:[#allocation2 + $0x3c] sm:$0xff]
      %v6733 = vld [vmem:[#allocation2 + $0x44] sm:$0xf]
      %v6734 = vld [vmem:[#allocation2 + $0x48] sm:$0xff]
      %v6735 = vld [vmem:[#allocation2 + $0x50] sm:$0xf]
      %v6736 = vld [vmem:[#allocation2 + $0x54] sm:$0xff]
      %v6737 = vld [vmem:[#allocation2 + $0x5c] sm:$0xf]
      %v6738 = vld [vmem:[#allocation2 + $0x60] sm:$0xff]
      %v6739 = vld [vmem:[#allocation2 + $0x68] sm:$0xf]
      %v6740 = vld [vmem:[#allocation2 + $0x6c] sm:$0xff]
      %v6741 = vld [vmem:[#allocation2 + $0x74] sm:$0xf]
      %v6742 = vld [vmem:[#allocation2 + $0x78] sm:$0xff]
      %v6743 = vld [vmem:[#allocation2 + $0x80] sm:$0xf]
      %v6744 = vld [vmem:[#allocation2 + $0x84] sm:$0xff]
      %v6745 = vld [vmem:[#allocation2 + $0x8c] sm:$0xf]
      %v6746 = vld [vmem:[#allocation2 + $0x90] sm:$0xff]
      %v6747 = vld [vmem:[#allocation2 + $0x98] sm:$0xf]
      %v6748 = vld [vmem:[#allocation2 + $0x9c] sm:$0xff]
      %v6749 = vld [vmem:[#allocation2 + $0xa4] sm:$0xf]
      %v6750 = vld [vmem:[#allocation2 + $0xa8] sm:$0xff]
      %v6751 = vld [vmem:[#allocation2 + $0xb0] sm:$0xf]
      %v6752 = vld [vmem:[#allocation2 + $0xb4] sm:$0xff]
      %v6753 = vld [vmem:[#allocation2 + $0xbc] sm:$0xf]
      %v6754 = vld [vmem:[#allocation2 + $0xc0] sm:$0xff]
      %v6755 = vld [vmem:[#allocation2 + $0xc8] sm:$0xf]
      %v6756 = vld [vmem:[#allocation2 + $0xcc] sm:$0xff]
      %v6757 = vld [vmem:[#allocation2 + $0xd4] sm:$0xf]
      %v6759 = vlaneseq
      %v6760 = vshrl.u32 %v6759, 7
      %v6761 = vsub.s32 0, %v6760
      %v6762 = vrot.slane %v5659, %v6761
      %v6800 = vunpack.c.l.b16 %v6722
      %v6801 = vunpack.c.h.b16 %v6722
      %v6802 = vunpack.c.l.b16 %v6723
      %v6803 = vunpack.c.l.b16 %v6724
      %v6804 = vunpack.c.h.b16 %v6724
      %v6805 = vunpack.c.l.b16 %v6725
      %v6806 = vunpack.c.l.b16 %v6726
      %v6807 = vunpack.c.h.b16 %v6726
      %v6808 = vunpack.c.l.b16 %v6727
      %v6809 = vunpack.c.l.b16 %v6728
      %v6810 = vunpack.c.h.b16 %v6728
      %v6811 = vunpack.c.l.b16 %v6729
      %v6812 = vunpack.c.l.b16 %v6730
      %v6813 = vunpack.c.h.b16 %v6730
      %v6814 = vunpack.c.l.b16 %v6731
      %v6815 = vunpack.c.l.b16 %v6732
      %v6816 = vunpack.c.h.b16 %v6732
      %v6817 = vunpack.c.l.b16 %v6733
      %v6818 = vunpack.c.l.b16 %v6734
      %v6819 = vunpack.c.h.b16 %v6734
      %v6820 = vunpack.c.l.b16 %v6735
      %v6821 = vunpack.c.l.b16 %v6736
      %v6822 = vunpack.c.h.b16 %v6736
      %v6823 = vunpack.c.l.b16 %v6737
      %v6824 = vunpack.c.l.b16 %v6738
      %v6825 = vunpack.c.h.b16 %v6738
      %v6826 = vunpack.c.l.b16 %v6739
      %v6827 = vunpack.c.l.b16 %v6740
      %v6828 = vunpack.c.h.b16 %v6740
      %v6829 = vunpack.c.l.b16 %v6741
      %v6830 = vunpack.c.l.b16 %v6742
      %v6831 = vunpack.c.h.b16 %v6742
      %v6832 = vunpack.c.l.b16 %v6743
      %v6833 = vunpack.c.l.b16 %v6744
      %v6834 = vunpack.c.h.b16 %v6744
      %v6835 = vunpack.c.l.b16 %v6745
      %v6836 = vunpack.c.l.b16 %v6746
      %v6837 = vunpack.c.h.b16 %v6746
      %v6838 = vunpack.c.l.b16 %v6747
      %v6839 = vunpack.c.l.b16 %v6748
      %v6840 = vunpack.c.h.b16 %v6748
      %v6841 = vunpack.c.l.b16 %v6749
      %v6842 = vunpack.c.l.b16 %v6750
      %v6843 = vunpack.c.h.b16 %v6750
      %v6844 = vunpack.c.l.b16 %v6751
      %v6845 = vunpack.c.l.b16 %v6752
      %v6846 = vunpack.c.h.b16 %v6752
      %v6847 = vunpack.c.l.b16 %v6753
      %v6848 = vunpack.c.l.b16 %v6754
      %v6849 = vunpack.c.h.b16 %v6754
      %v6850 = vunpack.c.l.b16 %v6755
      %v6851 = vunpack.c.l.b16 %v6756
      %v6852 = vunpack.c.h.b16 %v6756
      %v6853 = vunpack.c.l.b16 %v6757
      %v6854 = vpack.c.b16 %v6803, %v6800
      %v6855 = vpack.c.b16 %v6804, %v6801
      %v6856 = vpack.c.b16 %v6805, %v6802
      %v6857 = vpack.c.b16 %v6809, %v6806
      %v6858 = vpack.c.b16 %v6810, %v6807
      %v6859 = vpack.c.b16 %v6811, %v6808
      %v6860 = vpack.c.b16 %v6815, %v6812
      %v6861 = vpack.c.b16 %v6816, %v6813
      %v6862 = vpack.c.b16 %v6817, %v6814
      %v6863 = vpack.c.b16 %v6821, %v6818
      %v6864 = vpack.c.b16 %v6822, %v6819
      %v6865 = vpack.c.b16 %v6823, %v6820
      %v6866 = vpack.c.b16 %v6827, %v6824
      %v6867 = vpack.c.b16 %v6828, %v6825
      %v6868 = vpack.c.b16 %v6829, %v6826
      %v6869 = vpack.c.b16 %v6833, %v6830
      %v6870 = vpack.c.b16 %v6834, %v6831
      %v6871 = vpack.c.b16 %v6835, %v6832
      %v6872 = vpack.c.b16 %v6839, %v6836
      %v6873 = vpack.c.b16 %v6840, %v6837
      %v6874 = vpack.c.b16 %v6841, %v6838
      %v6875 = vpack.c.b16 %v6845, %v6842
      %v6876 = vpack.c.b16 %v6846, %v6843
      %v6877 = vpack.c.b16 %v6847, %v6844
      %v6878 = vpack.c.b16 %v6851, %v6848
      %v6879 = vpack.c.b16 %v6852, %v6849
      %v6880 = vpack.c.b16 %v6853, %v6850
      %v6935 = vunpack.c.l.b16 %v5622
      %v6936 = vunpack.c.l.b16 %v5623
      %v6937 = vunpack.c.l.b16 %v5624
      %v6938 = vunpack.c.l.b16 %v5625
      %v6939 = vunpack.c.l.b16 %v5626
      %v6940 = vunpack.c.l.b16 %v5627
      %v6941 = vunpack.c.l.b16 %v5628
      %v6942 = vunpack.c.l.b16 %v5629
      %v6943 = vunpack.c.l.b16 %v5630
      %v6944 = vunpack.c.l.b16 %v5631
      %v6945 = vunpack.c.l.b16 %v5632
      %v6946 = vunpack.c.l.b16 %v5633
      %v6947 = vunpack.c.l.b16 %v5634
      %v6948 = vunpack.c.l.b16 %v5635
      %v6949 = vunpack.c.l.b16 %v5636
      %v6950 = vunpack.c.l.b16 %v5637
      %v6951 = vunpack.c.l.b16 %v5638
      %v6952 = vunpack.c.l.b16 %v5639
      %v6953 = vunpack.c.l.b16 %v5640
      %v6954 = vunpack.c.l.b16 %v5641
      %v6955 = vunpack.c.l.b16 %v5642
      %v6956 = vunpack.c.l.b16 %v5643
      %v6957 = vunpack.c.l.b16 %v5644
      %v6958 = vunpack.c.l.b16 %v5645
      %v6959 = vunpack.c.l.b16 %v5646
      %v6960 = vunpack.c.l.b16 %v5647
      %v6961 = vunpack.c.l.b16 %v5648
      %v6962 = vunpack.c.l.b16 %v5649
      %v6963 = vunpack.c.l.b16 %v5650
      %v6964 = vunpack.c.l.b16 %v5651
      %v6965 = vunpack.c.l.b16 %v5652
      %v6966 = vunpack.c.l.b16 %v5653
      %v6967 = vunpack.c.l.b16 %v5654
      %v6968 = vunpack.c.l.b16 %v5655
      %v6969 = vunpack.c.l.b16 %v5656
      %v6970 = vunpack.c.l.b16 %v5657
      %v6971 = vpack.c.b16 %v6936, %v6935
      %v6972 = vpack.c.b16 %v6938, %v6937
      %v6973 = vpack.c.b16 %v6940, %v6939
      %v6974 = vpack.c.b16 %v6942, %v6941
      %v6975 = vpack.c.b16 %v6944, %v6943
      %v6976 = vpack.c.b16 %v6946, %v6945
      %v6977 = vpack.c.b16 %v6948, %v6947
      %v6978 = vpack.c.b16 %v6950, %v6949
      %v6979 = vpack.c.b16 %v6952, %v6951
      %v6980 = vpack.c.b16 %v6954, %v6953
      %v6981 = vpack.c.b16 %v6956, %v6955
      %v6982 = vpack.c.b16 %v6958, %v6957
      %v6983 = vpack.c.b16 %v6960, %v6959
      %v6984 = vpack.c.b16 %v6962, %v6961
      %v6985 = vpack.c.b16 %v6964, %v6963
      %v6986 = vpack.c.b16 %v6966, %v6965
      %v6987 = vpack.c.b16 %v6968, %v6967
      %v6988 = vpack.c.b16 %v6970, %v6969
      %v7008 = vsel %vm1923, %v6856, 0
      %v7011 = vsel %vm1923, %v6859, 0
      %v7014 = vsel %vm1923, %v6862, 0
      %v7017 = vsel %vm1923, %v6865, 0
      %v7020 = vsel %vm1923, %v6868, 0
      %v7023 = vsel %vm1923, %v6871, 0
      %v7026 = vsel %vm1923, %v6874, 0
      %v7029 = vsel %vm1923, %v6877, 0
      %v7032 = vsel %vm1923, %v6880, 0
      %7034 = vmatprep.subr.bf16.mxu0 0
      %7035 = vmatpush1.bf16.msra.mxu0 %v6978
      %7036 = vmatprep.subr.bf16.mxu0 0
      %7037 = vmatpush1.bf16.msra.mxu0 %v6977
      %7038 = vmatprep.subr.bf16.mxu0 0
      %7039 = vmatpush1.bf16.msra.mxu0 %v6976
      %7040 = vmatprep.subr.bf16.mxu0 0
      %7041 = vmatpush1.bf16.msra.mxu0 %v6975
      %7042 = vmatprep.subr.bf16.mxu0 0
      %7043 = vmatpush1.bf16.msra.mxu0 %v6974
      %7044 = vmatprep.subr.bf16.mxu0 0
      %7045 = vmatpush1.bf16.msra.mxu0 %v6973
      %7046 = vmatprep.subr.bf16.mxu0 0
      %7047 = vmatpush1.bf16.msra.mxu0 %v6972
      %7048 = vmatprep.subr.bf16.mxu0 0
      %7049 = vmatpush1.bf16.msra.mxu0 %v6971
      %7050 = vmatprep.subr.bf16.mxu0 0
      %7051 = vmatpush2.bf16.msra.mxu0 %v6986
      %7052 = vmatprep.subr.bf16.mxu0 0
      %7053 = vmatpush2.bf16.msra.mxu0 %v6985
      %7054 = vmatprep.subr.bf16.mxu0 0
      %7055 = vmatpush2.bf16.msra.mxu0 %v6984
      %7056 = vmatprep.subr.bf16.mxu0 0
      %7057 = vmatpush2.bf16.msra.mxu0 %v6983
      %7058 = vmatprep.subr.bf16.mxu0 0
      %7059 = vmatpush2.bf16.msra.mxu0 %v6982
      %7060 = vmatprep.subr.bf16.mxu0 0
      %7061 = vmatpush2.bf16.msra.mxu0 %v6981
      %7062 = vmatprep.subr.bf16.mxu0 0
      %7063 = vmatpush2.bf16.msra.mxu0 %v6980
      %7064 = vmatprep.subr.bf16.mxu0 0
      %7065 = vmatpush2.bf16.msra.mxu0 %v6979
      %7066 = vmatprep.mubr.bf16.mxu0 %v6855
      %7067 = vmatmul.mubr.bf16.gmra.mxu0 %v6854
      %v7068 = vpop.f32.mrf.mxu0
      %v7069 = vadd.f32 %v6762, %v7068
      %v7070 = vpop.f32.mrf.mxu0
      %v7071 = vpop.f32.mrf.mxu0
      %v7072 = vadd.f32 %v6762, %v7071
      %v7073 = vpop.f32.mrf.mxu0
      %7074 = vmatprep.mubr.bf16.mxu0 %v6858
      %7075 = vmatmul.mubr.bf16.gmra.mxu0 %v6857
      %v7076 = vpop.f32.mrf.mxu0
      %v7077 = vadd.f32 %v6762, %v7076
      %v7078 = vpop.f32.mrf.mxu0
      %v7079 = vpop.f32.mrf.mxu0
      %v7080 = vadd.f32 %v6762, %v7079
      %v7081 = vpop.f32.mrf.mxu0
      %7082 = vmatprep.mubr.bf16.mxu0 %v6861
      %7083 = vmatmul.mubr.bf16.gmra.mxu0 %v6860
      %v7084 = vpop.f32.mrf.mxu0
      %v7085 = vadd.f32 %v6762, %v7084
      %v7086 = vpop.f32.mrf.mxu0
      %v7087 = vpop.f32.mrf.mxu0
      %v7088 = vadd.f32 %v6762, %v7087
      %v7089 = vpop.f32.mrf.mxu0
      %7090 = vmatprep.mubr.bf16.mxu0 %v6864
      %7091 = vmatmul.mubr.bf16.gmra.mxu0 %v6863
      %v7092 = vpop.f32.mrf.mxu0
      %v7093 = vadd.f32 %v6762, %v7092
      %v7094 = vpop.f32.mrf.mxu0
      %v7095 = vpop.f32.mrf.mxu0
      %v7096 = vadd.f32 %v6762, %v7095
      %v7097 = vpop.f32.mrf.mxu0
      %7098 = vmatprep.mubr.bf16.mxu0 %v6867
      %7099 = vmatmul.mubr.bf16.gmra.mxu0 %v6866
      %v7100 = vpop.f32.mrf.mxu0
      %v7101 = vadd.f32 %v6762, %v7100
      %v7102 = vpop.f32.mrf.mxu0
      %v7103 = vpop.f32.mrf.mxu0
      %v7104 = vadd.f32 %v6762, %v7103
      %v7105 = vpop.f32.mrf.mxu0
      %7106 = vmatprep.mubr.bf16.mxu0 %v6870
      %7107 = vmatmul.mubr.bf16.gmra.mxu0 %v6869
      %v7108 = vpop.f32.mrf.mxu0
      %v7109 = vadd.f32 %v6762, %v7108
      %v7110 = vpop.f32.mrf.mxu0
      %v7111 = vpop.f32.mrf.mxu0
      %v7112 = vadd.f32 %v6762, %v7111
      %v7113 = vpop.f32.mrf.mxu0
      %7114 = vmatprep.mubr.bf16.mxu0 %v6873
      %7115 = vmatmul.mubr.bf16.gmra.mxu0 %v6872
      %v7116 = vpop.f32.mrf.mxu0
      %v7117 = vadd.f32 %v6762, %v7116
      %v7118 = vpop.f32.mrf.mxu0
      %v7119 = vpop.f32.mrf.mxu0
      %v7120 = vadd.f32 %v6762, %v7119
      %v7121 = vpop.f32.mrf.mxu0
      %7122 = vmatprep.mubr.bf16.mxu0 %v6876
      %7123 = vmatmul.mubr.bf16.gmra.mxu0 %v6875
      %v7124 = vpop.f32.mrf.mxu0
      %v7125 = vadd.f32 %v6762, %v7124
      %v7126 = vpop.f32.mrf.mxu0
      %v7127 = vpop.f32.mrf.mxu0
      %v7128 = vadd.f32 %v6762, %v7127
      %v7129 = vpop.f32.mrf.mxu0
      %7130 = vmatprep.mubr.bf16.mxu0 %v6879
      %7131 = vmatmul.mubr.bf16.gmra.mxu0 %v6878
      %v7132 = vpop.f32.mrf.mxu0
      %v7133 = vadd.f32 %v6762, %v7132
      %v7134 = vpop.f32.mrf.mxu0
      %v7135 = vpop.f32.mrf.mxu0
      %v7136 = vadd.f32 %v6762, %v7135
      %v7137 = vpop.f32.mrf.mxu0
      %7138 = vdwg.mxu0
      %7139 = vmatprep.subr.bf16.mxu0 0
      %7140 = vmatpush1.bf16.msra.mxu0 0
      %7141 = vmatprep.subr.bf16.mxu0 0
      %7142 = vmatpush1.bf16.msra.mxu0 0
      %7143 = vmatprep.subr.bf16.mxu0 0
      %7144 = vmatpush1.bf16.msra.mxu0 0
      %7145 = vmatprep.subr.bf16.mxu0 0
      %7146 = vmatpush1.bf16.msra.mxu0 0
      %7147 = vmatprep.subr.bf16.mxu0 0
      %7148 = vmatpush1.bf16.msra.mxu0 0
      %7149 = vmatprep.subr.bf16.mxu0 0
      %7150 = vmatpush1.bf16.msra.mxu0 0
      %7151 = vmatprep.subr.bf16.mxu0 0
      %7152 = vmatpush1.bf16.msra.mxu0 %v6988
      %7153 = vmatprep.subr.bf16.mxu0 0
      %7154 = vmatpush1.bf16.msra.mxu0 %v6987
      %7155 = vmatprep.subr.bf16.mxu0 0
      %7156 = vmatpush2.bf16.msra.mxu0 0
      %7157 = vmatprep.subr.bf16.mxu0 0
      %7158 = vmatpush2.bf16.msra.mxu0 0
      %7159 = vmatprep.subr.bf16.mxu0 0
      %7160 = vmatpush2.bf16.msra.mxu0 0
      %7161 = vmatprep.subr.bf16.mxu0 0
      %7162 = vmatpush2.bf16.msra.mxu0 0
      %7163 = vmatprep.subr.bf16.mxu0 0
      %7164 = vmatpush2.bf16.msra.mxu0 0
      %7165 = vmatprep.subr.bf16.mxu0 0
      %7166 = vmatpush2.bf16.msra.mxu0 0
      %7167 = vmatprep.subr.bf16.mxu0 0
      %7168 = vmatpush2.bf16.msra.mxu0 0
      %7169 = vmatprep.subr.bf16.mxu0 0
      %7170 = vmatpush2.bf16.msra.mxu0 0
      %7171 = vmatprep.mubr.bf16.mxu0 0
      %7172 = vmatmul.mubr.bf16.gmra.mxu0 %v7008
      %v7173 = vpop.f32.mrf.mxu0
      %v7174 = vadd.f32 %v7069, %v7173
      %v7175 = vpop.f32.mrf.mxu0
      %v7176 = vpop.f32.mrf.mxu0
      %v7177 = vadd.f32 %v7072, %v7176
      %v7178 = vpop.f32.mrf.mxu0
      %7179 = vmatprep.mubr.bf16.mxu0 0
      %7180 = vmatmul.mubr.bf16.gmra.mxu0 %v7011
      %v7181 = vpop.f32.mrf.mxu0
      %v7182 = vadd.f32 %v7077, %v7181
      %v7183 = vpop.f32.mrf.mxu0
      %v7184 = vpop.f32.mrf.mxu0
      %v7185 = vadd.f32 %v7080, %v7184
      %v7186 = vpop.f32.mrf.mxu0
      %7187 = vmatprep.mubr.bf16.mxu0 0
      %7188 = vmatmul.mubr.bf16.gmra.mxu0 %v7014
      %v7189 = vpop.f32.mrf.mxu0
      %v7190 = vadd.f32 %v7085, %v7189
      %v7191 = vpop.f32.mrf.mxu0
      %v7192 = vpop.f32.mrf.mxu0
      %v7193 = vadd.f32 %v7088, %v7192
      %v7194 = vpop.f32.mrf.mxu0
      %7195 = vmatprep.mubr.bf16.mxu0 0
      %7196 = vmatmul.mubr.bf16.gmra.mxu0 %v7017
      %v7197 = vpop.f32.mrf.mxu0
      %v7198 = vadd.f32 %v7093, %v7197
      %v7199 = vpop.f32.mrf.mxu0
      %v7200 = vpop.f32.mrf.mxu0
      %v7201 = vadd.f32 %v7096, %v7200
      %v7202 = vpop.f32.mrf.mxu0
      %7203 = vmatprep.mubr.bf16.mxu0 0
      %7204 = vmatmul.mubr.bf16.gmra.mxu0 %v7020
      %v7205 = vpop.f32.mrf.mxu0
      %v7206 = vadd.f32 %v7101, %v7205
      %v7207 = vpop.f32.mrf.mxu0
      %v7208 = vpop.f32.mrf.mxu0
      %v7209 = vadd.f32 %v7104, %v7208
      %v7210 = vpop.f32.mrf.mxu0
      %7211 = vmatprep.mubr.bf16.mxu0 0
      %7212 = vmatmul.mubr.bf16.gmra.mxu0 %v7023
      %v7213 = vpop.f32.mrf.mxu0
      %v7214 = vadd.f32 %v7109, %v7213
      %v7215 = vpop.f32.mrf.mxu0
      %v7216 = vpop.f32.mrf.mxu0
      %v7217 = vadd.f32 %v7112, %v7216
      %v7218 = vpop.f32.mrf.mxu0
      %7219 = vmatprep.mubr.bf16.mxu0 0
      %7220 = vmatmul.mubr.bf16.gmra.mxu0 %v7026
      %v7221 = vpop.f32.mrf.mxu0
      %v7222 = vadd.f32 %v7117, %v7221
      %v7223 = vpop.f32.mrf.mxu0
      %v7224 = vpop.f32.mrf.mxu0
      %v7225 = vadd.f32 %v7120, %v7224
      %v7226 = vpop.f32.mrf.mxu0
      %7227 = vmatprep.mubr.bf16.mxu0 0
      %7228 = vmatmul.mubr.bf16.gmra.mxu0 %v7029
      %v7229 = vpop.f32.mrf.mxu0
      %v7230 = vadd.f32 %v7125, %v7229
      %v7231 = vpop.f32.mrf.mxu0
      %v7232 = vpop.f32.mrf.mxu0
      %v7233 = vadd.f32 %v7128, %v7232
      %v7234 = vpop.f32.mrf.mxu0
      %7235 = vmatprep.mubr.bf16.mxu0 0
      %7236 = vmatmul.mubr.bf16.gmra.mxu0 %v7032
      %v7237 = vpop.f32.mrf.mxu0
      %v7238 = vadd.f32 %v7133, %v7237
      %v7239 = vpop.f32.mrf.mxu0
      %v7240 = vpop.f32.mrf.mxu0
      %v7241 = vadd.f32 %v7136, %v7240
      %v7242 = vpop.f32.mrf.mxu0
      %7243 = vdwg.mxu0
      %v7244 = vmax.f32 %v7174, 0.0
      %v7245 = vmax.f32 %v7177, 0.0
      %v7246 = vmax.f32 %v7182, 0.0
      %v7247 = vmax.f32 %v7185, 0.0
      %v7248 = vmax.f32 %v7190, 0.0
      %v7249 = vmax.f32 %v7193, 0.0
      %v7250 = vmax.f32 %v7198, 0.0
      %v7251 = vmax.f32 %v7201, 0.0
      %v7252 = vmax.f32 %v7206, 0.0
      %v7253 = vmax.f32 %v7209, 0.0
      %v7254 = vmax.f32 %v7214, 0.0
      %v7255 = vmax.f32 %v7217, 0.0
      %v7256 = vmax.f32 %v7222, 0.0
      %v7257 = vmax.f32 %v7225, 0.0
      %v7258 = vmax.f32 %v7230, 0.0
      %v7259 = vmax.f32 %v7233, 0.0
      %v7260 = vmax.f32 %v7238, 0.0
      %v7261 = vmax.f32 %v7241, 0.0
      %v7262 = vmul.f32 %v7244, %v2182
      %v7263 = vmul.f32 %v7245, %v2187
      %v7264 = vmul.f32 %v7246, %v2192
      %v7265 = vmul.f32 %v7247, %v2197
      %v7266 = vmul.f32 %v7248, %v2202
      %v7267 = vmul.f32 %v7249, %v2207
      %v7268 = vmul.f32 %v7250, %v2212
      %v7269 = vmul.f32 %v7251, %v2217
      %v7270 = vmul.f32 %v7252, %v2222
      %v7271 = vmul.f32 %v7253, %v2227
      %v7272 = vmul.f32 %v7254, %v2232
      %v7273 = vmul.f32 %v7255, %v2237
      %v7274 = vmul.f32 %v7256, %v2242
      %v7275 = vmul.f32 %v7257, %v2247
      %v7276 = vmul.f32 %v7258, %v2252
      %v7277 = vmul.f32 %v7259, %v2257
      %v7278 = vmul.f32 %v7260, %v2262
      %v7279 = vmul.f32 %v7261, %v2267
      %s7280 = scalar_lea.vmem %s4, 432
      %v7281 = vld [vmem:[%s7280] sm:$0xf]
      %v7282 = vld [vmem:[%s7280 + $0x4] sm:$0xf]
      %v7283 = vld [vmem:[%s7280 + $0x8] sm:$0xf]
      %v7284 = vld [vmem:[%s7280 + $0xc] sm:$0xf]
      %v7285 = vld [vmem:[%s7280 + $0x10] sm:$0xf]
      %v7286 = vld [vmem:[%s7280 + $0x14] sm:$0xf]
      %v7287 = vld [vmem:[%s7280 + $0x18] sm:$0xf]
      %v7288 = vld [vmem:[%s7280 + $0x1c] sm:$0xf]
      %v7289 = vld [vmem:[%s7280 + $0x20] sm:$0xf]
      %v7290 = vld [vmem:[%s7280 + $0x24] sm:$0xf]
      %v7291 = vld [vmem:[%s7280 + $0x28] sm:$0xf]
      %v7292 = vld [vmem:[%s7280 + $0x2c] sm:$0xf]
      %v7293 = vld [vmem:[%s7280 + $0x30] sm:$0xf]
      %v7294 = vld [vmem:[%s7280 + $0x34] sm:$0xf]
      %v7295 = vld [vmem:[%s7280 + $0x38] sm:$0xf]
      %v7296 = vld [vmem:[%s7280 + $0x3c] sm:$0xf]
      %v7297 = vld [vmem:[%s7280 + $0x40] sm:$0xf]
      %v7298 = vld [vmem:[%s7280 + $0x44] sm:$0xf]
      %v7299 = vld [vmem:[%s7280 + $0x48] sm:$0xf]
      %v7300 = vld [vmem:[%s7280 + $0x4c] sm:$0xf]
      %v7301 = vld [vmem:[%s7280 + $0x50] sm:$0xf]
      %v7302 = vld [vmem:[%s7280 + $0x54] sm:$0xf]
      %v7303 = vld [vmem:[%s7280 + $0x58] sm:$0xf]
      %v7304 = vld [vmem:[%s7280 + $0x5c] sm:$0xf]
      %v7305 = vld [vmem:[%s7280 + $0x60] sm:$0xf]
      %v7306 = vld [vmem:[%s7280 + $0x64] sm:$0xf]
      %v7307 = vld [vmem:[%s7280 + $0x68] sm:$0xf]
      %v7308 = vld [vmem:[%s7280 + $0x6c] sm:$0xf]
      %v7309 = vld [vmem:[%s7280 + $0x70] sm:$0xf]
      %v7310 = vld [vmem:[%s7280 + $0x74] sm:$0xf]
      %v7311 = vld [vmem:[%s7280 + $0x78] sm:$0xf]
      %v7312 = vld [vmem:[%s7280 + $0x7c] sm:$0xf]
      %v7313 = vld [vmem:[%s7280 + $0x80] sm:$0xf]
      %v7314 = vld [vmem:[%s7280 + $0x84] sm:$0xf]
      %v7315 = vld [vmem:[%s7280 + $0x88] sm:$0xf]
      %v7316 = vld [vmem:[%s7280 + $0x8c] sm:$0xf]
      %s7317 = scalar_lea.vmem %s5, 3
      %v7318 = vld [vmem:[%s7317] sm:$0x1]
      %v7319 = vrot.slane %v7262, 6
      %v7320 = vrot.slane %v7263, 6
      %v7321 = vrot.slane %v7264, 6
      %v7322 = vrot.slane %v7265, 6
      %v7323 = vrot.slane %v7266, 6
      %v7324 = vrot.slane %v7267, 6
      %v7325 = vrot.slane %v7268, 6
      %v7326 = vrot.slane %v7269, 6
      %v7327 = vrot.slane %v7270, 6
      %v7328 = vrot.slane %v7271, 6
      %v7329 = vrot.slane %v7272, 6
      %v7330 = vrot.slane %v7273, 6
      %v7331 = vrot.slane %v7274, 6
      %v7332 = vrot.slane %v7275, 6
      %v7333 = vrot.slane %v7276, 6
      %v7334 = vrot.slane %v7277, 6
      %v7335 = vrot.slane %v7278, 6
      %v7336 = vrot.slane %v7279, 6
      %v7337 = vsel %vm586, %v7335, %v7336
      %v7338 = vsel %vm586, %v7334, %v7335
      %v7339 = vsel %vm586, %v7333, %v7334
      %v7340 = vsel %vm586, %v7332, %v7333
      %v7341 = vsel %vm586, %v7331, %v7332
      %v7342 = vsel %vm586, %v7330, %v7331
      %v7343 = vsel %vm586, %v7329, %v7330
      %v7344 = vsel %vm586, %v7328, %v7329
      %v7345 = vsel %vm586, %v7327, %v7328
      %v7346 = vsel %vm586, %v7326, %v7327
      %v7347 = vsel %vm586, %v7325, %v7326
      %v7348 = vsel %vm586, %v7324, %v7325
      %v7349 = vsel %vm586, %v7323, %v7324
      %v7350 = vsel %vm586, %v7322, %v7323
      %v7351 = vsel %vm586, %v7321, %v7322
      %v7352 = vsel %vm586, %v7320, %v7321
      %v7353 = vsel %vm586, %v7319, %v7320
      %v7354 = vsel %vm586, %v7336, %v7319
      %v7355 = vpack.c.bf16 %v7354, %v7337
      %v7356 = vpack.c.bf16 %v7352, %v7353
      %v7357 = vpack.c.bf16 %v7350, %v7351
      %v7358 = vpack.c.bf16 %v7348, %v7349
      %v7359 = vpack.c.bf16 %v7346, %v7347
      %v7360 = vpack.c.bf16 %v7344, %v7345
      %v7361 = vpack.c.bf16 %v7342, %v7343
      %v7362 = vpack.c.bf16 %v7340, %v7341
      %v7363 = vpack.c.bf16 %v7338, %v7339
      %v7373 = vunpack.c.l.b16 %v7355
      %v7374 = vunpack.c.h.b16 %v7355
      %v7375 = vunpack.c.l.b16 %v7356
      %v7376 = vunpack.c.h.b16 %v7356
      %v7377 = vunpack.c.l.b16 %v7357
      %v7378 = vunpack.c.h.b16 %v7357
      %v7379 = vunpack.c.l.b16 %v7358
      %v7380 = vunpack.c.h.b16 %v7358
      %v7381 = vunpack.c.l.b16 %v7359
      %v7382 = vunpack.c.h.b16 %v7359
      %v7383 = vunpack.c.l.b16 %v7360
      %v7384 = vunpack.c.h.b16 %v7360
      %v7385 = vunpack.c.l.b16 %v7361
      %v7386 = vunpack.c.h.b16 %v7361
      %v7387 = vunpack.c.l.b16 %v7362
      %v7388 = vunpack.c.h.b16 %v7362
      %v7389 = vunpack.c.l.b16 %v7363
      %v7390 = vunpack.c.h.b16 %v7363
      %v7391 = vpack.c.b16 %v7373, %v7373
      %v7392 = vpack.c.b16 %v7374, %v7374
      %v7393 = vpack.c.b16 %v7375, %v7375
      %v7394 = vpack.c.b16 %v7376, %v7376
      %v7395 = vpack.c.b16 %v7377, %v7377
      %v7396 = vpack.c.b16 %v7378, %v7378
      %v7397 = vpack.c.b16 %v7379, %v7379
      %v7398 = vpack.c.b16 %v7380, %v7380
      %v7399 = vpack.c.b16 %v7381, %v7381
      %v7400 = vpack.c.b16 %v7382, %v7382
      %v7401 = vpack.c.b16 %v7383, %v7383
      %v7402 = vpack.c.b16 %v7384, %v7384
      %v7403 = vpack.c.b16 %v7385, %v7385
      %v7404 = vpack.c.b16 %v7386, %v7386
      %v7405 = vpack.c.b16 %v7387, %v7387
      %v7406 = vpack.c.b16 %v7388, %v7388
      %v7407 = vpack.c.b16 %v7389, %v7389
      %v7408 = vpack.c.b16 %v7390, %v7390
      %7427 = vst.msk [vmem:[#allocation2] sm:$0xf] %vm677, %v7391
      %7428 = vst.msk [vmem:[#allocation2 + $0xc] sm:$0xf] %vm677, %v7392
      %7429 = vst.msk [vmem:[#allocation2 + $0x18] sm:$0xf] %vm677, %v7393
      %7430 = vst.msk [vmem:[#allocation2 + $0x24] sm:$0xf] %vm677, %v7394
      %7431 = vst.msk [vmem:[#allocation2 + $0x30] sm:$0xf] %vm677, %v7395
      %7432 = vst.msk [vmem:[#allocation2 + $0x3c] sm:$0xf] %vm677, %v7396
      %7433 = vst.msk [vmem:[#allocation2 + $0x48] sm:$0xf] %vm677, %v7397
      %7434 = vst.msk [vmem:[#allocation2 + $0x54] sm:$0xf] %vm677, %v7398
      %7435 = vst.msk [vmem:[#allocation2 + $0x60] sm:$0xf] %vm677, %v7399
      %7436 = vst.msk [vmem:[#allocation2 + $0x6c] sm:$0xf] %vm677, %v7400
      %7437 = vst.msk [vmem:[#allocation2 + $0x78] sm:$0xf] %vm677, %v7401
      %7438 = vst.msk [vmem:[#allocation2 + $0x84] sm:$0xf] %vm677, %v7402
      %7439 = vst.msk [vmem:[#allocation2 + $0x90] sm:$0xf] %vm677, %v7403
      %7440 = vst.msk [vmem:[#allocation2 + $0x9c] sm:$0xf] %vm677, %v7404
      %7441 = vst.msk [vmem:[#allocation2 + $0xa8] sm:$0xf] %vm677, %v7405
      %7442 = vst.msk [vmem:[#allocation2 + $0xb4] sm:$0xf] %vm677, %v7406
      %7443 = vst.msk [vmem:[#allocation2 + $0xc0] sm:$0xf] %vm677, %v7407
      %7444 = vst.msk [vmem:[#allocation2 + $0xcc] sm:$0xf] %vm677, %v7408
      %v7445 = vrot.slane %v7262, 7
      %v7446 = vrot.slane %v7263, 7
      %v7447 = vrot.slane %v7264, 7
      %v7448 = vrot.slane %v7265, 7
      %v7449 = vrot.slane %v7266, 7
      %v7450 = vrot.slane %v7267, 7
      %v7451 = vrot.slane %v7268, 7
      %v7452 = vrot.slane %v7269, 7
      %v7453 = vrot.slane %v7270, 7
      %v7454 = vrot.slane %v7271, 7
      %v7455 = vrot.slane %v7272, 7
      %v7456 = vrot.slane %v7273, 7
      %v7457 = vrot.slane %v7274, 7
      %v7458 = vrot.slane %v7275, 7
      %v7459 = vrot.slane %v7276, 7
      %v7460 = vrot.slane %v7277, 7
      %v7461 = vrot.slane %v7278, 7
      %v7462 = vrot.slane %v7279, 7
      %v7463 = vsel %vm714, %v7461, %v7462
      %v7464 = vsel %vm714, %v7460, %v7461
      %v7465 = vsel %vm714, %v7459, %v7460
      %v7466 = vsel %vm714, %v7458, %v7459
      %v7467 = vsel %vm714, %v7457, %v7458
      %v7468 = vsel %vm714, %v7456, %v7457
      %v7469 = vsel %vm714, %v7455, %v7456
      %v7470 = vsel %vm714, %v7454, %v7455
      %v7471 = vsel %vm714, %v7453, %v7454
      %v7472 = vsel %vm714, %v7452, %v7453
      %v7473 = vsel %vm714, %v7451, %v7452
      %v7474 = vsel %vm714, %v7450, %v7451
      %v7475 = vsel %vm714, %v7449, %v7450
      %v7476 = vsel %vm714, %v7448, %v7449
      %v7477 = vsel %vm714, %v7447, %v7448
      %v7478 = vsel %vm714, %v7446, %v7447
      %v7479 = vsel %vm714, %v7445, %v7446
      %v7480 = vsel %vm714, %v7462, %v7445
      %v7481 = vpack.c.bf16 %v7480, %v7463
      %v7482 = vpack.c.bf16 %v7478, %v7479
      %v7483 = vpack.c.bf16 %v7476, %v7477
      %v7484 = vpack.c.bf16 %v7474, %v7475
      %v7485 = vpack.c.bf16 %v7472, %v7473
      %v7486 = vpack.c.bf16 %v7470, %v7471
      %v7487 = vpack.c.bf16 %v7468, %v7469
      %v7488 = vpack.c.bf16 %v7466, %v7467
      %v7489 = vpack.c.bf16 %v7464, %v7465
      %v7499 = vunpack.c.l.b16 %v7481
      %v7500 = vunpack.c.h.b16 %v7481
      %v7501 = vunpack.c.l.b16 %v7482
      %v7502 = vunpack.c.h.b16 %v7482
      %v7503 = vunpack.c.l.b16 %v7483
      %v7504 = vunpack.c.h.b16 %v7483
      %v7505 = vunpack.c.l.b16 %v7484
      %v7506 = vunpack.c.h.b16 %v7484
      %v7507 = vunpack.c.l.b16 %v7485
      %v7508 = vunpack.c.h.b16 %v7485
      %v7509 = vunpack.c.l.b16 %v7486
      %v7510 = vunpack.c.h.b16 %v7486
      %v7511 = vunpack.c.l.b16 %v7487
      %v7512 = vunpack.c.h.b16 %v7487
      %v7513 = vunpack.c.l.b16 %v7488
      %v7514 = vunpack.c.h.b16 %v7488
      %v7515 = vunpack.c.l.b16 %v7489
      %v7516 = vunpack.c.h.b16 %v7489
      %v7517 = vpack.c.b16 %v7499, %v7499
      %v7518 = vpack.c.b16 %v7500, %v7500
      %v7519 = vpack.c.b16 %v7501, %v7501
      %v7520 = vpack.c.b16 %v7502, %v7502
      %v7521 = vpack.c.b16 %v7503, %v7503
      %v7522 = vpack.c.b16 %v7504, %v7504
      %v7523 = vpack.c.b16 %v7505, %v7505
      %v7524 = vpack.c.b16 %v7506, %v7506
      %v7525 = vpack.c.b16 %v7507, %v7507
      %v7526 = vpack.c.b16 %v7508, %v7508
      %v7527 = vpack.c.b16 %v7509, %v7509
      %v7528 = vpack.c.b16 %v7510, %v7510
      %v7529 = vpack.c.b16 %v7511, %v7511
      %v7530 = vpack.c.b16 %v7512, %v7512
      %v7531 = vpack.c.b16 %v7513, %v7513
      %v7532 = vpack.c.b16 %v7514, %v7514
      %v7533 = vpack.c.b16 %v7515, %v7515
      %v7534 = vpack.c.b16 %v7516, %v7516
      %7535 = vrot.lane.b32.xlu0 %v7517, 32
      %v7536 = vpop.permute.xlu0 %7535
      %7537 = vrot.lane.b32.xlu0 %v7518, 32
      %v7538 = vpop.permute.xlu0 %7537
      %7539 = vrot.lane.b32.xlu0 %v7519, 32
      %v7540 = vpop.permute.xlu0 %7539
      %7541 = vrot.lane.b32.xlu0 %v7520, 32
      %v7542 = vpop.permute.xlu0 %7541
      %7543 = vrot.lane.b32.xlu0 %v7521, 32
      %v7544 = vpop.permute.xlu0 %7543
      %7545 = vrot.lane.b32.xlu0 %v7522, 32
      %v7546 = vpop.permute.xlu0 %7545
      %7547 = vrot.lane.b32.xlu0 %v7523, 32
      %v7548 = vpop.permute.xlu0 %7547
      %7549 = vrot.lane.b32.xlu0 %v7524, 32
      %v7550 = vpop.permute.xlu0 %7549
      %7551 = vrot.lane.b32.xlu0 %v7525, 32
      %v7552 = vpop.permute.xlu0 %7551
      %7553 = vrot.lane.b32.xlu0 %v7526, 32
      %v7554 = vpop.permute.xlu0 %7553
      %7555 = vrot.lane.b32.xlu0 %v7527, 32
      %v7556 = vpop.permute.xlu0 %7555
      %7557 = vrot.lane.b32.xlu0 %v7528, 32
      %v7558 = vpop.permute.xlu0 %7557
      %7559 = vrot.lane.b32.xlu0 %v7529, 32
      %v7560 = vpop.permute.xlu0 %7559
      %7561 = vrot.lane.b32.xlu0 %v7530, 32
      %v7562 = vpop.permute.xlu0 %7561
      %7563 = vrot.lane.b32.xlu0 %v7531, 32
      %v7564 = vpop.permute.xlu0 %7563
      %7565 = vrot.lane.b32.xlu0 %v7532, 32
      %v7566 = vpop.permute.xlu0 %7565
      %7567 = vrot.lane.b32.xlu0 %v7533, 32
      %v7568 = vpop.permute.xlu0 %7567
      %7569 = vrot.lane.b32.xlu0 %v7534, 32
      %v7570 = vpop.permute.xlu0 %7569
      %7589 = vst.msk [vmem:[#allocation2] sm:$0xf] %vm841, %v7536
      %7590 = vst.msk [vmem:[#allocation2 + $0xc] sm:$0xf] %vm841, %v7538
      %7591 = vst.msk [vmem:[#allocation2 + $0x18] sm:$0xf] %vm841, %v7540
      %7592 = vst.msk [vmem:[#allocation2 + $0x24] sm:$0xf] %vm841, %v7542
      %7593 = vst.msk [vmem:[#allocation2 + $0x30] sm:$0xf] %vm841, %v7544
      %7594 = vst.msk [vmem:[#allocation2 + $0x3c] sm:$0xf] %vm841, %v7546
      %7595 = vst.msk [vmem:[#allocation2 + $0x48] sm:$0xf] %vm841, %v7548
      %7596 = vst.msk [vmem:[#allocation2 + $0x54] sm:$0xf] %vm841, %v7550
      %7597 = vst.msk [vmem:[#allocation2 + $0x60] sm:$0xf] %vm841, %v7552
      %7598 = vst.msk [vmem:[#allocation2 + $0x6c] sm:$0xf] %vm841, %v7554
      %7599 = vst.msk [vmem:[#allocation2 + $0x78] sm:$0xf] %vm841, %v7556
      %7600 = vst.msk [vmem:[#allocation2 + $0x84] sm:$0xf] %vm841, %v7558
      %7601 = vst.msk [vmem:[#allocation2 + $0x90] sm:$0xf] %vm841, %v7560
      %7602 = vst.msk [vmem:[#allocation2 + $0x9c] sm:$0xf] %vm841, %v7562
      %7603 = vst.msk [vmem:[#allocation2 + $0xa8] sm:$0xf] %vm841, %v7564
      %7604 = vst.msk [vmem:[#allocation2 + $0xb4] sm:$0xf] %vm841, %v7566
      %7605 = vst.msk [vmem:[#allocation2 + $0xc0] sm:$0xf] %vm841, %v7568
      %7606 = vst.msk [vmem:[#allocation2 + $0xcc] sm:$0xf] %vm841, %v7570
      %v7607 = vpack.c.bf16 %v7262, %v7279
      %v7608 = vpack.c.bf16 %v7264, %v7263
      %v7609 = vpack.c.bf16 %v7266, %v7265
      %v7610 = vpack.c.bf16 %v7268, %v7267
      %v7611 = vpack.c.bf16 %v7270, %v7269
      %v7612 = vpack.c.bf16 %v7272, %v7271
      %v7613 = vpack.c.bf16 %v7274, %v7273
      %v7614 = vpack.c.bf16 %v7276, %v7275
      %v7615 = vpack.c.bf16 %v7278, %v7277
      %v7625 = vunpack.c.l.b16 %v7607
      %v7626 = vunpack.c.h.b16 %v7607
      %v7627 = vunpack.c.l.b16 %v7608
      %v7628 = vunpack.c.h.b16 %v7608
      %v7629 = vunpack.c.l.b16 %v7609
      %v7630 = vunpack.c.h.b16 %v7609
      %v7631 = vunpack.c.l.b16 %v7610
      %v7632 = vunpack.c.h.b16 %v7610
      %v7633 = vunpack.c.l.b16 %v7611
      %v7634 = vunpack.c.h.b16 %v7611
      %v7635 = vunpack.c.l.b16 %v7612
      %v7636 = vunpack.c.h.b16 %v7612
      %v7637 = vunpack.c.l.b16 %v7613
      %v7638 = vunpack.c.h.b16 %v7613
      %v7639 = vunpack.c.l.b16 %v7614
      %v7640 = vunpack.c.h.b16 %v7614
      %v7641 = vunpack.c.l.b16 %v7615
      %v7642 = vunpack.c.h.b16 %v7615
      %v7643 = vpack.c.b16 %v7625, %v7625
      %v7644 = vpack.c.b16 %v7626, %v7626
      %v7645 = vpack.c.b16 %v7627, %v7627
      %v7646 = vpack.c.b16 %v7628, %v7628
      %v7647 = vpack.c.b16 %v7629, %v7629
      %v7648 = vpack.c.b16 %v7630, %v7630
      %v7649 = vpack.c.b16 %v7631, %v7631
      %v7650 = vpack.c.b16 %v7632, %v7632
      %v7651 = vpack.c.b16 %v7633, %v7633
      %v7652 = vpack.c.b16 %v7634, %v7634
      %v7653 = vpack.c.b16 %v7635, %v7635
      %v7654 = vpack.c.b16 %v7636, %v7636
      %v7655 = vpack.c.b16 %v7637, %v7637
      %v7656 = vpack.c.b16 %v7638, %v7638
      %v7657 = vpack.c.b16 %v7639, %v7639
      %v7658 = vpack.c.b16 %v7640, %v7640
      %v7659 = vpack.c.b16 %v7641, %v7641
      %v7660 = vpack.c.b16 %v7642, %v7642
      %7661 = vrot.lane.b32.xlu0 %v7643, 64
      %v7662 = vpop.permute.xlu0 %7661
      %7663 = vrot.lane.b32.xlu0 %v7644, 64
      %v7664 = vpop.permute.xlu0 %7663
      %7665 = vrot.lane.b32.xlu0 %v7645, 64
      %v7666 = vpop.permute.xlu0 %7665
      %7667 = vrot.lane.b32.xlu0 %v7646, 64
      %v7668 = vpop.permute.xlu0 %7667
      %7669 = vrot.lane.b32.xlu0 %v7647, 64
      %v7670 = vpop.permute.xlu0 %7669
      %7671 = vrot.lane.b32.xlu0 %v7648, 64
      %v7672 = vpop.permute.xlu0 %7671
      %7673 = vrot.lane.b32.xlu0 %v7649, 64
      %v7674 = vpop.permute.xlu0 %7673
      %7675 = vrot.lane.b32.xlu0 %v7650, 64
      %v7676 = vpop.permute.xlu0 %7675
      %7677 = vrot.lane.b32.xlu0 %v7651, 64
      %v7678 = vpop.permute.xlu0 %7677
      %7679 = vrot.lane.b32.xlu0 %v7652, 64
      %v7680 = vpop.permute.xlu0 %7679
      %7681 = vrot.lane.b32.xlu0 %v7653, 64
      %v7682 = vpop.permute.xlu0 %7681
      %7683 = vrot.lane.b32.xlu0 %v7654, 64
      %v7684 = vpop.permute.xlu0 %7683
      %7685 = vrot.lane.b32.xlu0 %v7655, 64
      %v7686 = vpop.permute.xlu0 %7685
      %7687 = vrot.lane.b32.xlu0 %v7656, 64
      %v7688 = vpop.permute.xlu0 %7687
      %7689 = vrot.lane.b32.xlu0 %v7657, 64
      %v7690 = vpop.permute.xlu0 %7689
      %7691 = vrot.lane.b32.xlu0 %v7658, 64
      %v7692 = vpop.permute.xlu0 %7691
      %7693 = vrot.lane.b32.xlu0 %v7659, 64
      %v7694 = vpop.permute.xlu0 %7693
      %7695 = vrot.lane.b32.xlu0 %v7660, 64
      %v7696 = vpop.permute.xlu0 %7695
      %7715 = vst.msk [vmem:[#allocation2] sm:$0xf] %vm968, %v7662
      %7716 = vst.msk [vmem:[#allocation2 + $0xc] sm:$0xf] %vm968, %v7664
      %7717 = vst.msk [vmem:[#allocation2 + $0x18] sm:$0xf] %vm968, %v7666
      %7718 = vst.msk [vmem:[#allocation2 + $0x24] sm:$0xf] %vm968, %v7668
      %7719 = vst.msk [vmem:[#allocation2 + $0x30] sm:$0xf] %vm968, %v7670
      %7720 = vst.msk [vmem:[#allocation2 + $0x3c] sm:$0xf] %vm968, %v7672
      %7721 = vst.msk [vmem:[#allocation2 + $0x48] sm:$0xf] %vm968, %v7674
      %7722 = vst.msk [vmem:[#allocation2 + $0x54] sm:$0xf] %vm968, %v7676
      %7723 = vst.msk [vmem:[#allocation2 + $0x60] sm:$0xf] %vm968, %v7678
      %7724 = vst.msk [vmem:[#allocation2 + $0x6c] sm:$0xf] %vm968, %v7680
      %7725 = vst.msk [vmem:[#allocation2 + $0x78] sm:$0xf] %vm968, %v7682
      %7726 = vst.msk [vmem:[#allocation2 + $0x84] sm:$0xf] %vm968, %v7684
      %7727 = vst.msk [vmem:[#allocation2 + $0x90] sm:$0xf] %vm968, %v7686
      %7728 = vst.msk [vmem:[#allocation2 + $0x9c] sm:$0xf] %vm968, %v7688
      %7729 = vst.msk [vmem:[#allocation2 + $0xa8] sm:$0xf] %vm968, %v7690
      %7730 = vst.msk [vmem:[#allocation2 + $0xb4] sm:$0xf] %vm968, %v7692
      %7731 = vst.msk [vmem:[#allocation2 + $0xc0] sm:$0xf] %vm968, %v7694
      %7732 = vst.msk [vmem:[#allocation2 + $0xcc] sm:$0xf] %vm968, %v7696
      %v7733 = vpack.c.bf16 %v7479, %v7480
      %v7734 = vpack.c.bf16 %v7477, %v7478
      %v7735 = vpack.c.bf16 %v7475, %v7476
      %v7736 = vpack.c.bf16 %v7473, %v7474
      %v7737 = vpack.c.bf16 %v7471, %v7472
      %v7738 = vpack.c.bf16 %v7469, %v7470
      %v7739 = vpack.c.bf16 %v7467, %v7468
      %v7740 = vpack.c.bf16 %v7465, %v7466
      %v7741 = vpack.c.bf16 %v7463, %v7464
      %v7751 = vunpack.c.l.b16 %v7733
      %v7752 = vunpack.c.h.b16 %v7733
      %v7753 = vunpack.c.l.b16 %v7734
      %v7754 = vunpack.c.h.b16 %v7734
      %v7755 = vunpack.c.l.b16 %v7735
      %v7756 = vunpack.c.h.b16 %v7735
      %v7757 = vunpack.c.l.b16 %v7736
      %v7758 = vunpack.c.h.b16 %v7736
      %v7759 = vunpack.c.l.b16 %v7737
      %v7760 = vunpack.c.h.b16 %v7737
      %v7761 = vunpack.c.l.b16 %v7738
      %v7762 = vunpack.c.h.b16 %v7738
      %v7763 = vunpack.c.l.b16 %v7739
      %v7764 = vunpack.c.h.b16 %v7739
      %v7765 = vunpack.c.l.b16 %v7740
      %v7766 = vunpack.c.h.b16 %v7740
      %v7767 = vunpack.c.l.b16 %v7741
      %v7768 = vunpack.c.h.b16 %v7741
      %v7769 = vpack.c.b16 %v7751, %v7751
      %v7770 = vpack.c.b16 %v7752, %v7752
      %v7771 = vpack.c.b16 %v7753, %v7753
      %v7772 = vpack.c.b16 %v7754, %v7754
      %v7773 = vpack.c.b16 %v7755, %v7755
      %v7774 = vpack.c.b16 %v7756, %v7756
      %v7775 = vpack.c.b16 %v7757, %v7757
      %v7776 = vpack.c.b16 %v7758, %v7758
      %v7777 = vpack.c.b16 %v7759, %v7759
      %v7778 = vpack.c.b16 %v7760, %v7760
      %v7779 = vpack.c.b16 %v7761, %v7761
      %v7780 = vpack.c.b16 %v7762, %v7762
      %v7781 = vpack.c.b16 %v7763, %v7763
      %v7782 = vpack.c.b16 %v7764, %v7764
      %v7783 = vpack.c.b16 %v7765, %v7765
      %v7784 = vpack.c.b16 %v7766, %v7766
      %v7785 = vpack.c.b16 %v7767, %v7767
      %v7786 = vpack.c.b16 %v7768, %v7768
      %7787 = vrot.lane.b32.xlu0 %v7769, 96
      %v7788 = vpop.permute.xlu0 %7787
      %7789 = vrot.lane.b32.xlu0 %v7770, 96
      %v7790 = vpop.permute.xlu0 %7789
      %7791 = vrot.lane.b32.xlu0 %v7771, 96
      %v7792 = vpop.permute.xlu0 %7791
      %7793 = vrot.lane.b32.xlu0 %v7772, 96
      %v7794 = vpop.permute.xlu0 %7793
      %7795 = vrot.lane.b32.xlu0 %v7773, 96
      %v7796 = vpop.permute.xlu0 %7795
      %7797 = vrot.lane.b32.xlu0 %v7774, 96
      %v7798 = vpop.permute.xlu0 %7797
      %7799 = vrot.lane.b32.xlu0 %v7775, 96
      %v7800 = vpop.permute.xlu0 %7799
      %7801 = vrot.lane.b32.xlu0 %v7776, 96
      %v7802 = vpop.permute.xlu0 %7801
      %7803 = vrot.lane.b32.xlu0 %v7777, 96
      %v7804 = vpop.permute.xlu0 %7803
      %7805 = vrot.lane.b32.xlu0 %v7778, 96
      %v7806 = vpop.permute.xlu0 %7805
      %7807 = vrot.lane.b32.xlu0 %v7779, 96
      %v7808 = vpop.permute.xlu0 %7807
      %7809 = vrot.lane.b32.xlu0 %v7780, 96
      %v7810 = vpop.permute.xlu0 %7809
      %7811 = vrot.lane.b32.xlu0 %v7781, 96
      %v7812 = vpop.permute.xlu0 %7811
      %7813 = vrot.lane.b32.xlu0 %v7782, 96
      %v7814 = vpop.permute.xlu0 %7813
      %7815 = vrot.lane.b32.xlu0 %v7783, 96
      %v7816 = vpop.permute.xlu0 %7815
      %7817 = vrot.lane.b32.xlu0 %v7784, 96
      %v7818 = vpop.permute.xlu0 %7817
      %7819 = vrot.lane.b32.xlu0 %v7785, 96
      %v7820 = vpop.permute.xlu0 %7819
      %7821 = vrot.lane.b32.xlu0 %v7786, 96
      %v7822 = vpop.permute.xlu0 %7821
      %7841 = vst.msk [vmem:[#allocation2] sm:$0xf] %vm1095, %v7788
      %7842 = vst.msk [vmem:[#allocation2 + $0xc] sm:$0xf] %vm1095, %v7790
      %7843 = vst.msk [vmem:[#allocation2 + $0x18] sm:$0xf] %vm1095, %v7792
      %7844 = vst.msk [vmem:[#allocation2 + $0x24] sm:$0xf] %vm1095, %v7794
      %7845 = vst.msk [vmem:[#allocation2 + $0x30] sm:$0xf] %vm1095, %v7796
      %7846 = vst.msk [vmem:[#allocation2 + $0x3c] sm:$0xf] %vm1095, %v7798
      %7847 = vst.msk [vmem:[#allocation2 + $0x48] sm:$0xf] %vm1095, %v7800
      %7848 = vst.msk [vmem:[#allocation2 + $0x54] sm:$0xf] %vm1095, %v7802
      %7849 = vst.msk [vmem:[#allocation2 + $0x60] sm:$0xf] %vm1095, %v7804
      %7850 = vst.msk [vmem:[#allocation2 + $0x6c] sm:$0xf] %vm1095, %v7806
      %7851 = vst.msk [vmem:[#allocation2 + $0x78] sm:$0xf] %vm1095, %v7808
      %7852 = vst.msk [vmem:[#allocation2 + $0x84] sm:$0xf] %vm1095, %v7810
      %7853 = vst.msk [vmem:[#allocation2 + $0x90] sm:$0xf] %vm1095, %v7812
      %7854 = vst.msk [vmem:[#allocation2 + $0x9c] sm:$0xf] %vm1095, %v7814
      %7855 = vst.msk [vmem:[#allocation2 + $0xa8] sm:$0xf] %vm1095, %v7816
      %7856 = vst.msk [vmem:[#allocation2 + $0xb4] sm:$0xf] %vm1095, %v7818
      %7857 = vst.msk [vmem:[#allocation2 + $0xc0] sm:$0xf] %vm1095, %v7820
      %7858 = vst.msk [vmem:[#allocation2 + $0xcc] sm:$0xf] %vm1095, %v7822
      %v7859 = vpack.c.bf16 %v7263, %v7262
      %v7860 = vpack.c.bf16 %v7265, %v7264
      %v7861 = vpack.c.bf16 %v7267, %v7266
      %v7862 = vpack.c.bf16 %v7269, %v7268
      %v7863 = vpack.c.bf16 %v7271, %v7270
      %v7864 = vpack.c.bf16 %v7273, %v7272
      %v7865 = vpack.c.bf16 %v7275, %v7274
      %v7866 = vpack.c.bf16 %v7277, %v7276
      %v7867 = vpack.c.bf16 %v7279, %v7278
      %v7877 = vunpack.c.l.b16 %v7859
      %v7878 = vunpack.c.h.b16 %v7859
      %v7879 = vunpack.c.l.b16 %v7860
      %v7880 = vunpack.c.h.b16 %v7860
      %v7881 = vunpack.c.l.b16 %v7861
      %v7882 = vunpack.c.h.b16 %v7861
      %v7883 = vunpack.c.l.b16 %v7862
      %v7884 = vunpack.c.h.b16 %v7862
      %v7885 = vunpack.c.l.b16 %v7863
      %v7886 = vunpack.c.h.b16 %v7863
      %v7887 = vunpack.c.l.b16 %v7864
      %v7888 = vunpack.c.h.b16 %v7864
      %v7889 = vunpack.c.l.b16 %v7865
      %v7890 = vunpack.c.h.b16 %v7865
      %v7891 = vunpack.c.l.b16 %v7866
      %v7892 = vunpack.c.h.b16 %v7866
      %v7893 = vunpack.c.l.b16 %v7867
      %v7894 = vunpack.c.h.b16 %v7867
      %v7895 = vpack.c.b16 %v7877, %v7877
      %v7896 = vpack.c.b16 %v7878, %v7878
      %v7897 = vpack.c.b16 %v7879, %v7879
      %v7898 = vpack.c.b16 %v7880, %v7880
      %v7899 = vpack.c.b16 %v7881, %v7881
      %v7900 = vpack.c.b16 %v7882, %v7882
      %v7901 = vpack.c.b16 %v7883, %v7883
      %v7902 = vpack.c.b16 %v7884, %v7884
      %v7903 = vpack.c.b16 %v7885, %v7885
      %v7904 = vpack.c.b16 %v7886, %v7886
      %v7905 = vpack.c.b16 %v7887, %v7887
      %v7906 = vpack.c.b16 %v7888, %v7888
      %v7907 = vpack.c.b16 %v7889, %v7889
      %v7908 = vpack.c.b16 %v7890, %v7890
      %v7909 = vpack.c.b16 %v7891, %v7891
      %v7910 = vpack.c.b16 %v7892, %v7892
      %v7911 = vpack.c.b16 %v7893, %v7893
      %v7912 = vpack.c.b16 %v7894, %v7894
      %7931 = vst.msk [vmem:[#allocation2 + $0x4] sm:$0xf] %vm677, %v7895
      %7932 = vst.msk [vmem:[#allocation2 + $0x10] sm:$0xf] %vm677, %v7896
      %7933 = vst.msk [vmem:[#allocation2 + $0x1c] sm:$0xf] %vm677, %v7897
      %7934 = vst.msk [vmem:[#allocation2 + $0x28] sm:$0xf] %vm677, %v7898
      %7935 = vst.msk [vmem:[#allocation2 + $0x34] sm:$0xf] %vm677, %v7899
      %7936 = vst.msk [vmem:[#allocation2 + $0x40] sm:$0xf] %vm677, %v7900
      %7937 = vst.msk [vmem:[#allocation2 + $0x4c] sm:$0xf] %vm677, %v7901
      %7938 = vst.msk [vmem:[#allocation2 + $0x58] sm:$0xf] %vm677, %v7902
      %7939 = vst.msk [vmem:[#allocation2 + $0x64] sm:$0xf] %vm677, %v7903
      %7940 = vst.msk [vmem:[#allocation2 + $0x70] sm:$0xf] %vm677, %v7904
      %7941 = vst.msk [vmem:[#allocation2 + $0x7c] sm:$0xf] %vm677, %v7905
      %7942 = vst.msk [vmem:[#allocation2 + $0x88] sm:$0xf] %vm677, %v7906
      %7943 = vst.msk [vmem:[#allocation2 + $0x94] sm:$0xf] %vm677, %v7907
      %7944 = vst.msk [vmem:[#allocation2 + $0xa0] sm:$0xf] %vm677, %v7908
      %7945 = vst.msk [vmem:[#allocation2 + $0xac] sm:$0xf] %vm677, %v7909
      %7946 = vst.msk [vmem:[#allocation2 + $0xb8] sm:$0xf] %vm677, %v7910
      %7947 = vst.msk [vmem:[#allocation2 + $0xc4] sm:$0xf] %vm677, %v7911
      %7948 = vst.msk [vmem:[#allocation2 + $0xd0] sm:$0xf] %vm677, %v7912
      %v7949 = vrot.slane %v7262, 1
      %v7950 = vrot.slane %v7263, 1
      %v7951 = vrot.slane %v7264, 1
      %v7952 = vrot.slane %v7265, 1
      %v7953 = vrot.slane %v7266, 1
      %v7954 = vrot.slane %v7267, 1
      %v7955 = vrot.slane %v7268, 1
      %v7956 = vrot.slane %v7269, 1
      %v7957 = vrot.slane %v7270, 1
      %v7958 = vrot.slane %v7271, 1
      %v7959 = vrot.slane %v7272, 1
      %v7960 = vrot.slane %v7273, 1
      %v7961 = vrot.slane %v7274, 1
      %v7962 = vrot.slane %v7275, 1
      %v7963 = vrot.slane %v7276, 1
      %v7964 = vrot.slane %v7277, 1
      %v7965 = vrot.slane %v7278, 1
      %v7966 = vrot.slane %v7279, 1
      %v7967 = vsel %vm1222, %v7965, %v7966
      %v7968 = vsel %vm1222, %v7964, %v7965
      %v7969 = vsel %vm1222, %v7963, %v7964
      %v7970 = vsel %vm1222, %v7962, %v7963
      %v7971 = vsel %vm1222, %v7961, %v7962
      %v7972 = vsel %vm1222, %v7960, %v7961
      %v7973 = vsel %vm1222, %v7959, %v7960
      %v7974 = vsel %vm1222, %v7958, %v7959
      %v7975 = vsel %vm1222, %v7957, %v7958
      %v7976 = vsel %vm1222, %v7956, %v7957
      %v7977 = vsel %vm1222, %v7955, %v7956
      %v7978 = vsel %vm1222, %v7954, %v7955
      %v7979 = vsel %vm1222, %v7953, %v7954
      %v7980 = vsel %vm1222, %v7952, %v7953
      %v7981 = vsel %vm1222, %v7951, %v7952
      %v7982 = vsel %vm1222, %v7950, %v7951
      %v7983 = vsel %vm1222, %v7949, %v7950
      %v7984 = vsel %vm1222, %v7966, %v7949
      %v7985 = vpack.c.bf16 %v7982, %v7983
      %v7986 = vpack.c.bf16 %v7980, %v7981
      %v7987 = vpack.c.bf16 %v7978, %v7979
      %v7988 = vpack.c.bf16 %v7976, %v7977
      %v7989 = vpack.c.bf16 %v7974, %v7975
      %v7990 = vpack.c.bf16 %v7972, %v7973
      %v7991 = vpack.c.bf16 %v7970, %v7971
      %v7992 = vpack.c.bf16 %v7968, %v7969
      %v7993 = vpack.c.bf16 %v7984, %v7967
      %v8003 = vunpack.c.l.b16 %v7985
      %v8004 = vunpack.c.h.b16 %v7985
      %v8005 = vunpack.c.l.b16 %v7986
      %v8006 = vunpack.c.h.b16 %v7986
      %v8007 = vunpack.c.l.b16 %v7987
      %v8008 = vunpack.c.h.b16 %v7987
      %v8009 = vunpack.c.l.b16 %v7988
      %v8010 = vunpack.c.h.b16 %v7988
      %v8011 = vunpack.c.l.b16 %v7989
      %v8012 = vunpack.c.h.b16 %v7989
      %v8013 = vunpack.c.l.b16 %v7990
      %v8014 = vunpack.c.h.b16 %v7990
      %v8015 = vunpack.c.l.b16 %v7991
      %v8016 = vunpack.c.h.b16 %v7991
      %v8017 = vunpack.c.l.b16 %v7992
      %v8018 = vunpack.c.h.b16 %v7992
      %v8019 = vunpack.c.l.b16 %v7993
      %v8020 = vunpack.c.h.b16 %v7993
      %v8021 = vpack.c.b16 %v8003, %v8003
      %v8022 = vpack.c.b16 %v8004, %v8004
      %v8023 = vpack.c.b16 %v8005, %v8005
      %v8024 = vpack.c.b16 %v8006, %v8006
      %v8025 = vpack.c.b16 %v8007, %v8007
      %v8026 = vpack.c.b16 %v8008, %v8008
      %v8027 = vpack.c.b16 %v8009, %v8009
      %v8028 = vpack.c.b16 %v8010, %v8010
      %v8029 = vpack.c.b16 %v8011, %v8011
      %v8030 = vpack.c.b16 %v8012, %v8012
      %v8031 = vpack.c.b16 %v8013, %v8013
      %v8032 = vpack.c.b16 %v8014, %v8014
      %v8033 = vpack.c.b16 %v8015, %v8015
      %v8034 = vpack.c.b16 %v8016, %v8016
      %v8035 = vpack.c.b16 %v8017, %v8017
      %v8036 = vpack.c.b16 %v8018, %v8018
      %v8037 = vpack.c.b16 %v8019, %v8019
      %v8038 = vpack.c.b16 %v8020, %v8020
      %8039 = vrot.lane.b32.xlu0 %v8021, 32
      %v8040 = vpop.permute.xlu0 %8039
      %8041 = vrot.lane.b32.xlu0 %v8022, 32
      %v8042 = vpop.permute.xlu0 %8041
      %8043 = vrot.lane.b32.xlu0 %v8023, 32
      %v8044 = vpop.permute.xlu0 %8043
      %8045 = vrot.lane.b32.xlu0 %v8024, 32
      %v8046 = vpop.permute.xlu0 %8045
      %8047 = vrot.lane.b32.xlu0 %v8025, 32
      %v8048 = vpop.permute.xlu0 %8047
      %8049 = vrot.lane.b32.xlu0 %v8026, 32
      %v8050 = vpop.permute.xlu0 %8049
      %8051 = vrot.lane.b32.xlu0 %v8027, 32
      %v8052 = vpop.permute.xlu0 %8051
      %8053 = vrot.lane.b32.xlu0 %v8028, 32
      %v8054 = vpop.permute.xlu0 %8053
      %8055 = vrot.lane.b32.xlu0 %v8029, 32
      %v8056 = vpop.permute.xlu0 %8055
      %8057 = vrot.lane.b32.xlu0 %v8030, 32
      %v8058 = vpop.permute.xlu0 %8057
      %8059 = vrot.lane.b32.xlu0 %v8031, 32
      %v8060 = vpop.permute.xlu0 %8059
      %8061 = vrot.lane.b32.xlu0 %v8032, 32
      %v8062 = vpop.permute.xlu0 %8061
      %8063 = vrot.lane.b32.xlu0 %v8033, 32
      %v8064 = vpop.permute.xlu0 %8063
      %8065 = vrot.lane.b32.xlu0 %v8034, 32
      %v8066 = vpop.permute.xlu0 %8065
      %8067 = vrot.lane.b32.xlu0 %v8035, 32
      %v8068 = vpop.permute.xlu0 %8067
      %8069 = vrot.lane.b32.xlu0 %v8036, 32
      %v8070 = vpop.permute.xlu0 %8069
      %8071 = vrot.lane.b32.xlu0 %v8037, 32
      %v8072 = vpop.permute.xlu0 %8071
      %8073 = vrot.lane.b32.xlu0 %v8038, 32
      %v8074 = vpop.permute.xlu0 %8073
      %8093 = vst.msk [vmem:[#allocation2 + $0x4] sm:$0xf] %vm841, %v8040
      %8094 = vst.msk [vmem:[#allocation2 + $0x10] sm:$0xf] %vm841, %v8042
      %8095 = vst.msk [vmem:[#allocation2 + $0x1c] sm:$0xf] %vm841, %v8044
      %8096 = vst.msk [vmem:[#allocation2 + $0x28] sm:$0xf] %vm841, %v8046
      %8097 = vst.msk [vmem:[#allocation2 + $0x34] sm:$0xf] %vm841, %v8048
      %8098 = vst.msk [vmem:[#allocation2 + $0x40] sm:$0xf] %vm841, %v8050
      %8099 = vst.msk [vmem:[#allocation2 + $0x4c] sm:$0xf] %vm841, %v8052
      %8100 = vst.msk [vmem:[#allocation2 + $0x58] sm:$0xf] %vm841, %v8054
      %8101 = vst.msk [vmem:[#allocation2 + $0x64] sm:$0xf] %vm841, %v8056
      %8102 = vst.msk [vmem:[#allocation2 + $0x70] sm:$0xf] %vm841, %v8058
      %8103 = vst.msk [vmem:[#allocation2 + $0x7c] sm:$0xf] %vm841, %v8060
      %8104 = vst.msk [vmem:[#allocation2 + $0x88] sm:$0xf] %vm841, %v8062
      %8105 = vst.msk [vmem:[#allocation2 + $0x94] sm:$0xf] %vm841, %v8064
      %8106 = vst.msk [vmem:[#allocation2 + $0xa0] sm:$0xf] %vm841, %v8066
      %8107 = vst.msk [vmem:[#allocation2 + $0xac] sm:$0xf] %vm841, %v8068
      %8108 = vst.msk [vmem:[#allocation2 + $0xb8] sm:$0xf] %vm841, %v8070
      %8109 = vst.msk [vmem:[#allocation2 + $0xc4] sm:$0xf] %vm841, %v8072
      %8110 = vst.msk [vmem:[#allocation2 + $0xd0] sm:$0xf] %vm841, %v8074
      %8111 = vst.msk [vmem:[#allocation2 + $0x4] sm:$0xf] %vm968, %v7666
      %8112 = vst.msk [vmem:[#allocation2 + $0x10] sm:$0xf] %vm968, %v7668
      %8113 = vst.msk [vmem:[#allocation2 + $0x1c] sm:$0xf] %vm968, %v7670
      %8114 = vst.msk [vmem:[#allocation2 + $0x28] sm:$0xf] %vm968, %v7672
      %8115 = vst.msk [vmem:[#allocation2 + $0x34] sm:$0xf] %vm968, %v7674
      %8116 = vst.msk [vmem:[#allocation2 + $0x40] sm:$0xf] %vm968, %v7676
      %8117 = vst.msk [vmem:[#allocation2 + $0x4c] sm:$0xf] %vm968, %v7678
      %8118 = vst.msk [vmem:[#allocation2 + $0x58] sm:$0xf] %vm968, %v7680
      %8119 = vst.msk [vmem:[#allocation2 + $0x64] sm:$0xf] %vm968, %v7682
      %8120 = vst.msk [vmem:[#allocation2 + $0x70] sm:$0xf] %vm968, %v7684
      %8121 = vst.msk [vmem:[#allocation2 + $0x7c] sm:$0xf] %vm968, %v7686
      %8122 = vst.msk [vmem:[#allocation2 + $0x88] sm:$0xf] %vm968, %v7688
      %8123 = vst.msk [vmem:[#allocation2 + $0x94] sm:$0xf] %vm968, %v7690
      %8124 = vst.msk [vmem:[#allocation2 + $0xa0] sm:$0xf] %vm968, %v7692
      %8125 = vst.msk [vmem:[#allocation2 + $0xac] sm:$0xf] %vm968, %v7694
      %8126 = vst.msk [vmem:[#allocation2 + $0xb8] sm:$0xf] %vm968, %v7696
      %8127 = vst.msk [vmem:[#allocation2 + $0xc4] sm:$0xf] %vm968, %v7662
      %8128 = vst.msk [vmem:[#allocation2 + $0xd0] sm:$0xf] %vm968, %v7664
      %v8129 = vpack.c.bf16 %v7981, %v7982
      %v8130 = vpack.c.bf16 %v7979, %v7980
      %v8131 = vpack.c.bf16 %v7977, %v7978
      %v8132 = vpack.c.bf16 %v7975, %v7976
      %v8133 = vpack.c.bf16 %v7973, %v7974
      %v8134 = vpack.c.bf16 %v7971, %v7972
      %v8135 = vpack.c.bf16 %v7969, %v7970
      %v8136 = vpack.c.bf16 %v7967, %v7968
      %v8137 = vpack.c.bf16 %v7983, %v7984
      %v8147 = vunpack.c.l.b16 %v8129
      %v8148 = vunpack.c.h.b16 %v8129
      %v8149 = vunpack.c.l.b16 %v8130
      %v8150 = vunpack.c.h.b16 %v8130
      %v8151 = vunpack.c.l.b16 %v8131
      %v8152 = vunpack.c.h.b16 %v8131
      %v8153 = vunpack.c.l.b16 %v8132
      %v8154 = vunpack.c.h.b16 %v8132
      %v8155 = vunpack.c.l.b16 %v8133
      %v8156 = vunpack.c.h.b16 %v8133
      %v8157 = vunpack.c.l.b16 %v8134
      %v8158 = vunpack.c.h.b16 %v8134
      %v8159 = vunpack.c.l.b16 %v8135
      %v8160 = vunpack.c.h.b16 %v8135
      %v8161 = vunpack.c.l.b16 %v8136
      %v8162 = vunpack.c.h.b16 %v8136
      %v8163 = vunpack.c.l.b16 %v8137
      %v8164 = vunpack.c.h.b16 %v8137
      %v8165 = vpack.c.b16 %v8147, %v8147
      %v8166 = vpack.c.b16 %v8148, %v8148
      %v8167 = vpack.c.b16 %v8149, %v8149
      %v8168 = vpack.c.b16 %v8150, %v8150
      %v8169 = vpack.c.b16 %v8151, %v8151
      %v8170 = vpack.c.b16 %v8152, %v8152
      %v8171 = vpack.c.b16 %v8153, %v8153
      %v8172 = vpack.c.b16 %v8154, %v8154
      %v8173 = vpack.c.b16 %v8155, %v8155
      %v8174 = vpack.c.b16 %v8156, %v8156
      %v8175 = vpack.c.b16 %v8157, %v8157
      %v8176 = vpack.c.b16 %v8158, %v8158
      %v8177 = vpack.c.b16 %v8159, %v8159
      %v8178 = vpack.c.b16 %v8160, %v8160
      %v8179 = vpack.c.b16 %v8161, %v8161
      %v8180 = vpack.c.b16 %v8162, %v8162
      %v8181 = vpack.c.b16 %v8163, %v8163
      %v8182 = vpack.c.b16 %v8164, %v8164
      %8183 = vrot.lane.b32.xlu0 %v8165, 96
      %v8184 = vpop.permute.xlu0 %8183
      %8185 = vrot.lane.b32.xlu0 %v8166, 96
      %v8186 = vpop.permute.xlu0 %8185
      %8187 = vrot.lane.b32.xlu0 %v8167, 96
      %v8188 = vpop.permute.xlu0 %8187
      %8189 = vrot.lane.b32.xlu0 %v8168, 96
      %v8190 = vpop.permute.xlu0 %8189
      %8191 = vrot.lane.b32.xlu0 %v8169, 96
      %v8192 = vpop.permute.xlu0 %8191
      %8193 = vrot.lane.b32.xlu0 %v8170, 96
      %v8194 = vpop.permute.xlu0 %8193
      %8195 = vrot.lane.b32.xlu0 %v8171, 96
      %v8196 = vpop.permute.xlu0 %8195
      %8197 = vrot.lane.b32.xlu0 %v8172, 96
      %v8198 = vpop.permute.xlu0 %8197
      %8199 = vrot.lane.b32.xlu0 %v8173, 96
      %v8200 = vpop.permute.xlu0 %8199
      %8201 = vrot.lane.b32.xlu0 %v8174, 96
      %v8202 = vpop.permute.xlu0 %8201
      %8203 = vrot.lane.b32.xlu0 %v8175, 96
      %v8204 = vpop.permute.xlu0 %8203
      %8205 = vrot.lane.b32.xlu0 %v8176, 96
      %v8206 = vpop.permute.xlu0 %8205
      %8207 = vrot.lane.b32.xlu0 %v8177, 96
      %v8208 = vpop.permute.xlu0 %8207
      %8209 = vrot.lane.b32.xlu0 %v8178, 96
      %v8210 = vpop.permute.xlu0 %8209
      %8211 = vrot.lane.b32.xlu0 %v8179, 96
      %v8212 = vpop.permute.xlu0 %8211
      %8213 = vrot.lane.b32.xlu0 %v8180, 96
      %v8214 = vpop.permute.xlu0 %8213
      %8215 = vrot.lane.b32.xlu0 %v8181, 96
      %v8216 = vpop.permute.xlu0 %8215
      %8217 = vrot.lane.b32.xlu0 %v8182, 96
      %v8218 = vpop.permute.xlu0 %8217
      %8237 = vst.msk [vmem:[#allocation2 + $0x4] sm:$0xf] %vm1095, %v8184
      %8238 = vst.msk [vmem:[#allocation2 + $0x10] sm:$0xf] %vm1095, %v8186
      %8239 = vst.msk [vmem:[#allocation2 + $0x1c] sm:$0xf] %vm1095, %v8188
      %8240 = vst.msk [vmem:[#allocation2 + $0x28] sm:$0xf] %vm1095, %v8190
      %8241 = vst.msk [vmem:[#allocation2 + $0x34] sm:$0xf] %vm1095, %v8192
      %8242 = vst.msk [vmem:[#allocation2 + $0x40] sm:$0xf] %vm1095, %v8194
      %8243 = vst.msk [vmem:[#allocation2 + $0x4c] sm:$0xf] %vm1095, %v8196
      %8244 = vst.msk [vmem:[#allocation2 + $0x58] sm:$0xf] %vm1095, %v8198
      %8245 = vst.msk [vmem:[#allocation2 + $0x64] sm:$0xf] %vm1095, %v8200
      %8246 = vst.msk [vmem:[#allocation2 + $0x70] sm:$0xf] %vm1095, %v8202
      %8247 = vst.msk [vmem:[#allocation2 + $0x7c] sm:$0xf] %vm1095, %v8204
      %8248 = vst.msk [vmem:[#allocation2 + $0x88] sm:$0xf] %vm1095, %v8206
      %8249 = vst.msk [vmem:[#allocation2 + $0x94] sm:$0xf] %vm1095, %v8208
      %8250 = vst.msk [vmem:[#allocation2 + $0xa0] sm:$0xf] %vm1095, %v8210
      %8251 = vst.msk [vmem:[#allocation2 + $0xac] sm:$0xf] %vm1095, %v8212
      %8252 = vst.msk [vmem:[#allocation2 + $0xb8] sm:$0xf] %vm1095, %v8214
      %8253 = vst.msk [vmem:[#allocation2 + $0xc4] sm:$0xf] %vm1095, %v8216
      %8254 = vst.msk [vmem:[#allocation2 + $0xd0] sm:$0xf] %vm1095, %v8218
      %v8255 = vrot.slane %v7262, 2
      %v8256 = vrot.slane %v7263, 2
      %v8257 = vrot.slane %v7264, 2
      %v8258 = vrot.slane %v7265, 2
      %v8259 = vrot.slane %v7266, 2
      %v8260 = vrot.slane %v7267, 2
      %v8261 = vrot.slane %v7268, 2
      %v8262 = vrot.slane %v7269, 2
      %v8263 = vrot.slane %v7270, 2
      %v8264 = vrot.slane %v7271, 2
      %v8265 = vrot.slane %v7272, 2
      %v8266 = vrot.slane %v7273, 2
      %v8267 = vrot.slane %v7274, 2
      %v8268 = vrot.slane %v7275, 2
      %v8269 = vrot.slane %v7276, 2
      %v8270 = vrot.slane %v7277, 2
      %v8271 = vrot.slane %v7278, 2
      %v8272 = vrot.slane %v7279, 2
      %v8273 = vsel %vm1529, %v8271, %v8272
      %v8274 = vsel %vm1529, %v8270, %v8271
      %v8275 = vsel %vm1529, %v8269, %v8270
      %v8276 = vsel %vm1529, %v8268, %v8269
      %v8277 = vsel %vm1529, %v8267, %v8268
      %v8278 = vsel %vm1529, %v8266, %v8267
      %v8279 = vsel %vm1529, %v8265, %v8266
      %v8280 = vsel %vm1529, %v8264, %v8265
      %v8281 = vsel %vm1529, %v8263, %v8264
      %v8282 = vsel %vm1529, %v8262, %v8263
      %v8283 = vsel %vm1529, %v8261, %v8262
      %v8284 = vsel %vm1529, %v8260, %v8261
      %v8285 = vsel %vm1529, %v8259, %v8260
      %v8286 = vsel %vm1529, %v8258, %v8259
      %v8287 = vsel %vm1529, %v8257, %v8258
      %v8288 = vsel %vm1529, %v8256, %v8257
      %v8289 = vsel %vm1529, %v8255, %v8256
      %v8290 = vsel %vm1529, %v8272, %v8255
      %v8291 = vpack.c.bf16 %v8287, %v8288
      %v8292 = vpack.c.bf16 %v8285, %v8286
      %v8293 = vpack.c.bf16 %v8283, %v8284
      %v8294 = vpack.c.bf16 %v8281, %v8282
      %v8295 = vpack.c.bf16 %v8279, %v8280
      %v8296 = vpack.c.bf16 %v8277, %v8278
      %v8297 = vpack.c.bf16 %v8275, %v8276
      %v8298 = vpack.c.bf16 %v8273, %v8274
      %v8299 = vpack.c.bf16 %v8289, %v8290
      %v8309 = vunpack.c.l.b16 %v8291
      %v8310 = vunpack.c.h.b16 %v8291
      %v8311 = vunpack.c.l.b16 %v8292
      %v8312 = vunpack.c.h.b16 %v8292
      %v8313 = vunpack.c.l.b16 %v8293
      %v8314 = vunpack.c.h.b16 %v8293
      %v8315 = vunpack.c.l.b16 %v8294
      %v8316 = vunpack.c.h.b16 %v8294
      %v8317 = vunpack.c.l.b16 %v8295
      %v8318 = vunpack.c.h.b16 %v8295
      %v8319 = vunpack.c.l.b16 %v8296
      %v8320 = vunpack.c.h.b16 %v8296
      %v8321 = vunpack.c.l.b16 %v8297
      %v8322 = vunpack.c.h.b16 %v8297
      %v8323 = vunpack.c.l.b16 %v8298
      %v8324 = vunpack.c.h.b16 %v8298
      %v8325 = vunpack.c.l.b16 %v8299
      %v8326 = vunpack.c.h.b16 %v8299
      %v8327 = vpack.c.b16 %v8309, %v8309
      %v8328 = vpack.c.b16 %v8310, %v8310
      %v8329 = vpack.c.b16 %v8311, %v8311
      %v8330 = vpack.c.b16 %v8312, %v8312
      %v8331 = vpack.c.b16 %v8313, %v8313
      %v8332 = vpack.c.b16 %v8314, %v8314
      %v8333 = vpack.c.b16 %v8315, %v8315
      %v8334 = vpack.c.b16 %v8316, %v8316
      %v8335 = vpack.c.b16 %v8317, %v8317
      %v8336 = vpack.c.b16 %v8318, %v8318
      %v8337 = vpack.c.b16 %v8319, %v8319
      %v8338 = vpack.c.b16 %v8320, %v8320
      %v8339 = vpack.c.b16 %v8321, %v8321
      %v8340 = vpack.c.b16 %v8322, %v8322
      %v8341 = vpack.c.b16 %v8323, %v8323
      %v8342 = vpack.c.b16 %v8324, %v8324
      %v8343 = vpack.c.b16 %v8325, %v8325
      %v8344 = vpack.c.b16 %v8326, %v8326
      %8363 = vst.msk [vmem:[#allocation2 + $0x8] sm:$0xf] %vm677, %v8327
      %8364 = vst.msk [vmem:[#allocation2 + $0x14] sm:$0xf] %vm677, %v8328
      %8365 = vst.msk [vmem:[#allocation2 + $0x20] sm:$0xf] %vm677, %v8329
      %8366 = vst.msk [vmem:[#allocation2 + $0x2c] sm:$0xf] %vm677, %v8330
      %8367 = vst.msk [vmem:[#allocation2 + $0x38] sm:$0xf] %vm677, %v8331
      %8368 = vst.msk [vmem:[#allocation2 + $0x44] sm:$0xf] %vm677, %v8332
      %8369 = vst.msk [vmem:[#allocation2 + $0x50] sm:$0xf] %vm677, %v8333
      %8370 = vst.msk [vmem:[#allocation2 + $0x5c] sm:$0xf] %vm677, %v8334
      %8371 = vst.msk [vmem:[#allocation2 + $0x68] sm:$0xf] %vm677, %v8335
      %8372 = vst.msk [vmem:[#allocation2 + $0x74] sm:$0xf] %vm677, %v8336
      %8373 = vst.msk [vmem:[#allocation2 + $0x80] sm:$0xf] %vm677, %v8337
      %8374 = vst.msk [vmem:[#allocation2 + $0x8c] sm:$0xf] %vm677, %v8338
      %8375 = vst.msk [vmem:[#allocation2 + $0x98] sm:$0xf] %vm677, %v8339
      %8376 = vst.msk [vmem:[#allocation2 + $0xa4] sm:$0xf] %vm677, %v8340
      %8377 = vst.msk [vmem:[#allocation2 + $0xb0] sm:$0xf] %vm677, %v8341
      %8378 = vst.msk [vmem:[#allocation2 + $0xbc] sm:$0xf] %vm677, %v8342
      %8379 = vst.msk [vmem:[#allocation2 + $0xc8] sm:$0xf] %vm677, %v8343
      %8380 = vst.msk [vmem:[#allocation2 + $0xd4] sm:$0xf] %vm677, %v8344
      %v8381 = vld [vmem:[#allocation2] sm:$0xff]
      %v8382 = vld [vmem:[#allocation2 + $0x8] sm:$0xf]
      %v8383 = vld [vmem:[#allocation2 + $0xc] sm:$0xff]
      %v8384 = vld [vmem:[#allocation2 + $0x14] sm:$0xf]
      %v8385 = vld [vmem:[#allocation2 + $0x18] sm:$0xff]
      %v8386 = vld [vmem:[#allocation2 + $0x20] sm:$0xf]
      %v8387 = vld [vmem:[#allocation2 + $0x24] sm:$0xff]
      %v8388 = vld [vmem:[#allocation2 + $0x2c] sm:$0xf]
      %v8389 = vld [vmem:[#allocation2 + $0x30] sm:$0xff]
      %v8390 = vld [vmem:[#allocation2 + $0x38] sm:$0xf]
      %v8391 = vld [vmem:[#allocation2 + $0x3c] sm:$0xff]
      %v8392 = vld [vmem:[#allocation2 + $0x44] sm:$0xf]
      %v8393 = vld [vmem:[#allocation2 + $0x48] sm:$0xff]
      %v8394 = vld [vmem:[#allocation2 + $0x50] sm:$0xf]
      %v8395 = vld [vmem:[#allocation2 + $0x54] sm:$0xff]
      %v8396 = vld [vmem:[#allocation2 + $0x5c] sm:$0xf]
      %v8397 = vld [vmem:[#allocation2 + $0x60] sm:$0xff]
      %v8398 = vld [vmem:[#allocation2 + $0x68] sm:$0xf]
      %v8399 = vld [vmem:[#allocation2 + $0x6c] sm:$0xff]
      %v8400 = vld [vmem:[#allocation2 + $0x74] sm:$0xf]
      %v8401 = vld [vmem:[#allocation2 + $0x78] sm:$0xff]
      %v8402 = vld [vmem:[#allocation2 + $0x80] sm:$0xf]
      %v8403 = vld [vmem:[#allocation2 + $0x84] sm:$0xff]
      %v8404 = vld [vmem:[#allocation2 + $0x8c] sm:$0xf]
      %v8405 = vld [vmem:[#allocation2 + $0x90] sm:$0xff]
      %v8406 = vld [vmem:[#allocation2 + $0x98] sm:$0xf]
      %v8407 = vld [vmem:[#allocation2 + $0x9c] sm:$0xff]
      %v8408 = vld [vmem:[#allocation2 + $0xa4] sm:$0xf]
      %v8409 = vld [vmem:[#allocation2 + $0xa8] sm:$0xff]
      %v8410 = vld [vmem:[#allocation2 + $0xb0] sm:$0xf]
      %v8411 = vld [vmem:[#allocation2 + $0xb4] sm:$0xff]
      %v8412 = vld [vmem:[#allocation2 + $0xbc] sm:$0xf]
      %v8413 = vld [vmem:[#allocation2 + $0xc0] sm:$0xff]
      %v8414 = vld [vmem:[#allocation2 + $0xc8] sm:$0xf]
      %v8415 = vld [vmem:[#allocation2 + $0xcc] sm:$0xff]
      %v8416 = vld [vmem:[#allocation2 + $0xd4] sm:$0xf]
      %v8418 = vlaneseq
      %v8419 = vshrl.u32 %v8418, 7
      %v8420 = vsub.s32 0, %v8419
      %v8421 = vrot.slane %v7318, %v8420
      %v8459 = vunpack.c.l.b16 %v8381
      %v8460 = vunpack.c.h.b16 %v8381
      %v8461 = vunpack.c.l.b16 %v8382
      %v8462 = vunpack.c.l.b16 %v8383
      %v8463 = vunpack.c.h.b16 %v8383
      %v8464 = vunpack.c.l.b16 %v8384
      %v8465 = vunpack.c.l.b16 %v8385
      %v8466 = vunpack.c.h.b16 %v8385
      %v8467 = vunpack.c.l.b16 %v8386
      %v8468 = vunpack.c.l.b16 %v8387
      %v8469 = vunpack.c.h.b16 %v8387
      %v8470 = vunpack.c.l.b16 %v8388
      %v8471 = vunpack.c.l.b16 %v8389
      %v8472 = vunpack.c.h.b16 %v8389
      %v8473 = vunpack.c.l.b16 %v8390
      %v8474 = vunpack.c.l.b16 %v8391
      %v8475 = vunpack.c.h.b16 %v8391
      %v8476 = vunpack.c.l.b16 %v8392
      %v8477 = vunpack.c.l.b16 %v8393
      %v8478 = vunpack.c.h.b16 %v8393
      %v8479 = vunpack.c.l.b16 %v8394
      %v8480 = vunpack.c.l.b16 %v8395
      %v8481 = vunpack.c.h.b16 %v8395
      %v8482 = vunpack.c.l.b16 %v8396
      %v8483 = vunpack.c.l.b16 %v8397
      %v8484 = vunpack.c.h.b16 %v8397
      %v8485 = vunpack.c.l.b16 %v8398
      %v8486 = vunpack.c.l.b16 %v8399
      %v8487 = vunpack.c.h.b16 %v8399
      %v8488 = vunpack.c.l.b16 %v8400
      %v8489 = vunpack.c.l.b16 %v8401
      %v8490 = vunpack.c.h.b16 %v8401
      %v8491 = vunpack.c.l.b16 %v8402
      %v8492 = vunpack.c.l.b16 %v8403
      %v8493 = vunpack.c.h.b16 %v8403
      %v8494 = vunpack.c.l.b16 %v8404
      %v8495 = vunpack.c.l.b16 %v8405
      %v8496 = vunpack.c.h.b16 %v8405
      %v8497 = vunpack.c.l.b16 %v8406
      %v8498 = vunpack.c.l.b16 %v8407
      %v8499 = vunpack.c.h.b16 %v8407
      %v8500 = vunpack.c.l.b16 %v8408
      %v8501 = vunpack.c.l.b16 %v8409
      %v8502 = vunpack.c.h.b16 %v8409
      %v8503 = vunpack.c.l.b16 %v8410
      %v8504 = vunpack.c.l.b16 %v8411
      %v8505 = vunpack.c.h.b16 %v8411
      %v8506 = vunpack.c.l.b16 %v8412
      %v8507 = vunpack.c.l.b16 %v8413
      %v8508 = vunpack.c.h.b16 %v8413
      %v8509 = vunpack.c.l.b16 %v8414
      %v8510 = vunpack.c.l.b16 %v8415
      %v8511 = vunpack.c.h.b16 %v8415
      %v8512 = vunpack.c.l.b16 %v8416
      %v8513 = vpack.c.b16 %v8462, %v8459
      %v8514 = vpack.c.b16 %v8463, %v8460
      %v8515 = vpack.c.b16 %v8464, %v8461
      %v8516 = vpack.c.b16 %v8468, %v8465
      %v8517 = vpack.c.b16 %v8469, %v8466
      %v8518 = vpack.c.b16 %v8470, %v8467
      %v8519 = vpack.c.b16 %v8474, %v8471
      %v8520 = vpack.c.b16 %v8475, %v8472
      %v8521 = vpack.c.b16 %v8476, %v8473
      %v8522 = vpack.c.b16 %v8480, %v8477
      %v8523 = vpack.c.b16 %v8481, %v8478
      %v8524 = vpack.c.b16 %v8482, %v8479
      %v8525 = vpack.c.b16 %v8486, %v8483
      %v8526 = vpack.c.b16 %v8487, %v8484
      %v8527 = vpack.c.b16 %v8488, %v8485
      %v8528 = vpack.c.b16 %v8492, %v8489
      %v8529 = vpack.c.b16 %v8493, %v8490
      %v8530 = vpack.c.b16 %v8494, %v8491
      %v8531 = vpack.c.b16 %v8498, %v8495
      %v8532 = vpack.c.b16 %v8499, %v8496
      %v8533 = vpack.c.b16 %v8500, %v8497
      %v8534 = vpack.c.b16 %v8504, %v8501
      %v8535 = vpack.c.b16 %v8505, %v8502
      %v8536 = vpack.c.b16 %v8506, %v8503
      %v8537 = vpack.c.b16 %v8510, %v8507
      %v8538 = vpack.c.b16 %v8511, %v8508
      %v8539 = vpack.c.b16 %v8512, %v8509
      %v8594 = vunpack.c.l.b16 %v7281
      %v8595 = vunpack.c.l.b16 %v7282
      %v8596 = vunpack.c.l.b16 %v7283
      %v8597 = vunpack.c.l.b16 %v7284
      %v8598 = vunpack.c.l.b16 %v7285
      %v8599 = vunpack.c.l.b16 %v7286
      %v8600 = vunpack.c.l.b16 %v7287
      %v8601 = vunpack.c.l.b16 %v7288
      %v8602 = vunpack.c.l.b16 %v7289
      %v8603 = vunpack.c.l.b16 %v7290
      %v8604 = vunpack.c.l.b16 %v7291
      %v8605 = vunpack.c.l.b16 %v7292
      %v8606 = vunpack.c.l.b16 %v7293
      %v8607 = vunpack.c.l.b16 %v7294
      %v8608 = vunpack.c.l.b16 %v7295
      %v8609 = vunpack.c.l.b16 %v7296
      %v8610 = vunpack.c.l.b16 %v7297
      %v8611 = vunpack.c.l.b16 %v7298
      %v8612 = vunpack.c.l.b16 %v7299
      %v8613 = vunpack.c.l.b16 %v7300
      %v8614 = vunpack.c.l.b16 %v7301
      %v8615 = vunpack.c.l.b16 %v7302
      %v8616 = vunpack.c.l.b16 %v7303
      %v8617 = vunpack.c.l.b16 %v7304
      %v8618 = vunpack.c.l.b16 %v7305
      %v8619 = vunpack.c.l.b16 %v7306
      %v8620 = vunpack.c.l.b16 %v7307
      %v8621 = vunpack.c.l.b16 %v7308
      %v8622 = vunpack.c.l.b16 %v7309
      %v8623 = vunpack.c.l.b16 %v7310
      %v8624 = vunpack.c.l.b16 %v7311
      %v8625 = vunpack.c.l.b16 %v7312
      %v8626 = vunpack.c.l.b16 %v7313
      %v8627 = vunpack.c.l.b16 %v7314
      %v8628 = vunpack.c.l.b16 %v7315
      %v8629 = vunpack.c.l.b16 %v7316
      %v8630 = vpack.c.b16 %v8595, %v8594
      %v8631 = vpack.c.b16 %v8597, %v8596
      %v8632 = vpack.c.b16 %v8599, %v8598
      %v8633 = vpack.c.b16 %v8601, %v8600
      %v8634 = vpack.c.b16 %v8603, %v8602
      %v8635 = vpack.c.b16 %v8605, %v8604
      %v8636 = vpack.c.b16 %v8607, %v8606
      %v8637 = vpack.c.b16 %v8609, %v8608
      %v8638 = vpack.c.b16 %v8611, %v8610
      %v8639 = vpack.c.b16 %v8613, %v8612
      %v8640 = vpack.c.b16 %v8615, %v8614
      %v8641 = vpack.c.b16 %v8617, %v8616
      %v8642 = vpack.c.b16 %v8619, %v8618
      %v8643 = vpack.c.b16 %v8621, %v8620
      %v8644 = vpack.c.b16 %v8623, %v8622
      %v8645 = vpack.c.b16 %v8625, %v8624
      %v8646 = vpack.c.b16 %v8627, %v8626
      %v8647 = vpack.c.b16 %v8629, %v8628
      %v8667 = vsel %vm1923, %v8515, 0
      %v8670 = vsel %vm1923, %v8518, 0
      %v8673 = vsel %vm1923, %v8521, 0
      %v8676 = vsel %vm1923, %v8524, 0
      %v8679 = vsel %vm1923, %v8527, 0
      %v8682 = vsel %vm1923, %v8530, 0
      %v8685 = vsel %vm1923, %v8533, 0
      %v8688 = vsel %vm1923, %v8536, 0
      %v8691 = vsel %vm1923, %v8539, 0
      %8693 = vmatprep.subr.bf16.mxu0 0
      %8694 = vmatpush1.bf16.msra.mxu0 %v8637
      %8695 = vmatprep.subr.bf16.mxu0 0
      %8696 = vmatpush1.bf16.msra.mxu0 %v8636
      %8697 = vmatprep.subr.bf16.mxu0 0
      %8698 = vmatpush1.bf16.msra.mxu0 %v8635
      %8699 = vmatprep.subr.bf16.mxu0 0
      %8700 = vmatpush1.bf16.msra.mxu0 %v8634
      %8701 = vmatprep.subr.bf16.mxu0 0
      %8702 = vmatpush1.bf16.msra.mxu0 %v8633
      %8703 = vmatprep.subr.bf16.mxu0 0
      %8704 = vmatpush1.bf16.msra.mxu0 %v8632
      %8705 = vmatprep.subr.bf16.mxu0 0
      %8706 = vmatpush1.bf16.msra.mxu0 %v8631
      %8707 = vmatprep.subr.bf16.mxu0 0
      %8708 = vmatpush1.bf16.msra.mxu0 %v8630
      %8709 = vmatprep.subr.bf16.mxu0 0
      %8710 = vmatpush2.bf16.msra.mxu0 %v8645
      %8711 = vmatprep.subr.bf16.mxu0 0
      %8712 = vmatpush2.bf16.msra.mxu0 %v8644
      %8713 = vmatprep.subr.bf16.mxu0 0
      %8714 = vmatpush2.bf16.msra.mxu0 %v8643
      %8715 = vmatprep.subr.bf16.mxu0 0
      %8716 = vmatpush2.bf16.msra.mxu0 %v8642
      %8717 = vmatprep.subr.bf16.mxu0 0
      %8718 = vmatpush2.bf16.msra.mxu0 %v8641
      %8719 = vmatprep.subr.bf16.mxu0 0
      %8720 = vmatpush2.bf16.msra.mxu0 %v8640
      %8721 = vmatprep.subr.bf16.mxu0 0
      %8722 = vmatpush2.bf16.msra.mxu0 %v8639
      %8723 = vmatprep.subr.bf16.mxu0 0
      %8724 = vmatpush2.bf16.msra.mxu0 %v8638
      %8725 = vmatprep.mubr.bf16.mxu0 %v8514
      %8726 = vmatmul.mubr.bf16.gmra.mxu0 %v8513
      %v8727 = vpop.f32.mrf.mxu0
      %v8728 = vadd.f32 %v8421, %v8727
      %v8729 = vpop.f32.mrf.mxu0
      %v8730 = vpop.f32.mrf.mxu0
      %v8731 = vadd.f32 %v8421, %v8730
      %v8732 = vpop.f32.mrf.mxu0
      %8733 = vmatprep.mubr.bf16.mxu0 %v8517
      %8734 = vmatmul.mubr.bf16.gmra.mxu0 %v8516
      %v8735 = vpop.f32.mrf.mxu0
      %v8736 = vadd.f32 %v8421, %v8735
      %v8737 = vpop.f32.mrf.mxu0
      %v8738 = vpop.f32.mrf.mxu0
      %v8739 = vadd.f32 %v8421, %v8738
      %v8740 = vpop.f32.mrf.mxu0
      %8741 = vmatprep.mubr.bf16.mxu0 %v8520
      %8742 = vmatmul.mubr.bf16.gmra.mxu0 %v8519
      %v8743 = vpop.f32.mrf.mxu0
      %v8744 = vadd.f32 %v8421, %v8743
      %v8745 = vpop.f32.mrf.mxu0
      %v8746 = vpop.f32.mrf.mxu0
      %v8747 = vadd.f32 %v8421, %v8746
      %v8748 = vpop.f32.mrf.mxu0
      %8749 = vmatprep.mubr.bf16.mxu0 %v8523
      %8750 = vmatmul.mubr.bf16.gmra.mxu0 %v8522
      %v8751 = vpop.f32.mrf.mxu0
      %v8752 = vadd.f32 %v8421, %v8751
      %v8753 = vpop.f32.mrf.mxu0
      %v8754 = vpop.f32.mrf.mxu0
      %v8755 = vadd.f32 %v8421, %v8754
      %v8756 = vpop.f32.mrf.mxu0
      %8757 = vmatprep.mubr.bf16.mxu0 %v8526
      %8758 = vmatmul.mubr.bf16.gmra.mxu0 %v8525
      %v8759 = vpop.f32.mrf.mxu0
      %v8760 = vadd.f32 %v8421, %v8759
      %v8761 = vpop.f32.mrf.mxu0
      %v8762 = vpop.f32.mrf.mxu0
      %v8763 = vadd.f32 %v8421, %v8762
      %v8764 = vpop.f32.mrf.mxu0
      %8765 = vmatprep.mubr.bf16.mxu0 %v8529
      %8766 = vmatmul.mubr.bf16.gmra.mxu0 %v8528
      %v8767 = vpop.f32.mrf.mxu0
      %v8768 = vadd.f32 %v8421, %v8767
      %v8769 = vpop.f32.mrf.mxu0
      %v8770 = vpop.f32.mrf.mxu0
      %v8771 = vadd.f32 %v8421, %v8770
      %v8772 = vpop.f32.mrf.mxu0
      %8773 = vmatprep.mubr.bf16.mxu0 %v8532
      %8774 = vmatmul.mubr.bf16.gmra.mxu0 %v8531
      %v8775 = vpop.f32.mrf.mxu0
      %v8776 = vadd.f32 %v8421, %v8775
      %v8777 = vpop.f32.mrf.mxu0
      %v8778 = vpop.f32.mrf.mxu0
      %v8779 = vadd.f32 %v8421, %v8778
      %v8780 = vpop.f32.mrf.mxu0
      %8781 = vmatprep.mubr.bf16.mxu0 %v8535
      %8782 = vmatmul.mubr.bf16.gmra.mxu0 %v8534
      %v8783 = vpop.f32.mrf.mxu0
      %v8784 = vadd.f32 %v8421, %v8783
      %v8785 = vpop.f32.mrf.mxu0
      %v8786 = vpop.f32.mrf.mxu0
      %v8787 = vadd.f32 %v8421, %v8786
      %v8788 = vpop.f32.mrf.mxu0
      %8789 = vmatprep.mubr.bf16.mxu0 %v8538
      %8790 = vmatmul.mubr.bf16.gmra.mxu0 %v8537
      %v8791 = vpop.f32.mrf.mxu0
      %v8792 = vadd.f32 %v8421, %v8791
      %v8793 = vpop.f32.mrf.mxu0
      %v8794 = vpop.f32.mrf.mxu0
      %v8795 = vadd.f32 %v8421, %v8794
      %v8796 = vpop.f32.mrf.mxu0
      %8797 = vdwg.mxu0
      %8798 = vmatprep.subr.bf16.mxu0 0
      %8799 = vmatpush1.bf16.msra.mxu0 0
      %8800 = vmatprep.subr.bf16.mxu0 0
      %8801 = vmatpush1.bf16.msra.mxu0 0
      %8802 = vmatprep.subr.bf16.mxu0 0
      %8803 = vmatpush1.bf16.msra.mxu0 0
      %8804 = vmatprep.subr.bf16.mxu0 0
      %8805 = vmatpush1.bf16.msra.mxu0 0
      %8806 = vmatprep.subr.bf16.mxu0 0
      %8807 = vmatpush1.bf16.msra.mxu0 0
      %8808 = vmatprep.subr.bf16.mxu0 0
      %8809 = vmatpush1.bf16.msra.mxu0 0
      %8810 = vmatprep.subr.bf16.mxu0 0
      %8811 = vmatpush1.bf16.msra.mxu0 %v8647
      %8812 = vmatprep.subr.bf16.mxu0 0
      %8813 = vmatpush1.bf16.msra.mxu0 %v8646
      %8814 = vmatprep.subr.bf16.mxu0 0
      %8815 = vmatpush2.bf16.msra.mxu0 0
      %8816 = vmatprep.subr.bf16.mxu0 0
      %8817 = vmatpush2.bf16.msra.mxu0 0
      %8818 = vmatprep.subr.bf16.mxu0 0
      %8819 = vmatpush2.bf16.msra.mxu0 0
      %8820 = vmatprep.subr.bf16.mxu0 0
      %8821 = vmatpush2.bf16.msra.mxu0 0
      %8822 = vmatprep.subr.bf16.mxu0 0
      %8823 = vmatpush2.bf16.msra.mxu0 0
      %8824 = vmatprep.subr.bf16.mxu0 0
      %8825 = vmatpush2.bf16.msra.mxu0 0
      %8826 = vmatprep.subr.bf16.mxu0 0
      %8827 = vmatpush2.bf16.msra.mxu0 0
      %8828 = vmatprep.subr.bf16.mxu0 0
      %8829 = vmatpush2.bf16.msra.mxu0 0
      %8830 = vmatprep.mubr.bf16.mxu0 0
      %8831 = vmatmul.mubr.bf16.gmra.mxu0 %v8667
      %v8832 = vpop.f32.mrf.mxu0
      %v8833 = vadd.f32 %v8728, %v8832
      %v8834 = vpop.f32.mrf.mxu0
      %v8835 = vpop.f32.mrf.mxu0
      %v8836 = vadd.f32 %v8731, %v8835
      %v8837 = vpop.f32.mrf.mxu0
      %8838 = vmatprep.mubr.bf16.mxu0 0
      %8839 = vmatmul.mubr.bf16.gmra.mxu0 %v8670
      %v8840 = vpop.f32.mrf.mxu0
      %v8841 = vadd.f32 %v8736, %v8840
      %v8842 = vpop.f32.mrf.mxu0
      %v8843 = vpop.f32.mrf.mxu0
      %v8844 = vadd.f32 %v8739, %v8843
      %v8845 = vpop.f32.mrf.mxu0
      %8846 = vmatprep.mubr.bf16.mxu0 0
      %8847 = vmatmul.mubr.bf16.gmra.mxu0 %v8673
      %v8848 = vpop.f32.mrf.mxu0
      %v8849 = vadd.f32 %v8744, %v8848
      %v8850 = vpop.f32.mrf.mxu0
      %v8851 = vpop.f32.mrf.mxu0
      %v8852 = vadd.f32 %v8747, %v8851
      %v8853 = vpop.f32.mrf.mxu0
      %8854 = vmatprep.mubr.bf16.mxu0 0
      %8855 = vmatmul.mubr.bf16.gmra.mxu0 %v8676
      %v8856 = vpop.f32.mrf.mxu0
      %v8857 = vadd.f32 %v8752, %v8856
      %v8858 = vpop.f32.mrf.mxu0
      %v8859 = vpop.f32.mrf.mxu0
      %v8860 = vadd.f32 %v8755, %v8859
      %v8861 = vpop.f32.mrf.mxu0
      %8862 = vmatprep.mubr.bf16.mxu0 0
      %8863 = vmatmul.mubr.bf16.gmra.mxu0 %v8679
      %v8864 = vpop.f32.mrf.mxu0
      %v8865 = vadd.f32 %v8760, %v8864
      %v8866 = vpop.f32.mrf.mxu0
      %v8867 = vpop.f32.mrf.mxu0
      %v8868 = vadd.f32 %v8763, %v8867
      %v8869 = vpop.f32.mrf.mxu0
      %8870 = vmatprep.mubr.bf16.mxu0 0
      %8871 = vmatmul.mubr.bf16.gmra.mxu0 %v8682
      %v8872 = vpop.f32.mrf.mxu0
      %v8873 = vadd.f32 %v8768, %v8872
      %v8874 = vpop.f32.mrf.mxu0
      %v8875 = vpop.f32.mrf.mxu0
      %v8876 = vadd.f32 %v8771, %v8875
      %v8877 = vpop.f32.mrf.mxu0
      %8878 = vmatprep.mubr.bf16.mxu0 0
      %8879 = vmatmul.mubr.bf16.gmra.mxu0 %v8685
      %v8880 = vpop.f32.mrf.mxu0
      %v8881 = vadd.f32 %v8776, %v8880
      %v8882 = vpop.f32.mrf.mxu0
      %v8883 = vpop.f32.mrf.mxu0
      %v8884 = vadd.f32 %v8779, %v8883
      %v8885 = vpop.f32.mrf.mxu0
      %8886 = vmatprep.mubr.bf16.mxu0 0
      %8887 = vmatmul.mubr.bf16.gmra.mxu0 %v8688
      %v8888 = vpop.f32.mrf.mxu0
      %v8889 = vadd.f32 %v8784, %v8888
      %v8890 = vpop.f32.mrf.mxu0
      %v8891 = vpop.f32.mrf.mxu0
      %v8892 = vadd.f32 %v8787, %v8891
      %v8893 = vpop.f32.mrf.mxu0
      %8894 = vmatprep.mubr.bf16.mxu0 0
      %8895 = vmatmul.mubr.bf16.gmra.mxu0 %v8691
      %v8896 = vpop.f32.mrf.mxu0
      %v8897 = vadd.f32 %v8792, %v8896
      %v8898 = vpop.f32.mrf.mxu0
      %v8899 = vpop.f32.mrf.mxu0
      %v8900 = vadd.f32 %v8795, %v8899
      %v8901 = vpop.f32.mrf.mxu0
      %8902 = vdwg.mxu0
      %v8903 = vadd.f32 %v8833, %v5603
      %v8904 = vadd.f32 %v8836, %v5604
      %v8905 = vadd.f32 %v8841, %v5605
      %v8906 = vadd.f32 %v8844, %v5606
      %v8907 = vadd.f32 %v8849, %v5607
      %v8908 = vadd.f32 %v8852, %v5608
      %v8909 = vadd.f32 %v8857, %v5609
      %v8910 = vadd.f32 %v8860, %v5610
      %v8911 = vadd.f32 %v8865, %v5611
      %v8912 = vadd.f32 %v8868, %v5612
      %v8913 = vadd.f32 %v8873, %v5613
      %v8914 = vadd.f32 %v8876, %v5614
      %v8915 = vadd.f32 %v8881, %v5615
      %v8916 = vadd.f32 %v8884, %v5616
      %v8917 = vadd.f32 %v8889, %v5617
      %v8918 = vadd.f32 %v8892, %v5618
      %v8919 = vadd.f32 %v8897, %v5619
      %v8920 = vadd.f32 %v8900, %v5620
      %v8921 = vmax.f32 %v8903, 0.0
      %v8922 = vmax.f32 %v8904, 0.0
      %v8923 = vmax.f32 %v8905, 0.0
      %v8924 = vmax.f32 %v8906, 0.0
      %v8925 = vmax.f32 %v8907, 0.0
      %v8926 = vmax.f32 %v8908, 0.0
      %v8927 = vmax.f32 %v8909, 0.0
      %v8928 = vmax.f32 %v8910, 0.0
      %v8929 = vmax.f32 %v8911, 0.0
      %v8930 = vmax.f32 %v8912, 0.0
      %v8931 = vmax.f32 %v8913, 0.0
      %v8932 = vmax.f32 %v8914, 0.0
      %v8933 = vmax.f32 %v8915, 0.0
      %v8934 = vmax.f32 %v8916, 0.0
      %v8935 = vmax.f32 %v8917, 0.0
      %v8936 = vmax.f32 %v8918, 0.0
      %v8937 = vmax.f32 %v8919, 0.0
      %v8938 = vmax.f32 %v8920, 0.0
      %v8939 = vmul.f32 %v8921, %v2182
      %v8940 = vmul.f32 %v8922, %v2187
      %v8941 = vmul.f32 %v8923, %v2192
      %v8942 = vmul.f32 %v8924, %v2197
      %v8943 = vmul.f32 %v8925, %v2202
      %v8944 = vmul.f32 %v8926, %v2207
      %v8945 = vmul.f32 %v8927, %v2212
      %v8946 = vmul.f32 %v8928, %v2217
      %v8947 = vmul.f32 %v8929, %v2222
      %v8948 = vmul.f32 %v8930, %v2227
      %v8949 = vmul.f32 %v8931, %v2232
      %v8950 = vmul.f32 %v8932, %v2237
      %v8951 = vmul.f32 %v8933, %v2242
      %v8952 = vmul.f32 %v8934, %v2247
      %v8953 = vmul.f32 %v8935, %v2252
      %v8954 = vmul.f32 %v8936, %v2257
      %v8955 = vmul.f32 %v8937, %v2262
      %v8956 = vmul.f32 %v8938, %v2267
      %v8957 = vld [vmem:[%s6] sm:$0xff]
      %v8958 = vld [vmem:[%s6 + $0x8] sm:$0xff]
      %v8959 = vld [vmem:[%s6 + $0x10] sm:$0xff]
      %v8960 = vld [vmem:[%s6 + $0x18] sm:$0xff]
      %v8961 = vld [vmem:[%s7] sm:$0x1]
      %v8963 = vlaneseq
      %v8964 = vshrl.u32 %v8963, 7
      %v8965 = vsub.s32 0, %v8964
      %v8966 = vrot.slane %v8961, %v8965
      %v8969 = vsel %vm1923, %v8939, 0
      %v8972 = vsel %vm1923, %v8940, 0
      %v8975 = vsel %vm1923, %v8941, 0
      %v8978 = vsel %vm1923, %v8942, 0
      %v8981 = vsel %vm1923, %v8943, 0
      %v8984 = vsel %vm1923, %v8944, 0
      %v8987 = vsel %vm1923, %v8945, 0
      %v8990 = vsel %vm1923, %v8946, 0
      %v8993 = vsel %vm1923, %v8947, 0
      %v8996 = vsel %vm1923, %v8948, 0
      %v8999 = vsel %vm1923, %v8949, 0
      %v9002 = vsel %vm1923, %v8950, 0
      %v9005 = vsel %vm1923, %v8951, 0
      %v9008 = vsel %vm1923, %v8952, 0
      %v9011 = vsel %vm1923, %v8953, 0
      %v9014 = vsel %vm1923, %v8954, 0
      %v9017 = vsel %vm1923, %v8955, 0
      %v9020 = vsel %vm1923, %v8956, 0
      %9022 = vmatprep.subr.mxu0 0.0
      %9023 = vmatpush1.msra.mxu0 0.0
      %9024 = vmatprep.subr.mxu0 0.0
      %9025 = vmatpush1.msra.mxu0 0.0
      %9026 = vmatprep.subr.mxu0 0.0
      %9027 = vmatpush1.msra.mxu0 0.0
      %9028 = vmatprep.subr.mxu0 0.0
      %9029 = vmatpush1.msra.mxu0 0.0
      %9030 = vmatprep.subr.mxu0 0.0
      %9031 = vmatpush1.msra.mxu0 0.0
      %9032 = vmatprep.subr.mxu0 0.0
      %9033 = vmatpush1.msra.mxu0 0.0
      %9034 = vmatprep.subr.mxu0 0.0
      %9035 = vmatpush1.msra.mxu0 0.0
      %9036 = vmatprep.subr.mxu0 0.0
      %9037 = vmatpush1.msra.mxu0 0.0
      %9038 = vmatprep.subr.mxu0 0.0
      %9039 = vmatpush1.msra.mxu0 0.0
      %9040 = vmatprep.subr.mxu0 0.0
      %9041 = vmatpush1.msra.mxu0 0.0
      %9042 = vmatprep.subr.mxu0 0.0
      %9043 = vmatpush1.msra.mxu0 0.0
      %9044 = vmatprep.subr.mxu0 0.0
      %9045 = vmatpush1.msra.mxu0 0.0
      %9046 = vmatprep.subr.mxu0 0.0
      %9047 = vmatpush1.msra.mxu0 %v8960
      %9048 = vmatprep.subr.mxu0 0.0
      %9049 = vmatpush1.msra.mxu0 %v8959
      %9050 = vmatprep.subr.mxu0 0.0
      %9051 = vmatpush1.msra.mxu0 %v8958
      %9052 = vmatprep.subr.mxu0 0.0
      %9053 = vmatpush1.msra.mxu0 %v8957
      %9054 = vmatprep.subr.mxu0 0.0
      %9055 = vmatpush2.msra.mxu0 0.0
      %9056 = vmatprep.subr.mxu0 0.0
      %9057 = vmatpush2.msra.mxu0 0.0
      %9058 = vmatprep.subr.mxu0 0.0
      %9059 = vmatpush2.msra.mxu0 0.0
      %9060 = vmatprep.subr.mxu0 0.0
      %9061 = vmatpush2.msra.mxu0 0.0
      %9062 = vmatprep.subr.mxu0 0.0
      %9063 = vmatpush2.msra.mxu0 0.0
      %9064 = vmatprep.subr.mxu0 0.0
      %9065 = vmatpush2.msra.mxu0 0.0
      %9066 = vmatprep.subr.mxu0 0.0
      %9067 = vmatpush2.msra.mxu0 0.0
      %9068 = vmatprep.subr.mxu0 0.0
      %9069 = vmatpush2.msra.mxu0 0.0
      %9070 = vmatprep.subr.mxu0 0.0
      %9071 = vmatpush2.msra.mxu0 0.0
      %9072 = vmatprep.subr.mxu0 0.0
      %9073 = vmatpush2.msra.mxu0 0.0
      %9074 = vmatprep.subr.mxu0 0.0
      %9075 = vmatpush2.msra.mxu0 0.0
      %9076 = vmatprep.subr.mxu0 0.0
      %9077 = vmatpush2.msra.mxu0 0.0
      %9078 = vmatprep.subr.mxu0 0.0
      %9079 = vmatpush2.msra.mxu0 0.0
      %9080 = vmatprep.subr.mxu0 0.0
      %9081 = vmatpush2.msra.mxu0 0.0
      %9082 = vmatprep.subr.mxu0 0.0
      %9083 = vmatpush2.msra.mxu0 0.0
      %9084 = vmatprep.subr.mxu0 0.0
      %9085 = vmatpush2.msra.mxu0 0.0
      %9086 = vmatprep.mubr.f32.mxu0 0.0
      %9087 = vmatmul.mubr.f32.gmra.mxu0 %v8969
      %v9088 = vpop.f32.mrf.mxu0
      %v9089 = vadd.f32 %v8966, %v9088
      %v9090 = vpop.f32.mrf.mxu0
      %9091 = vmatprep.mubr.f32.mxu0 0.0
      %9092 = vmatmul.mubr.f32.gmra.mxu0 %v8972
      %v9093 = vpop.f32.mrf.mxu0
      %v9094 = vadd.f32 %v8966, %v9093
      %v9095 = vpop.f32.mrf.mxu0
      %9096 = vmatprep.mubr.f32.mxu0 0.0
      %9097 = vmatmul.mubr.f32.gmra.mxu0 %v8975
      %v9098 = vpop.f32.mrf.mxu0
      %v9099 = vadd.f32 %v8966, %v9098
      %v9100 = vpop.f32.mrf.mxu0
      %9101 = vmatprep.mubr.f32.mxu0 0.0
      %9102 = vmatmul.mubr.f32.gmra.mxu0 %v8978
      %v9103 = vpop.f32.mrf.mxu0
      %v9104 = vadd.f32 %v8966, %v9103
      %v9105 = vpop.f32.mrf.mxu0
      %9106 = vmatprep.mubr.f32.mxu0 0.0
      %9107 = vmatmul.mubr.f32.gmra.mxu0 %v8981
      %v9108 = vpop.f32.mrf.mxu0
      %v9109 = vadd.f32 %v8966, %v9108
      %v9110 = vpop.f32.mrf.mxu0
      %9111 = vmatprep.mubr.f32.mxu0 0.0
      %9112 = vmatmul.mubr.f32.gmra.mxu0 %v8984
      %v9113 = vpop.f32.mrf.mxu0
      %v9114 = vadd.f32 %v8966, %v9113
      %v9115 = vpop.f32.mrf.mxu0
      %9116 = vmatprep.mubr.f32.mxu0 0.0
      %9117 = vmatmul.mubr.f32.gmra.mxu0 %v8987
      %v9118 = vpop.f32.mrf.mxu0
      %v9119 = vadd.f32 %v8966, %v9118
      %v9120 = vpop.f32.mrf.mxu0
      %9121 = vmatprep.mubr.f32.mxu0 0.0
      %9122 = vmatmul.mubr.f32.gmra.mxu0 %v8990
      %v9123 = vpop.f32.mrf.mxu0
      %v9124 = vadd.f32 %v8966, %v9123
      %v9125 = vpop.f32.mrf.mxu0
      %9126 = vmatprep.mubr.f32.mxu0 0.0
      %9127 = vmatmul.mubr.f32.gmra.mxu0 %v8993
      %v9128 = vpop.f32.mrf.mxu0
      %v9129 = vadd.f32 %v8966, %v9128
      %v9130 = vpop.f32.mrf.mxu0
      %9131 = vmatprep.mubr.f32.mxu0 0.0
      %9132 = vmatmul.mubr.f32.gmra.mxu0 %v8996
      %v9133 = vpop.f32.mrf.mxu0
      %v9134 = vadd.f32 %v8966, %v9133
      %v9135 = vpop.f32.mrf.mxu0
      %9136 = vmatprep.mubr.f32.mxu0 0.0
      %9137 = vmatmul.mubr.f32.gmra.mxu0 %v8999
      %v9138 = vpop.f32.mrf.mxu0
      %v9139 = vadd.f32 %v8966, %v9138
      %v9140 = vpop.f32.mrf.mxu0
      %9141 = vmatprep.mubr.f32.mxu0 0.0
      %9142 = vmatmul.mubr.f32.gmra.mxu0 %v9002
      %v9143 = vpop.f32.mrf.mxu0
      %v9144 = vadd.f32 %v8966, %v9143
      %v9145 = vpop.f32.mrf.mxu0
      %9146 = vmatprep.mubr.f32.mxu0 0.0
      %9147 = vmatmul.mubr.f32.gmra.mxu0 %v9005
      %v9148 = vpop.f32.mrf.mxu0
      %v9149 = vadd.f32 %v8966, %v9148
      %v9150 = vpop.f32.mrf.mxu0
      %9151 = vmatprep.mubr.f32.mxu0 0.0
      %9152 = vmatmul.mubr.f32.gmra.mxu0 %v9008
      %v9153 = vpop.f32.mrf.mxu0
      %v9154 = vadd.f32 %v8966, %v9153
      %v9155 = vpop.f32.mrf.mxu0
      %9156 = vmatprep.mubr.f32.mxu0 0.0
      %9157 = vmatmul.mubr.f32.gmra.mxu0 %v9011
      %v9158 = vpop.f32.mrf.mxu0
      %v9159 = vadd.f32 %v8966, %v9158
      %v9160 = vpop.f32.mrf.mxu0
      %9161 = vmatprep.mubr.f32.mxu0 0.0
      %9162 = vmatmul.mubr.f32.gmra.mxu0 %v9014
      %v9163 = vpop.f32.mrf.mxu0
      %v9164 = vadd.f32 %v8966, %v9163
      %v9165 = vpop.f32.mrf.mxu0
      %9166 = vmatprep.mubr.f32.mxu0 0.0
      %9167 = vmatmul.mubr.f32.gmra.mxu0 %v9017
      %v9168 = vpop.f32.mrf.mxu0
      %v9169 = vadd.f32 %v8966, %v9168
      %v9170 = vpop.f32.mrf.mxu0
      %9171 = vmatprep.mubr.f32.mxu0 0.0
      %9172 = vmatmul.mubr.f32.gmra.mxu0 %v9020
      %v9173 = vpop.f32.mrf.mxu0
      %v9174 = vadd.f32 %v8966, %v9173
      %v9175 = vpop.f32.mrf.mxu0
      %9176 = vdwg.mxu0
      %v9177 = vmax.f32 %v9089, 0.0
      %v9178 = vmax.f32 %v9094, 0.0
      %v9179 = vmax.f32 %v9099, 0.0
      %v9180 = vmax.f32 %v9104, 0.0
      %v9181 = vmax.f32 %v9109, 0.0
      %v9182 = vmax.f32 %v9114, 0.0
      %v9183 = vmax.f32 %v9119, 0.0
      %v9184 = vmax.f32 %v9124, 0.0
      %v9185 = vmax.f32 %v9129, 0.0
      %v9186 = vmax.f32 %v9134, 0.0
      %v9187 = vmax.f32 %v9139, 0.0
      %v9188 = vmax.f32 %v9144, 0.0
      %v9189 = vmax.f32 %v9149, 0.0
      %v9190 = vmax.f32 %v9154, 0.0
      %v9191 = vmax.f32 %v9159, 0.0
      %v9192 = vmax.f32 %v9164, 0.0
      %v9193 = vmax.f32 %v9169, 0.0
      %v9194 = vmax.f32 %v9174, 0.0
      %v9195 = vmul.f32 %v9177, %v2182
      %v9196 = vmul.f32 %v9178, %v2187
      %v9197 = vmul.f32 %v9179, %v2192
      %v9198 = vmul.f32 %v9180, %v2197
      %v9199 = vmul.f32 %v9181, %v2202
      %v9200 = vmul.f32 %v9182, %v2207
      %v9201 = vmul.f32 %v9183, %v2212
      %v9202 = vmul.f32 %v9184, %v2217
      %v9203 = vmul.f32 %v9185, %v2222
      %v9204 = vmul.f32 %v9186, %v2227
      %v9205 = vmul.f32 %v9187, %v2232
      %v9206 = vmul.f32 %v9188, %v2237
      %v9207 = vmul.f32 %v9189, %v2242
      %v9208 = vmul.f32 %v9190, %v2247
      %v9209 = vmul.f32 %v9191, %v2252
      %v9210 = vmul.f32 %v9192, %v2257
      %v9211 = vmul.f32 %v9193, %v2262
      %v9212 = vmul.f32 %v9194, %v2267
      %v9213 = vld [vmem:[%s8] sm:$0xff]
      %v9214 = vld [vmem:[%s8 + $0x8] sm:$0xff]
      %v9215 = vld [vmem:[%s8 + $0x10] sm:$0xff]
      %v9216 = vld [vmem:[%s8 + $0x18] sm:$0xff]
      %v9217 = vld [vmem:[%s8 + $0x20] sm:$0xff]
      %v9218 = vld [vmem:[%s8 + $0x28] sm:$0xff]
      %v9219 = vld [vmem:[%s8 + $0x30] sm:$0xff]
      %v9220 = vld [vmem:[%s8 + $0x38] sm:$0xff]
      %v9221 = vld [vmem:[%s8 + $0x40] sm:$0xff]
      %9223 = vset.pattern.permute.xlu0 0
      %9224 = vperm.xlu0 %9223, %v9195
      %v9225 = vpop.permute.xlu0 %9224
      %9228 = vset.pattern.permute.xlu0 0
      %9229 = vperm.xlu0 %9228, %v9196
      %v9230 = vpop.permute.xlu0 %9229
      %9233 = vset.pattern.permute.xlu0 0
      %9234 = vperm.xlu0 %9233, %v9197
      %v9235 = vpop.permute.xlu0 %9234
      %9238 = vset.pattern.permute.xlu0 0
      %9239 = vperm.xlu0 %9238, %v9198
      %v9240 = vpop.permute.xlu0 %9239
      %9243 = vset.pattern.permute.xlu0 0
      %9244 = vperm.xlu0 %9243, %v9199
      %v9245 = vpop.permute.xlu0 %9244
      %9248 = vset.pattern.permute.xlu0 0
      %9249 = vperm.xlu0 %9248, %v9200
      %v9250 = vpop.permute.xlu0 %9249
      %9253 = vset.pattern.permute.xlu0 0
      %9254 = vperm.xlu0 %9253, %v9201
      %v9255 = vpop.permute.xlu0 %9254
      %9258 = vset.pattern.permute.xlu0 0
      %9259 = vperm.xlu0 %9258, %v9202
      %v9260 = vpop.permute.xlu0 %9259
      %9263 = vset.pattern.permute.xlu0 0
      %9264 = vperm.xlu0 %9263, %v9203
      %v9265 = vpop.permute.xlu0 %9264
      %9268 = vset.pattern.permute.xlu0 0
      %9269 = vperm.xlu0 %9268, %v9204
      %v9270 = vpop.permute.xlu0 %9269
      %9273 = vset.pattern.permute.xlu0 0
      %9274 = vperm.xlu0 %9273, %v9205
      %v9275 = vpop.permute.xlu0 %9274
      %9278 = vset.pattern.permute.xlu0 0
      %9279 = vperm.xlu0 %9278, %v9206
      %v9280 = vpop.permute.xlu0 %9279
      %9283 = vset.pattern.permute.xlu0 0
      %9284 = vperm.xlu0 %9283, %v9207
      %v9285 = vpop.permute.xlu0 %9284
      %9288 = vset.pattern.permute.xlu0 0
      %9289 = vperm.xlu0 %9288, %v9208
      %v9290 = vpop.permute.xlu0 %9289
      %9293 = vset.pattern.permute.xlu0 0
      %9294 = vperm.xlu0 %9293, %v9209
      %v9295 = vpop.permute.xlu0 %9294
      %9298 = vset.pattern.permute.xlu0 0
      %9299 = vperm.xlu0 %9298, %v9210
      %v9300 = vpop.permute.xlu0 %9299
      %9303 = vset.pattern.permute.xlu0 0
      %9304 = vperm.xlu0 %9303, %v9211
      %v9305 = vpop.permute.xlu0 %9304
      %9308 = vset.pattern.permute.xlu0 0
      %9309 = vperm.xlu0 %9308, %v9212
      %v9310 = vpop.permute.xlu0 %9309
      %v9312 = vmul.f32 %v9225, %v9213
      %v9313 = vmul.f32 %v9230, %v9214
      %v9314 = vmul.f32 %v9235, %v9215
      %v9315 = vmul.f32 %v9240, %v9216
      %v9316 = vmul.f32 %v9245, %v9217
      %v9317 = vmul.f32 %v9250, %v9218
      %v9318 = vmul.f32 %v9255, %v9219
      %v9319 = vmul.f32 %v9260, %v9220
      %v9320 = vmul.f32 %v9265, %v9221
      %v9321 = vmul.f32 %v9270, %v9213
      %v9322 = vmul.f32 %v9275, %v9214
      %v9323 = vmul.f32 %v9280, %v9215
      %v9324 = vmul.f32 %v9285, %v9216
      %v9325 = vmul.f32 %v9290, %v9217
      %v9326 = vmul.f32 %v9295, %v9218
      %v9327 = vmul.f32 %v9300, %v9219
      %v9328 = vmul.f32 %v9305, %v9220
      %v9329 = vmul.f32 %v9310, %v9221
      %s9330 = scalar_lea.vmem %s8, 72
      %v9331 = vld [vmem:[%s9330] sm:$0xff]
      %v9332 = vld [vmem:[%s9330 + $0x8] sm:$0xff]
      %v9333 = vld [vmem:[%s9330 + $0x10] sm:$0xff]
      %v9334 = vld [vmem:[%s9330 + $0x18] sm:$0xff]
      %v9335 = vld [vmem:[%s9330 + $0x20] sm:$0xff]
      %v9336 = vld [vmem:[%s9330 + $0x28] sm:$0xff]
      %v9337 = vld [vmem:[%s9330 + $0x30] sm:$0xff]
      %v9338 = vld [vmem:[%s9330 + $0x38] sm:$0xff]
      %v9339 = vld [vmem:[%s9330 + $0x40] sm:$0xff]
      %9340 = vset.pattern.permute.xlu0 1
      %9341 = vperm.xlu0 %9340, %v9195
      %v9342 = vpop.permute.xlu0 %9341
      %9344 = vset.pattern.permute.xlu0 1
      %9345 = vperm.xlu0 %9344, %v9196
      %v9346 = vpop.permute.xlu0 %9345
      %9348 = vset.pattern.permute.xlu0 1
      %9349 = vperm.xlu0 %9348, %v9197
      %v9350 = vpop.permute.xlu0 %9349
      %9352 = vset.pattern.permute.xlu0 1
      %9353 = vperm.xlu0 %9352, %v9198
      %v9354 = vpop.permute.xlu0 %9353
      %9356 = vset.pattern.permute.xlu0 1
      %9357 = vperm.xlu0 %9356, %v9199
      %v9358 = vpop.permute.xlu0 %9357
      %9360 = vset.pattern.permute.xlu0 1
      %9361 = vperm.xlu0 %9360, %v9200
      %v9362 = vpop.permute.xlu0 %9361
      %9364 = vset.pattern.permute.xlu0 1
      %9365 = vperm.xlu0 %9364, %v9201
      %v9366 = vpop.permute.xlu0 %9365
      %9368 = vset.pattern.permute.xlu0 1
      %9369 = vperm.xlu0 %9368, %v9202
      %v9370 = vpop.permute.xlu0 %9369
      %9372 = vset.pattern.permute.xlu0 1
      %9373 = vperm.xlu0 %9372, %v9203
      %v9374 = vpop.permute.xlu0 %9373
      %9376 = vset.pattern.permute.xlu0 1
      %9377 = vperm.xlu0 %9376, %v9204
      %v9378 = vpop.permute.xlu0 %9377
      %9380 = vset.pattern.permute.xlu0 1
      %9381 = vperm.xlu0 %9380, %v9205
      %v9382 = vpop.permute.xlu0 %9381
      %9384 = vset.pattern.permute.xlu0 1
      %9385 = vperm.xlu0 %9384, %v9206
      %v9386 = vpop.permute.xlu0 %9385
      %9388 = vset.pattern.permute.xlu0 1
      %9389 = vperm.xlu0 %9388, %v9207
      %v9390 = vpop.permute.xlu0 %9389
      %9392 = vset.pattern.permute.xlu0 1
      %9393 = vperm.xlu0 %9392, %v9208
      %v9394 = vpop.permute.xlu0 %9393
      %9396 = vset.pattern.permute.xlu0 1
      %9397 = vperm.xlu0 %9396, %v9209
      %v9398 = vpop.permute.xlu0 %9397
      %9400 = vset.pattern.permute.xlu0 1
      %9401 = vperm.xlu0 %9400, %v9210
      %v9402 = vpop.permute.xlu0 %9401
      %9404 = vset.pattern.permute.xlu0 1
      %9405 = vperm.xlu0 %9404, %v9211
      %v9406 = vpop.permute.xlu0 %9405
      %9408 = vset.pattern.permute.xlu0 1
      %9409 = vperm.xlu0 %9408, %v9212
      %v9410 = vpop.permute.xlu0 %9409
      %v9412 = vmul.f32 %v9342, %v9331
      %v9413 = vmul.f32 %v9346, %v9332
      %v9414 = vmul.f32 %v9350, %v9333
      %v9415 = vmul.f32 %v9354, %v9334
      %v9416 = vmul.f32 %v9358, %v9335
      %v9417 = vmul.f32 %v9362, %v9336
      %v9418 = vmul.f32 %v9366, %v9337
      %v9419 = vmul.f32 %v9370, %v9338
      %v9420 = vmul.f32 %v9374, %v9339
      %v9421 = vmul.f32 %v9378, %v9331
      %v9422 = vmul.f32 %v9382, %v9332
      %v9423 = vmul.f32 %v9386, %v9333
      %v9424 = vmul.f32 %v9390, %v9334
      %v9425 = vmul.f32 %v9394, %v9335
      %v9426 = vmul.f32 %v9398, %v9336
      %v9427 = vmul.f32 %v9402, %v9337
      %v9428 = vmul.f32 %v9406, %v9338
      %v9429 = vmul.f32 %v9410, %v9339
      %v9430 = vadd.f32 %v9312, %v9412
      %v9431 = vadd.f32 %v9313, %v9413
      %v9432 = vadd.f32 %v9314, %v9414
      %v9433 = vadd.f32 %v9315, %v9415
      %v9434 = vadd.f32 %v9316, %v9416
      %v9435 = vadd.f32 %v9317, %v9417
      %v9436 = vadd.f32 %v9318, %v9418
      %v9437 = vadd.f32 %v9319, %v9419
      %v9438 = vadd.f32 %v9320, %v9420
      %v9439 = vadd.f32 %v9321, %v9421
      %v9440 = vadd.f32 %v9322, %v9422
      %v9441 = vadd.f32 %v9323, %v9423
      %v9442 = vadd.f32 %v9324, %v9424
      %v9443 = vadd.f32 %v9325, %v9425
      %v9444 = vadd.f32 %v9326, %v9426
      %v9445 = vadd.f32 %v9327, %v9427
      %v9446 = vadd.f32 %v9328, %v9428
      %v9447 = vadd.f32 %v9329, %v9429
      %v9448 = vadd.f32 %v9430, %v9431
      %v9449 = vadd.f32 %v9448, %v9432
      %v9450 = vadd.f32 %v9449, %v9433
      %v9451 = vadd.f32 %v9450, %v9434
      %v9452 = vadd.f32 %v9451, %v9435
      %v9453 = vadd.f32 %v9452, %v9436
      %v9454 = vadd.f32 %v9453, %v9437
      %v9455 = vadd.f32 %v9454, %v9438
      %v9456 = vrot.slane %v9455, 4
      %v9457 = vadd.f32 %v9455, %v9456
      %v9458 = vrot.slane %v9457, 2
      %v9459 = vadd.f32 %v9457, %v9458
      %v9460 = vrot.slane %v9459, 1
      %v9461 = vadd.f32 %v9459, %v9460
      %v9462 = vadd.f32 %v9439, %v9440
      %v9463 = vadd.f32 %v9462, %v9441
      %v9464 = vadd.f32 %v9463, %v9442
      %v9465 = vadd.f32 %v9464, %v9443
      %v9466 = vadd.f32 %v9465, %v9444
      %v9467 = vadd.f32 %v9466, %v9445
      %v9468 = vadd.f32 %v9467, %v9446
      %v9469 = vadd.f32 %v9468, %v9447
      %v9470 = vrot.slane %v9469, 4
      %v9471 = vadd.f32 %v9469, %v9470
      %v9472 = vrot.slane %v9471, 2
      %v9473 = vadd.f32 %v9471, %v9472
      %v9474 = vrot.slane %v9473, 1
      %v9475 = vadd.f32 %v9473, %v9474
      %v9476 = vld [vmem:[%s9] sm:$0x1]
      %v9478 = vlaneseq
      %v9479 = vshrl.u32 %v9478, 7
      %v9480 = vsub.s32 0, %v9479
      %v9481 = vrot.slane %v9476, %v9480
      %v9483 = vadd.f32 %v9461, %v9481
      %v9484 = vadd.f32 %v9475, %v9481
      %v9485 = vld [vmem:[%s10] sm:$0xff]
      %v9486 = vld [vmem:[%s10 + $0x8] sm:$0xff]
      %v9487 = vld [vmem:[%s10 + $0x10] sm:$0xff]
      %v9488 = vld [vmem:[%s10 + $0x18] sm:$0xff]
      %v9489 = vld [vmem:[%s10 + $0x20] sm:$0xff]
      %v9490 = vld [vmem:[%s10 + $0x28] sm:$0xff]
      %v9491 = vld [vmem:[%s10 + $0x30] sm:$0xff]
      %v9492 = vld [vmem:[%s10 + $0x38] sm:$0xff]
      %v9493 = vld [vmem:[%s10 + $0x40] sm:$0xff]
      %v9494 = vld [vmem:[%s10 + $0x48] sm:$0xff]
      %v9495 = vld [vmem:[%s10 + $0x50] sm:$0xff]
      %v9496 = vld [vmem:[%s10 + $0x58] sm:$0xff]
      %v9497 = vld [vmem:[%s10 + $0x60] sm:$0xff]
      %v9498 = vld [vmem:[%s10 + $0x68] sm:$0xff]
      %v9499 = vld [vmem:[%s10 + $0x70] sm:$0xff]
      %v9500 = vld [vmem:[%s10 + $0x78] sm:$0xff]
      %v9501 = vld [vmem:[%s10 + $0x80] sm:$0xff]
      %v9502 = vld [vmem:[%s10 + $0x88] sm:$0xff]
      %9503 = vset.pattern.permute.xlu0 2
      %9504 = vperm.xlu0 %9503, %v9195
      %v9505 = vpop.permute.xlu0 %9504
      %9507 = vset.pattern.permute.xlu0 2
      %9508 = vperm.xlu0 %9507, %v9196
      %v9509 = vpop.permute.xlu0 %9508
      %9511 = vset.pattern.permute.xlu0 2
      %9512 = vperm.xlu0 %9511, %v9197
      %v9513 = vpop.permute.xlu0 %9512
      %9515 = vset.pattern.permute.xlu0 2
      %9516 = vperm.xlu0 %9515, %v9198
      %v9517 = vpop.permute.xlu0 %9516
      %9519 = vset.pattern.permute.xlu0 2
      %9520 = vperm.xlu0 %9519, %v9199
      %v9521 = vpop.permute.xlu0 %9520
      %9523 = vset.pattern.permute.xlu0 2
      %9524 = vperm.xlu0 %9523, %v9200
      %v9525 = vpop.permute.xlu0 %9524
      %9527 = vset.pattern.permute.xlu0 2
      %9528 = vperm.xlu0 %9527, %v9201
      %v9529 = vpop.permute.xlu0 %9528
      %9531 = vset.pattern.permute.xlu0 2
      %9532 = vperm.xlu0 %9531, %v9202
      %v9533 = vpop.permute.xlu0 %9532
      %9535 = vset.pattern.permute.xlu0 2
      %9536 = vperm.xlu0 %9535, %v9203
      %v9537 = vpop.permute.xlu0 %9536
      %9539 = vset.pattern.permute.xlu0 2
      %9540 = vperm.xlu0 %9539, %v9204
      %v9541 = vpop.permute.xlu0 %9540
      %9543 = vset.pattern.permute.xlu0 2
      %9544 = vperm.xlu0 %9543, %v9205
      %v9545 = vpop.permute.xlu0 %9544
      %9547 = vset.pattern.permute.xlu0 2
      %9548 = vperm.xlu0 %9547, %v9206
      %v9549 = vpop.permute.xlu0 %9548
      %9551 = vset.pattern.permute.xlu0 2
      %9552 = vperm.xlu0 %9551, %v9207
      %v9553 = vpop.permute.xlu0 %9552
      %9555 = vset.pattern.permute.xlu0 2
      %9556 = vperm.xlu0 %9555, %v9208
      %v9557 = vpop.permute.xlu0 %9556
      %9559 = vset.pattern.permute.xlu0 2
      %9560 = vperm.xlu0 %9559, %v9209
      %v9561 = vpop.permute.xlu0 %9560
      %9563 = vset.pattern.permute.xlu0 2
      %9564 = vperm.xlu0 %9563, %v9210
      %v9565 = vpop.permute.xlu0 %9564
      %9567 = vset.pattern.permute.xlu0 2
      %9568 = vperm.xlu0 %9567, %v9211
      %v9569 = vpop.permute.xlu0 %9568
      %9571 = vset.pattern.permute.xlu0 2
      %9572 = vperm.xlu0 %9571, %v9212
      %v9573 = vpop.permute.xlu0 %9572
      %v9575 = vmul.f32 %v9505, %v9485
      %v9576 = vmul.f32 %v9505, %v9486
      %v9577 = vmul.f32 %v9509, %v9487
      %v9578 = vmul.f32 %v9509, %v9488
      %v9579 = vmul.f32 %v9513, %v9489
      %v9580 = vmul.f32 %v9513, %v9490
      %v9581 = vmul.f32 %v9517, %v9491
      %v9582 = vmul.f32 %v9517, %v9492
      %v9583 = vmul.f32 %v9521, %v9493
      %v9584 = vmul.f32 %v9521, %v9494
      %v9585 = vmul.f32 %v9525, %v9495
      %v9586 = vmul.f32 %v9525, %v9496
      %v9587 = vmul.f32 %v9529, %v9497
      %v9588 = vmul.f32 %v9529, %v9498
      %v9589 = vmul.f32 %v9533, %v9499
      %v9590 = vmul.f32 %v9533, %v9500
      %v9591 = vmul.f32 %v9537, %v9501
      %v9592 = vmul.f32 %v9537, %v9502
      %v9593 = vmul.f32 %v9541, %v9485
      %v9594 = vmul.f32 %v9541, %v9486
      %v9595 = vmul.f32 %v9545, %v9487
      %v9596 = vmul.f32 %v9545, %v9488
      %v9597 = vmul.f32 %v9549, %v9489
      %v9598 = vmul.f32 %v9549, %v9490
      %v9599 = vmul.f32 %v9553, %v9491
      %v9600 = vmul.f32 %v9553, %v9492
      %v9601 = vmul.f32 %v9557, %v9493
      %v9602 = vmul.f32 %v9557, %v9494
      %v9603 = vmul.f32 %v9561, %v9495
      %v9604 = vmul.f32 %v9561, %v9496
      %v9605 = vmul.f32 %v9565, %v9497
      %v9606 = vmul.f32 %v9565, %v9498
      %v9607 = vmul.f32 %v9569, %v9499
      %v9608 = vmul.f32 %v9569, %v9500
      %v9609 = vmul.f32 %v9573, %v9501
      %v9610 = vmul.f32 %v9573, %v9502
      %v9611 = vadd.f32 %v9575, %v9577
      %v9612 = vadd.f32 %v9611, %v9579
      %v9613 = vadd.f32 %v9612, %v9581
      %v9614 = vadd.f32 %v9613, %v9583
      %v9615 = vadd.f32 %v9614, %v9585
      %v9616 = vadd.f32 %v9615, %v9587
      %v9617 = vadd.f32 %v9616, %v9589
      %v9618 = vadd.f32 %v9617, %v9591
      %v9619 = vrot.slane %v9618, 4
      %v9620 = vadd.f32 %v9618, %v9619
      %v9621 = vrot.slane %v9620, 2
      %v9622 = vadd.f32 %v9620, %v9621
      %v9623 = vrot.slane %v9622, 1
      %v9624 = vadd.f32 %v9622, %v9623
      %v9625 = vadd.f32 %v9576, %v9578
      %v9626 = vadd.f32 %v9625, %v9580
      %v9627 = vadd.f32 %v9626, %v9582
      %v9628 = vadd.f32 %v9627, %v9584
      %v9629 = vadd.f32 %v9628, %v9586
      %v9630 = vadd.f32 %v9629, %v9588
      %v9631 = vadd.f32 %v9630, %v9590
      %v9632 = vadd.f32 %v9631, %v9592
      %v9633 = vrot.slane %v9632, 4
      %v9634 = vadd.f32 %v9632, %v9633
      %v9635 = vrot.slane %v9634, 2
      %v9636 = vadd.f32 %v9634, %v9635
      %v9637 = vrot.slane %v9636, 1
      %v9638 = vadd.f32 %v9636, %v9637
      %v9639 = vadd.f32 %v9593, %v9595
      %v9640 = vadd.f32 %v9639, %v9597
      %v9641 = vadd.f32 %v9640, %v9599
      %v9642 = vadd.f32 %v9641, %v9601
      %v9643 = vadd.f32 %v9642, %v9603
      %v9644 = vadd.f32 %v9643, %v9605
      %v9645 = vadd.f32 %v9644, %v9607
      %v9646 = vadd.f32 %v9645, %v9609
      %v9647 = vrot.slane %v9646, 4
      %v9648 = vadd.f32 %v9646, %v9647
      %v9649 = vrot.slane %v9648, 2
      %v9650 = vadd.f32 %v9648, %v9649
      %v9651 = vrot.slane %v9650, 1
      %v9652 = vadd.f32 %v9650, %v9651
      %v9653 = vadd.f32 %v9594, %v9596
      %v9654 = vadd.f32 %v9653, %v9598
      %v9655 = vadd.f32 %v9654, %v9600
      %v9656 = vadd.f32 %v9655, %v9602
      %v9657 = vadd.f32 %v9656, %v9604
      %v9658 = vadd.f32 %v9657, %v9606
      %v9659 = vadd.f32 %v9658, %v9608
      %v9660 = vadd.f32 %v9659, %v9610
      %v9661 = vrot.slane %v9660, 4
      %v9662 = vadd.f32 %v9660, %v9661
      %v9663 = vrot.slane %v9662, 2
      %v9664 = vadd.f32 %v9662, %v9663
      %v9665 = vrot.slane %v9664, 1
      %v9666 = vadd.f32 %v9664, %v9665
      %v9667 = vld [vmem:[%s11] sm:$0x3]
      %v9669 = vlaneseq
      %v9670 = vshrl.u32 %v9669, 7
      %v9671 = vsub.s32 0, %v9670
      %v9672 = vrot.slane %v9667, %v9671
      %v9673 = vlaneseq
      %v9674 = vshrl.u32 %v9673, 7
      %v9675 = vsub.s32 1, %v9674
      %v9676 = vrot.slane %v9667, %v9675
      %v9679 = vadd.f32 %v9624, %v9672
      %v9680 = vadd.f32 %v9638, %v9676
      %v9681 = vadd.f32 %v9652, %v9672
      %v9682 = vadd.f32 %v9666, %v9676
      %v9683 = vmax.f32 %v9679, 0.0
      %v9684 = vmax.f32 %v9680, 0.0
      %v9685 = vmax.f32 %v9681, 0.0
      %v9686 = vmax.f32 %v9682, 0.0
      %v9687 = vld [vmem:[%s12] sm:$0xff]
      %v9688 = vld [vmem:[%s12 + $0x8] sm:$0xff]
      %v9689 = vld [vmem:[%s12 + $0x10] sm:$0xff]
      %v9690 = vld [vmem:[%s12 + $0x18] sm:$0xff]
      %v9691 = vld [vmem:[%s12 + $0x20] sm:$0xff]
      %v9692 = vld [vmem:[%s12 + $0x28] sm:$0xff]
      %v9693 = vld [vmem:[%s12 + $0x30] sm:$0xff]
      %v9694 = vld [vmem:[%s12 + $0x38] sm:$0xff]
      %v9695 = vld [vmem:[%s12 + $0x40] sm:$0xff]
      %v9696 = vld [vmem:[%s12 + $0x48] sm:$0xff]
      %v9697 = vld [vmem:[%s12 + $0x50] sm:$0xff]
      %v9698 = vld [vmem:[%s12 + $0x58] sm:$0xff]
      %v9699 = vld [vmem:[%s12 + $0x60] sm:$0xff]
      %v9700 = vld [vmem:[%s12 + $0x68] sm:$0xff]
      %v9701 = vld [vmem:[%s12 + $0x70] sm:$0xff]
      %v9702 = vld [vmem:[%s12 + $0x78] sm:$0xff]
      %v9703 = vld [vmem:[%s12 + $0x80] sm:$0xff]
      %v9704 = vld [vmem:[%s12 + $0x88] sm:$0xff]
      %v9705 = vld [vmem:[%s12 + $0x90] sm:$0xff]
      %v9706 = vld [vmem:[%s12 + $0x98] sm:$0xff]
      %v9707 = vld [vmem:[%s12 + $0xa0] sm:$0xff]
      %v9708 = vld [vmem:[%s12 + $0xa8] sm:$0xff]
      %v9709 = vld [vmem:[%s12 + $0xb0] sm:$0xff]
      %v9710 = vld [vmem:[%s12 + $0xb8] sm:$0xff]
      %v9711 = vld [vmem:[%s12 + $0xc0] sm:$0xff]
      %v9712 = vld [vmem:[%s12 + $0xc8] sm:$0xff]
      %v9713 = vld [vmem:[%s12 + $0xd0] sm:$0xff]
      %v9714 = vld [vmem:[%s12 + $0xd8] sm:$0xff]
      %v9715 = vld [vmem:[%s12 + $0xe0] sm:$0xff]
      %v9716 = vld [vmem:[%s12 + $0xe8] sm:$0xff]
      %v9717 = vld [vmem:[%s12 + $0xf0] sm:$0xff]
      %v9718 = vld [vmem:[%s12 + $0xf8] sm:$0xff]
      %v9719 = vld [vmem:[#allocation3] sm:$0x1]
      %v9721 = vlaneseq
      %v9722 = vshrl.u32 %v9721, 7
      %v9723 = vsub.s32 0, %v9722
      %v9724 = vrot.slane %v9719, %v9723
      %v9730 = vrot.slane %v9685, 7
      %vm9731 = vcmask 1041409
      %v9732 = vsel %vm9731, %v9730, %v9683
      %v9733 = vrot.slane %v9686, 7
      %v9734 = vsel %vm9731, %v9733, %v9684
      %9737 = vmatprep.subr.mxu0 0.0
      %9738 = vmatpush1.msra.mxu0 %v9702
      %9739 = vmatprep.subr.mxu0 0.0
      %9740 = vmatpush1.msra.mxu0 %v9701
      %9741 = vmatprep.subr.mxu0 0.0
      %9742 = vmatpush1.msra.mxu0 %v9700
      %9743 = vmatprep.subr.mxu0 0.0
      %9744 = vmatpush1.msra.mxu0 %v9699
      %9745 = vmatprep.subr.mxu0 0.0
      %9746 = vmatpush1.msra.mxu0 %v9698
      %9747 = vmatprep.subr.mxu0 0.0
      %9748 = vmatpush1.msra.mxu0 %v9697
      %9749 = vmatprep.subr.mxu0 0.0
      %9750 = vmatpush1.msra.mxu0 %v9696
      %9751 = vmatprep.subr.mxu0 0.0
      %9752 = vmatpush1.msra.mxu0 %v9695
      %9753 = vmatprep.subr.mxu0 0.0
      %9754 = vmatpush1.msra.mxu0 %v9694
      %9755 = vmatprep.subr.mxu0 0.0
      %9756 = vmatpush1.msra.mxu0 %v9693
      %9757 = vmatprep.subr.mxu0 0.0
      %9758 = vmatpush1.msra.mxu0 %v9692
      %9759 = vmatprep.subr.mxu0 0.0
      %9760 = vmatpush1.msra.mxu0 %v9691
      %9761 = vmatprep.subr.mxu0 0.0
      %9762 = vmatpush1.msra.mxu0 %v9690
      %9763 = vmatprep.subr.mxu0 0.0
      %9764 = vmatpush1.msra.mxu0 %v9689
      %9765 = vmatprep.subr.mxu0 0.0
      %9766 = vmatpush1.msra.mxu0 %v9688
      %9767 = vmatprep.subr.mxu0 0.0
      %9768 = vmatpush1.msra.mxu0 %v9687
      %9769 = vmatprep.subr.mxu0 0.0
      %9770 = vmatpush2.msra.mxu0 %v9718
      %9771 = vmatprep.subr.mxu0 0.0
      %9772 = vmatpush2.msra.mxu0 %v9717
      %9773 = vmatprep.subr.mxu0 0.0
      %9774 = vmatpush2.msra.mxu0 %v9716
      %9775 = vmatprep.subr.mxu0 0.0
      %9776 = vmatpush2.msra.mxu0 %v9715
      %9777 = vmatprep.subr.mxu0 0.0
      %9778 = vmatpush2.msra.mxu0 %v9714
      %9779 = vmatprep.subr.mxu0 0.0
      %9780 = vmatpush2.msra.mxu0 %v9713
      %9781 = vmatprep.subr.mxu0 0.0
      %9782 = vmatpush2.msra.mxu0 %v9712
      %9783 = vmatprep.subr.mxu0 0.0
      %9784 = vmatpush2.msra.mxu0 %v9711
      %9785 = vmatprep.subr.mxu0 0.0
      %9786 = vmatpush2.msra.mxu0 %v9710
      %9787 = vmatprep.subr.mxu0 0.0
      %9788 = vmatpush2.msra.mxu0 %v9709
      %9789 = vmatprep.subr.mxu0 0.0
      %9790 = vmatpush2.msra.mxu0 %v9708
      %9791 = vmatprep.subr.mxu0 0.0
      %9792 = vmatpush2.msra.mxu0 %v9707
      %9793 = vmatprep.subr.mxu0 0.0
      %9794 = vmatpush2.msra.mxu0 %v9706
      %9795 = vmatprep.subr.mxu0 0.0
      %9796 = vmatpush2.msra.mxu0 %v9705
      %9797 = vmatprep.subr.mxu0 0.0
      %9798 = vmatpush2.msra.mxu0 %v9704
      %9799 = vmatprep.subr.mxu0 0.0
      %9800 = vmatpush2.msra.mxu0 %v9703
      %9801 = vmatprep.mubr.f32.mxu0 %v9734
      %9802 = vmatmul.mubr.f32.gmra.mxu0 %v9732
      %v9803 = vpop.f32.mrf.mxu0
      %v9804 = vadd.f32 %v9724, %v9803
      %v9805 = vpop.f32.mrf.mxu0
      %9806 = vdwg.mxu0
      %v9807 = vtanh.pop %v9804
      %v9808 = vlaneseq
      %v9809 = vand.u32 %v9808, 127
      %vm9810 = vcmp.eq.s32.totalorder %v9809, 7
      %v9811 = vsel %vm9810, 1, 0
      %v9812 = vcvt.s32.f32 %v9811
      %9814 = vset.pattern.permute.xlu0 0
      %9815 = vperm.xlu0 %9814, %v9807
      %v9816 = vpop.permute.xlu0 %9815
      %v9818 = vmul.f32 %v9816, %v9812
      %v9820 = vrot.slane %v9818, 1
      %v9823 = vadd.f32 %v9483, %v9818
      %v9824 = vadd.f32 %v9484, %v9820
      %v9827 = vrot.slane %v9824, 7
      %v9828 = vsel %vm9731, %v9827, %v9823
      %9830 = vst [vmem:[%s491] sm:$0x3] %v9828
      %p9831 = scmp.lt.s32.totalorder %s27, 2
      %s9832 = scalar_select %p9831, %s27, 2
      %s9833 = smul.addr %s9832, 2
      %s9834 = scalar_lea.vmem %s14, %s9833
      // Predicated region
      $region77: #{alpha_connect4_forward.1} parent=75 // pred_check
        %p9835 = pneg %p349
      $region78: #{alpha_connect4_forward.1} parent=75 // pred_check_branch
        %9837 = sbr.rel (%p9835) target = $region80
      $region79: #{alpha_connect4_forward.1} parent=75 // pred_region
        _
      $region80: #{alpha_connect4_forward.1} parent=75 // pred_fallthru
        _
    $region76: #{alpha_connect4_forward.1} parent=5 // pred_fallthru
      _
    %p9838 = scmp.le.s32.totalorder 2, %s22
    // Predicated region
    $region81: #{alpha_connect4_forward.1} parent=5 // pred_check
      %p9839 = pneg %p9838
    $region82: #{alpha_connect4_forward.1} parent=5 // pred_check_branch
      %9841 = sbr.rel (%p9839) target = $region84
    $region83: #{alpha_connect4_forward.1} parent=5 // pred_region
      %s9842 = ssub.s32 %s22, 2
      // Predicated region
      $region85: #{alpha_connect4_forward.1} parent=83 // pred_check
        %p9843 = pneg %p355
      $region86: #{alpha_connect4_forward.1} parent=83 // pred_check_branch
        %9845 = sbr.rel (%p9843) target = $region88
      $region87: #{alpha_connect4_forward.1} parent=83 // pred_region
        %p9846 = scmp.lt.s32.totalorder %s28, 2
        %s9847 = scalar_select %p9846, %s28, 2
        %s9848 = smul.addr %s9847, 2
        %s9849 = scalar_lea.vmem %s14, %s9848
      $region88: #{alpha_connect4_forward.1} parent=83 // pred_fallthru
        _
    $region84: #{alpha_connect4_forward.1} parent=5 // pred_fallthru
      _
  $region6: #{alpha_connect4_forward.1} parent=0 // loop_footer
    %s26 = sadd.s32 1, %s22
  $region7: #{alpha_connect4_forward.1} parent=0 // loop_footer_branch
    %21 = sbr.rel target = $region3
  $region8: #{alpha_connect4_forward.1} parent=0 // loop_exit
    _

</llo_original>
